<compile_context>
chip_gen: v5e
topology: v5e:2x2
jax: 0.10.0
libtpu: 0.0.40
codegen_flags: <defaults>
</compile_context>

<pallas_src>
import jax
import jax.numpy as jnp
from jax import lax
from jax.experimental import pallas as pl
from jax.experimental.pallas import tpu as pltpu

# ---- model / problem sizes (small, consistent with the module) --------------
IN_CHANNELS = 4            # in_channels
HIDDEN = 32                # hidden_dim
NUM_LAYERS = 2             # num_layers
D8 = HIDDEN // 8           # query/key channels (in_channels // 8 of the attn block)
D8_PAD = ((D8 + 7) // 8) * 8   # q/k rows zero-padded to a sublane (8-row) boundary
B = 2
H = W = 16
HW = H * W
QBLK = 64                  # query-row block: (QBLK, HW) f32 tile = 16 vregs (no spill)
QKV_ROWS = 2 * D8_PAD + HIDDEN + 1   # q_pad | k_pad | v (gamma-scaled) | ones-row


def image_transformer_kernel(x_ref, wc_ref, bc_ref, wqkv_ref, bqkv_ref,
                             wfc_ref, bfc_ref, out_ref, h_ref):
    bb, cin, hw = x_ref.shape
    hidden = wc_ref.shape[0]
    num_layers = wqkv_ref.shape[0]
    d8p = (wqkv_ref.shape[1] - 1 - hidden) // 2          # padded q/k row count (8)
    qblk = QBLK if hw % QBLK == 0 else hw

    for bi in range(bb):                                  # static unroll (bb <= 2)
        x = x_ref[bi]                                                     # (Cin, HW)

        # stem 1x1 conv, channel-major: (HIDDEN, Cin) @ (Cin, HW) + b
        h_ref[...] = (jnp.dot(wc_ref[...], x, preferred_element_type=jnp.float32)
                      + bc_ref[...])

        for l in range(num_layers):
            # fused q|k|v|ones projection: one MXU matmul + one bias add.
            # All row slices below start on 8-row boundaries (zero-cost views).
            qkv = (jnp.dot(wqkv_ref[l], h_ref[...],
                           preferred_element_type=jnp.float32)
                   + bqkv_ref[l])                                         # (49, HW)
            q = qkv[0:d8p]                                 # (8, HW), rows d8..7 are 0
            k = qkv[d8p:2 * d8p]                           # (8, HW), rows d8..7 are 0
            v_ext = qkv[2 * d8p:]                          # (HIDDEN+1, HW), last row == 1
            # (gamma is already folded into the v rows by the wrapper.)

            # attention, blocked over query rows to bound vreg pressure
            for qc in range(hw // qblk):
                qs = qc * qblk
                q_c = q[:, qs:qs + qblk]                                  # (8, QBLK)
                # scores: contract the channel axis directly (no transpose);
                # the zero pad rows contribute nothing.
                s = lax.dot_general(q_c, k, (((0,), (0,)), ((), ())),
                                    preferred_element_type=jnp.float32)   # (QBLK, HW)
                e = jnp.exp(s - jnp.max(s, axis=-1, keepdims=True))       # (QBLK, HW)
                # value @ e^T; the appended ones-row yields the softmax row sums.
                o_ext = lax.dot_general(v_ext, e, (((1,), (1,)), ((), ())),
                                        preferred_element_type=jnp.float32)  # (HIDDEN+1, QBLK)
                attn = o_ext[:hidden] * pl.reciprocal(o_ext[hidden:], approx=True)
                # residual (gamma already applied via the fused weights)
                h_ref[:, qs:qs + qblk] = attn + h_ref[:, qs:qs + qblk]

        # torch.mean(x, dim=(2,3)) -> mean over tokens (lane reduction)
        pooled = jnp.mean(h_ref[...], axis=1, keepdims=True)              # (HIDDEN, 1)

        # fc: Linear(hidden_dim, in_channels): pooled^T @ Wfc + b
        out_ref[bi] = (jnp.sum(pooled * wfc_ref[...], axis=0, keepdims=True)
                       + bfc_ref[...])                                    # (1, Cin)


def _select_config(batch, device_kind=None):
    """v7x (2 TensorCores): 1 batch element per grid step, CORE_PARALLEL so the
    batch axis is guaranteed to split across cores.  Single-TC v5e/v6e: fold the
    whole batch into one grid step (latency-bound kernel, avoid per-step cost).
    Pass device_kind explicitly for AOT / multi-backend setups."""
    if device_kind is None:
        try:
            device_kind = jax.devices()[0].device_kind
        except Exception:
            device_kind = ""
    device_kind = device_kind.lower()
    if "v7" in device_kind:
        return 1, (pltpu.CORE_PARALLEL,)
    return batch, ("arbitrary",)


def build_image_transformer(batch, cin, hh, ww, *, device_kind=None):
    """Builds and jits the forward for fixed shapes.  Call once; reuse."""
    hw = hh * ww
    bb, dim_sem = _select_config(batch, device_kind)

    call = pl.pallas_call(
        image_transformer_kernel,
        out_shape=jax.ShapeDtypeStruct((batch, 1, cin), jnp.float32),
        grid=(batch // bb,),
        in_specs=[
            pl.BlockSpec((bb, cin, hw), lambda i: (i, 0, 0)),             # x (channel-major)
            pl.BlockSpec((HIDDEN, cin), lambda i: (0, 0)),                # stem conv W
            pl.BlockSpec((HIDDEN, 1), lambda i: (0, 0)),                  # stem conv b
            pl.BlockSpec((NUM_LAYERS, QKV_ROWS, HIDDEN),
                         lambda i: (0, 0, 0)),                            # fused Wqkv (+pad+ones)
            pl.BlockSpec((NUM_LAYERS, QKV_ROWS, 1), lambda i: (0, 0, 0)), # fused bqkv (+pad+1)
            pl.BlockSpec((HIDDEN, cin), lambda i: (0, 0)),                # fc W
            pl.BlockSpec((1, cin), lambda i: (0, 0)),                     # fc b
        ],
        out_specs=pl.BlockSpec((bb, 1, cin), lambda i: (i, 0, 0)),
        scratch_shapes=[pltpu.VMEM((HIDDEN, hw), jnp.float32)],           # resident h
        compiler_params=pltpu.CompilerParams(dimension_semantics=dim_sem),
    )

    @jax.jit
    def forward(x_nchw, fused):
        wc, bc_col, wqkv, bqkv, wfc, bfc_row = fused
        # channel-major tokens: exactly torch's .view(B, C, H*W) -- no transpose
        x_cm = x_nchw.reshape(batch, cin, hw)
        out = call(x_cm, wc, bc_col, wqkv, bqkv, wfc, bfc_row)
        return out[:, 0, :]                                               # (B, Cin)

    return forward


def prepare_fused_params(params):
    """Precompute fused / padded kernel operands ONCE (outside the call path).

    - q/k weight rows are zero-padded to 8-row (sublane) boundaries so every
      in-kernel slice of the fused projection output is tile-aligned.
    - gamma is folded into the value projection (exact: gamma is a constant at
      call time).  The appended all-ones row (softmax normalizer) is NOT scaled.
    """
    (wc, bc, wq, bq, wk, bk, wv, bv, gamma, wfc, bfc) = params
    L, d8, hidden = wq.shape
    d8_pad = ((d8 + 7) // 8) * 8
    pad_w = jnp.zeros((L, d8_pad - d8, hidden), jnp.float32)
    pad_b = jnp.zeros((L, d8_pad - d8), jnp.float32)
    wv_g = wv * gamma[:, None, None]
    bv_g = bv * gamma[:, None]
    ones_w = jnp.zeros((L, 1, hidden), jnp.float32)   # zero weights ...
    ones_b = jnp.ones((L, 1), jnp.float32)            # ... + bias 1 => constant-1 row
    wqkv = jnp.concatenate([wq, pad_w, wk, pad_w, wv_g, ones_w], axis=1)  # (L, 49, HIDDEN)
    bqkv = jnp.concatenate([bq, pad_b, bk, pad_b, bv_g, ones_b], axis=1)[..., None]
    return (wc, bc.reshape(hidden, 1), wqkv, bqkv, wfc, bfc.reshape(1, -1))


def reference_forward(x_nchw, params):
    """Pure-JAX reference of the PyTorch forward (channel-major, like torch)."""
    (wc, bc, wq, bq, wk, bk, wv, bv, gamma, wfc, bfc) = params
    b, cin, hh, ww = x_nchw.shape
    x = x_nchw.reshape(b, cin, hh * ww)                                   # (B, C, HW)
    h = jnp.einsum("oc,bct->bot", wc, x) + bc[None, :, None]
    for l in range(NUM_LAYERS):
        q = jnp.einsum("dc,bct->bdt", wq[l], h) + bq[l][None, :, None]    # (B, D8, HW)
        k = jnp.einsum("dc,bct->bdt", wk[l], h) + bk[l][None, :, None]
        v = jnp.einsum("oc,bct->bot", wv[l], h) + bv[l][None, :, None]    # (B, HIDDEN, HW)
        s = jnp.einsum("bdi,bdj->bij", q, k)        # bmm(query, key), query=(B,HW,D8)
        a = jax.nn.softmax(s, axis=-1)
        attn = jnp.einsum("bcj,bij->bci", v, a)     # bmm(value, attn^T)
        h = gamma[l] * attn + h
    pooled = jnp.mean(h, axis=2)                                          # (B, HIDDEN)
    return pooled @ wfc + bfc


def make_params(key):
    ks = jax.random.split(key, 10)
    s = 0.1
    wc = s * jax.random.normal(ks[0], (HIDDEN, IN_CHANNELS), jnp.float32)
    bc = s * jax.random.normal(ks[1], (HIDDEN,), jnp.float32)
    wq = s * jax.random.normal(ks[2], (NUM_LAYERS, D8, HIDDEN), jnp.float32)
    bq = s * jax.random.normal(ks[3], (NUM_LAYERS, D8), jnp.float32)
    wk = s * jax.random.normal(ks[4], (NUM_LAYERS, D8, HIDDEN), jnp.float32)
    bk = s * jax.random.normal(ks[5], (NUM_LAYERS, D8), jnp.float32)
    wv = s * jax.random.normal(ks[6], (NUM_LAYERS, HIDDEN, HIDDEN), jnp.float32)
    bv = s * jax.random.normal(ks[7], (NUM_LAYERS, HIDDEN), jnp.float32)
    # PyTorch init is torch.zeros(1); use small nonzero values so the
    # attention path is actually exercised numerically (still deterministic).
    # A drop-in for a trained module must use the real learned gamma.
    gamma = jnp.array([0.1, 0.2], jnp.float32)[:NUM_LAYERS]
    wfc = s * jax.random.normal(ks[8], (HIDDEN, IN_CHANNELS), jnp.float32)
    bfc = s * jax.random.normal(ks[9], (IN_CHANNELS,), jnp.float32)
    return (wc, bc, wq, bq, wk, bk, wv, bv, gamma, wfc, bfc)


if __name__ == "__main__":
    key = jax.random.PRNGKey(0)
    kx, kp = jax.random.split(key)
    x = jax.random.normal(kx, (B, IN_CHANNELS, H, W), jnp.float32)   # NCHW, like PyTorch
    params = make_params(kp)

    fused = prepare_fused_params(params)                 # once, outside the hot path
    forward = build_image_transformer(B, IN_CHANNELS, H, W)

    out = forward(x, fused)
    out = jax.block_until_ready(out)

    ref = reference_forward(x, params)
    assert out.shape == (B, IN_CHANNELS), out.shape
    assert jnp.allclose(out, ref, rtol=1e-4, atol=1e-4), (out, ref)

    print("KERNEL_OK")
</pallas_src>

<mosaic_0001>
module attributes {stable_mosaic.version = 11 : i64} {
  func.func @image_transformer_kernel(%arg0: i32, %arg1: memref<2x4x256xf32, #tpu.memory_space<vmem>>, %arg2: memref<32x4xf32, #tpu.memory_space<vmem>>, %arg3: memref<32x1xf32, #tpu.memory_space<vmem>>, %arg4: memref<2x49x32xf32, #tpu.memory_space<vmem>>, %arg5: memref<2x49x1xf32, #tpu.memory_space<vmem>>, %arg6: memref<32x4xf32, #tpu.memory_space<vmem>>, %arg7: memref<1x4xf32, #tpu.memory_space<vmem>>, %arg8: memref<2x1x4xf32, #tpu.memory_space<vmem>>, %arg9: memref<32x256xf32, #tpu.memory_space<vmem>>) attributes {dimension_semantics = [#tpu.dimension_semantics<arbitrary>], iteration_bounds = array<i64: 1>, scalar_prefetch = 0 : i64, scratch_operands = 1 : i64, tpu.core_type = #tpu.core_type<tc>, window_params = [{transform_indices = @transform_0, window_bounds = array<i64: 2, 4, 256>}, {pipeline_mode = #tpu.pipeline_mode<synchronous>, transform_indices = @transform_1, window_bounds = array<i64: 32, 4>}, {pipeline_mode = #tpu.pipeline_mode<synchronous>, transform_indices = @transform_2, window_bounds = array<i64: 32, 1>}, {pipeline_mode = #tpu.pipeline_mode<synchronous>, transform_indices = @transform_3, window_bounds = array<i64: 2, 49, 32>}, {pipeline_mode = #tpu.pipeline_mode<synchronous>, transform_indices = @transform_4, window_bounds = array<i64: 2, 49, 1>}, {pipeline_mode = #tpu.pipeline_mode<synchronous>, transform_indices = @transform_5, window_bounds = array<i64: 32, 4>}, {pipeline_mode = #tpu.pipeline_mode<synchronous>, transform_indices = @transform_6, window_bounds = array<i64: 1, 4>}, {transform_indices = @transform_7, window_bounds = array<i64: 2, 1, 4>}]} {
    %c0 = arith.constant 0 : index
    %c0_0 = arith.constant 0 : index
    %c0_1 = arith.constant 0 : index
    %0 = vector.load %arg1[%c0, %c0_0, %c0_1] : memref<2x4x256xf32, #tpu.memory_space<vmem>>, vector<1x4x256xf32>
    %1 = vector.shape_cast %0 : vector<1x4x256xf32> to vector<4x256xf32>
    %c0_2 = arith.constant 0 : index
    %c0_3 = arith.constant 0 : index
    %2 = vector.load %arg2[%c0_2, %c0_3] : memref<32x4xf32, #tpu.memory_space<vmem>>, vector<32x4xf32>
    %cst = arith.constant dense<0.000000e+00> : vector<32x256xf32>
    %3 = tpu.matmul %2, %1, %cst {dimension_numbers = #tpu.dot_dimension_numbers<[1], [0], [0], [1], [0, 0, 1, 1], [], []>} : vector<32x4xf32>, vector<4x256xf32>, vector<32x256xf32> -> vector<32x256xf32>
    %c0_4 = arith.constant 0 : index
    %c0_5 = arith.constant 0 : index
    %4 = vector.load %arg3[%c0_4, %c0_5] : memref<32x1xf32, #tpu.memory_space<vmem>>, vector<32x1xf32>
    %5 = vector.broadcast %4 : vector<32x1xf32> to vector<32x256xf32>
    %6 = arith.addf %3, %5 : vector<32x256xf32>
    %c0_6 = arith.constant 0 : index
    %c0_7 = arith.constant 0 : index
    %7 = vector.load %arg9[%c0_6, %c0_7] : memref<32x256xf32, #tpu.memory_space<vmem>>, vector<32x256xf32>
    tpu.vector_store %arg9[%c0_6, %c0_7], %6 {strides = array<i32>} : memref<32x256xf32, #tpu.memory_space<vmem>>, vector<32x256xf32>,
    %c0_8 = arith.constant 0 : index
    %c0_9 = arith.constant 0 : index
    %c0_10 = arith.constant 0 : index
    %8 = vector.load %arg4[%c0_8, %c0_9, %c0_10] : memref<2x49x32xf32, #tpu.memory_space<vmem>>, vector<1x49x32xf32>
    %9 = vector.shape_cast %8 : vector<1x49x32xf32> to vector<49x32xf32>
    %c0_11 = arith.constant 0 : index
    %c0_12 = arith.constant 0 : index
    %10 = vector.load %arg9[%c0_11, %c0_12] : memref<32x256xf32, #tpu.memory_space<vmem>>, vector<32x256xf32>
    %cst_13 = arith.constant dense<0.000000e+00> : vector<49x256xf32>
    %11 = tpu.matmul %9, %10, %cst_13 {dimension_numbers = #tpu.dot_dimension_numbers<[1], [0], [0], [1], [0, 0, 1, 1], [], []>} : vector<49x32xf32>, vector<32x256xf32>, vector<49x256xf32> -> vector<49x256xf32>
    %c0_14 = arith.constant 0 : index
    %c0_15 = arith.constant 0 : index
    %c0_16 = arith.constant 0 : index
    %12 = vector.load %arg5[%c0_14, %c0_15, %c0_16] : memref<2x49x1xf32, #tpu.memory_space<vmem>>, vector<1x49x1xf32>
    %13 = vector.shape_cast %12 : vector<1x49x1xf32> to vector<49x1xf32>
    %14 = vector.broadcast %13 : vector<49x1xf32> to vector<49x256xf32>
    %15 = arith.addf %11, %14 : vector<49x256xf32>
    %16 = vector.extract_strided_slice %15 {offsets = [0, 0], sizes = [8, 256], strides = [1, 1]} : vector<49x256xf32> to vector<8x256xf32>
    %17 = vector.extract_strided_slice %15 {offsets = [8, 0], sizes = [8, 256], strides = [1, 1]} : vector<49x256xf32> to vector<8x256xf32>
    %18 = vector.extract_strided_slice %15 {offsets = [16, 0], sizes = [33, 256], strides = [1, 1]} : vector<49x256xf32> to vector<33x256xf32>
    %19 = vector.extract_strided_slice %16 {offsets = [0, 0], sizes = [8, 64], strides = [1, 1]} : vector<8x256xf32> to vector<8x64xf32>
    %cst_17 = arith.constant dense<0.000000e+00> : vector<64x256xf32>
    %20 = tpu.matmul %19, %17, %cst_17 {dimension_numbers = #tpu.dot_dimension_numbers<[0], [0], [1], [1], [0, 1, 1, 1], [], []>} : vector<8x64xf32>, vector<8x256xf32>, vector<64x256xf32> -> vector<64x256xf32>
    %cst_18 = arith.constant dense<0xFF800000> : vector<64xf32>
    %21 = vector.multi_reduction <maximumf>, %20, %cst_18 [1] : vector<64x256xf32> to vector<64xf32>
    %22 = vector.shape_cast %21 : vector<64xf32> to vector<64x1xf32>
    %23 = vector.broadcast %22 : vector<64x1xf32> to vector<64x256xf32>
    %24 = arith.subf %20, %23 : vector<64x256xf32>
    %25 = math.exp %24 : vector<64x256xf32>
    %cst_19 = arith.constant dense<0.000000e+00> : vector<33x64xf32>
    %26 = tpu.matmul %18, %25, %cst_19 {dimension_numbers = #tpu.dot_dimension_numbers<[1], [1], [0], [0], [0, 0, 1, 0], [], []>} : vector<33x256xf32>, vector<64x256xf32>, vector<33x64xf32> -> vector<33x64xf32>
    %27 = vector.extract_strided_slice %26 {offsets = [0, 0], sizes = [32, 64], strides = [1, 1]} : vector<33x64xf32> to vector<32x64xf32>
    %28 = vector.extract_strided_slice %26 {offsets = [32, 0], sizes = [1, 64], strides = [1, 1]} : vector<33x64xf32> to vector<1x64xf32>
    %29 = tpu.reciprocal %28 {approx = true} : vector<1x64xf32> -> vector<1x64xf32>
    %30 = vector.broadcast %29 : vector<1x64xf32> to vector<32x64xf32>
    %31 = arith.mulf %27, %30 : vector<32x64xf32>
    %c0_20 = arith.constant 0 : index
    %c0_21 = arith.constant 0 : index
    %32 = vector.load %arg9[%c0_20, %c0_21] : memref<32x256xf32, #tpu.memory_space<vmem>>, vector<32x64xf32>
    %33 = arith.addf %31, %32 : vector<32x64xf32>
    %c0_22 = arith.constant 0 : index
    %c0_23 = arith.constant 0 : index
    %34 = vector.load %arg9[%c0_22, %c0_23] : memref<32x256xf32, #tpu.memory_space<vmem>>, vector<32x64xf32>
    tpu.vector_store %arg9[%c0_22, %c0_23], %33 {strides = array<i32>} : memref<32x256xf32, #tpu.memory_space<vmem>>, vector<32x64xf32>,
    %35 = vector.extract_strided_slice %16 {offsets = [0, 64], sizes = [8, 64], strides = [1, 1]} : vector<8x256xf32> to vector<8x64xf32>
    %cst_24 = arith.constant dense<0.000000e+00> : vector<64x256xf32>
    %36 = tpu.matmul %35, %17, %cst_24 {dimension_numbers = #tpu.dot_dimension_numbers<[0], [0], [1], [1], [0, 1, 1, 1], [], []>} : vector<8x64xf32>, vector<8x256xf32>, vector<64x256xf32> -> vector<64x256xf32>
    %cst_25 = arith.constant dense<0xFF800000> : vector<64xf32>
    %37 = vector.multi_reduction <maximumf>, %36, %cst_25 [1] : vector<64x256xf32> to vector<64xf32>
    %38 = vector.shape_cast %37 : vector<64xf32> to vector<64x1xf32>
    %39 = vector.broadcast %38 : vector<64x1xf32> to vector<64x256xf32>
    %40 = arith.subf %36, %39 : vector<64x256xf32>
    %41 = math.exp %40 : vector<64x256xf32>
    %cst_26 = arith.constant dense<0.000000e+00> : vector<33x64xf32>
    %42 = tpu.matmul %18, %41, %cst_26 {dimension_numbers = #tpu.dot_dimension_numbers<[1], [1], [0], [0], [0, 0, 1, 0], [], []>} : vector<33x256xf32>, vector<64x256xf32>, vector<33x64xf32> -> vector<33x64xf32>
    %43 = vector.extract_strided_slice %42 {offsets = [0, 0], sizes = [32, 64], strides = [1, 1]} : vector<33x64xf32> to vector<32x64xf32>
    %44 = vector.extract_strided_slice %42 {offsets = [32, 0], sizes = [1, 64], strides = [1, 1]} : vector<33x64xf32> to vector<1x64xf32>
    %45 = tpu.reciprocal %44 {approx = true} : vector<1x64xf32> -> vector<1x64xf32>
    %46 = vector.broadcast %45 : vector<1x64xf32> to vector<32x64xf32>
    %47 = arith.mulf %43, %46 : vector<32x64xf32>
    %c0_27 = arith.constant 0 : index
    %c64 = arith.constant 64 : index
    %48 = vector.load %arg9[%c0_27, %c64] : memref<32x256xf32, #tpu.memory_space<vmem>>, vector<32x64xf32>
    %49 = arith.addf %47, %48 : vector<32x64xf32>
    %c0_28 = arith.constant 0 : index
    %c64_29 = arith.constant 64 : index
    %50 = vector.load %arg9[%c0_28, %c64_29] : memref<32x256xf32, #tpu.memory_space<vmem>>, vector<32x64xf32>
    tpu.vector_store %arg9[%c0_28, %c64_29], %49 {strides = array<i32>} : memref<32x256xf32, #tpu.memory_space<vmem>>, vector<32x64xf32>,
    %51 = vector.extract_strided_slice %16 {offsets = [0, 128], sizes = [8, 64], strides = [1, 1]} : vector<8x256xf32> to vector<8x64xf32>
    %cst_30 = arith.constant dense<0.000000e+00> : vector<64x256xf32>
    %52 = tpu.matmul %51, %17, %cst_30 {dimension_numbers = #tpu.dot_dimension_numbers<[0], [0], [1], [1], [0, 1, 1, 1], [], []>} : vector<8x64xf32>, vector<8x256xf32>, vector<64x256xf32> -> vector<64x256xf32>
    %cst_31 = arith.constant dense<0xFF800000> : vector<64xf32>
    %53 = vector.multi_reduction <maximumf>, %52, %cst_31 [1] : vector<64x256xf32> to vector<64xf32>
    %54 = vector.shape_cast %53 : vector<64xf32> to vector<64x1xf32>
    %55 = vector.broadcast %54 : vector<64x1xf32> to vector<64x256xf32>
    %56 = arith.subf %52, %55 : vector<64x256xf32>
    %57 = math.exp %56 : vector<64x256xf32>
    %cst_32 = arith.constant dense<0.000000e+00> : vector<33x64xf32>
    %58 = tpu.matmul %18, %57, %cst_32 {dimension_numbers = #tpu.dot_dimension_numbers<[1], [1], [0], [0], [0, 0, 1, 0], [], []>} : vector<33x256xf32>, vector<64x256xf32>, vector<33x64xf32> -> vector<33x64xf32>
    %59 = vector.extract_strided_slice %58 {offsets = [0, 0], sizes = [32, 64], strides = [1, 1]} : vector<33x64xf32> to vector<32x64xf32>
    %60 = vector.extract_strided_slice %58 {offsets = [32, 0], sizes = [1, 64], strides = [1, 1]} : vector<33x64xf32> to vector<1x64xf32>
    %61 = tpu.reciprocal %60 {approx = true} : vector<1x64xf32> -> vector<1x64xf32>
    %62 = vector.broadcast %61 : vector<1x64xf32> to vector<32x64xf32>
    %63 = arith.mulf %59, %62 : vector<32x64xf32>
    %c0_33 = arith.constant 0 : index
    %c128 = arith.constant 128 : index
    %64 = vector.load %arg9[%c0_33, %c128] : memref<32x256xf32, #tpu.memory_space<vmem>>, vector<32x64xf32>
    %65 = arith.addf %63, %64 : vector<32x64xf32>
    %c0_34 = arith.constant 0 : index
    %c128_35 = arith.constant 128 : index
    %66 = vector.load %arg9[%c0_34, %c128_35] : memref<32x256xf32, #tpu.memory_space<vmem>>, vector<32x64xf32>
    tpu.vector_store %arg9[%c0_34, %c128_35], %65 {strides = array<i32>} : memref<32x256xf32, #tpu.memory_space<vmem>>, vector<32x64xf32>,
    %67 = vector.extract_strided_slice %16 {offsets = [0, 192], sizes = [8, 64], strides = [1, 1]} : vector<8x256xf32> to vector<8x64xf32>
    %cst_36 = arith.constant dense<0.000000e+00> : vector<64x256xf32>
    %68 = tpu.matmul %67, %17, %cst_36 {dimension_numbers = #tpu.dot_dimension_numbers<[0], [0], [1], [1], [0, 1, 1, 1], [], []>} : vector<8x64xf32>, vector<8x256xf32>, vector<64x256xf32> -> vector<64x256xf32>
    %cst_37 = arith.constant dense<0xFF800000> : vector<64xf32>
    %69 = vector.multi_reduction <maximumf>, %68, %cst_37 [1] : vector<64x256xf32> to vector<64xf32>
    %70 = vector.shape_cast %69 : vector<64xf32> to vector<64x1xf32>
    %71 = vector.broadcast %70 : vector<64x1xf32> to vector<64x256xf32>
    %72 = arith.subf %68, %71 : vector<64x256xf32>
    %73 = math.exp %72 : vector<64x256xf32>
    %cst_38 = arith.constant dense<0.000000e+00> : vector<33x64xf32>
    %74 = tpu.matmul %18, %73, %cst_38 {dimension_numbers = #tpu.dot_dimension_numbers<[1], [1], [0], [0], [0, 0, 1, 0], [], []>} : vector<33x256xf32>, vector<64x256xf32>, vector<33x64xf32> -> vector<33x64xf32>
    %75 = vector.extract_strided_slice %74 {offsets = [0, 0], sizes = [32, 64], strides = [1, 1]} : vector<33x64xf32> to vector<32x64xf32>
    %76 = vector.extract_strided_slice %74 {offsets = [32, 0], sizes = [1, 64], strides = [1, 1]} : vector<33x64xf32> to vector<1x64xf32>
    %77 = tpu.reciprocal %76 {approx = true} : vector<1x64xf32> -> vector<1x64xf32>
    %78 = vector.broadcast %77 : vector<1x64xf32> to vector<32x64xf32>
    %79 = arith.mulf %75, %78 : vector<32x64xf32>
    %c0_39 = arith.constant 0 : index
    %c192 = arith.constant 192 : index
    %80 = vector.load %arg9[%c0_39, %c192] : memref<32x256xf32, #tpu.memory_space<vmem>>, vector<32x64xf32>
    %81 = arith.addf %79, %80 : vector<32x64xf32>
    %c0_40 = arith.constant 0 : index
    %c192_41 = arith.constant 192 : index
    %82 = vector.load %arg9[%c0_40, %c192_41] : memref<32x256xf32, #tpu.memory_space<vmem>>, vector<32x64xf32>
    tpu.vector_store %arg9[%c0_40, %c192_41], %81 {strides = array<i32>} : memref<32x256xf32, #tpu.memory_space<vmem>>, vector<32x64xf32>,
    %c1 = arith.constant 1 : index
    %c0_42 = arith.constant 0 : index
    %c0_43 = arith.constant 0 : index
    %83 = vector.load %arg4[%c1, %c0_42, %c0_43] : memref<2x49x32xf32, #tpu.memory_space<vmem>>, vector<1x49x32xf32>
    %84 = vector.shape_cast %83 : vector<1x49x32xf32> to vector<49x32xf32>
    %c0_44 = arith.constant 0 : index
    %c0_45 = arith.constant 0 : index
    %85 = vector.load %arg9[%c0_44, %c0_45] : memref<32x256xf32, #tpu.memory_space<vmem>>, vector<32x256xf32>
    %cst_46 = arith.constant dense<0.000000e+00> : vector<49x256xf32>
    %86 = tpu.matmul %84, %85, %cst_46 {dimension_numbers = #tpu.dot_dimension_numbers<[1], [0], [0], [1], [0, 0, 1, 1], [], []>} : vector<49x32xf32>, vector<32x256xf32>, vector<49x256xf32> -> vector<49x256xf32>
    %c1_47 = arith.constant 1 : index
    %c0_48 = arith.constant 0 : index
    %c0_49 = arith.constant 0 : index
    %87 = vector.load %arg5[%c1_47, %c0_48, %c0_49] : memref<2x49x1xf32, #tpu.memory_space<vmem>>, vector<1x49x1xf32>
    %88 = vector.shape_cast %87 : vector<1x49x1xf32> to vector<49x1xf32>
    %89 = vector.broadcast %88 : vector<49x1xf32> to vector<49x256xf32>
    %90 = arith.addf %86, %89 : vector<49x256xf32>
    %91 = vector.extract_strided_slice %90 {offsets = [0, 0], sizes = [8, 256], strides = [1, 1]} : vector<49x256xf32> to vector<8x256xf32>
    %92 = vector.extract_strided_slice %90 {offsets = [8, 0], sizes = [8, 256], strides = [1, 1]} : vector<49x256xf32> to vector<8x256xf32>
    %93 = vector.extract_strided_slice %90 {offsets = [16, 0], sizes = [33, 256], strides = [1, 1]} : vector<49x256xf32> to vector<33x256xf32>
    %94 = vector.extract_strided_slice %91 {offsets = [0, 0], sizes = [8, 64], strides = [1, 1]} : vector<8x256xf32> to vector<8x64xf32>
    %cst_50 = arith.constant dense<0.000000e+00> : vector<64x256xf32>
    %95 = tpu.matmul %94, %92, %cst_50 {dimension_numbers = #tpu.dot_dimension_numbers<[0], [0], [1], [1], [0, 1, 1, 1], [], []>} : vector<8x64xf32>, vector<8x256xf32>, vector<64x256xf32> -> vector<64x256xf32>
    %cst_51 = arith.constant dense<0xFF800000> : vector<64xf32>
    %96 = vector.multi_reduction <maximumf>, %95, %cst_51 [1] : vector<64x256xf32> to vector<64xf32>
    %97 = vector.shape_cast %96 : vector<64xf32> to vector<64x1xf32>
    %98 = vector.broadcast %97 : vector<64x1xf32> to vector<64x256xf32>
    %99 = arith.subf %95, %98 : vector<64x256xf32>
    %100 = math.exp %99 : vector<64x256xf32>
    %cst_52 = arith.constant dense<0.000000e+00> : vector<33x64xf32>
    %101 = tpu.matmul %93, %100, %cst_52 {dimension_numbers = #tpu.dot_dimension_numbers<[1], [1], [0], [0], [0, 0, 1, 0], [], []>} : vector<33x256xf32>, vector<64x256xf32>, vector<33x64xf32> -> vector<33x64xf32>
    %102 = vector.extract_strided_slice %101 {offsets = [0, 0], sizes = [32, 64], strides = [1, 1]} : vector<33x64xf32> to vector<32x64xf32>
    %103 = vector.extract_strided_slice %101 {offsets = [32, 0], sizes = [1, 64], strides = [1, 1]} : vector<33x64xf32> to vector<1x64xf32>
    %104 = tpu.reciprocal %103 {approx = true} : vector<1x64xf32> -> vector<1x64xf32>
    %105 = vector.broadcast %104 : vector<1x64xf32> to vector<32x64xf32>
    %106 = arith.mulf %102, %105 : vector<32x64xf32>
    %c0_53 = arith.constant 0 : index
    %c0_54 = arith.constant 0 : index
    %107 = vector.load %arg9[%c0_53, %c0_54] : memref<32x256xf32, #tpu.memory_space<vmem>>, vector<32x64xf32>
    %108 = arith.addf %106, %107 : vector<32x64xf32>
    %c0_55 = arith.constant 0 : index
    %c0_56 = arith.constant 0 : index
    %109 = vector.load %arg9[%c0_55, %c0_56] : memref<32x256xf32, #tpu.memory_space<vmem>>, vector<32x64xf32>
    tpu.vector_store %arg9[%c0_55, %c0_56], %108 {strides = array<i32>} : memref<32x256xf32, #tpu.memory_space<vmem>>, vector<32x64xf32>,
    %110 = vector.extract_strided_slice %91 {offsets = [0, 64], sizes = [8, 64], strides = [1, 1]} : vector<8x256xf32> to vector<8x64xf32>
    %cst_57 = arith.constant dense<0.000000e+00> : vector<64x256xf32>
    %111 = tpu.matmul %110, %92, %cst_57 {dimension_numbers = #tpu.dot_dimension_numbers<[0], [0], [1], [1], [0, 1, 1, 1], [], []>} : vector<8x64xf32>, vector<8x256xf32>, vector<64x256xf32> -> vector<64x256xf32>
    %cst_58 = arith.constant dense<0xFF800000> : vector<64xf32>
    %112 = vector.multi_reduction <maximumf>, %111, %cst_58 [1] : vector<64x256xf32> to vector<64xf32>
    %113 = vector.shape_cast %112 : vector<64xf32> to vector<64x1xf32>
    %114 = vector.broadcast %113 : vector<64x1xf32> to vector<64x256xf32>
    %115 = arith.subf %111, %114 : vector<64x256xf32>
    %116 = math.exp %115 : vector<64x256xf32>
    %cst_59 = arith.constant dense<0.000000e+00> : vector<33x64xf32>
    %117 = tpu.matmul %93, %116, %cst_59 {dimension_numbers = #tpu.dot_dimension_numbers<[1], [1], [0], [0], [0, 0, 1, 0], [], []>} : vector<33x256xf32>, vector<64x256xf32>, vector<33x64xf32> -> vector<33x64xf32>
    %118 = vector.extract_strided_slice %117 {offsets = [0, 0], sizes = [32, 64], strides = [1, 1]} : vector<33x64xf32> to vector<32x64xf32>
    %119 = vector.extract_strided_slice %117 {offsets = [32, 0], sizes = [1, 64], strides = [1, 1]} : vector<33x64xf32> to vector<1x64xf32>
    %120 = tpu.reciprocal %119 {approx = true} : vector<1x64xf32> -> vector<1x64xf32>
    %121 = vector.broadcast %120 : vector<1x64xf32> to vector<32x64xf32>
    %122 = arith.mulf %118, %121 : vector<32x64xf32>
    %c0_60 = arith.constant 0 : index
    %c64_61 = arith.constant 64 : index
    %123 = vector.load %arg9[%c0_60, %c64_61] : memref<32x256xf32, #tpu.memory_space<vmem>>, vector<32x64xf32>
    %124 = arith.addf %122, %123 : vector<32x64xf32>
    %c0_62 = arith.constant 0 : index
    %c64_63 = arith.constant 64 : index
    %125 = vector.load %arg9[%c0_62, %c64_63] : memref<32x256xf32, #tpu.memory_space<vmem>>, vector<32x64xf32>
    tpu.vector_store %arg9[%c0_62, %c64_63], %124 {strides = array<i32>} : memref<32x256xf32, #tpu.memory_space<vmem>>, vector<32x64xf32>,
    %126 = vector.extract_strided_slice %91 {offsets = [0, 128], sizes = [8, 64], strides = [1, 1]} : vector<8x256xf32> to vector<8x64xf32>
    %cst_64 = arith.constant dense<0.000000e+00> : vector<64x256xf32>
    %127 = tpu.matmul %126, %92, %cst_64 {dimension_numbers = #tpu.dot_dimension_numbers<[0], [0], [1], [1], [0, 1, 1, 1], [], []>} : vector<8x64xf32>, vector<8x256xf32>, vector<64x256xf32> -> vector<64x256xf32>
    %cst_65 = arith.constant dense<0xFF800000> : vector<64xf32>
    %128 = vector.multi_reduction <maximumf>, %127, %cst_65 [1] : vector<64x256xf32> to vector<64xf32>
    %129 = vector.shape_cast %128 : vector<64xf32> to vector<64x1xf32>
    %130 = vector.broadcast %129 : vector<64x1xf32> to vector<64x256xf32>
    %131 = arith.subf %127, %130 : vector<64x256xf32>
    %132 = math.exp %131 : vector<64x256xf32>
    %cst_66 = arith.constant dense<0.000000e+00> : vector<33x64xf32>
    %133 = tpu.matmul %93, %132, %cst_66 {dimension_numbers = #tpu.dot_dimension_numbers<[1], [1], [0], [0], [0, 0, 1, 0], [], []>} : vector<33x256xf32>, vector<64x256xf32>, vector<33x64xf32> -> vector<33x64xf32>
    %134 = vector.extract_strided_slice %133 {offsets = [0, 0], sizes = [32, 64], strides = [1, 1]} : vector<33x64xf32> to vector<32x64xf32>
    %135 = vector.extract_strided_slice %133 {offsets = [32, 0], sizes = [1, 64], strides = [1, 1]} : vector<33x64xf32> to vector<1x64xf32>
    %136 = tpu.reciprocal %135 {approx = true} : vector<1x64xf32> -> vector<1x64xf32>
    %137 = vector.broadcast %136 : vector<1x64xf32> to vector<32x64xf32>
    %138 = arith.mulf %134, %137 : vector<32x64xf32>
    %c0_67 = arith.constant 0 : index
    %c128_68 = arith.constant 128 : index
    %139 = vector.load %arg9[%c0_67, %c128_68] : memref<32x256xf32, #tpu.memory_space<vmem>>, vector<32x64xf32>
    %140 = arith.addf %138, %139 : vector<32x64xf32>
    %c0_69 = arith.constant 0 : index
    %c128_70 = arith.constant 128 : index
    %141 = vector.load %arg9[%c0_69, %c128_70] : memref<32x256xf32, #tpu.memory_space<vmem>>, vector<32x64xf32>
    tpu.vector_store %arg9[%c0_69, %c128_70], %140 {strides = array<i32>} : memref<32x256xf32, #tpu.memory_space<vmem>>, vector<32x64xf32>,
    %142 = vector.extract_strided_slice %91 {offsets = [0, 192], sizes = [8, 64], strides = [1, 1]} : vector<8x256xf32> to vector<8x64xf32>
    %cst_71 = arith.constant dense<0.000000e+00> : vector<64x256xf32>
    %143 = tpu.matmul %142, %92, %cst_71 {dimension_numbers = #tpu.dot_dimension_numbers<[0], [0], [1], [1], [0, 1, 1, 1], [], []>} : vector<8x64xf32>, vector<8x256xf32>, vector<64x256xf32> -> vector<64x256xf32>
    %cst_72 = arith.constant dense<0xFF800000> : vector<64xf32>
    %144 = vector.multi_reduction <maximumf>, %143, %cst_72 [1] : vector<64x256xf32> to vector<64xf32>
    %145 = vector.shape_cast %144 : vector<64xf32> to vector<64x1xf32>
    %146 = vector.broadcast %145 : vector<64x1xf32> to vector<64x256xf32>
    %147 = arith.subf %143, %146 : vector<64x256xf32>
    %148 = math.exp %147 : vector<64x256xf32>
    %cst_73 = arith.constant dense<0.000000e+00> : vector<33x64xf32>
    %149 = tpu.matmul %93, %148, %cst_73 {dimension_numbers = #tpu.dot_dimension_numbers<[1], [1], [0], [0], [0, 0, 1, 0], [], []>} : vector<33x256xf32>, vector<64x256xf32>, vector<33x64xf32> -> vector<33x64xf32>
    %150 = vector.extract_strided_slice %149 {offsets = [0, 0], sizes = [32, 64], strides = [1, 1]} : vector<33x64xf32> to vector<32x64xf32>
    %151 = vector.extract_strided_slice %149 {offsets = [32, 0], sizes = [1, 64], strides = [1, 1]} : vector<33x64xf32> to vector<1x64xf32>
    %152 = tpu.reciprocal %151 {approx = true} : vector<1x64xf32> -> vector<1x64xf32>
    %153 = vector.broadcast %152 : vector<1x64xf32> to vector<32x64xf32>
    %154 = arith.mulf %150, %153 : vector<32x64xf32>
    %c0_74 = arith.constant 0 : index
    %c192_75 = arith.constant 192 : index
    %155 = vector.load %arg9[%c0_74, %c192_75] : memref<32x256xf32, #tpu.memory_space<vmem>>, vector<32x64xf32>
    %156 = arith.addf %154, %155 : vector<32x64xf32>
    %c0_76 = arith.constant 0 : index
    %c192_77 = arith.constant 192 : index
    %157 = vector.load %arg9[%c0_76, %c192_77] : memref<32x256xf32, #tpu.memory_space<vmem>>, vector<32x64xf32>
    tpu.vector_store %arg9[%c0_76, %c192_77], %156 {strides = array<i32>} : memref<32x256xf32, #tpu.memory_space<vmem>>, vector<32x64xf32>,
    %c0_78 = arith.constant 0 : index
    %c0_79 = arith.constant 0 : index
    %158 = vector.load %arg9[%c0_78, %c0_79] : memref<32x256xf32, #tpu.memory_space<vmem>>, vector<32x256xf32>
    %cst_80 = arith.constant dense<0.000000e+00> : vector<32xf32>
    %159 = vector.multi_reduction <add>, %158, %cst_80 [1] : vector<32x256xf32> to vector<32xf32>
    %160 = vector.shape_cast %159 : vector<32xf32> to vector<32x1xf32>
    %cst_81 = arith.constant 2.560000e+02 : f32
    %161 = vector.broadcast %cst_81 : f32 to vector<32x1xf32>
    %162 = arith.divf %160, %161 : vector<32x1xf32>
    %c0_82 = arith.constant 0 : index
    %c0_83 = arith.constant 0 : index
    %163 = vector.load %arg6[%c0_82, %c0_83] : memref<32x4xf32, #tpu.memory_space<vmem>>, vector<32x4xf32>
    %164 = vector.broadcast %162 : vector<32x1xf32> to vector<32x4xf32>
    %165 = arith.mulf %164, %163 : vector<32x4xf32>
    %cst_84 = arith.constant dense<0.000000e+00> : vector<4xf32>
    %166 = vector.multi_reduction <add>, %165, %cst_84 [0] : vector<32x4xf32> to vector<4xf32>
    %167 = vector.shape_cast %166 : vector<4xf32> to vector<1x4xf32>
    %c0_85 = arith.constant 0 : index
    %c0_86 = arith.constant 0 : index
    %168 = vector.load %arg7[%c0_85, %c0_86] : memref<1x4xf32, #tpu.memory_space<vmem>>, vector<1x4xf32>
    %169 = arith.addf %167, %168 : vector<1x4xf32>
    %c0_87 = arith.constant 0 : index
    %c0_88 = arith.constant 0 : index
    %c0_89 = arith.constant 0 : index
    %170 = vector.load %arg8[%c0_87, %c0_88, %c0_89] : memref<2x1x4xf32, #tpu.memory_space<vmem>>, vector<1x1x4xf32>
    %171 = vector.shape_cast %170 : vector<1x1x4xf32> to vector<1x4xf32>
    %172 = vector.shape_cast %169 : vector<1x4xf32> to vector<1x1x4xf32>
    tpu.vector_store %arg8[%c0_87, %c0_88, %c0_89], %172 {strides = array<i32>} : memref<2x1x4xf32, #tpu.memory_space<vmem>>, vector<1x1x4xf32>,
    %c1_90 = arith.constant 1 : index
    %c0_91 = arith.constant 0 : index
    %c0_92 = arith.constant 0 : index
    %173 = vector.load %arg1[%c1_90, %c0_91, %c0_92] : memref<2x4x256xf32, #tpu.memory_space<vmem>>, vector<1x4x256xf32>
    %174 = vector.shape_cast %173 : vector<1x4x256xf32> to vector<4x256xf32>
    %c0_93 = arith.constant 0 : index
    %c0_94 = arith.constant 0 : index
    %175 = vector.load %arg2[%c0_93, %c0_94] : memref<32x4xf32, #tpu.memory_space<vmem>>, vector<32x4xf32>
    %cst_95 = arith.constant dense<0.000000e+00> : vector<32x256xf32>
    %176 = tpu.matmul %175, %174, %cst_95 {dimension_numbers = #tpu.dot_dimension_numbers<[1], [0], [0], [1], [0, 0, 1, 1], [], []>} : vector<32x4xf32>, vector<4x256xf32>, vector<32x256xf32> -> vector<32x256xf32>
    %c0_96 = arith.constant 0 : index
    %c0_97 = arith.constant 0 : index
    %177 = vector.load %arg3[%c0_96, %c0_97] : memref<32x1xf32, #tpu.memory_space<vmem>>, vector<32x1xf32>
    %178 = vector.broadcast %177 : vector<32x1xf32> to vector<32x256xf32>
    %179 = arith.addf %176, %178 : vector<32x256xf32>
    %c0_98 = arith.constant 0 : index
    %c0_99 = arith.constant 0 : index
    %180 = vector.load %arg9[%c0_98, %c0_99] : memref<32x256xf32, #tpu.memory_space<vmem>>, vector<32x256xf32>
    tpu.vector_store %arg9[%c0_98, %c0_99], %179 {strides = array<i32>} : memref<32x256xf32, #tpu.memory_space<vmem>>, vector<32x256xf32>,
    %c0_100 = arith.constant 0 : index
    %c0_101 = arith.constant 0 : index
    %c0_102 = arith.constant 0 : index
    %181 = vector.load %arg4[%c0_100, %c0_101, %c0_102] : memref<2x49x32xf32, #tpu.memory_space<vmem>>, vector<1x49x32xf32>
    %182 = vector.shape_cast %181 : vector<1x49x32xf32> to vector<49x32xf32>
    %c0_103 = arith.constant 0 : index
    %c0_104 = arith.constant 0 : index
    %183 = vector.load %arg9[%c0_103, %c0_104] : memref<32x256xf32, #tpu.memory_space<vmem>>, vector<32x256xf32>
    %cst_105 = arith.constant dense<0.000000e+00> : vector<49x256xf32>
    %184 = tpu.matmul %182, %183, %cst_105 {dimension_numbers = #tpu.dot_dimension_numbers<[1], [0], [0], [1], [0, 0, 1, 1], [], []>} : vector<49x32xf32>, vector<32x256xf32>, vector<49x256xf32> -> vector<49x256xf32>
    %c0_106 = arith.constant 0 : index
    %c0_107 = arith.constant 0 : index
    %c0_108 = arith.constant 0 : index
    %185 = vector.load %arg5[%c0_106, %c0_107, %c0_108] : memref<2x49x1xf32, #tpu.memory_space<vmem>>, vector<1x49x1xf32>
    %186 = vector.shape_cast %185 : vector<1x49x1xf32> to vector<49x1xf32>
    %187 = vector.broadcast %186 : vector<49x1xf32> to vector<49x256xf32>
    %188 = arith.addf %184, %187 : vector<49x256xf32>
    %189 = vector.extract_strided_slice %188 {offsets = [0, 0], sizes = [8, 256], strides = [1, 1]} : vector<49x256xf32> to vector<8x256xf32>
    %190 = vector.extract_strided_slice %188 {offsets = [8, 0], sizes = [8, 256], strides = [1, 1]} : vector<49x256xf32> to vector<8x256xf32>
    %191 = vector.extract_strided_slice %188 {offsets = [16, 0], sizes = [33, 256], strides = [1, 1]} : vector<49x256xf32> to vector<33x256xf32>
    %192 = vector.extract_strided_slice %189 {offsets = [0, 0], sizes = [8, 64], strides = [1, 1]} : vector<8x256xf32> to vector<8x64xf32>
    %cst_109 = arith.constant dense<0.000000e+00> : vector<64x256xf32>
    %193 = tpu.matmul %192, %190, %cst_109 {dimension_numbers = #tpu.dot_dimension_numbers<[0], [0], [1], [1], [0, 1, 1, 1], [], []>} : vector<8x64xf32>, vector<8x256xf32>, vector<64x256xf32> -> vector<64x256xf32>
    %cst_110 = arith.constant dense<0xFF800000> : vector<64xf32>
    %194 = vector.multi_reduction <maximumf>, %193, %cst_110 [1] : vector<64x256xf32> to vector<64xf32>
    %195 = vector.shape_cast %194 : vector<64xf32> to vector<64x1xf32>
    %196 = vector.broadcast %195 : vector<64x1xf32> to vector<64x256xf32>
    %197 = arith.subf %193, %196 : vector<64x256xf32>
    %198 = math.exp %197 : vector<64x256xf32>
    %cst_111 = arith.constant dense<0.000000e+00> : vector<33x64xf32>
    %199 = tpu.matmul %191, %198, %cst_111 {dimension_numbers = #tpu.dot_dimension_numbers<[1], [1], [0], [0], [0, 0, 1, 0], [], []>} : vector<33x256xf32>, vector<64x256xf32>, vector<33x64xf32> -> vector<33x64xf32>
    %200 = vector.extract_strided_slice %199 {offsets = [0, 0], sizes = [32, 64], strides = [1, 1]} : vector<33x64xf32> to vector<32x64xf32>
    %201 = vector.extract_strided_slice %199 {offsets = [32, 0], sizes = [1, 64], strides = [1, 1]} : vector<33x64xf32> to vector<1x64xf32>
    %202 = tpu.reciprocal %201 {approx = true} : vector<1x64xf32> -> vector<1x64xf32>
    %203 = vector.broadcast %202 : vector<1x64xf32> to vector<32x64xf32>
    %204 = arith.mulf %200, %203 : vector<32x64xf32>
    %c0_112 = arith.constant 0 : index
    %c0_113 = arith.constant 0 : index
    %205 = vector.load %arg9[%c0_112, %c0_113] : memref<32x256xf32, #tpu.memory_space<vmem>>, vector<32x64xf32>
    %206 = arith.addf %204, %205 : vector<32x64xf32>
    %c0_114 = arith.constant 0 : index
    %c0_115 = arith.constant 0 : index
    %207 = vector.load %arg9[%c0_114, %c0_115] : memref<32x256xf32, #tpu.memory_space<vmem>>, vector<32x64xf32>
    tpu.vector_store %arg9[%c0_114, %c0_115], %206 {strides = array<i32>} : memref<32x256xf32, #tpu.memory_space<vmem>>, vector<32x64xf32>,
    %208 = vector.extract_strided_slice %189 {offsets = [0, 64], sizes = [8, 64], strides = [1, 1]} : vector<8x256xf32> to vector<8x64xf32>
    %cst_116 = arith.constant dense<0.000000e+00> : vector<64x256xf32>
    %209 = tpu.matmul %208, %190, %cst_116 {dimension_numbers = #tpu.dot_dimension_numbers<[0], [0], [1], [1], [0, 1, 1, 1], [], []>} : vector<8x64xf32>, vector<8x256xf32>, vector<64x256xf32> -> vector<64x256xf32>
    %cst_117 = arith.constant dense<0xFF800000> : vector<64xf32>
    %210 = vector.multi_reduction <maximumf>, %209, %cst_117 [1] : vector<64x256xf32> to vector<64xf32>
    %211 = vector.shape_cast %210 : vector<64xf32> to vector<64x1xf32>
    %212 = vector.broadcast %211 : vector<64x1xf32> to vector<64x256xf32>
    %213 = arith.subf %209, %212 : vector<64x256xf32>
    %214 = math.exp %213 : vector<64x256xf32>
    %cst_118 = arith.constant dense<0.000000e+00> : vector<33x64xf32>
    %215 = tpu.matmul %191, %214, %cst_118 {dimension_numbers = #tpu.dot_dimension_numbers<[1], [1], [0], [0], [0, 0, 1, 0], [], []>} : vector<33x256xf32>, vector<64x256xf32>, vector<33x64xf32> -> vector<33x64xf32>
    %216 = vector.extract_strided_slice %215 {offsets = [0, 0], sizes = [32, 64], strides = [1, 1]} : vector<33x64xf32> to vector<32x64xf32>
    %217 = vector.extract_strided_slice %215 {offsets = [32, 0], sizes = [1, 64], strides = [1, 1]} : vector<33x64xf32> to vector<1x64xf32>
    %218 = tpu.reciprocal %217 {approx = true} : vector<1x64xf32> -> vector<1x64xf32>
    %219 = vector.broadcast %218 : vector<1x64xf32> to vector<32x64xf32>
    %220 = arith.mulf %216, %219 : vector<32x64xf32>
    %c0_119 = arith.constant 0 : index
    %c64_120 = arith.constant 64 : index
    %221 = vector.load %arg9[%c0_119, %c64_120] : memref<32x256xf32, #tpu.memory_space<vmem>>, vector<32x64xf32>
    %222 = arith.addf %220, %221 : vector<32x64xf32>
    %c0_121 = arith.constant 0 : index
    %c64_122 = arith.constant 64 : index
    %223 = vector.load %arg9[%c0_121, %c64_122] : memref<32x256xf32, #tpu.memory_space<vmem>>, vector<32x64xf32>
    tpu.vector_store %arg9[%c0_121, %c64_122], %222 {strides = array<i32>} : memref<32x256xf32, #tpu.memory_space<vmem>>, vector<32x64xf32>,
    %224 = vector.extract_strided_slice %189 {offsets = [0, 128], sizes = [8, 64], strides = [1, 1]} : vector<8x256xf32> to vector<8x64xf32>
    %cst_123 = arith.constant dense<0.000000e+00> : vector<64x256xf32>
    %225 = tpu.matmul %224, %190, %cst_123 {dimension_numbers = #tpu.dot_dimension_numbers<[0], [0], [1], [1], [0, 1, 1, 1], [], []>} : vector<8x64xf32>, vector<8x256xf32>, vector<64x256xf32> -> vector<64x256xf32>
    %cst_124 = arith.constant dense<0xFF800000> : vector<64xf32>
    %226 = vector.multi_reduction <maximumf>, %225, %cst_124 [1] : vector<64x256xf32> to vector<64xf32>
    %227 = vector.shape_cast %226 : vector<64xf32> to vector<64x1xf32>
    %228 = vector.broadcast %227 : vector<64x1xf32> to vector<64x256xf32>
    %229 = arith.subf %225, %228 : vector<64x256xf32>
    %230 = math.exp %229 : vector<64x256xf32>
    %cst_125 = arith.constant dense<0.000000e+00> : vector<33x64xf32>
    %231 = tpu.matmul %191, %230, %cst_125 {dimension_numbers = #tpu.dot_dimension_numbers<[1], [1], [0], [0], [0, 0, 1, 0], [], []>} : vector<33x256xf32>, vector<64x256xf32>, vector<33x64xf32> -> vector<33x64xf32>
    %232 = vector.extract_strided_slice %231 {offsets = [0, 0], sizes = [32, 64], strides = [1, 1]} : vector<33x64xf32> to vector<32x64xf32>
    %233 = vector.extract_strided_slice %231 {offsets = [32, 0], sizes = [1, 64], strides = [1, 1]} : vector<33x64xf32> to vector<1x64xf32>
    %234 = tpu.reciprocal %233 {approx = true} : vector<1x64xf32> -> vector<1x64xf32>
    %235 = vector.broadcast %234 : vector<1x64xf32> to vector<32x64xf32>
    %236 = arith.mulf %232, %235 : vector<32x64xf32>
    %c0_126 = arith.constant 0 : index
    %c128_127 = arith.constant 128 : index
    %237 = vector.load %arg9[%c0_126, %c128_127] : memref<32x256xf32, #tpu.memory_space<vmem>>, vector<32x64xf32>
    %238 = arith.addf %236, %237 : vector<32x64xf32>
    %c0_128 = arith.constant 0 : index
    %c128_129 = arith.constant 128 : index
    %239 = vector.load %arg9[%c0_128, %c128_129] : memref<32x256xf32, #tpu.memory_space<vmem>>, vector<32x64xf32>
    tpu.vector_store %arg9[%c0_128, %c128_129], %238 {strides = array<i32>} : memref<32x256xf32, #tpu.memory_space<vmem>>, vector<32x64xf32>,
    %240 = vector.extract_strided_slice %189 {offsets = [0, 192], sizes = [8, 64], strides = [1, 1]} : vector<8x256xf32> to vector<8x64xf32>
    %cst_130 = arith.constant dense<0.000000e+00> : vector<64x256xf32>
    %241 = tpu.matmul %240, %190, %cst_130 {dimension_numbers = #tpu.dot_dimension_numbers<[0], [0], [1], [1], [0, 1, 1, 1], [], []>} : vector<8x64xf32>, vector<8x256xf32>, vector<64x256xf32> -> vector<64x256xf32>
    %cst_131 = arith.constant dense<0xFF800000> : vector<64xf32>
    %242 = vector.multi_reduction <maximumf>, %241, %cst_131 [1] : vector<64x256xf32> to vector<64xf32>
    %243 = vector.shape_cast %242 : vector<64xf32> to vector<64x1xf32>
    %244 = vector.broadcast %243 : vector<64x1xf32> to vector<64x256xf32>
    %245 = arith.subf %241, %244 : vector<64x256xf32>
    %246 = math.exp %245 : vector<64x256xf32>
    %cst_132 = arith.constant dense<0.000000e+00> : vector<33x64xf32>
    %247 = tpu.matmul %191, %246, %cst_132 {dimension_numbers = #tpu.dot_dimension_numbers<[1], [1], [0], [0], [0, 0, 1, 0], [], []>} : vector<33x256xf32>, vector<64x256xf32>, vector<33x64xf32> -> vector<33x64xf32>
    %248 = vector.extract_strided_slice %247 {offsets = [0, 0], sizes = [32, 64], strides = [1, 1]} : vector<33x64xf32> to vector<32x64xf32>
    %249 = vector.extract_strided_slice %247 {offsets = [32, 0], sizes = [1, 64], strides = [1, 1]} : vector<33x64xf32> to vector<1x64xf32>
    %250 = tpu.reciprocal %249 {approx = true} : vector<1x64xf32> -> vector<1x64xf32>
    %251 = vector.broadcast %250 : vector<1x64xf32> to vector<32x64xf32>
    %252 = arith.mulf %248, %251 : vector<32x64xf32>
    %c0_133 = arith.constant 0 : index
    %c192_134 = arith.constant 192 : index
    %253 = vector.load %arg9[%c0_133, %c192_134] : memref<32x256xf32, #tpu.memory_space<vmem>>, vector<32x64xf32>
    %254 = arith.addf %252, %253 : vector<32x64xf32>
    %c0_135 = arith.constant 0 : index
    %c192_136 = arith.constant 192 : index
    %255 = vector.load %arg9[%c0_135, %c192_136] : memref<32x256xf32, #tpu.memory_space<vmem>>, vector<32x64xf32>
    tpu.vector_store %arg9[%c0_135, %c192_136], %254 {strides = array<i32>} : memref<32x256xf32, #tpu.memory_space<vmem>>, vector<32x64xf32>,
    %c1_137 = arith.constant 1 : index
    %c0_138 = arith.constant 0 : index
    %c0_139 = arith.constant 0 : index
    %256 = vector.load %arg4[%c1_137, %c0_138, %c0_139] : memref<2x49x32xf32, #tpu.memory_space<vmem>>, vector<1x49x32xf32>
    %257 = vector.shape_cast %256 : vector<1x49x32xf32> to vector<49x32xf32>
    %c0_140 = arith.constant 0 : index
    %c0_141 = arith.constant 0 : index
    %258 = vector.load %arg9[%c0_140, %c0_141] : memref<32x256xf32, #tpu.memory_space<vmem>>, vector<32x256xf32>
    %cst_142 = arith.constant dense<0.000000e+00> : vector<49x256xf32>
    %259 = tpu.matmul %257, %258, %cst_142 {dimension_numbers = #tpu.dot_dimension_numbers<[1], [0], [0], [1], [0, 0, 1, 1], [], []>} : vector<49x32xf32>, vector<32x256xf32>, vector<49x256xf32> -> vector<49x256xf32>
    %c1_143 = arith.constant 1 : index
    %c0_144 = arith.constant 0 : index
    %c0_145 = arith.constant 0 : index
    %260 = vector.load %arg5[%c1_143, %c0_144, %c0_145] : memref<2x49x1xf32, #tpu.memory_space<vmem>>, vector<1x49x1xf32>
    %261 = vector.shape_cast %260 : vector<1x49x1xf32> to vector<49x1xf32>
    %262 = vector.broadcast %261 : vector<49x1xf32> to vector<49x256xf32>
    %263 = arith.addf %259, %262 : vector<49x256xf32>
    %264 = vector.extract_strided_slice %263 {offsets = [0, 0], sizes = [8, 256], strides = [1, 1]} : vector<49x256xf32> to vector<8x256xf32>
    %265 = vector.extract_strided_slice %263 {offsets = [8, 0], sizes = [8, 256], strides = [1, 1]} : vector<49x256xf32> to vector<8x256xf32>
    %266 = vector.extract_strided_slice %263 {offsets = [16, 0], sizes = [33, 256], strides = [1, 1]} : vector<49x256xf32> to vector<33x256xf32>
    %267 = vector.extract_strided_slice %264 {offsets = [0, 0], sizes = [8, 64], strides = [1, 1]} : vector<8x256xf32> to vector<8x64xf32>
    %cst_146 = arith.constant dense<0.000000e+00> : vector<64x256xf32>
    %268 = tpu.matmul %267, %265, %cst_146 {dimension_numbers = #tpu.dot_dimension_numbers<[0], [0], [1], [1], [0, 1, 1, 1], [], []>} : vector<8x64xf32>, vector<8x256xf32>, vector<64x256xf32> -> vector<64x256xf32>
    %cst_147 = arith.constant dense<0xFF800000> : vector<64xf32>
    %269 = vector.multi_reduction <maximumf>, %268, %cst_147 [1] : vector<64x256xf32> to vector<64xf32>
    %270 = vector.shape_cast %269 : vector<64xf32> to vector<64x1xf32>
    %271 = vector.broadcast %270 : vector<64x1xf32> to vector<64x256xf32>
    %272 = arith.subf %268, %271 : vector<64x256xf32>
    %273 = math.exp %272 : vector<64x256xf32>
    %cst_148 = arith.constant dense<0.000000e+00> : vector<33x64xf32>
    %274 = tpu.matmul %266, %273, %cst_148 {dimension_numbers = #tpu.dot_dimension_numbers<[1], [1], [0], [0], [0, 0, 1, 0], [], []>} : vector<33x256xf32>, vector<64x256xf32>, vector<33x64xf32> -> vector<33x64xf32>
    %275 = vector.extract_strided_slice %274 {offsets = [0, 0], sizes = [32, 64], strides = [1, 1]} : vector<33x64xf32> to vector<32x64xf32>
    %276 = vector.extract_strided_slice %274 {offsets = [32, 0], sizes = [1, 64], strides = [1, 1]} : vector<33x64xf32> to vector<1x64xf32>
    %277 = tpu.reciprocal %276 {approx = true} : vector<1x64xf32> -> vector<1x64xf32>
    %278 = vector.broadcast %277 : vector<1x64xf32> to vector<32x64xf32>
    %279 = arith.mulf %275, %278 : vector<32x64xf32>
    %c0_149 = arith.constant 0 : index
    %c0_150 = arith.constant 0 : index
    %280 = vector.load %arg9[%c0_149, %c0_150] : memref<32x256xf32, #tpu.memory_space<vmem>>, vector<32x64xf32>
    %281 = arith.addf %279, %280 : vector<32x64xf32>
    %c0_151 = arith.constant 0 : index
    %c0_152 = arith.constant 0 : index
    %282 = vector.load %arg9[%c0_151, %c0_152] : memref<32x256xf32, #tpu.memory_space<vmem>>, vector<32x64xf32>
    tpu.vector_store %arg9[%c0_151, %c0_152], %281 {strides = array<i32>} : memref<32x256xf32, #tpu.memory_space<vmem>>, vector<32x64xf32>,
    %283 = vector.extract_strided_slice %264 {offsets = [0, 64], sizes = [8, 64], strides = [1, 1]} : vector<8x256xf32> to vector<8x64xf32>
    %cst_153 = arith.constant dense<0.000000e+00> : vector<64x256xf32>
    %284 = tpu.matmul %283, %265, %cst_153 {dimension_numbers = #tpu.dot_dimension_numbers<[0], [0], [1], [1], [0, 1, 1, 1], [], []>} : vector<8x64xf32>, vector<8x256xf32>, vector<64x256xf32> -> vector<64x256xf32>
    %cst_154 = arith.constant dense<0xFF800000> : vector<64xf32>
    %285 = vector.multi_reduction <maximumf>, %284, %cst_154 [1] : vector<64x256xf32> to vector<64xf32>
    %286 = vector.shape_cast %285 : vector<64xf32> to vector<64x1xf32>
    %287 = vector.broadcast %286 : vector<64x1xf32> to vector<64x256xf32>
    %288 = arith.subf %284, %287 : vector<64x256xf32>
    %289 = math.exp %288 : vector<64x256xf32>
    %cst_155 = arith.constant dense<0.000000e+00> : vector<33x64xf32>
    %290 = tpu.matmul %266, %289, %cst_155 {dimension_numbers = #tpu.dot_dimension_numbers<[1], [1], [0], [0], [0, 0, 1, 0], [], []>} : vector<33x256xf32>, vector<64x256xf32>, vector<33x64xf32> -> vector<33x64xf32>
    %291 = vector.extract_strided_slice %290 {offsets = [0, 0], sizes = [32, 64], strides = [1, 1]} : vector<33x64xf32> to vector<32x64xf32>
    %292 = vector.extract_strided_slice %290 {offsets = [32, 0], sizes = [1, 64], strides = [1, 1]} : vector<33x64xf32> to vector<1x64xf32>
    %293 = tpu.reciprocal %292 {approx = true} : vector<1x64xf32> -> vector<1x64xf32>
    %294 = vector.broadcast %293 : vector<1x64xf32> to vector<32x64xf32>
    %295 = arith.mulf %291, %294 : vector<32x64xf32>
    %c0_156 = arith.constant 0 : index
    %c64_157 = arith.constant 64 : index
    %296 = vector.load %arg9[%c0_156, %c64_157] : memref<32x256xf32, #tpu.memory_space<vmem>>, vector<32x64xf32>
    %297 = arith.addf %295, %296 : vector<32x64xf32>
    %c0_158 = arith.constant 0 : index
    %c64_159 = arith.constant 64 : index
    %298 = vector.load %arg9[%c0_158, %c64_159] : memref<32x256xf32, #tpu.memory_space<vmem>>, vector<32x64xf32>
    tpu.vector_store %arg9[%c0_158, %c64_159], %297 {strides = array<i32>} : memref<32x256xf32, #tpu.memory_space<vmem>>, vector<32x64xf32>,
    %299 = vector.extract_strided_slice %264 {offsets = [0, 128], sizes = [8, 64], strides = [1, 1]} : vector<8x256xf32> to vector<8x64xf32>
    %cst_160 = arith.constant dense<0.000000e+00> : vector<64x256xf32>
    %300 = tpu.matmul %299, %265, %cst_160 {dimension_numbers = #tpu.dot_dimension_numbers<[0], [0], [1], [1], [0, 1, 1, 1], [], []>} : vector<8x64xf32>, vector<8x256xf32>, vector<64x256xf32> -> vector<64x256xf32>
    %cst_161 = arith.constant dense<0xFF800000> : vector<64xf32>
    %301 = vector.multi_reduction <maximumf>, %300, %cst_161 [1] : vector<64x256xf32> to vector<64xf32>
    %302 = vector.shape_cast %301 : vector<64xf32> to vector<64x1xf32>
    %303 = vector.broadcast %302 : vector<64x1xf32> to vector<64x256xf32>
    %304 = arith.subf %300, %303 : vector<64x256xf32>
    %305 = math.exp %304 : vector<64x256xf32>
    %cst_162 = arith.constant dense<0.000000e+00> : vector<33x64xf32>
    %306 = tpu.matmul %266, %305, %cst_162 {dimension_numbers = #tpu.dot_dimension_numbers<[1], [1], [0], [0], [0, 0, 1, 0], [], []>} : vector<33x256xf32>, vector<64x256xf32>, vector<33x64xf32> -> vector<33x64xf32>
    %307 = vector.extract_strided_slice %306 {offsets = [0, 0], sizes = [32, 64], strides = [1, 1]} : vector<33x64xf32> to vector<32x64xf32>
    %308 = vector.extract_strided_slice %306 {offsets = [32, 0], sizes = [1, 64], strides = [1, 1]} : vector<33x64xf32> to vector<1x64xf32>
    %309 = tpu.reciprocal %308 {approx = true} : vector<1x64xf32> -> vector<1x64xf32>
    %310 = vector.broadcast %309 : vector<1x64xf32> to vector<32x64xf32>
    %311 = arith.mulf %307, %310 : vector<32x64xf32>
    %c0_163 = arith.constant 0 : index
    %c128_164 = arith.constant 128 : index
    %312 = vector.load %arg9[%c0_163, %c128_164] : memref<32x256xf32, #tpu.memory_space<vmem>>, vector<32x64xf32>
    %313 = arith.addf %311, %312 : vector<32x64xf32>
    %c0_165 = arith.constant 0 : index
    %c128_166 = arith.constant 128 : index
    %314 = vector.load %arg9[%c0_165, %c128_166] : memref<32x256xf32, #tpu.memory_space<vmem>>, vector<32x64xf32>
    tpu.vector_store %arg9[%c0_165, %c128_166], %313 {strides = array<i32>} : memref<32x256xf32, #tpu.memory_space<vmem>>, vector<32x64xf32>,
    %315 = vector.extract_strided_slice %264 {offsets = [0, 192], sizes = [8, 64], strides = [1, 1]} : vector<8x256xf32> to vector<8x64xf32>
    %cst_167 = arith.constant dense<0.000000e+00> : vector<64x256xf32>
    %316 = tpu.matmul %315, %265, %cst_167 {dimension_numbers = #tpu.dot_dimension_numbers<[0], [0], [1], [1], [0, 1, 1, 1], [], []>} : vector<8x64xf32>, vector<8x256xf32>, vector<64x256xf32> -> vector<64x256xf32>
    %cst_168 = arith.constant dense<0xFF800000> : vector<64xf32>
    %317 = vector.multi_reduction <maximumf>, %316, %cst_168 [1] : vector<64x256xf32> to vector<64xf32>
    %318 = vector.shape_cast %317 : vector<64xf32> to vector<64x1xf32>
    %319 = vector.broadcast %318 : vector<64x1xf32> to vector<64x256xf32>
    %320 = arith.subf %316, %319 : vector<64x256xf32>
    %321 = math.exp %320 : vector<64x256xf32>
    %cst_169 = arith.constant dense<0.000000e+00> : vector<33x64xf32>
    %322 = tpu.matmul %266, %321, %cst_169 {dimension_numbers = #tpu.dot_dimension_numbers<[1], [1], [0], [0], [0, 0, 1, 0], [], []>} : vector<33x256xf32>, vector<64x256xf32>, vector<33x64xf32> -> vector<33x64xf32>
    %323 = vector.extract_strided_slice %322 {offsets = [0, 0], sizes = [32, 64], strides = [1, 1]} : vector<33x64xf32> to vector<32x64xf32>
    %324 = vector.extract_strided_slice %322 {offsets = [32, 0], sizes = [1, 64], strides = [1, 1]} : vector<33x64xf32> to vector<1x64xf32>
    %325 = tpu.reciprocal %324 {approx = true} : vector<1x64xf32> -> vector<1x64xf32>
    %326 = vector.broadcast %325 : vector<1x64xf32> to vector<32x64xf32>
    %327 = arith.mulf %323, %326 : vector<32x64xf32>
    %c0_170 = arith.constant 0 : index
    %c192_171 = arith.constant 192 : index
    %328 = vector.load %arg9[%c0_170, %c192_171] : memref<32x256xf32, #tpu.memory_space<vmem>>, vector<32x64xf32>
    %329 = arith.addf %327, %328 : vector<32x64xf32>
    %c0_172 = arith.constant 0 : index
    %c192_173 = arith.constant 192 : index
    %330 = vector.load %arg9[%c0_172, %c192_173] : memref<32x256xf32, #tpu.memory_space<vmem>>, vector<32x64xf32>
    tpu.vector_store %arg9[%c0_172, %c192_173], %329 {strides = array<i32>} : memref<32x256xf32, #tpu.memory_space<vmem>>, vector<32x64xf32>,
    %c0_174 = arith.constant 0 : index
    %c0_175 = arith.constant 0 : index
    %331 = vector.load %arg9[%c0_174, %c0_175] : memref<32x256xf32, #tpu.memory_space<vmem>>, vector<32x256xf32>
    %cst_176 = arith.constant dense<0.000000e+00> : vector<32xf32>
    %332 = vector.multi_reduction <add>, %331, %cst_176 [1] : vector<32x256xf32> to vector<32xf32>
    %333 = vector.shape_cast %332 : vector<32xf32> to vector<32x1xf32>
    %cst_177 = arith.constant 2.560000e+02 : f32
    %334 = vector.broadcast %cst_177 : f32 to vector<32x1xf32>
    %335 = arith.divf %333, %334 : vector<32x1xf32>
    %c0_178 = arith.constant 0 : index
    %c0_179 = arith.constant 0 : index
    %336 = vector.load %arg6[%c0_178, %c0_179] : memref<32x4xf32, #tpu.memory_space<vmem>>, vector<32x4xf32>
    %337 = vector.broadcast %335 : vector<32x1xf32> to vector<32x4xf32>
    %338 = arith.mulf %337, %336 : vector<32x4xf32>
    %cst_180 = arith.constant dense<0.000000e+00> : vector<4xf32>
    %339 = vector.multi_reduction <add>, %338, %cst_180 [0] : vector<32x4xf32> to vector<4xf32>
    %340 = vector.shape_cast %339 : vector<4xf32> to vector<1x4xf32>
    %c0_181 = arith.constant 0 : index
    %c0_182 = arith.constant 0 : index
    %341 = vector.load %arg7[%c0_181, %c0_182] : memref<1x4xf32, #tpu.memory_space<vmem>>, vector<1x4xf32>
    %342 = arith.addf %340, %341 : vector<1x4xf32>
    %c1_183 = arith.constant 1 : index
    %c0_184 = arith.constant 0 : index
    %c0_185 = arith.constant 0 : index
    %343 = vector.load %arg8[%c1_183, %c0_184, %c0_185] : memref<2x1x4xf32, #tpu.memory_space<vmem>>, vector<1x1x4xf32>
    %344 = vector.shape_cast %343 : vector<1x1x4xf32> to vector<1x4xf32>
    %345 = vector.shape_cast %342 : vector<1x4xf32> to vector<1x1x4xf32>
    tpu.vector_store %arg8[%c1_183, %c0_184, %c0_185], %345 {strides = array<i32>} : memref<2x1x4xf32, #tpu.memory_space<vmem>>, vector<1x1x4xf32>,
    return
  }
  func.func @transform_0(%arg0: i32) -> (i32, i32, i32) {
    %c0_i32 = arith.constant 0 : i32
    %c0_i32_0 = arith.constant 0 : i32
    %c0_i32_1 = arith.constant 0 : i32
    return %arg0, %c0_i32, %c0_i32_0 : i32, i32, i32
  }
  func.func @transform_1(%arg0: i32) -> (i32, i32) {
    %c0_i32 = arith.constant 0 : i32
    %c0_i32_0 = arith.constant 0 : i32
    %c0_i32_1 = arith.constant 0 : i32
    return %c0_i32, %c0_i32_0 : i32, i32
  }
  func.func @transform_2(%arg0: i32) -> (i32, i32) {
    %c0_i32 = arith.constant 0 : i32
    %c0_i32_0 = arith.constant 0 : i32
    %c0_i32_1 = arith.constant 0 : i32
    return %c0_i32, %c0_i32_0 : i32, i32
  }
  func.func @transform_3(%arg0: i32) -> (i32, i32, i32) {
    %c0_i32 = arith.constant 0 : i32
    %c0_i32_0 = arith.constant 0 : i32
    %c0_i32_1 = arith.constant 0 : i32
    %c0_i32_2 = arith.constant 0 : i32
    return %c0_i32, %c0_i32_0, %c0_i32_1 : i32, i32, i32
  }
  func.func @transform_4(%arg0: i32) -> (i32, i32, i32) {
    %c0_i32 = arith.constant 0 : i32
    %c0_i32_0 = arith.constant 0 : i32
    %c0_i32_1 = arith.constant 0 : i32
    %c0_i32_2 = arith.constant 0 : i32
    return %c0_i32, %c0_i32_0, %c0_i32_1 : i32, i32, i32
  }
  func.func @transform_5(%arg0: i32) -> (i32, i32) {
    %c0_i32 = arith.constant 0 : i32
    %c0_i32_0 = arith.constant 0 : i32
    %c0_i32_1 = arith.constant 0 : i32
    return %c0_i32, %c0_i32_0 : i32, i32
  }
  func.func @transform_6(%arg0: i32) -> (i32, i32) {
    %c0_i32 = arith.constant 0 : i32
    %c0_i32_0 = arith.constant 0 : i32
    %c0_i32_1 = arith.constant 0 : i32
    return %c0_i32, %c0_i32_0 : i32, i32
  }
  func.func @transform_7(%arg0: i32) -> (i32, i32, i32) {
    %c0_i32 = arith.constant 0 : i32
    %c0_i32_0 = arith.constant 0 : i32
    %c0_i32_1 = arith.constant 0 : i32
    return %arg0, %c0_i32, %c0_i32_0 : i32, i32, i32
  }
}

</mosaic_0001>

<llo_original>
// kernel: forward.1
$region0: #{forward.1}
  #allocation0 [shape = 'u32[]', space=smem, size = 0x4, offset = 0x4, fixed_abs, tag = 'smem constant byte address 0x4 - core index']
  #allocation1 [shape = 'u32[72,128]{1,0:T(1,128)}', space=vmem, size = 0x9000, scoped, tag = 'internal scratch']
  #allocation2 [shape = 'f32[32,256]{1,0:T(8,128)}', space=vmem, size = 0x8000, scoped, tag = 'scratch operand']
  %s0 = inlined_call_operand.vmem [shape: f32[2,4,256], index: 0, kind: input, shape index: {}]
  %s1 = inlined_call_operand.vmem [shape: f32[32,4], index: 1, kind: input, shape index: {}]
  %s2 = inlined_call_operand.vmem [shape: f32[32,1], index: 2, kind: input, shape index: {}]
  %s3 = inlined_call_operand.vmem [shape: f32[2,49,32], index: 3, kind: input, shape index: {}]
  %s4 = inlined_call_operand.vmem [shape: f32[2,49,1], index: 4, kind: input, shape index: {}]
  %s5 = inlined_call_operand.vmem [shape: f32[32,4], index: 5, kind: input, shape index: {}]
  %s6 = inlined_call_operand.vmem [shape: f32[1,4], index: 6, kind: input, shape index: {}]
  %s7 = inlined_call_operand.hbm [shape: f32[2,1,4], index: 7, kind: output, shape index: {}]
  %s8 = sld [smem:[#allocation0]]
  $region38: #{forward.1} parent=0
    _
  %s10 = ssub.s32 1, %s8
  %s11 = scalar_select 0, %s10, %s8
  $region1: #{forward.1} parent=0
    #allocation3 [shape = 'u8[1024]{0}', space=vmem, size = 0x400, scoped, tag = 'output window, operand 0, single buffered']
    #allocation4 [shape = 's32[1]{0}', space=sflag, size = 0x4, scoped, tag = 'scoped memory for forward.1']
    %12 = vsyncpa [#allocation4], 0
    // Predicated region
    $region2: #{forward.1} parent=1 // pred_check
      _
    $region3: #{forward.1} parent=1 // pred_check_branch
      %14 = sbr.rel (0) target = $region5
    $region4: #{forward.1} parent=1 // pred_region
      _
    $region5: #{forward.1} parent=1 // pred_fallthru
      _
    // Predicated region
    $region6: #{forward.1} parent=1 // pred_check
      _
    $region7: #{forward.1} parent=1 // pred_check_branch
      %16 = sbr.rel (0) target = $region9
    $region8: #{forward.1} parent=1 // pred_region
      _
    $region9: #{forward.1} parent=1 // pred_fallthru
      _
    // Predicated region
    $region10: #{forward.1} parent=1 // pred_check
      _
    $region11: #{forward.1} parent=1 // pred_check_branch
      %18 = sbr.rel (0) target = $region13
    $region12: #{forward.1} parent=1 // pred_region
      _
    $region13: #{forward.1} parent=1 // pred_fallthru
      _
    // Predicated region
    $region14: #{forward.1} parent=1 // pred_check
      _
    $region15: #{forward.1} parent=1 // pred_check_branch
      %20 = sbr.rel (0) target = $region17
    $region16: #{forward.1} parent=1 // pred_region
      _
    $region17: #{forward.1} parent=1 // pred_fallthru
      _
    // Predicated region
    $region18: #{forward.1} parent=1 // pred_check
      _
    $region19: #{forward.1} parent=1 // pred_check_branch
      %22 = sbr.rel (0) target = $region21
    $region20: #{forward.1} parent=1 // pred_region
      _
    $region21: #{forward.1} parent=1 // pred_fallthru
      _
    // Predicated region
    $region22: #{forward.1} parent=1 // pred_check
      _
    $region23: #{forward.1} parent=1 // pred_check_branch
      %24 = sbr.rel (0) target = $region25
    $region24: #{forward.1} parent=1 // pred_region
      _
    $region25: #{forward.1} parent=1 // pred_fallthru
      _
    // Predicated region
    $region26: #{forward.1} parent=1 // pred_check
      _
    $region27: #{forward.1} parent=1 // pred_check_branch
      %26 = sbr.rel (0) target = $region29
    $region28: #{forward.1} parent=1 // pred_region
      _
    $region29: #{forward.1} parent=1 // pred_fallthru
      _
    %v27 = vld [vmem:[%s0] sm:$0xff]
    %v28 = vld [vmem:[%s1] sm:$0xff]
    %v29 = vld [vmem:[%s1 + $0x8] sm:$0xff]
    %v30 = vld [vmem:[%s1 + $0x10] sm:$0xff]
    %v31 = vld [vmem:[%s1 + $0x18] sm:$0xff]
    %v32 = vld [vmem:[%s2] sm:$0xff]
    %v33 = vld [vmem:[%s2 + $0x8] sm:$0xff]
    %v34 = vld [vmem:[%s2 + $0x10] sm:$0xff]
    %v35 = vld [vmem:[%s2 + $0x18] sm:$0xff]
    %37 = vset.pattern.permute.xlu0 0
    %38 = vperm.xlu0 %37, %v32
    %v39 = vpop.permute.xlu0 %38
    %42 = vset.pattern.permute.xlu0 0
    %43 = vperm.xlu0 %42, %v33
    %v44 = vpop.permute.xlu0 %43
    %47 = vset.pattern.permute.xlu0 0
    %48 = vperm.xlu0 %47, %v34
    %v49 = vpop.permute.xlu0 %48
    %52 = vset.pattern.permute.xlu0 0
    %53 = vperm.xlu0 %52, %v35
    %v54 = vpop.permute.xlu0 %53
    %57 = vst [vmem:[#allocation1] ss:$2 sm:$0xff] %v27
    %v58 = vld.sshfl [vmem:[#allocation1] sm:$0xff pattern:$0x75316420]
    %v59 = vld.sshfl [vmem:[#allocation1 + $0x8] sm:$0xff pattern:$0x75316420]
    %vm60 = vcmask 31744
    %v62 = vsel %vm60, %v28, 0
    %v65 = vsel %vm60, %v29, 0
    %v68 = vsel %vm60, %v30, 0
    %v71 = vsel %vm60, %v31, 0
    %vm73 = vcmask 1043456
    %v74 = vsel %vm73, %v58, 0
    %v76 = vsel %vm73, %v59, 0
    %78 = vmatpush.msra.mxu0 0.0
    %79 = vmatpush.msra.mxu0 0.0
    %80 = vmatpush.msra.mxu0 0.0
    %81 = vmatpush.msra.mxu0 0.0
    %82 = vmatpush.msra.mxu0 0.0
    %83 = vmatpush.msra.mxu0 0.0
    %84 = vmatpush.msra.mxu0 0.0
    %85 = vmatpush.msra.mxu0 0.0
    %86 = vmatpush.msra.mxu0 0.0
    %87 = vmatpush.msra.mxu0 0.0
    %88 = vmatpush.msra.mxu0 0.0
    %89 = vmatpush.msra.mxu0 0.0
    %90 = vmatpush.msra.mxu0 0.0
    %91 = vmatpush.msra.mxu0 0.0
    %92 = vmatpush.msra.mxu0 0.0
    %93 = vmatpush.msra.mxu0 %v74
    %94 = vmatmul.f32.gmra.mxu0 %v62
    %v95 = vpop.f32.mrf.mxu0
    %v96 = vadd.f32 %v39, %v95
    %97 = vmatmul.f32.gmra.mxu0 %v65
    %v98 = vpop.f32.mrf.mxu0
    %v99 = vadd.f32 %v44, %v98
    %100 = vmatmul.f32.gmra.mxu0 %v68
    %v101 = vpop.f32.mrf.mxu0
    %v102 = vadd.f32 %v49, %v101
    %103 = vmatmul.f32.gmra.mxu0 %v71
    %v104 = vpop.f32.mrf.mxu0
    %v105 = vadd.f32 %v54, %v104
    %106 = vdwg.mxu0
    %107 = vmatpush.msra.mxu0 0.0
    %108 = vmatpush.msra.mxu0 0.0
    %109 = vmatpush.msra.mxu0 0.0
    %110 = vmatpush.msra.mxu0 0.0
    %111 = vmatpush.msra.mxu0 0.0
    %112 = vmatpush.msra.mxu0 0.0
    %113 = vmatpush.msra.mxu0 0.0
    %114 = vmatpush.msra.mxu0 0.0
    %115 = vmatpush.msra.mxu0 0.0
    %116 = vmatpush.msra.mxu0 0.0
    %117 = vmatpush.msra.mxu0 0.0
    %118 = vmatpush.msra.mxu0 0.0
    %119 = vmatpush.msra.mxu0 0.0
    %120 = vmatpush.msra.mxu0 0.0
    %121 = vmatpush.msra.mxu0 0.0
    %122 = vmatpush.msra.mxu0 %v76
    %123 = vmatmul.f32.gmra.mxu0 %v62
    %v124 = vpop.f32.mrf.mxu0
    %v125 = vadd.f32 %v39, %v124
    %126 = vmatmul.f32.gmra.mxu0 %v65
    %v127 = vpop.f32.mrf.mxu0
    %v128 = vadd.f32 %v44, %v127
    %129 = vmatmul.f32.gmra.mxu0 %v68
    %v130 = vpop.f32.mrf.mxu0
    %v131 = vadd.f32 %v49, %v130
    %132 = vmatmul.f32.gmra.mxu0 %v71
    %v133 = vpop.f32.mrf.mxu0
    %v134 = vadd.f32 %v54, %v133
    %135 = vdwg.mxu0
    %136 = vst [vmem:[#allocation2] sm:$0xff] %v96
    %137 = vst [vmem:[#allocation2 + $0x8] sm:$0xff] %v125
    %138 = vst [vmem:[#allocation2 + $0x10] sm:$0xff] %v99
    %139 = vst [vmem:[#allocation2 + $0x18] sm:$0xff] %v128
    %140 = vst [vmem:[#allocation2 + $0x20] sm:$0xff] %v102
    %141 = vst [vmem:[#allocation2 + $0x28] sm:$0xff] %v131
    %142 = vst [vmem:[#allocation2 + $0x30] sm:$0xff] %v105
    %143 = vst [vmem:[#allocation2 + $0x38] sm:$0xff] %v134
    %v144 = vld [vmem:[%s3] sm:$0xff]
    %v145 = vld [vmem:[%s3 + $0x8] sm:$0xff]
    %v146 = vld [vmem:[%s3 + $0x10] sm:$0xff]
    %v147 = vld [vmem:[%s3 + $0x18] sm:$0xff]
    %v148 = vld [vmem:[%s3 + $0x20] sm:$0xff]
    %v149 = vld [vmem:[%s3 + $0x28] sm:$0xff]
    %v150 = vld [vmem:[%s3 + $0x30] sm:$0x1]
    %v151 = vld [vmem:[#allocation2] sm:$0xff]
    %v152 = vld [vmem:[#allocation2 + $0x8] sm:$0xff]
    %v153 = vld [vmem:[#allocation2 + $0x10] sm:$0xff]
    %v154 = vld [vmem:[#allocation2 + $0x18] sm:$0xff]
    %v155 = vld [vmem:[#allocation2 + $0x20] sm:$0xff]
    %v156 = vld [vmem:[#allocation2 + $0x28] sm:$0xff]
    %v157 = vld [vmem:[#allocation2 + $0x30] sm:$0xff]
    %v158 = vld [vmem:[#allocation2 + $0x38] sm:$0xff]
    %v159 = vld [vmem:[%s4] sm:$0xff]
    %v160 = vld [vmem:[%s4 + $0x8] sm:$0xff]
    %v161 = vld [vmem:[%s4 + $0x10] sm:$0xff]
    %v162 = vld [vmem:[%s4 + $0x18] sm:$0xff]
    %v163 = vld [vmem:[%s4 + $0x20] sm:$0xff]
    %v164 = vld [vmem:[%s4 + $0x28] sm:$0xff]
    %v165 = vld [vmem:[%s4 + $0x30] sm:$0x1]
    %167 = vset.pattern.permute.xlu0 0
    %168 = vperm.xlu0 %167, %v159
    %v169 = vpop.permute.xlu0 %168
    %172 = vset.pattern.permute.xlu0 0
    %173 = vperm.xlu0 %172, %v160
    %v174 = vpop.permute.xlu0 %173
    %177 = vset.pattern.permute.xlu0 0
    %178 = vperm.xlu0 %177, %v161
    %v179 = vpop.permute.xlu0 %178
    %182 = vset.pattern.permute.xlu0 0
    %183 = vperm.xlu0 %182, %v162
    %v184 = vpop.permute.xlu0 %183
    %187 = vset.pattern.permute.xlu0 0
    %188 = vperm.xlu0 %187, %v163
    %v189 = vpop.permute.xlu0 %188
    %192 = vset.pattern.permute.xlu0 0
    %193 = vperm.xlu0 %192, %v164
    %v194 = vpop.permute.xlu0 %193
    %197 = vset.pattern.permute.xlu0 0
    %198 = vperm.xlu0 %197, %v165
    %v199 = vpop.permute.xlu0 %198
    %vm201 = vcmask 261120
    %v203 = vsel %vm201, %v144, 0
    %v206 = vsel %vm201, %v145, 0
    %v209 = vsel %vm201, %v146, 0
    %v212 = vsel %vm201, %v147, 0
    %v215 = vsel %vm201, %v148, 0
    %v218 = vsel %vm201, %v149, 0
    %v221 = vsel %vm201, %v150, 0
    %223 = vmatpush.msra.mxu0 0.0
    %224 = vmatpush.msra.mxu0 0.0
    %225 = vmatpush.msra.mxu0 0.0
    %226 = vmatpush.msra.mxu0 0.0
    %227 = vmatpush.msra.mxu0 0.0
    %228 = vmatpush.msra.mxu0 0.0
    %229 = vmatpush.msra.mxu0 0.0
    %230 = vmatpush.msra.mxu0 0.0
    %231 = vmatpush.msra.mxu0 0.0
    %232 = vmatpush.msra.mxu0 0.0
    %233 = vmatpush.msra.mxu0 0.0
    %234 = vmatpush.msra.mxu0 0.0
    %235 = vmatpush.msra.mxu0 %v157
    %236 = vmatpush.msra.mxu0 %v155
    %237 = vmatpush.msra.mxu0 %v153
    %238 = vmatpush.msra.mxu0 %v151
    %239 = vmatmul.f32.gmra.mxu0 %v203
    %v240 = vpop.f32.mrf.mxu0
    %v241 = vadd.f32 %v169, %v240
    %242 = vmatmul.f32.gmra.mxu0 %v206
    %v243 = vpop.f32.mrf.mxu0
    %v244 = vadd.f32 %v174, %v243
    %245 = vmatmul.f32.gmra.mxu0 %v209
    %v246 = vpop.f32.mrf.mxu0
    %v247 = vadd.f32 %v179, %v246
    %248 = vmatmul.f32.gmra.mxu0 %v212
    %v249 = vpop.f32.mrf.mxu0
    %v250 = vadd.f32 %v184, %v249
    %251 = vmatmul.f32.gmra.mxu0 %v215
    %v252 = vpop.f32.mrf.mxu0
    %v253 = vadd.f32 %v189, %v252
    %254 = vmatmul.f32.gmra.mxu0 %v218
    %v255 = vpop.f32.mrf.mxu0
    %v256 = vadd.f32 %v194, %v255
    %257 = vmatmul.f32.gmra.mxu0 %v221
    %v258 = vpop.f32.mrf.mxu0
    %v259 = vadd.f32 %v199, %v258
    %260 = vdwg.mxu0
    %261 = vmatpush.msra.mxu0 0.0
    %262 = vmatpush.msra.mxu0 0.0
    %263 = vmatpush.msra.mxu0 0.0
    %264 = vmatpush.msra.mxu0 0.0
    %265 = vmatpush.msra.mxu0 0.0
    %266 = vmatpush.msra.mxu0 0.0
    %267 = vmatpush.msra.mxu0 0.0
    %268 = vmatpush.msra.mxu0 0.0
    %269 = vmatpush.msra.mxu0 0.0
    %270 = vmatpush.msra.mxu0 0.0
    %271 = vmatpush.msra.mxu0 0.0
    %272 = vmatpush.msra.mxu0 0.0
    %273 = vmatpush.msra.mxu0 %v158
    %274 = vmatpush.msra.mxu0 %v156
    %275 = vmatpush.msra.mxu0 %v154
    %276 = vmatpush.msra.mxu0 %v152
    %277 = vmatmul.f32.gmra.mxu0 %v203
    %v278 = vpop.f32.mrf.mxu0
    %v279 = vadd.f32 %v169, %v278
    %280 = vmatmul.f32.gmra.mxu0 %v206
    %v281 = vpop.f32.mrf.mxu0
    %v282 = vadd.f32 %v174, %v281
    %283 = vmatmul.f32.gmra.mxu0 %v209
    %v284 = vpop.f32.mrf.mxu0
    %v285 = vadd.f32 %v179, %v284
    %286 = vmatmul.f32.gmra.mxu0 %v212
    %v287 = vpop.f32.mrf.mxu0
    %v288 = vadd.f32 %v184, %v287
    %289 = vmatmul.f32.gmra.mxu0 %v215
    %v290 = vpop.f32.mrf.mxu0
    %v291 = vadd.f32 %v189, %v290
    %292 = vmatmul.f32.gmra.mxu0 %v218
    %v293 = vpop.f32.mrf.mxu0
    %v294 = vadd.f32 %v194, %v293
    %295 = vmatmul.f32.gmra.mxu0 %v221
    %v296 = vpop.f32.mrf.mxu0
    %v297 = vadd.f32 %v199, %v296
    %298 = vdwg.mxu0
    %299 = vxpose.xlu0.b32.start [1/16] %v241, 128
    %300 = vxpose.xlu0.b32.cont [2/16] 0.0, 128
    %301 = vxpose.xlu0.b32.cont [3/16] 0.0, 128
    %302 = vxpose.xlu0.b32.cont [4/16] 0.0, 128
    %303 = vxpose.xlu0.b32.cont [5/16] 0.0, 128
    %304 = vxpose.xlu0.b32.cont [6/16] 0.0, 128
    %305 = vxpose.xlu0.b32.cont [7/16] 0.0, 128
    %306 = vxpose.xlu0.b32.cont [8/16] 0.0, 128
    %307 = vxpose.xlu0.b32.cont [9/16] 0.0, 128
    %308 = vxpose.xlu0.b32.cont [10/16] 0.0, 128
    %309 = vxpose.xlu0.b32.cont [11/16] 0.0, 128
    %310 = vxpose.xlu0.b32.cont [12/16] 0.0, 128
    %311 = vxpose.xlu0.b32.cont [13/16] 0.0, 128
    %312 = vxpose.xlu0.b32.cont [14/16] 0.0, 128
    %313 = vxpose.xlu0.b32.cont [15/16] 0.0, 128
    %314 = vxpose.xlu0.b32.end [16/16] 0.0, 128
    %v315 = vpop.trf.xlu0
    %v316 = vpop.trf.xlu0
    %v317 = vpop.trf.xlu0
    %v318 = vpop.trf.xlu0
    %v319 = vpop.trf.xlu0
    %v320 = vpop.trf.xlu0
    %v321 = vpop.trf.xlu0
    %v322 = vpop.trf.xlu0
    %v323 = vpop.trf.xlu0
    %v324 = vpop.trf.xlu0
    %v325 = vpop.trf.xlu0
    %v326 = vpop.trf.xlu0
    %v327 = vpop.trf.xlu0
    %v328 = vpop.trf.xlu0
    %v329 = vpop.trf.xlu0
    %v330 = vpop.trf.xlu0
    %vm331 = vcmask 64512
    %v333 = vsel %vm331, %v315, 0
    %v336 = vsel %vm331, %v316, 0
    %v339 = vsel %vm331, %v317, 0
    %v342 = vsel %vm331, %v318, 0
    %v345 = vsel %vm331, %v319, 0
    %v348 = vsel %vm331, %v320, 0
    %v351 = vsel %vm331, %v321, 0
    %v354 = vsel %vm331, %v322, 0
    %356 = vmatpush.msra.mxu0 0.0
    %357 = vmatpush.msra.mxu0 0.0
    %358 = vmatpush.msra.mxu0 0.0
    %359 = vmatpush.msra.mxu0 0.0
    %360 = vmatpush.msra.mxu0 0.0
    %361 = vmatpush.msra.mxu0 0.0
    %362 = vmatpush.msra.mxu0 0.0
    %363 = vmatpush.msra.mxu0 0.0
    %364 = vmatpush.msra.mxu0 0.0
    %365 = vmatpush.msra.mxu0 0.0
    %366 = vmatpush.msra.mxu0 0.0
    %367 = vmatpush.msra.mxu0 0.0
    %368 = vmatpush.msra.mxu0 0.0
    %369 = vmatpush.msra.mxu0 0.0
    %370 = vmatpush.msra.mxu0 0.0
    %371 = vmatpush.msra.mxu0 %v244
    %372 = vmatmul.f32.gmra.mxu0 %v333
    %v373 = vpop.f32.mrf.mxu0
    %v374 = vadd.f32 0.0, %v373
    %375 = vmatmul.f32.gmra.mxu0 %v336
    %v376 = vpop.f32.mrf.mxu0
    %v377 = vadd.f32 0.0, %v376
    %378 = vmatmul.f32.gmra.mxu0 %v339
    %v379 = vpop.f32.mrf.mxu0
    %v380 = vadd.f32 0.0, %v379
    %381 = vmatmul.f32.gmra.mxu0 %v342
    %v382 = vpop.f32.mrf.mxu0
    %v383 = vadd.f32 0.0, %v382
    %384 = vmatmul.f32.gmra.mxu0 %v345
    %v385 = vpop.f32.mrf.mxu0
    %v386 = vadd.f32 0.0, %v385
    %387 = vmatmul.f32.gmra.mxu0 %v348
    %v388 = vpop.f32.mrf.mxu0
    %v389 = vadd.f32 0.0, %v388
    %390 = vmatmul.f32.gmra.mxu0 %v351
    %v391 = vpop.f32.mrf.mxu0
    %v392 = vadd.f32 0.0, %v391
    %393 = vmatmul.f32.gmra.mxu0 %v354
    %v394 = vpop.f32.mrf.mxu0
    %v395 = vadd.f32 0.0, %v394
    %396 = vdwg.mxu0
    %397 = vmatpush.msra.mxu0 0.0
    %398 = vmatpush.msra.mxu0 0.0
    %399 = vmatpush.msra.mxu0 0.0
    %400 = vmatpush.msra.mxu0 0.0
    %401 = vmatpush.msra.mxu0 0.0
    %402 = vmatpush.msra.mxu0 0.0
    %403 = vmatpush.msra.mxu0 0.0
    %404 = vmatpush.msra.mxu0 0.0
    %405 = vmatpush.msra.mxu0 0.0
    %406 = vmatpush.msra.mxu0 0.0
    %407 = vmatpush.msra.mxu0 0.0
    %408 = vmatpush.msra.mxu0 0.0
    %409 = vmatpush.msra.mxu0 0.0
    %410 = vmatpush.msra.mxu0 0.0
    %411 = vmatpush.msra.mxu0 0.0
    %412 = vmatpush.msra.mxu0 %v282
    %413 = vmatmul.f32.gmra.mxu0 %v333
    %v414 = vpop.f32.mrf.mxu0
    %v415 = vadd.f32 0.0, %v414
    %416 = vmatmul.f32.gmra.mxu0 %v336
    %v417 = vpop.f32.mrf.mxu0
    %v418 = vadd.f32 0.0, %v417
    %419 = vmatmul.f32.gmra.mxu0 %v339
    %v420 = vpop.f32.mrf.mxu0
    %v421 = vadd.f32 0.0, %v420
    %422 = vmatmul.f32.gmra.mxu0 %v342
    %v423 = vpop.f32.mrf.mxu0
    %v424 = vadd.f32 0.0, %v423
    %425 = vmatmul.f32.gmra.mxu0 %v345
    %v426 = vpop.f32.mrf.mxu0
    %v427 = vadd.f32 0.0, %v426
    %428 = vmatmul.f32.gmra.mxu0 %v348
    %v429 = vpop.f32.mrf.mxu0
    %v430 = vadd.f32 0.0, %v429
    %431 = vmatmul.f32.gmra.mxu0 %v351
    %v432 = vpop.f32.mrf.mxu0
    %v433 = vadd.f32 0.0, %v432
    %434 = vmatmul.f32.gmra.mxu0 %v354
    %v435 = vpop.f32.mrf.mxu0
    %v436 = vadd.f32 0.0, %v435
    %437 = vdwg.mxu0
    %v438 = vmax.f32 %v374, %v415
    %439 = vmax.xlane.f32.xlu0 %v438
    %v440 = vpop.xlane.xlu0 %439
    %v441 = vmax.f32 %v377, %v418
    %442 = vmax.xlane.f32.xlu0 %v441
    %v443 = vpop.xlane.xlu0 %442
    %v444 = vmax.f32 %v380, %v421
    %445 = vmax.xlane.f32.xlu0 %v444
    %v446 = vpop.xlane.xlu0 %445
    %v447 = vmax.f32 %v383, %v424
    %448 = vmax.xlane.f32.xlu0 %v447
    %v449 = vpop.xlane.xlu0 %448
    %v450 = vmax.f32 %v386, %v427
    %451 = vmax.xlane.f32.xlu0 %v450
    %v452 = vpop.xlane.xlu0 %451
    %v453 = vmax.f32 %v389, %v430
    %454 = vmax.xlane.f32.xlu0 %v453
    %v455 = vpop.xlane.xlu0 %454
    %v456 = vmax.f32 %v392, %v433
    %457 = vmax.xlane.f32.xlu0 %v456
    %v458 = vpop.xlane.xlu0 %457
    %v459 = vmax.f32 %v395, %v436
    %460 = vmax.xlane.f32.xlu0 %v459
    %v461 = vpop.xlane.xlu0 %460
    %v462 = vsub.f32 %v374, %v440
    %v463 = vsub.f32 %v415, %v440
    %v464 = vsub.f32 %v377, %v443
    %v465 = vsub.f32 %v418, %v443
    %v466 = vsub.f32 %v380, %v446
    %v467 = vsub.f32 %v421, %v446
    %v468 = vsub.f32 %v383, %v449
    %v469 = vsub.f32 %v424, %v449
    %v470 = vsub.f32 %v386, %v452
    %v471 = vsub.f32 %v427, %v452
    %v472 = vsub.f32 %v389, %v455
    %v473 = vsub.f32 %v430, %v455
    %v474 = vsub.f32 %v392, %v458
    %v475 = vsub.f32 %v433, %v458
    %v476 = vsub.f32 %v395, %v461
    %v477 = vsub.f32 %v436, %v461
    %v478 = vmul.f32 %v462, 1.442695
    %v479 = vpow.pop %v478
    %v480 = vmul.f32 %v463, 1.442695
    %v481 = vpow.pop %v480
    %v482 = vmul.f32 %v464, 1.442695
    %v483 = vpow.pop %v482
    %v484 = vmul.f32 %v465, 1.442695
    %v485 = vpow.pop %v484
    %v486 = vmul.f32 %v466, 1.442695
    %v487 = vpow.pop %v486
    %v488 = vmul.f32 %v467, 1.442695
    %v489 = vpow.pop %v488
    %v490 = vmul.f32 %v468, 1.442695
    %v491 = vpow.pop %v490
    %v492 = vmul.f32 %v469, 1.442695
    %v493 = vpow.pop %v492
    %v494 = vmul.f32 %v470, 1.442695
    %v495 = vpow.pop %v494
    %v496 = vmul.f32 %v471, 1.442695
    %v497 = vpow.pop %v496
    %v498 = vmul.f32 %v472, 1.442695
    %v499 = vpow.pop %v498
    %v500 = vmul.f32 %v473, 1.442695
    %v501 = vpow.pop %v500
    %v502 = vmul.f32 %v474, 1.442695
    %v503 = vpow.pop %v502
    %v504 = vmul.f32 %v475, 1.442695
    %v505 = vpow.pop %v504
    %v506 = vmul.f32 %v476, 1.442695
    %v507 = vpow.pop %v506
    %v508 = vmul.f32 %v477, 1.442695
    %v509 = vpow.pop %v508
    %510 = vmatpush.xpose.msra.mxu0 0.0
    %511 = vmatpush.xpose.msra.mxu0 0.0
    %512 = vmatpush.xpose.msra.mxu0 0.0
    %513 = vmatpush.xpose.msra.mxu0 0.0
    %514 = vmatpush.xpose.msra.mxu0 0.0
    %515 = vmatpush.xpose.msra.mxu0 0.0
    %516 = vmatpush.xpose.msra.mxu0 0.0
    %517 = vmatpush.xpose.msra.mxu0 0.0
    %518 = vmatpush.xpose.msra.mxu0 %v507
    %519 = vmatpush.xpose.msra.mxu0 %v503
    %520 = vmatpush.xpose.msra.mxu0 %v499
    %521 = vmatpush.xpose.msra.mxu0 %v495
    %522 = vmatpush.xpose.msra.mxu0 %v491
    %523 = vmatpush.xpose.msra.mxu0 %v487
    %524 = vmatpush.xpose.msra.mxu0 %v483
    %525 = vmatpush.xpose.msra.mxu0 %v479
    %526 = vmatmul.f32.gmra.mxu0 %v247
    %v527 = vpop.f32.mrf.mxu0
    %v528 = vadd.f32 0.0, %v527
    %529 = vmatmul.f32.gmra.mxu0 %v250
    %v530 = vpop.f32.mrf.mxu0
    %v531 = vadd.f32 0.0, %v530
    %532 = vmatmul.f32.gmra.mxu0 %v253
    %v533 = vpop.f32.mrf.mxu0
    %v534 = vadd.f32 0.0, %v533
    %535 = vmatmul.f32.gmra.mxu0 %v256
    %v536 = vpop.f32.mrf.mxu0
    %v537 = vadd.f32 0.0, %v536
    %538 = vmatmul.f32.gmra.mxu0 %v259
    %v539 = vpop.f32.mrf.mxu0
    %v540 = vadd.f32 0.0, %v539
    %541 = vdwg.mxu0
    %542 = vmatpush.xpose.msra.mxu0 0.0
    %543 = vmatpush.xpose.msra.mxu0 0.0
    %544 = vmatpush.xpose.msra.mxu0 0.0
    %545 = vmatpush.xpose.msra.mxu0 0.0
    %546 = vmatpush.xpose.msra.mxu0 0.0
    %547 = vmatpush.xpose.msra.mxu0 0.0
    %548 = vmatpush.xpose.msra.mxu0 0.0
    %549 = vmatpush.xpose.msra.mxu0 0.0
    %550 = vmatpush.xpose.msra.mxu0 %v509
    %551 = vmatpush.xpose.msra.mxu0 %v505
    %552 = vmatpush.xpose.msra.mxu0 %v501
    %553 = vmatpush.xpose.msra.mxu0 %v497
    %554 = vmatpush.xpose.msra.mxu0 %v493
    %555 = vmatpush.xpose.msra.mxu0 %v489
    %556 = vmatpush.xpose.msra.mxu0 %v485
    %557 = vmatpush.xpose.msra.mxu0 %v481
    %558 = vmatmul.f32.gmra.mxu0 %v285
    %v559 = vpop.f32.mrf.mxu0
    %v560 = vadd.f32 %v528, %v559
    %561 = vmatmul.f32.gmra.mxu0 %v288
    %v562 = vpop.f32.mrf.mxu0
    %v563 = vadd.f32 %v531, %v562
    %564 = vmatmul.f32.gmra.mxu0 %v291
    %v565 = vpop.f32.mrf.mxu0
    %v566 = vadd.f32 %v534, %v565
    %567 = vmatmul.f32.gmra.mxu0 %v294
    %v568 = vpop.f32.mrf.mxu0
    %v569 = vadd.f32 %v537, %v568
    %570 = vmatmul.f32.gmra.mxu0 %v297
    %v571 = vpop.f32.mrf.mxu0
    %v572 = vadd.f32 %v540, %v571
    %573 = vdwg.mxu0
    %v574 = vrcp.pop %v572
    %v575 = vperm.slane %v574, 0
    %v576 = vmul.f32 %v560, %v575
    %v577 = vmul.f32 %v563, %v575
    %v578 = vmul.f32 %v566, %v575
    %v579 = vmul.f32 %v569, %v575
    %v580 = vld [vmem:[#allocation2] sm:$0xff]
    %v581 = vld [vmem:[#allocation2 + $0x10] sm:$0xff]
    %v582 = vld [vmem:[#allocation2 + $0x20] sm:$0xff]
    %v583 = vld [vmem:[#allocation2 + $0x30] sm:$0xff]
    %v584 = vadd.f32 %v576, %v580
    %v585 = vadd.f32 %v577, %v581
    %v586 = vadd.f32 %v578, %v582
    %v587 = vadd.f32 %v579, %v583
    %vm588 = vcmask 523264
    %589 = vst.msk [vmem:[#allocation2] sm:$0xff] %vm588, %v584
    %590 = vst.msk [vmem:[#allocation2 + $0x10] sm:$0xff] %vm588, %v585
    %591 = vst.msk [vmem:[#allocation2 + $0x20] sm:$0xff] %vm588, %v586
    %592 = vst.msk [vmem:[#allocation2 + $0x30] sm:$0xff] %vm588, %v587
    %594 = vrot.lane.b32.xlu0 %v241, 64
    %v595 = vpop.permute.xlu0 %594
    %597 = vxpose.xlu0.b32.start [1/16] %v595, 128
    %598 = vxpose.xlu0.b32.cont [2/16] 0.0, 128
    %599 = vxpose.xlu0.b32.cont [3/16] 0.0, 128
    %600 = vxpose.xlu0.b32.cont [4/16] 0.0, 128
    %601 = vxpose.xlu0.b32.cont [5/16] 0.0, 128
    %602 = vxpose.xlu0.b32.cont [6/16] 0.0, 128
    %603 = vxpose.xlu0.b32.cont [7/16] 0.0, 128
    %604 = vxpose.xlu0.b32.cont [8/16] 0.0, 128
    %605 = vxpose.xlu0.b32.cont [9/16] 0.0, 128
    %606 = vxpose.xlu0.b32.cont [10/16] 0.0, 128
    %607 = vxpose.xlu0.b32.cont [11/16] 0.0, 128
    %608 = vxpose.xlu0.b32.cont [12/16] 0.0, 128
    %609 = vxpose.xlu0.b32.cont [13/16] 0.0, 128
    %610 = vxpose.xlu0.b32.cont [14/16] 0.0, 128
    %611 = vxpose.xlu0.b32.cont [15/16] 0.0, 128
    %612 = vxpose.xlu0.b32.end [16/16] 0.0, 128
    %v613 = vpop.trf.xlu0
    %v614 = vpop.trf.xlu0
    %v615 = vpop.trf.xlu0
    %v616 = vpop.trf.xlu0
    %v617 = vpop.trf.xlu0
    %v618 = vpop.trf.xlu0
    %v619 = vpop.trf.xlu0
    %v620 = vpop.trf.xlu0
    %v621 = vpop.trf.xlu0
    %v622 = vpop.trf.xlu0
    %v623 = vpop.trf.xlu0
    %v624 = vpop.trf.xlu0
    %v625 = vpop.trf.xlu0
    %v626 = vpop.trf.xlu0
    %v627 = vpop.trf.xlu0
    %v628 = vpop.trf.xlu0
    %v630 = vsel %vm331, %v613, 0
    %v633 = vsel %vm331, %v614, 0
    %v636 = vsel %vm331, %v615, 0
    %v639 = vsel %vm331, %v616, 0
    %v642 = vsel %vm331, %v617, 0
    %v645 = vsel %vm331, %v618, 0
    %v648 = vsel %vm331, %v619, 0
    %v651 = vsel %vm331, %v620, 0
    %653 = vmatpush.msra.mxu0 0.0
    %654 = vmatpush.msra.mxu0 0.0
    %655 = vmatpush.msra.mxu0 0.0
    %656 = vmatpush.msra.mxu0 0.0
    %657 = vmatpush.msra.mxu0 0.0
    %658 = vmatpush.msra.mxu0 0.0
    %659 = vmatpush.msra.mxu0 0.0
    %660 = vmatpush.msra.mxu0 0.0
    %661 = vmatpush.msra.mxu0 0.0
    %662 = vmatpush.msra.mxu0 0.0
    %663 = vmatpush.msra.mxu0 0.0
    %664 = vmatpush.msra.mxu0 0.0
    %665 = vmatpush.msra.mxu0 0.0
    %666 = vmatpush.msra.mxu0 0.0
    %667 = vmatpush.msra.mxu0 0.0
    %668 = vmatpush.msra.mxu0 %v244
    %669 = vmatmul.f32.gmra.mxu0 %v630
    %v670 = vpop.f32.mrf.mxu0
    %v671 = vadd.f32 0.0, %v670
    %672 = vmatmul.f32.gmra.mxu0 %v633
    %v673 = vpop.f32.mrf.mxu0
    %v674 = vadd.f32 0.0, %v673
    %675 = vmatmul.f32.gmra.mxu0 %v636
    %v676 = vpop.f32.mrf.mxu0
    %v677 = vadd.f32 0.0, %v676
    %678 = vmatmul.f32.gmra.mxu0 %v639
    %v679 = vpop.f32.mrf.mxu0
    %v680 = vadd.f32 0.0, %v679
    %681 = vmatmul.f32.gmra.mxu0 %v642
    %v682 = vpop.f32.mrf.mxu0
    %v683 = vadd.f32 0.0, %v682
    %684 = vmatmul.f32.gmra.mxu0 %v645
    %v685 = vpop.f32.mrf.mxu0
    %v686 = vadd.f32 0.0, %v685
    %687 = vmatmul.f32.gmra.mxu0 %v648
    %v688 = vpop.f32.mrf.mxu0
    %v689 = vadd.f32 0.0, %v688
    %690 = vmatmul.f32.gmra.mxu0 %v651
    %v691 = vpop.f32.mrf.mxu0
    %v692 = vadd.f32 0.0, %v691
    %693 = vdwg.mxu0
    %694 = vmatpush.msra.mxu0 0.0
    %695 = vmatpush.msra.mxu0 0.0
    %696 = vmatpush.msra.mxu0 0.0
    %697 = vmatpush.msra.mxu0 0.0
    %698 = vmatpush.msra.mxu0 0.0
    %699 = vmatpush.msra.mxu0 0.0
    %700 = vmatpush.msra.mxu0 0.0
    %701 = vmatpush.msra.mxu0 0.0
    %702 = vmatpush.msra.mxu0 0.0
    %703 = vmatpush.msra.mxu0 0.0
    %704 = vmatpush.msra.mxu0 0.0
    %705 = vmatpush.msra.mxu0 0.0
    %706 = vmatpush.msra.mxu0 0.0
    %707 = vmatpush.msra.mxu0 0.0
    %708 = vmatpush.msra.mxu0 0.0
    %709 = vmatpush.msra.mxu0 %v282
    %710 = vmatmul.f32.gmra.mxu0 %v630
    %v711 = vpop.f32.mrf.mxu0
    %v712 = vadd.f32 0.0, %v711
    %713 = vmatmul.f32.gmra.mxu0 %v633
    %v714 = vpop.f32.mrf.mxu0
    %v715 = vadd.f32 0.0, %v714
    %716 = vmatmul.f32.gmra.mxu0 %v636
    %v717 = vpop.f32.mrf.mxu0
    %v718 = vadd.f32 0.0, %v717
    %719 = vmatmul.f32.gmra.mxu0 %v639
    %v720 = vpop.f32.mrf.mxu0
    %v721 = vadd.f32 0.0, %v720
    %722 = vmatmul.f32.gmra.mxu0 %v642
    %v723 = vpop.f32.mrf.mxu0
    %v724 = vadd.f32 0.0, %v723
    %725 = vmatmul.f32.gmra.mxu0 %v645
    %v726 = vpop.f32.mrf.mxu0
    %v727 = vadd.f32 0.0, %v726
    %728 = vmatmul.f32.gmra.mxu0 %v648
    %v729 = vpop.f32.mrf.mxu0
    %v730 = vadd.f32 0.0, %v729
    %731 = vmatmul.f32.gmra.mxu0 %v651
    %v732 = vpop.f32.mrf.mxu0
    %v733 = vadd.f32 0.0, %v732
    %734 = vdwg.mxu0
    %v735 = vmax.f32 %v671, %v712
    %736 = vmax.xlane.f32.xlu0 %v735
    %v737 = vpop.xlane.xlu0 %736
    %v738 = vmax.f32 %v674, %v715
    %739 = vmax.xlane.f32.xlu0 %v738
    %v740 = vpop.xlane.xlu0 %739
    %v741 = vmax.f32 %v677, %v718
    %742 = vmax.xlane.f32.xlu0 %v741
    %v743 = vpop.xlane.xlu0 %742
    %v744 = vmax.f32 %v680, %v721
    %745 = vmax.xlane.f32.xlu0 %v744
    %v746 = vpop.xlane.xlu0 %745
    %v747 = vmax.f32 %v683, %v724
    %748 = vmax.xlane.f32.xlu0 %v747
    %v749 = vpop.xlane.xlu0 %748
    %v750 = vmax.f32 %v686, %v727
    %751 = vmax.xlane.f32.xlu0 %v750
    %v752 = vpop.xlane.xlu0 %751
    %v753 = vmax.f32 %v689, %v730
    %754 = vmax.xlane.f32.xlu0 %v753
    %v755 = vpop.xlane.xlu0 %754
    %v756 = vmax.f32 %v692, %v733
    %757 = vmax.xlane.f32.xlu0 %v756
    %v758 = vpop.xlane.xlu0 %757
    %v759 = vsub.f32 %v671, %v737
    %v760 = vsub.f32 %v712, %v737
    %v761 = vsub.f32 %v674, %v740
    %v762 = vsub.f32 %v715, %v740
    %v763 = vsub.f32 %v677, %v743
    %v764 = vsub.f32 %v718, %v743
    %v765 = vsub.f32 %v680, %v746
    %v766 = vsub.f32 %v721, %v746
    %v767 = vsub.f32 %v683, %v749
    %v768 = vsub.f32 %v724, %v749
    %v769 = vsub.f32 %v686, %v752
    %v770 = vsub.f32 %v727, %v752
    %v771 = vsub.f32 %v689, %v755
    %v772 = vsub.f32 %v730, %v755
    %v773 = vsub.f32 %v692, %v758
    %v774 = vsub.f32 %v733, %v758
    %v775 = vmul.f32 %v759, 1.442695
    %v776 = vpow.pop %v775
    %v777 = vmul.f32 %v760, 1.442695
    %v778 = vpow.pop %v777
    %v779 = vmul.f32 %v761, 1.442695
    %v780 = vpow.pop %v779
    %v781 = vmul.f32 %v762, 1.442695
    %v782 = vpow.pop %v781
    %v783 = vmul.f32 %v763, 1.442695
    %v784 = vpow.pop %v783
    %v785 = vmul.f32 %v764, 1.442695
    %v786 = vpow.pop %v785
    %v787 = vmul.f32 %v765, 1.442695
    %v788 = vpow.pop %v787
    %v789 = vmul.f32 %v766, 1.442695
    %v790 = vpow.pop %v789
    %v791 = vmul.f32 %v767, 1.442695
    %v792 = vpow.pop %v791
    %v793 = vmul.f32 %v768, 1.442695
    %v794 = vpow.pop %v793
    %v795 = vmul.f32 %v769, 1.442695
    %v796 = vpow.pop %v795
    %v797 = vmul.f32 %v770, 1.442695
    %v798 = vpow.pop %v797
    %v799 = vmul.f32 %v771, 1.442695
    %v800 = vpow.pop %v799
    %v801 = vmul.f32 %v772, 1.442695
    %v802 = vpow.pop %v801
    %v803 = vmul.f32 %v773, 1.442695
    %v804 = vpow.pop %v803
    %v805 = vmul.f32 %v774, 1.442695
    %v806 = vpow.pop %v805
    %807 = vmatpush.xpose.msra.mxu0 0.0
    %808 = vmatpush.xpose.msra.mxu0 0.0
    %809 = vmatpush.xpose.msra.mxu0 0.0
    %810 = vmatpush.xpose.msra.mxu0 0.0
    %811 = vmatpush.xpose.msra.mxu0 0.0
    %812 = vmatpush.xpose.msra.mxu0 0.0
    %813 = vmatpush.xpose.msra.mxu0 0.0
    %814 = vmatpush.xpose.msra.mxu0 0.0
    %815 = vmatpush.xpose.msra.mxu0 %v804
    %816 = vmatpush.xpose.msra.mxu0 %v800
    %817 = vmatpush.xpose.msra.mxu0 %v796
    %818 = vmatpush.xpose.msra.mxu0 %v792
    %819 = vmatpush.xpose.msra.mxu0 %v788
    %820 = vmatpush.xpose.msra.mxu0 %v784
    %821 = vmatpush.xpose.msra.mxu0 %v780
    %822 = vmatpush.xpose.msra.mxu0 %v776
    %823 = vmatmul.f32.gmra.mxu0 %v247
    %v824 = vpop.f32.mrf.mxu0
    %v825 = vadd.f32 0.0, %v824
    %826 = vmatmul.f32.gmra.mxu0 %v250
    %v827 = vpop.f32.mrf.mxu0
    %v828 = vadd.f32 0.0, %v827
    %829 = vmatmul.f32.gmra.mxu0 %v253
    %v830 = vpop.f32.mrf.mxu0
    %v831 = vadd.f32 0.0, %v830
    %832 = vmatmul.f32.gmra.mxu0 %v256
    %v833 = vpop.f32.mrf.mxu0
    %v834 = vadd.f32 0.0, %v833
    %835 = vmatmul.f32.gmra.mxu0 %v259
    %v836 = vpop.f32.mrf.mxu0
    %v837 = vadd.f32 0.0, %v836
    %838 = vdwg.mxu0
    %839 = vmatpush.xpose.msra.mxu0 0.0
    %840 = vmatpush.xpose.msra.mxu0 0.0
    %841 = vmatpush.xpose.msra.mxu0 0.0
    %842 = vmatpush.xpose.msra.mxu0 0.0
    %843 = vmatpush.xpose.msra.mxu0 0.0
    %844 = vmatpush.xpose.msra.mxu0 0.0
    %845 = vmatpush.xpose.msra.mxu0 0.0
    %846 = vmatpush.xpose.msra.mxu0 0.0
    %847 = vmatpush.xpose.msra.mxu0 %v806
    %848 = vmatpush.xpose.msra.mxu0 %v802
    %849 = vmatpush.xpose.msra.mxu0 %v798
    %850 = vmatpush.xpose.msra.mxu0 %v794
    %851 = vmatpush.xpose.msra.mxu0 %v790
    %852 = vmatpush.xpose.msra.mxu0 %v786
    %853 = vmatpush.xpose.msra.mxu0 %v782
    %854 = vmatpush.xpose.msra.mxu0 %v778
    %855 = vmatmul.f32.gmra.mxu0 %v285
    %v856 = vpop.f32.mrf.mxu0
    %v857 = vadd.f32 %v825, %v856
    %858 = vmatmul.f32.gmra.mxu0 %v288
    %v859 = vpop.f32.mrf.mxu0
    %v860 = vadd.f32 %v828, %v859
    %861 = vmatmul.f32.gmra.mxu0 %v291
    %v862 = vpop.f32.mrf.mxu0
    %v863 = vadd.f32 %v831, %v862
    %864 = vmatmul.f32.gmra.mxu0 %v294
    %v865 = vpop.f32.mrf.mxu0
    %v866 = vadd.f32 %v834, %v865
    %867 = vmatmul.f32.gmra.mxu0 %v297
    %v868 = vpop.f32.mrf.mxu0
    %v869 = vadd.f32 %v837, %v868
    %870 = vdwg.mxu0
    %v871 = vrcp.pop %v869
    %v872 = vperm.slane %v871, 0
    %v873 = vmul.f32 %v857, %v872
    %v874 = vmul.f32 %v860, %v872
    %v875 = vmul.f32 %v863, %v872
    %v876 = vmul.f32 %v866, %v872
    %v877 = vld [vmem:[#allocation2] sm:$0xff]
    %v878 = vld [vmem:[#allocation2 + $0x10] sm:$0xff]
    %v879 = vld [vmem:[#allocation2 + $0x20] sm:$0xff]
    %v880 = vld [vmem:[#allocation2 + $0x30] sm:$0xff]
    %885 = vrot.lane.b32.xlu0 %v877, 64
    %v886 = vpop.permute.xlu0 %885
    %887 = vrot.lane.b32.xlu0 %v878, 64
    %v888 = vpop.permute.xlu0 %887
    %889 = vrot.lane.b32.xlu0 %v879, 64
    %v890 = vpop.permute.xlu0 %889
    %891 = vrot.lane.b32.xlu0 %v880, 64
    %v892 = vpop.permute.xlu0 %891
    %v897 = vadd.f32 %v873, %v886
    %v898 = vadd.f32 %v874, %v888
    %v899 = vadd.f32 %v875, %v890
    %v900 = vadd.f32 %v876, %v892
    %905 = vrot.lane.b32.xlu0 %v897, 64
    %v906 = vpop.permute.xlu0 %905
    %907 = vrot.lane.b32.xlu0 %v898, 64
    %v908 = vpop.permute.xlu0 %907
    %909 = vrot.lane.b32.xlu0 %v899, 64
    %v910 = vpop.permute.xlu0 %909
    %911 = vrot.lane.b32.xlu0 %v900, 64
    %v912 = vpop.permute.xlu0 %911
    %vm917 = vcmask 1048064
    %918 = vst.msk [vmem:[#allocation2] sm:$0xff] %vm917, %v906
    %919 = vst.msk [vmem:[#allocation2 + $0x10] sm:$0xff] %vm917, %v908
    %920 = vst.msk [vmem:[#allocation2 + $0x20] sm:$0xff] %vm917, %v910
    %921 = vst.msk [vmem:[#allocation2 + $0x30] sm:$0xff] %vm917, %v912
    %922 = vxpose.xlu0.b32.start [1/16] %v279, 128
    %923 = vxpose.xlu0.b32.cont [2/16] 0.0, 128
    %924 = vxpose.xlu0.b32.cont [3/16] 0.0, 128
    %925 = vxpose.xlu0.b32.cont [4/16] 0.0, 128
    %926 = vxpose.xlu0.b32.cont [5/16] 0.0, 128
    %927 = vxpose.xlu0.b32.cont [6/16] 0.0, 128
    %928 = vxpose.xlu0.b32.cont [7/16] 0.0, 128
    %929 = vxpose.xlu0.b32.cont [8/16] 0.0, 128
    %930 = vxpose.xlu0.b32.cont [9/16] 0.0, 128
    %931 = vxpose.xlu0.b32.cont [10/16] 0.0, 128
    %932 = vxpose.xlu0.b32.cont [11/16] 0.0, 128
    %933 = vxpose.xlu0.b32.cont [12/16] 0.0, 128
    %934 = vxpose.xlu0.b32.cont [13/16] 0.0, 128
    %935 = vxpose.xlu0.b32.cont [14/16] 0.0, 128
    %936 = vxpose.xlu0.b32.cont [15/16] 0.0, 128
    %937 = vxpose.xlu0.b32.end [16/16] 0.0, 128
    %v938 = vpop.trf.xlu0
    %v939 = vpop.trf.xlu0
    %v940 = vpop.trf.xlu0
    %v941 = vpop.trf.xlu0
    %v942 = vpop.trf.xlu0
    %v943 = vpop.trf.xlu0
    %v944 = vpop.trf.xlu0
    %v945 = vpop.trf.xlu0
    %v946 = vpop.trf.xlu0
    %v947 = vpop.trf.xlu0
    %v948 = vpop.trf.xlu0
    %v949 = vpop.trf.xlu0
    %v950 = vpop.trf.xlu0
    %v951 = vpop.trf.xlu0
    %v952 = vpop.trf.xlu0
    %v953 = vpop.trf.xlu0
    %v955 = vsel %vm331, %v938, 0
    %v958 = vsel %vm331, %v939, 0
    %v961 = vsel %vm331, %v940, 0
    %v964 = vsel %vm331, %v941, 0
    %v967 = vsel %vm331, %v942, 0
    %v970 = vsel %vm331, %v943, 0
    %v973 = vsel %vm331, %v944, 0
    %v976 = vsel %vm331, %v945, 0
    %978 = vmatpush.msra.mxu0 0.0
    %979 = vmatpush.msra.mxu0 0.0
    %980 = vmatpush.msra.mxu0 0.0
    %981 = vmatpush.msra.mxu0 0.0
    %982 = vmatpush.msra.mxu0 0.0
    %983 = vmatpush.msra.mxu0 0.0
    %984 = vmatpush.msra.mxu0 0.0
    %985 = vmatpush.msra.mxu0 0.0
    %986 = vmatpush.msra.mxu0 0.0
    %987 = vmatpush.msra.mxu0 0.0
    %988 = vmatpush.msra.mxu0 0.0
    %989 = vmatpush.msra.mxu0 0.0
    %990 = vmatpush.msra.mxu0 0.0
    %991 = vmatpush.msra.mxu0 0.0
    %992 = vmatpush.msra.mxu0 0.0
    %993 = vmatpush.msra.mxu0 %v244
    %994 = vmatmul.f32.gmra.mxu0 %v955
    %v995 = vpop.f32.mrf.mxu0
    %v996 = vadd.f32 0.0, %v995
    %997 = vmatmul.f32.gmra.mxu0 %v958
    %v998 = vpop.f32.mrf.mxu0
    %v999 = vadd.f32 0.0, %v998
    %1000 = vmatmul.f32.gmra.mxu0 %v961
    %v1001 = vpop.f32.mrf.mxu0
    %v1002 = vadd.f32 0.0, %v1001
    %1003 = vmatmul.f32.gmra.mxu0 %v964
    %v1004 = vpop.f32.mrf.mxu0
    %v1005 = vadd.f32 0.0, %v1004
    %1006 = vmatmul.f32.gmra.mxu0 %v967
    %v1007 = vpop.f32.mrf.mxu0
    %v1008 = vadd.f32 0.0, %v1007
    %1009 = vmatmul.f32.gmra.mxu0 %v970
    %v1010 = vpop.f32.mrf.mxu0
    %v1011 = vadd.f32 0.0, %v1010
    %1012 = vmatmul.f32.gmra.mxu0 %v973
    %v1013 = vpop.f32.mrf.mxu0
    %v1014 = vadd.f32 0.0, %v1013
    %1015 = vmatmul.f32.gmra.mxu0 %v976
    %v1016 = vpop.f32.mrf.mxu0
    %v1017 = vadd.f32 0.0, %v1016
    %1018 = vdwg.mxu0
    %1019 = vmatpush.msra.mxu0 0.0
    %1020 = vmatpush.msra.mxu0 0.0
    %1021 = vmatpush.msra.mxu0 0.0
    %1022 = vmatpush.msra.mxu0 0.0
    %1023 = vmatpush.msra.mxu0 0.0
    %1024 = vmatpush.msra.mxu0 0.0
    %1025 = vmatpush.msra.mxu0 0.0
    %1026 = vmatpush.msra.mxu0 0.0
    %1027 = vmatpush.msra.mxu0 0.0
    %1028 = vmatpush.msra.mxu0 0.0
    %1029 = vmatpush.msra.mxu0 0.0
    %1030 = vmatpush.msra.mxu0 0.0
    %1031 = vmatpush.msra.mxu0 0.0
    %1032 = vmatpush.msra.mxu0 0.0
    %1033 = vmatpush.msra.mxu0 0.0
    %1034 = vmatpush.msra.mxu0 %v282
    %1035 = vmatmul.f32.gmra.mxu0 %v955
    %v1036 = vpop.f32.mrf.mxu0
    %v1037 = vadd.f32 0.0, %v1036
    %1038 = vmatmul.f32.gmra.mxu0 %v958
    %v1039 = vpop.f32.mrf.mxu0
    %v1040 = vadd.f32 0.0, %v1039
    %1041 = vmatmul.f32.gmra.mxu0 %v961
    %v1042 = vpop.f32.mrf.mxu0
    %v1043 = vadd.f32 0.0, %v1042
    %1044 = vmatmul.f32.gmra.mxu0 %v964
    %v1045 = vpop.f32.mrf.mxu0
    %v1046 = vadd.f32 0.0, %v1045
    %1047 = vmatmul.f32.gmra.mxu0 %v967
    %v1048 = vpop.f32.mrf.mxu0
    %v1049 = vadd.f32 0.0, %v1048
    %1050 = vmatmul.f32.gmra.mxu0 %v970
    %v1051 = vpop.f32.mrf.mxu0
    %v1052 = vadd.f32 0.0, %v1051
    %1053 = vmatmul.f32.gmra.mxu0 %v973
    %v1054 = vpop.f32.mrf.mxu0
    %v1055 = vadd.f32 0.0, %v1054
    %1056 = vmatmul.f32.gmra.mxu0 %v976
    %v1057 = vpop.f32.mrf.mxu0
    %v1058 = vadd.f32 0.0, %v1057
    %1059 = vdwg.mxu0
    %v1060 = vmax.f32 %v996, %v1037
    %1061 = vmax.xlane.f32.xlu0 %v1060
    %v1062 = vpop.xlane.xlu0 %1061
    %v1063 = vmax.f32 %v999, %v1040
    %1064 = vmax.xlane.f32.xlu0 %v1063
    %v1065 = vpop.xlane.xlu0 %1064
    %v1066 = vmax.f32 %v1002, %v1043
    %1067 = vmax.xlane.f32.xlu0 %v1066
    %v1068 = vpop.xlane.xlu0 %1067
    %v1069 = vmax.f32 %v1005, %v1046
    %1070 = vmax.xlane.f32.xlu0 %v1069
    %v1071 = vpop.xlane.xlu0 %1070
    %v1072 = vmax.f32 %v1008, %v1049
    %1073 = vmax.xlane.f32.xlu0 %v1072
    %v1074 = vpop.xlane.xlu0 %1073
    %v1075 = vmax.f32 %v1011, %v1052
    %1076 = vmax.xlane.f32.xlu0 %v1075
    %v1077 = vpop.xlane.xlu0 %1076
    %v1078 = vmax.f32 %v1014, %v1055
    %1079 = vmax.xlane.f32.xlu0 %v1078
    %v1080 = vpop.xlane.xlu0 %1079
    %v1081 = vmax.f32 %v1017, %v1058
    %1082 = vmax.xlane.f32.xlu0 %v1081
    %v1083 = vpop.xlane.xlu0 %1082
    %v1084 = vsub.f32 %v996, %v1062
    %v1085 = vsub.f32 %v1037, %v1062
    %v1086 = vsub.f32 %v999, %v1065
    %v1087 = vsub.f32 %v1040, %v1065
    %v1088 = vsub.f32 %v1002, %v1068
    %v1089 = vsub.f32 %v1043, %v1068
    %v1090 = vsub.f32 %v1005, %v1071
    %v1091 = vsub.f32 %v1046, %v1071
    %v1092 = vsub.f32 %v1008, %v1074
    %v1093 = vsub.f32 %v1049, %v1074
    %v1094 = vsub.f32 %v1011, %v1077
    %v1095 = vsub.f32 %v1052, %v1077
    %v1096 = vsub.f32 %v1014, %v1080
    %v1097 = vsub.f32 %v1055, %v1080
    %v1098 = vsub.f32 %v1017, %v1083
    %v1099 = vsub.f32 %v1058, %v1083
    %v1100 = vmul.f32 %v1084, 1.442695
    %v1101 = vpow.pop %v1100
    %v1102 = vmul.f32 %v1085, 1.442695
    %v1103 = vpow.pop %v1102
    %v1104 = vmul.f32 %v1086, 1.442695
    %v1105 = vpow.pop %v1104
    %v1106 = vmul.f32 %v1087, 1.442695
    %v1107 = vpow.pop %v1106
    %v1108 = vmul.f32 %v1088, 1.442695
    %v1109 = vpow.pop %v1108
    %v1110 = vmul.f32 %v1089, 1.442695
    %v1111 = vpow.pop %v1110
    %v1112 = vmul.f32 %v1090, 1.442695
    %v1113 = vpow.pop %v1112
    %v1114 = vmul.f32 %v1091, 1.442695
    %v1115 = vpow.pop %v1114
    %v1116 = vmul.f32 %v1092, 1.442695
    %v1117 = vpow.pop %v1116
    %v1118 = vmul.f32 %v1093, 1.442695
    %v1119 = vpow.pop %v1118
    %v1120 = vmul.f32 %v1094, 1.442695
    %v1121 = vpow.pop %v1120
    %v1122 = vmul.f32 %v1095, 1.442695
    %v1123 = vpow.pop %v1122
    %v1124 = vmul.f32 %v1096, 1.442695
    %v1125 = vpow.pop %v1124
    %v1126 = vmul.f32 %v1097, 1.442695
    %v1127 = vpow.pop %v1126
    %v1128 = vmul.f32 %v1098, 1.442695
    %v1129 = vpow.pop %v1128
    %v1130 = vmul.f32 %v1099, 1.442695
    %v1131 = vpow.pop %v1130
    %1132 = vmatpush.xpose.msra.mxu0 0.0
    %1133 = vmatpush.xpose.msra.mxu0 0.0
    %1134 = vmatpush.xpose.msra.mxu0 0.0
    %1135 = vmatpush.xpose.msra.mxu0 0.0
    %1136 = vmatpush.xpose.msra.mxu0 0.0
    %1137 = vmatpush.xpose.msra.mxu0 0.0
    %1138 = vmatpush.xpose.msra.mxu0 0.0
    %1139 = vmatpush.xpose.msra.mxu0 0.0
    %1140 = vmatpush.xpose.msra.mxu0 %v1129
    %1141 = vmatpush.xpose.msra.mxu0 %v1125
    %1142 = vmatpush.xpose.msra.mxu0 %v1121
    %1143 = vmatpush.xpose.msra.mxu0 %v1117
    %1144 = vmatpush.xpose.msra.mxu0 %v1113
    %1145 = vmatpush.xpose.msra.mxu0 %v1109
    %1146 = vmatpush.xpose.msra.mxu0 %v1105
    %1147 = vmatpush.xpose.msra.mxu0 %v1101
    %1148 = vmatmul.f32.gmra.mxu0 %v247
    %v1149 = vpop.f32.mrf.mxu0
    %v1150 = vadd.f32 0.0, %v1149
    %1151 = vmatmul.f32.gmra.mxu0 %v250
    %v1152 = vpop.f32.mrf.mxu0
    %v1153 = vadd.f32 0.0, %v1152
    %1154 = vmatmul.f32.gmra.mxu0 %v253
    %v1155 = vpop.f32.mrf.mxu0
    %v1156 = vadd.f32 0.0, %v1155
    %1157 = vmatmul.f32.gmra.mxu0 %v256
    %v1158 = vpop.f32.mrf.mxu0
    %v1159 = vadd.f32 0.0, %v1158
    %1160 = vmatmul.f32.gmra.mxu0 %v259
    %v1161 = vpop.f32.mrf.mxu0
    %v1162 = vadd.f32 0.0, %v1161
    %1163 = vdwg.mxu0
    %1164 = vmatpush.xpose.msra.mxu0 0.0
    %1165 = vmatpush.xpose.msra.mxu0 0.0
    %1166 = vmatpush.xpose.msra.mxu0 0.0
    %1167 = vmatpush.xpose.msra.mxu0 0.0
    %1168 = vmatpush.xpose.msra.mxu0 0.0
    %1169 = vmatpush.xpose.msra.mxu0 0.0
    %1170 = vmatpush.xpose.msra.mxu0 0.0
    %1171 = vmatpush.xpose.msra.mxu0 0.0
    %1172 = vmatpush.xpose.msra.mxu0 %v1131
    %1173 = vmatpush.xpose.msra.mxu0 %v1127
    %1174 = vmatpush.xpose.msra.mxu0 %v1123
    %1175 = vmatpush.xpose.msra.mxu0 %v1119
    %1176 = vmatpush.xpose.msra.mxu0 %v1115
    %1177 = vmatpush.xpose.msra.mxu0 %v1111
    %1178 = vmatpush.xpose.msra.mxu0 %v1107
    %1179 = vmatpush.xpose.msra.mxu0 %v1103
    %1180 = vmatmul.f32.gmra.mxu0 %v285
    %v1181 = vpop.f32.mrf.mxu0
    %v1182 = vadd.f32 %v1150, %v1181
    %1183 = vmatmul.f32.gmra.mxu0 %v288
    %v1184 = vpop.f32.mrf.mxu0
    %v1185 = vadd.f32 %v1153, %v1184
    %1186 = vmatmul.f32.gmra.mxu0 %v291
    %v1187 = vpop.f32.mrf.mxu0
    %v1188 = vadd.f32 %v1156, %v1187
    %1189 = vmatmul.f32.gmra.mxu0 %v294
    %v1190 = vpop.f32.mrf.mxu0
    %v1191 = vadd.f32 %v1159, %v1190
    %1192 = vmatmul.f32.gmra.mxu0 %v297
    %v1193 = vpop.f32.mrf.mxu0
    %v1194 = vadd.f32 %v1162, %v1193
    %1195 = vdwg.mxu0
    %v1196 = vrcp.pop %v1194
    %v1197 = vperm.slane %v1196, 0
    %v1198 = vmul.f32 %v1182, %v1197
    %v1199 = vmul.f32 %v1185, %v1197
    %v1200 = vmul.f32 %v1188, %v1197
    %v1201 = vmul.f32 %v1191, %v1197
    %v1202 = vld [vmem:[#allocation2 + $0x8] sm:$0xff]
    %v1203 = vld [vmem:[#allocation2 + $0x18] sm:$0xff]
    %v1204 = vld [vmem:[#allocation2 + $0x28] sm:$0xff]
    %v1205 = vld [vmem:[#allocation2 + $0x38] sm:$0xff]
    %v1206 = vadd.f32 %v1198, %v1202
    %v1207 = vadd.f32 %v1199, %v1203
    %v1208 = vadd.f32 %v1200, %v1204
    %v1209 = vadd.f32 %v1201, %v1205
    %1210 = vst.msk [vmem:[#allocation2 + $0x8] sm:$0xff] %vm588, %v1206
    %1211 = vst.msk [vmem:[#allocation2 + $0x18] sm:$0xff] %vm588, %v1207
    %1212 = vst.msk [vmem:[#allocation2 + $0x28] sm:$0xff] %vm588, %v1208
    %1213 = vst.msk [vmem:[#allocation2 + $0x38] sm:$0xff] %vm588, %v1209
    %1215 = vrot.lane.b32.xlu0 %v279, 64
    %v1216 = vpop.permute.xlu0 %1215
    %1218 = vxpose.xlu0.b32.start [1/16] %v1216, 128
    %1219 = vxpose.xlu0.b32.cont [2/16] 0.0, 128
    %1220 = vxpose.xlu0.b32.cont [3/16] 0.0, 128
    %1221 = vxpose.xlu0.b32.cont [4/16] 0.0, 128
    %1222 = vxpose.xlu0.b32.cont [5/16] 0.0, 128
    %1223 = vxpose.xlu0.b32.cont [6/16] 0.0, 128
    %1224 = vxpose.xlu0.b32.cont [7/16] 0.0, 128
    %1225 = vxpose.xlu0.b32.cont [8/16] 0.0, 128
    %1226 = vxpose.xlu0.b32.cont [9/16] 0.0, 128
    %1227 = vxpose.xlu0.b32.cont [10/16] 0.0, 128
    %1228 = vxpose.xlu0.b32.cont [11/16] 0.0, 128
    %1229 = vxpose.xlu0.b32.cont [12/16] 0.0, 128
    %1230 = vxpose.xlu0.b32.cont [13/16] 0.0, 128
    %1231 = vxpose.xlu0.b32.cont [14/16] 0.0, 128
    %1232 = vxpose.xlu0.b32.cont [15/16] 0.0, 128
    %1233 = vxpose.xlu0.b32.end [16/16] 0.0, 128
    %v1234 = vpop.trf.xlu0
    %v1235 = vpop.trf.xlu0
    %v1236 = vpop.trf.xlu0
    %v1237 = vpop.trf.xlu0
    %v1238 = vpop.trf.xlu0
    %v1239 = vpop.trf.xlu0
    %v1240 = vpop.trf.xlu0
    %v1241 = vpop.trf.xlu0
    %v1242 = vpop.trf.xlu0
    %v1243 = vpop.trf.xlu0
    %v1244 = vpop.trf.xlu0
    %v1245 = vpop.trf.xlu0
    %v1246 = vpop.trf.xlu0
    %v1247 = vpop.trf.xlu0
    %v1248 = vpop.trf.xlu0
    %v1249 = vpop.trf.xlu0
    %v1251 = vsel %vm331, %v1234, 0
    %v1254 = vsel %vm331, %v1235, 0
    %v1257 = vsel %vm331, %v1236, 0
    %v1260 = vsel %vm331, %v1237, 0
    %v1263 = vsel %vm331, %v1238, 0
    %v1266 = vsel %vm331, %v1239, 0
    %v1269 = vsel %vm331, %v1240, 0
    %v1272 = vsel %vm331, %v1241, 0
    %1274 = vmatpush.msra.mxu0 0.0
    %1275 = vmatpush.msra.mxu0 0.0
    %1276 = vmatpush.msra.mxu0 0.0
    %1277 = vmatpush.msra.mxu0 0.0
    %1278 = vmatpush.msra.mxu0 0.0
    %1279 = vmatpush.msra.mxu0 0.0
    %1280 = vmatpush.msra.mxu0 0.0
    %1281 = vmatpush.msra.mxu0 0.0
    %1282 = vmatpush.msra.mxu0 0.0
    %1283 = vmatpush.msra.mxu0 0.0
    %1284 = vmatpush.msra.mxu0 0.0
    %1285 = vmatpush.msra.mxu0 0.0
    %1286 = vmatpush.msra.mxu0 0.0
    %1287 = vmatpush.msra.mxu0 0.0
    %1288 = vmatpush.msra.mxu0 0.0
    %1289 = vmatpush.msra.mxu0 %v244
    %1290 = vmatmul.f32.gmra.mxu0 %v1251
    %v1291 = vpop.f32.mrf.mxu0
    %v1292 = vadd.f32 0.0, %v1291
    %1293 = vmatmul.f32.gmra.mxu0 %v1254
    %v1294 = vpop.f32.mrf.mxu0
    %v1295 = vadd.f32 0.0, %v1294
    %1296 = vmatmul.f32.gmra.mxu0 %v1257
    %v1297 = vpop.f32.mrf.mxu0
    %v1298 = vadd.f32 0.0, %v1297
    %1299 = vmatmul.f32.gmra.mxu0 %v1260
    %v1300 = vpop.f32.mrf.mxu0
    %v1301 = vadd.f32 0.0, %v1300
    %1302 = vmatmul.f32.gmra.mxu0 %v1263
    %v1303 = vpop.f32.mrf.mxu0
    %v1304 = vadd.f32 0.0, %v1303
    %1305 = vmatmul.f32.gmra.mxu0 %v1266
    %v1306 = vpop.f32.mrf.mxu0
    %v1307 = vadd.f32 0.0, %v1306
    %1308 = vmatmul.f32.gmra.mxu0 %v1269
    %v1309 = vpop.f32.mrf.mxu0
    %v1310 = vadd.f32 0.0, %v1309
    %1311 = vmatmul.f32.gmra.mxu0 %v1272
    %v1312 = vpop.f32.mrf.mxu0
    %v1313 = vadd.f32 0.0, %v1312
    %1314 = vdwg.mxu0
    %1315 = vmatpush.msra.mxu0 0.0
    %1316 = vmatpush.msra.mxu0 0.0
    %1317 = vmatpush.msra.mxu0 0.0
    %1318 = vmatpush.msra.mxu0 0.0
    %1319 = vmatpush.msra.mxu0 0.0
    %1320 = vmatpush.msra.mxu0 0.0
    %1321 = vmatpush.msra.mxu0 0.0
    %1322 = vmatpush.msra.mxu0 0.0
    %1323 = vmatpush.msra.mxu0 0.0
    %1324 = vmatpush.msra.mxu0 0.0
    %1325 = vmatpush.msra.mxu0 0.0
    %1326 = vmatpush.msra.mxu0 0.0
    %1327 = vmatpush.msra.mxu0 0.0
    %1328 = vmatpush.msra.mxu0 0.0
    %1329 = vmatpush.msra.mxu0 0.0
    %1330 = vmatpush.msra.mxu0 %v282
    %1331 = vmatmul.f32.gmra.mxu0 %v1251
    %v1332 = vpop.f32.mrf.mxu0
    %v1333 = vadd.f32 0.0, %v1332
    %1334 = vmatmul.f32.gmra.mxu0 %v1254
    %v1335 = vpop.f32.mrf.mxu0
    %v1336 = vadd.f32 0.0, %v1335
    %1337 = vmatmul.f32.gmra.mxu0 %v1257
    %v1338 = vpop.f32.mrf.mxu0
    %v1339 = vadd.f32 0.0, %v1338
    %1340 = vmatmul.f32.gmra.mxu0 %v1260
    %v1341 = vpop.f32.mrf.mxu0
    %v1342 = vadd.f32 0.0, %v1341
    %1343 = vmatmul.f32.gmra.mxu0 %v1263
    %v1344 = vpop.f32.mrf.mxu0
    %v1345 = vadd.f32 0.0, %v1344
    %1346 = vmatmul.f32.gmra.mxu0 %v1266
    %v1347 = vpop.f32.mrf.mxu0
    %v1348 = vadd.f32 0.0, %v1347
    %1349 = vmatmul.f32.gmra.mxu0 %v1269
    %v1350 = vpop.f32.mrf.mxu0
    %v1351 = vadd.f32 0.0, %v1350
    %1352 = vmatmul.f32.gmra.mxu0 %v1272
    %v1353 = vpop.f32.mrf.mxu0
    %v1354 = vadd.f32 0.0, %v1353
    %1355 = vdwg.mxu0
    %v1356 = vmax.f32 %v1292, %v1333
    %1357 = vmax.xlane.f32.xlu0 %v1356
    %v1358 = vpop.xlane.xlu0 %1357
    %v1359 = vmax.f32 %v1295, %v1336
    %1360 = vmax.xlane.f32.xlu0 %v1359
    %v1361 = vpop.xlane.xlu0 %1360
    %v1362 = vmax.f32 %v1298, %v1339
    %1363 = vmax.xlane.f32.xlu0 %v1362
    %v1364 = vpop.xlane.xlu0 %1363
    %v1365 = vmax.f32 %v1301, %v1342
    %1366 = vmax.xlane.f32.xlu0 %v1365
    %v1367 = vpop.xlane.xlu0 %1366
    %v1368 = vmax.f32 %v1304, %v1345
    %1369 = vmax.xlane.f32.xlu0 %v1368
    %v1370 = vpop.xlane.xlu0 %1369
    %v1371 = vmax.f32 %v1307, %v1348
    %1372 = vmax.xlane.f32.xlu0 %v1371
    %v1373 = vpop.xlane.xlu0 %1372
    %v1374 = vmax.f32 %v1310, %v1351
    %1375 = vmax.xlane.f32.xlu0 %v1374
    %v1376 = vpop.xlane.xlu0 %1375
    %v1377 = vmax.f32 %v1313, %v1354
    %1378 = vmax.xlane.f32.xlu0 %v1377
    %v1379 = vpop.xlane.xlu0 %1378
    %v1380 = vsub.f32 %v1292, %v1358
    %v1381 = vsub.f32 %v1333, %v1358
    %v1382 = vsub.f32 %v1295, %v1361
    %v1383 = vsub.f32 %v1336, %v1361
    %v1384 = vsub.f32 %v1298, %v1364
    %v1385 = vsub.f32 %v1339, %v1364
    %v1386 = vsub.f32 %v1301, %v1367
    %v1387 = vsub.f32 %v1342, %v1367
    %v1388 = vsub.f32 %v1304, %v1370
    %v1389 = vsub.f32 %v1345, %v1370
    %v1390 = vsub.f32 %v1307, %v1373
    %v1391 = vsub.f32 %v1348, %v1373
    %v1392 = vsub.f32 %v1310, %v1376
    %v1393 = vsub.f32 %v1351, %v1376
    %v1394 = vsub.f32 %v1313, %v1379
    %v1395 = vsub.f32 %v1354, %v1379
    %v1396 = vmul.f32 %v1380, 1.442695
    %v1397 = vpow.pop %v1396
    %v1398 = vmul.f32 %v1381, 1.442695
    %v1399 = vpow.pop %v1398
    %v1400 = vmul.f32 %v1382, 1.442695
    %v1401 = vpow.pop %v1400
    %v1402 = vmul.f32 %v1383, 1.442695
    %v1403 = vpow.pop %v1402
    %v1404 = vmul.f32 %v1384, 1.442695
    %v1405 = vpow.pop %v1404
    %v1406 = vmul.f32 %v1385, 1.442695
    %v1407 = vpow.pop %v1406
    %v1408 = vmul.f32 %v1386, 1.442695
    %v1409 = vpow.pop %v1408
    %v1410 = vmul.f32 %v1387, 1.442695
    %v1411 = vpow.pop %v1410
    %v1412 = vmul.f32 %v1388, 1.442695
    %v1413 = vpow.pop %v1412
    %v1414 = vmul.f32 %v1389, 1.442695
    %v1415 = vpow.pop %v1414
    %v1416 = vmul.f32 %v1390, 1.442695
    %v1417 = vpow.pop %v1416
    %v1418 = vmul.f32 %v1391, 1.442695
    %v1419 = vpow.pop %v1418
    %v1420 = vmul.f32 %v1392, 1.442695
    %v1421 = vpow.pop %v1420
    %v1422 = vmul.f32 %v1393, 1.442695
    %v1423 = vpow.pop %v1422
    %v1424 = vmul.f32 %v1394, 1.442695
    %v1425 = vpow.pop %v1424
    %v1426 = vmul.f32 %v1395, 1.442695
    %v1427 = vpow.pop %v1426
    %1428 = vmatpush.xpose.msra.mxu0 0.0
    %1429 = vmatpush.xpose.msra.mxu0 0.0
    %1430 = vmatpush.xpose.msra.mxu0 0.0
    %1431 = vmatpush.xpose.msra.mxu0 0.0
    %1432 = vmatpush.xpose.msra.mxu0 0.0
    %1433 = vmatpush.xpose.msra.mxu0 0.0
    %1434 = vmatpush.xpose.msra.mxu0 0.0
    %1435 = vmatpush.xpose.msra.mxu0 0.0
    %1436 = vmatpush.xpose.msra.mxu0 %v1425
    %1437 = vmatpush.xpose.msra.mxu0 %v1421
    %1438 = vmatpush.xpose.msra.mxu0 %v1417
    %1439 = vmatpush.xpose.msra.mxu0 %v1413
    %1440 = vmatpush.xpose.msra.mxu0 %v1409
    %1441 = vmatpush.xpose.msra.mxu0 %v1405
    %1442 = vmatpush.xpose.msra.mxu0 %v1401
    %1443 = vmatpush.xpose.msra.mxu0 %v1397
    %1444 = vmatmul.f32.gmra.mxu0 %v247
    %v1445 = vpop.f32.mrf.mxu0
    %v1446 = vadd.f32 0.0, %v1445
    %1447 = vmatmul.f32.gmra.mxu0 %v250
    %v1448 = vpop.f32.mrf.mxu0
    %v1449 = vadd.f32 0.0, %v1448
    %1450 = vmatmul.f32.gmra.mxu0 %v253
    %v1451 = vpop.f32.mrf.mxu0
    %v1452 = vadd.f32 0.0, %v1451
    %1453 = vmatmul.f32.gmra.mxu0 %v256
    %v1454 = vpop.f32.mrf.mxu0
    %v1455 = vadd.f32 0.0, %v1454
    %1456 = vmatmul.f32.gmra.mxu0 %v259
    %v1457 = vpop.f32.mrf.mxu0
    %v1458 = vadd.f32 0.0, %v1457
    %1459 = vdwg.mxu0
    %1460 = vmatpush.xpose.msra.mxu0 0.0
    %1461 = vmatpush.xpose.msra.mxu0 0.0
    %1462 = vmatpush.xpose.msra.mxu0 0.0
    %1463 = vmatpush.xpose.msra.mxu0 0.0
    %1464 = vmatpush.xpose.msra.mxu0 0.0
    %1465 = vmatpush.xpose.msra.mxu0 0.0
    %1466 = vmatpush.xpose.msra.mxu0 0.0
    %1467 = vmatpush.xpose.msra.mxu0 0.0
    %1468 = vmatpush.xpose.msra.mxu0 %v1427
    %1469 = vmatpush.xpose.msra.mxu0 %v1423
    %1470 = vmatpush.xpose.msra.mxu0 %v1419
    %1471 = vmatpush.xpose.msra.mxu0 %v1415
    %1472 = vmatpush.xpose.msra.mxu0 %v1411
    %1473 = vmatpush.xpose.msra.mxu0 %v1407
    %1474 = vmatpush.xpose.msra.mxu0 %v1403
    %1475 = vmatpush.xpose.msra.mxu0 %v1399
    %1476 = vmatmul.f32.gmra.mxu0 %v285
    %v1477 = vpop.f32.mrf.mxu0
    %v1478 = vadd.f32 %v1446, %v1477
    %1479 = vmatmul.f32.gmra.mxu0 %v288
    %v1480 = vpop.f32.mrf.mxu0
    %v1481 = vadd.f32 %v1449, %v1480
    %1482 = vmatmul.f32.gmra.mxu0 %v291
    %v1483 = vpop.f32.mrf.mxu0
    %v1484 = vadd.f32 %v1452, %v1483
    %1485 = vmatmul.f32.gmra.mxu0 %v294
    %v1486 = vpop.f32.mrf.mxu0
    %v1487 = vadd.f32 %v1455, %v1486
    %1488 = vmatmul.f32.gmra.mxu0 %v297
    %v1489 = vpop.f32.mrf.mxu0
    %v1490 = vadd.f32 %v1458, %v1489
    %1491 = vdwg.mxu0
    %v1492 = vrcp.pop %v1490
    %v1493 = vperm.slane %v1492, 0
    %v1494 = vmul.f32 %v1478, %v1493
    %v1495 = vmul.f32 %v1481, %v1493
    %v1496 = vmul.f32 %v1484, %v1493
    %v1497 = vmul.f32 %v1487, %v1493
    %v1498 = vld [vmem:[#allocation2 + $0x8] sm:$0xff]
    %v1499 = vld [vmem:[#allocation2 + $0x18] sm:$0xff]
    %v1500 = vld [vmem:[#allocation2 + $0x28] sm:$0xff]
    %v1501 = vld [vmem:[#allocation2 + $0x38] sm:$0xff]
    %1506 = vrot.lane.b32.xlu0 %v1498, 64
    %v1507 = vpop.permute.xlu0 %1506
    %1508 = vrot.lane.b32.xlu0 %v1499, 64
    %v1509 = vpop.permute.xlu0 %1508
    %1510 = vrot.lane.b32.xlu0 %v1500, 64
    %v1511 = vpop.permute.xlu0 %1510
    %1512 = vrot.lane.b32.xlu0 %v1501, 64
    %v1513 = vpop.permute.xlu0 %1512
    %v1518 = vadd.f32 %v1494, %v1507
    %v1519 = vadd.f32 %v1495, %v1509
    %v1520 = vadd.f32 %v1496, %v1511
    %v1521 = vadd.f32 %v1497, %v1513
    %1526 = vrot.lane.b32.xlu0 %v1518, 64
    %v1527 = vpop.permute.xlu0 %1526
    %1528 = vrot.lane.b32.xlu0 %v1519, 64
    %v1529 = vpop.permute.xlu0 %1528
    %1530 = vrot.lane.b32.xlu0 %v1520, 64
    %v1531 = vpop.permute.xlu0 %1530
    %1532 = vrot.lane.b32.xlu0 %v1521, 64
    %v1533 = vpop.permute.xlu0 %1532
    %1538 = vst.msk [vmem:[#allocation2 + $0x8] sm:$0xff] %vm917, %v1527
    %1539 = vst.msk [vmem:[#allocation2 + $0x18] sm:$0xff] %vm917, %v1529
    %1540 = vst.msk [vmem:[#allocation2 + $0x28] sm:$0xff] %vm917, %v1531
    %1541 = vst.msk [vmem:[#allocation2 + $0x38] sm:$0xff] %vm917, %v1533
    %s1542 = scalar_lea.vmem %s3, 56
    %v1543 = vld [vmem:[%s1542] sm:$0xff]
    %v1544 = vld [vmem:[%s1542 + $0x8] sm:$0xff]
    %v1545 = vld [vmem:[%s1542 + $0x10] sm:$0xff]
    %v1546 = vld [vmem:[%s1542 + $0x18] sm:$0xff]
    %v1547 = vld [vmem:[%s1542 + $0x20] sm:$0xff]
    %v1548 = vld [vmem:[%s1542 + $0x28] sm:$0xff]
    %v1549 = vld [vmem:[%s1542 + $0x30] sm:$0x1]
    %v1550 = vld [vmem:[#allocation2] sm:$0xff]
    %v1551 = vld [vmem:[#allocation2 + $0x8] sm:$0xff]
    %v1552 = vld [vmem:[#allocation2 + $0x10] sm:$0xff]
    %v1553 = vld [vmem:[#allocation2 + $0x18] sm:$0xff]
    %v1554 = vld [vmem:[#allocation2 + $0x20] sm:$0xff]
    %v1555 = vld [vmem:[#allocation2 + $0x28] sm:$0xff]
    %v1556 = vld [vmem:[#allocation2 + $0x30] sm:$0xff]
    %v1557 = vld [vmem:[#allocation2 + $0x38] sm:$0xff]
    %s1558 = scalar_lea.vmem %s4, 56
    %v1559 = vld [vmem:[%s1558] sm:$0xff]
    %v1560 = vld [vmem:[%s1558 + $0x8] sm:$0xff]
    %v1561 = vld [vmem:[%s1558 + $0x10] sm:$0xff]
    %v1562 = vld [vmem:[%s1558 + $0x18] sm:$0xff]
    %v1563 = vld [vmem:[%s1558 + $0x20] sm:$0xff]
    %v1564 = vld [vmem:[%s1558 + $0x28] sm:$0xff]
    %v1565 = vld [vmem:[%s1558 + $0x30] sm:$0x1]
    %1567 = vset.pattern.permute.xlu0 0
    %1568 = vperm.xlu0 %1567, %v1559
    %v1569 = vpop.permute.xlu0 %1568
    %1572 = vset.pattern.permute.xlu0 0
    %1573 = vperm.xlu0 %1572, %v1560
    %v1574 = vpop.permute.xlu0 %1573
    %1577 = vset.pattern.permute.xlu0 0
    %1578 = vperm.xlu0 %1577, %v1561
    %v1579 = vpop.permute.xlu0 %1578
    %1582 = vset.pattern.permute.xlu0 0
    %1583 = vperm.xlu0 %1582, %v1562
    %v1584 = vpop.permute.xlu0 %1583
    %1587 = vset.pattern.permute.xlu0 0
    %1588 = vperm.xlu0 %1587, %v1563
    %v1589 = vpop.permute.xlu0 %1588
    %1592 = vset.pattern.permute.xlu0 0
    %1593 = vperm.xlu0 %1592, %v1564
    %v1594 = vpop.permute.xlu0 %1593
    %1597 = vset.pattern.permute.xlu0 0
    %1598 = vperm.xlu0 %1597, %v1565
    %v1599 = vpop.permute.xlu0 %1598
    %v1602 = vsel %vm201, %v1543, 0
    %v1605 = vsel %vm201, %v1544, 0
    %v1608 = vsel %vm201, %v1545, 0
    %v1611 = vsel %vm201, %v1546, 0
    %v1614 = vsel %vm201, %v1547, 0
    %v1617 = vsel %vm201, %v1548, 0
    %v1620 = vsel %vm201, %v1549, 0
    %1622 = vmatpush.msra.mxu0 0.0
    %1623 = vmatpush.msra.mxu0 0.0
    %1624 = vmatpush.msra.mxu0 0.0
    %1625 = vmatpush.msra.mxu0 0.0
    %1626 = vmatpush.msra.mxu0 0.0
    %1627 = vmatpush.msra.mxu0 0.0
    %1628 = vmatpush.msra.mxu0 0.0
    %1629 = vmatpush.msra.mxu0 0.0
    %1630 = vmatpush.msra.mxu0 0.0
    %1631 = vmatpush.msra.mxu0 0.0
    %1632 = vmatpush.msra.mxu0 0.0
    %1633 = vmatpush.msra.mxu0 0.0
    %1634 = vmatpush.msra.mxu0 %v1556
    %1635 = vmatpush.msra.mxu0 %v1554
    %1636 = vmatpush.msra.mxu0 %v1552
    %1637 = vmatpush.msra.mxu0 %v1550
    %1638 = vmatmul.f32.gmra.mxu0 %v1602
    %v1639 = vpop.f32.mrf.mxu0
    %v1640 = vadd.f32 %v1569, %v1639
    %1641 = vmatmul.f32.gmra.mxu0 %v1605
    %v1642 = vpop.f32.mrf.mxu0
    %v1643 = vadd.f32 %v1574, %v1642
    %1644 = vmatmul.f32.gmra.mxu0 %v1608
    %v1645 = vpop.f32.mrf.mxu0
    %v1646 = vadd.f32 %v1579, %v1645
    %1647 = vmatmul.f32.gmra.mxu0 %v1611
    %v1648 = vpop.f32.mrf.mxu0
    %v1649 = vadd.f32 %v1584, %v1648
    %1650 = vmatmul.f32.gmra.mxu0 %v1614
    %v1651 = vpop.f32.mrf.mxu0
    %v1652 = vadd.f32 %v1589, %v1651
    %1653 = vmatmul.f32.gmra.mxu0 %v1617
    %v1654 = vpop.f32.mrf.mxu0
    %v1655 = vadd.f32 %v1594, %v1654
    %1656 = vmatmul.f32.gmra.mxu0 %v1620
    %v1657 = vpop.f32.mrf.mxu0
    %v1658 = vadd.f32 %v1599, %v1657
    %1659 = vdwg.mxu0
    %1660 = vmatpush.msra.mxu0 0.0
    %1661 = vmatpush.msra.mxu0 0.0
    %1662 = vmatpush.msra.mxu0 0.0
    %1663 = vmatpush.msra.mxu0 0.0
    %1664 = vmatpush.msra.mxu0 0.0
    %1665 = vmatpush.msra.mxu0 0.0
    %1666 = vmatpush.msra.mxu0 0.0
    %1667 = vmatpush.msra.mxu0 0.0
    %1668 = vmatpush.msra.mxu0 0.0
    %1669 = vmatpush.msra.mxu0 0.0
    %1670 = vmatpush.msra.mxu0 0.0
    %1671 = vmatpush.msra.mxu0 0.0
    %1672 = vmatpush.msra.mxu0 %v1557
    %1673 = vmatpush.msra.mxu0 %v1555
    %1674 = vmatpush.msra.mxu0 %v1553
    %1675 = vmatpush.msra.mxu0 %v1551
    %1676 = vmatmul.f32.gmra.mxu0 %v1602
    %v1677 = vpop.f32.mrf.mxu0
    %v1678 = vadd.f32 %v1569, %v1677
    %1679 = vmatmul.f32.gmra.mxu0 %v1605
    %v1680 = vpop.f32.mrf.mxu0
    %v1681 = vadd.f32 %v1574, %v1680
    %1682 = vmatmul.f32.gmra.mxu0 %v1608
    %v1683 = vpop.f32.mrf.mxu0
    %v1684 = vadd.f32 %v1579, %v1683
    %1685 = vmatmul.f32.gmra.mxu0 %v1611
    %v1686 = vpop.f32.mrf.mxu0
    %v1687 = vadd.f32 %v1584, %v1686
    %1688 = vmatmul.f32.gmra.mxu0 %v1614
    %v1689 = vpop.f32.mrf.mxu0
    %v1690 = vadd.f32 %v1589, %v1689
    %1691 = vmatmul.f32.gmra.mxu0 %v1617
    %v1692 = vpop.f32.mrf.mxu0
    %v1693 = vadd.f32 %v1594, %v1692
    %1694 = vmatmul.f32.gmra.mxu0 %v1620
    %v1695 = vpop.f32.mrf.mxu0
    %v1696 = vadd.f32 %v1599, %v1695
    %1697 = vdwg.mxu0
    %1698 = vxpose.xlu0.b32.start [1/16] %v1640, 128
    %1699 = vxpose.xlu0.b32.cont [2/16] 0.0, 128
    %1700 = vxpose.xlu0.b32.cont [3/16] 0.0, 128
    %1701 = vxpose.xlu0.b32.cont [4/16] 0.0, 128
    %1702 = vxpose.xlu0.b32.cont [5/16] 0.0, 128
    %1703 = vxpose.xlu0.b32.cont [6/16] 0.0, 128
    %1704 = vxpose.xlu0.b32.cont [7/16] 0.0, 128
    %1705 = vxpose.xlu0.b32.cont [8/16] 0.0, 128
    %1706 = vxpose.xlu0.b32.cont [9/16] 0.0, 128
    %1707 = vxpose.xlu0.b32.cont [10/16] 0.0, 128
    %1708 = vxpose.xlu0.b32.cont [11/16] 0.0, 128
    %1709 = vxpose.xlu0.b32.cont [12/16] 0.0, 128
    %1710 = vxpose.xlu0.b32.cont [13/16] 0.0, 128
    %1711 = vxpose.xlu0.b32.cont [14/16] 0.0, 128
    %1712 = vxpose.xlu0.b32.cont [15/16] 0.0, 128
    %1713 = vxpose.xlu0.b32.end [16/16] 0.0, 128
    %v1714 = vpop.trf.xlu0
    %v1715 = vpop.trf.xlu0
    %v1716 = vpop.trf.xlu0
    %v1717 = vpop.trf.xlu0
    %v1718 = vpop.trf.xlu0
    %v1719 = vpop.trf.xlu0
    %v1720 = vpop.trf.xlu0
    %v1721 = vpop.trf.xlu0
    %v1722 = vpop.trf.xlu0
    %v1723 = vpop.trf.xlu0
    %v1724 = vpop.trf.xlu0
    %v1725 = vpop.trf.xlu0
    %v1726 = vpop.trf.xlu0
    %v1727 = vpop.trf.xlu0
    %v1728 = vpop.trf.xlu0
    %v1729 = vpop.trf.xlu0
    %v1731 = vsel %vm331, %v1714, 0
    %v1734 = vsel %vm331, %v1715, 0
    %v1737 = vsel %vm331, %v1716, 0
    %v1740 = vsel %vm331, %v1717, 0
    %v1743 = vsel %vm331, %v1718, 0
    %v1746 = vsel %vm331, %v1719, 0
    %v1749 = vsel %vm331, %v1720, 0
    %v1752 = vsel %vm331, %v1721, 0
    %1754 = vmatpush.msra.mxu0 0.0
    %1755 = vmatpush.msra.mxu0 0.0
    %1756 = vmatpush.msra.mxu0 0.0
    %1757 = vmatpush.msra.mxu0 0.0
    %1758 = vmatpush.msra.mxu0 0.0
    %1759 = vmatpush.msra.mxu0 0.0
    %1760 = vmatpush.msra.mxu0 0.0
    %1761 = vmatpush.msra.mxu0 0.0
    %1762 = vmatpush.msra.mxu0 0.0
    %1763 = vmatpush.msra.mxu0 0.0
    %1764 = vmatpush.msra.mxu0 0.0
    %1765 = vmatpush.msra.mxu0 0.0
    %1766 = vmatpush.msra.mxu0 0.0
    %1767 = vmatpush.msra.mxu0 0.0
    %1768 = vmatpush.msra.mxu0 0.0
    %1769 = vmatpush.msra.mxu0 %v1643
    %1770 = vmatmul.f32.gmra.mxu0 %v1731
    %v1771 = vpop.f32.mrf.mxu0
    %v1772 = vadd.f32 0.0, %v1771
    %1773 = vmatmul.f32.gmra.mxu0 %v1734
    %v1774 = vpop.f32.mrf.mxu0
    %v1775 = vadd.f32 0.0, %v1774
    %1776 = vmatmul.f32.gmra.mxu0 %v1737
    %v1777 = vpop.f32.mrf.mxu0
    %v1778 = vadd.f32 0.0, %v1777
    %1779 = vmatmul.f32.gmra.mxu0 %v1740
    %v1780 = vpop.f32.mrf.mxu0
    %v1781 = vadd.f32 0.0, %v1780
    %1782 = vmatmul.f32.gmra.mxu0 %v1743
    %v1783 = vpop.f32.mrf.mxu0
    %v1784 = vadd.f32 0.0, %v1783
    %1785 = vmatmul.f32.gmra.mxu0 %v1746
    %v1786 = vpop.f32.mrf.mxu0
    %v1787 = vadd.f32 0.0, %v1786
    %1788 = vmatmul.f32.gmra.mxu0 %v1749
    %v1789 = vpop.f32.mrf.mxu0
    %v1790 = vadd.f32 0.0, %v1789
    %1791 = vmatmul.f32.gmra.mxu0 %v1752
    %v1792 = vpop.f32.mrf.mxu0
    %v1793 = vadd.f32 0.0, %v1792
    %1794 = vdwg.mxu0
    %1795 = vmatpush.msra.mxu0 0.0
    %1796 = vmatpush.msra.mxu0 0.0
    %1797 = vmatpush.msra.mxu0 0.0
    %1798 = vmatpush.msra.mxu0 0.0
    %1799 = vmatpush.msra.mxu0 0.0
    %1800 = vmatpush.msra.mxu0 0.0
    %1801 = vmatpush.msra.mxu0 0.0
    %1802 = vmatpush.msra.mxu0 0.0
    %1803 = vmatpush.msra.mxu0 0.0
    %1804 = vmatpush.msra.mxu0 0.0
    %1805 = vmatpush.msra.mxu0 0.0
    %1806 = vmatpush.msra.mxu0 0.0
    %1807 = vmatpush.msra.mxu0 0.0
    %1808 = vmatpush.msra.mxu0 0.0
    %1809 = vmatpush.msra.mxu0 0.0
    %1810 = vmatpush.msra.mxu0 %v1681
    %1811 = vmatmul.f32.gmra.mxu0 %v1731
    %v1812 = vpop.f32.mrf.mxu0
    %v1813 = vadd.f32 0.0, %v1812
    %1814 = vmatmul.f32.gmra.mxu0 %v1734
    %v1815 = vpop.f32.mrf.mxu0
    %v1816 = vadd.f32 0.0, %v1815
    %1817 = vmatmul.f32.gmra.mxu0 %v1737
    %v1818 = vpop.f32.mrf.mxu0
    %v1819 = vadd.f32 0.0, %v1818
    %1820 = vmatmul.f32.gmra.mxu0 %v1740
    %v1821 = vpop.f32.mrf.mxu0
    %v1822 = vadd.f32 0.0, %v1821
    %1823 = vmatmul.f32.gmra.mxu0 %v1743
    %v1824 = vpop.f32.mrf.mxu0
    %v1825 = vadd.f32 0.0, %v1824
    %1826 = vmatmul.f32.gmra.mxu0 %v1746
    %v1827 = vpop.f32.mrf.mxu0
    %v1828 = vadd.f32 0.0, %v1827
    %1829 = vmatmul.f32.gmra.mxu0 %v1749
    %v1830 = vpop.f32.mrf.mxu0
    %v1831 = vadd.f32 0.0, %v1830
    %1832 = vmatmul.f32.gmra.mxu0 %v1752
    %v1833 = vpop.f32.mrf.mxu0
    %v1834 = vadd.f32 0.0, %v1833
    %1835 = vdwg.mxu0
    %v1836 = vmax.f32 %v1772, %v1813
    %1837 = vmax.xlane.f32.xlu0 %v1836
    %v1838 = vpop.xlane.xlu0 %1837
    %v1839 = vmax.f32 %v1775, %v1816
    %1840 = vmax.xlane.f32.xlu0 %v1839
    %v1841 = vpop.xlane.xlu0 %1840
    %v1842 = vmax.f32 %v1778, %v1819
    %1843 = vmax.xlane.f32.xlu0 %v1842
    %v1844 = vpop.xlane.xlu0 %1843
    %v1845 = vmax.f32 %v1781, %v1822
    %1846 = vmax.xlane.f32.xlu0 %v1845
    %v1847 = vpop.xlane.xlu0 %1846
    %v1848 = vmax.f32 %v1784, %v1825
    %1849 = vmax.xlane.f32.xlu0 %v1848
    %v1850 = vpop.xlane.xlu0 %1849
    %v1851 = vmax.f32 %v1787, %v1828
    %1852 = vmax.xlane.f32.xlu0 %v1851
    %v1853 = vpop.xlane.xlu0 %1852
    %v1854 = vmax.f32 %v1790, %v1831
    %1855 = vmax.xlane.f32.xlu0 %v1854
    %v1856 = vpop.xlane.xlu0 %1855
    %v1857 = vmax.f32 %v1793, %v1834
    %1858 = vmax.xlane.f32.xlu0 %v1857
    %v1859 = vpop.xlane.xlu0 %1858
    %v1860 = vsub.f32 %v1772, %v1838
    %v1861 = vsub.f32 %v1813, %v1838
    %v1862 = vsub.f32 %v1775, %v1841
    %v1863 = vsub.f32 %v1816, %v1841
    %v1864 = vsub.f32 %v1778, %v1844
    %v1865 = vsub.f32 %v1819, %v1844
    %v1866 = vsub.f32 %v1781, %v1847
    %v1867 = vsub.f32 %v1822, %v1847
    %v1868 = vsub.f32 %v1784, %v1850
    %v1869 = vsub.f32 %v1825, %v1850
    %v1870 = vsub.f32 %v1787, %v1853
    %v1871 = vsub.f32 %v1828, %v1853
    %v1872 = vsub.f32 %v1790, %v1856
    %v1873 = vsub.f32 %v1831, %v1856
    %v1874 = vsub.f32 %v1793, %v1859
    %v1875 = vsub.f32 %v1834, %v1859
    %v1876 = vmul.f32 %v1860, 1.442695
    %v1877 = vpow.pop %v1876
    %v1878 = vmul.f32 %v1861, 1.442695
    %v1879 = vpow.pop %v1878
    %v1880 = vmul.f32 %v1862, 1.442695
    %v1881 = vpow.pop %v1880
    %v1882 = vmul.f32 %v1863, 1.442695
    %v1883 = vpow.pop %v1882
    %v1884 = vmul.f32 %v1864, 1.442695
    %v1885 = vpow.pop %v1884
    %v1886 = vmul.f32 %v1865, 1.442695
    %v1887 = vpow.pop %v1886
    %v1888 = vmul.f32 %v1866, 1.442695
    %v1889 = vpow.pop %v1888
    %v1890 = vmul.f32 %v1867, 1.442695
    %v1891 = vpow.pop %v1890
    %v1892 = vmul.f32 %v1868, 1.442695
    %v1893 = vpow.pop %v1892
    %v1894 = vmul.f32 %v1869, 1.442695
    %v1895 = vpow.pop %v1894
    %v1896 = vmul.f32 %v1870, 1.442695
    %v1897 = vpow.pop %v1896
    %v1898 = vmul.f32 %v1871, 1.442695
    %v1899 = vpow.pop %v1898
    %v1900 = vmul.f32 %v1872, 1.442695
    %v1901 = vpow.pop %v1900
    %v1902 = vmul.f32 %v1873, 1.442695
    %v1903 = vpow.pop %v1902
    %v1904 = vmul.f32 %v1874, 1.442695
    %v1905 = vpow.pop %v1904
    %v1906 = vmul.f32 %v1875, 1.442695
    %v1907 = vpow.pop %v1906
    %1908 = vmatpush.xpose.msra.mxu0 0.0
    %1909 = vmatpush.xpose.msra.mxu0 0.0
    %1910 = vmatpush.xpose.msra.mxu0 0.0
    %1911 = vmatpush.xpose.msra.mxu0 0.0
    %1912 = vmatpush.xpose.msra.mxu0 0.0
    %1913 = vmatpush.xpose.msra.mxu0 0.0
    %1914 = vmatpush.xpose.msra.mxu0 0.0
    %1915 = vmatpush.xpose.msra.mxu0 0.0
    %1916 = vmatpush.xpose.msra.mxu0 %v1905
    %1917 = vmatpush.xpose.msra.mxu0 %v1901
    %1918 = vmatpush.xpose.msra.mxu0 %v1897
    %1919 = vmatpush.xpose.msra.mxu0 %v1893
    %1920 = vmatpush.xpose.msra.mxu0 %v1889
    %1921 = vmatpush.xpose.msra.mxu0 %v1885
    %1922 = vmatpush.xpose.msra.mxu0 %v1881
    %1923 = vmatpush.xpose.msra.mxu0 %v1877
    %1924 = vmatmul.f32.gmra.mxu0 %v1646
    %v1925 = vpop.f32.mrf.mxu0
    %v1926 = vadd.f32 0.0, %v1925
    %1927 = vmatmul.f32.gmra.mxu0 %v1649
    %v1928 = vpop.f32.mrf.mxu0
    %v1929 = vadd.f32 0.0, %v1928
    %1930 = vmatmul.f32.gmra.mxu0 %v1652
    %v1931 = vpop.f32.mrf.mxu0
    %v1932 = vadd.f32 0.0, %v1931
    %1933 = vmatmul.f32.gmra.mxu0 %v1655
    %v1934 = vpop.f32.mrf.mxu0
    %v1935 = vadd.f32 0.0, %v1934
    %1936 = vmatmul.f32.gmra.mxu0 %v1658
    %v1937 = vpop.f32.mrf.mxu0
    %v1938 = vadd.f32 0.0, %v1937
    %1939 = vdwg.mxu0
    %1940 = vmatpush.xpose.msra.mxu0 0.0
    %1941 = vmatpush.xpose.msra.mxu0 0.0
    %1942 = vmatpush.xpose.msra.mxu0 0.0
    %1943 = vmatpush.xpose.msra.mxu0 0.0
    %1944 = vmatpush.xpose.msra.mxu0 0.0
    %1945 = vmatpush.xpose.msra.mxu0 0.0
    %1946 = vmatpush.xpose.msra.mxu0 0.0
    %1947 = vmatpush.xpose.msra.mxu0 0.0
    %1948 = vmatpush.xpose.msra.mxu0 %v1907
    %1949 = vmatpush.xpose.msra.mxu0 %v1903
    %1950 = vmatpush.xpose.msra.mxu0 %v1899
    %1951 = vmatpush.xpose.msra.mxu0 %v1895
    %1952 = vmatpush.xpose.msra.mxu0 %v1891
    %1953 = vmatpush.xpose.msra.mxu0 %v1887
    %1954 = vmatpush.xpose.msra.mxu0 %v1883
    %1955 = vmatpush.xpose.msra.mxu0 %v1879
    %1956 = vmatmul.f32.gmra.mxu0 %v1684
    %v1957 = vpop.f32.mrf.mxu0
    %v1958 = vadd.f32 %v1926, %v1957
    %1959 = vmatmul.f32.gmra.mxu0 %v1687
    %v1960 = vpop.f32.mrf.mxu0
    %v1961 = vadd.f32 %v1929, %v1960
    %1962 = vmatmul.f32.gmra.mxu0 %v1690
    %v1963 = vpop.f32.mrf.mxu0
    %v1964 = vadd.f32 %v1932, %v1963
    %1965 = vmatmul.f32.gmra.mxu0 %v1693
    %v1966 = vpop.f32.mrf.mxu0
    %v1967 = vadd.f32 %v1935, %v1966
    %1968 = vmatmul.f32.gmra.mxu0 %v1696
    %v1969 = vpop.f32.mrf.mxu0
    %v1970 = vadd.f32 %v1938, %v1969
    %1971 = vdwg.mxu0
    %v1972 = vrcp.pop %v1970
    %v1973 = vperm.slane %v1972, 0
    %v1974 = vmul.f32 %v1958, %v1973
    %v1975 = vmul.f32 %v1961, %v1973
    %v1976 = vmul.f32 %v1964, %v1973
    %v1977 = vmul.f32 %v1967, %v1973
    %v1978 = vld [vmem:[#allocation2] sm:$0xff]
    %v1979 = vld [vmem:[#allocation2 + $0x10] sm:$0xff]
    %v1980 = vld [vmem:[#allocation2 + $0x20] sm:$0xff]
    %v1981 = vld [vmem:[#allocation2 + $0x30] sm:$0xff]
    %v1982 = vadd.f32 %v1974, %v1978
    %v1983 = vadd.f32 %v1975, %v1979
    %v1984 = vadd.f32 %v1976, %v1980
    %v1985 = vadd.f32 %v1977, %v1981
    %1986 = vst.msk [vmem:[#allocation2] sm:$0xff] %vm588, %v1982
    %1987 = vst.msk [vmem:[#allocation2 + $0x10] sm:$0xff] %vm588, %v1983
    %1988 = vst.msk [vmem:[#allocation2 + $0x20] sm:$0xff] %vm588, %v1984
    %1989 = vst.msk [vmem:[#allocation2 + $0x30] sm:$0xff] %vm588, %v1985
    %1991 = vrot.lane.b32.xlu0 %v1640, 64
    %v1992 = vpop.permute.xlu0 %1991
    %1994 = vxpose.xlu0.b32.start [1/16] %v1992, 128
    %1995 = vxpose.xlu0.b32.cont [2/16] 0.0, 128
    %1996 = vxpose.xlu0.b32.cont [3/16] 0.0, 128
    %1997 = vxpose.xlu0.b32.cont [4/16] 0.0, 128
    %1998 = vxpose.xlu0.b32.cont [5/16] 0.0, 128
    %1999 = vxpose.xlu0.b32.cont [6/16] 0.0, 128
    %2000 = vxpose.xlu0.b32.cont [7/16] 0.0, 128
    %2001 = vxpose.xlu0.b32.cont [8/16] 0.0, 128
    %2002 = vxpose.xlu0.b32.cont [9/16] 0.0, 128
    %2003 = vxpose.xlu0.b32.cont [10/16] 0.0, 128
    %2004 = vxpose.xlu0.b32.cont [11/16] 0.0, 128
    %2005 = vxpose.xlu0.b32.cont [12/16] 0.0, 128
    %2006 = vxpose.xlu0.b32.cont [13/16] 0.0, 128
    %2007 = vxpose.xlu0.b32.cont [14/16] 0.0, 128
    %2008 = vxpose.xlu0.b32.cont [15/16] 0.0, 128
    %2009 = vxpose.xlu0.b32.end [16/16] 0.0, 128
    %v2010 = vpop.trf.xlu0
    %v2011 = vpop.trf.xlu0
    %v2012 = vpop.trf.xlu0
    %v2013 = vpop.trf.xlu0
    %v2014 = vpop.trf.xlu0
    %v2015 = vpop.trf.xlu0
    %v2016 = vpop.trf.xlu0
    %v2017 = vpop.trf.xlu0
    %v2018 = vpop.trf.xlu0
    %v2019 = vpop.trf.xlu0
    %v2020 = vpop.trf.xlu0
    %v2021 = vpop.trf.xlu0
    %v2022 = vpop.trf.xlu0
    %v2023 = vpop.trf.xlu0
    %v2024 = vpop.trf.xlu0
    %v2025 = vpop.trf.xlu0
    %v2027 = vsel %vm331, %v2010, 0
    %v2030 = vsel %vm331, %v2011, 0
    %v2033 = vsel %vm331, %v2012, 0
    %v2036 = vsel %vm331, %v2013, 0
    %v2039 = vsel %vm331, %v2014, 0
    %v2042 = vsel %vm331, %v2015, 0
    %v2045 = vsel %vm331, %v2016, 0
    %v2048 = vsel %vm331, %v2017, 0
    %2050 = vmatpush.msra.mxu0 0.0
    %2051 = vmatpush.msra.mxu0 0.0
    %2052 = vmatpush.msra.mxu0 0.0
    %2053 = vmatpush.msra.mxu0 0.0
    %2054 = vmatpush.msra.mxu0 0.0
    %2055 = vmatpush.msra.mxu0 0.0
    %2056 = vmatpush.msra.mxu0 0.0
    %2057 = vmatpush.msra.mxu0 0.0
    %2058 = vmatpush.msra.mxu0 0.0
    %2059 = vmatpush.msra.mxu0 0.0
    %2060 = vmatpush.msra.mxu0 0.0
    %2061 = vmatpush.msra.mxu0 0.0
    %2062 = vmatpush.msra.mxu0 0.0
    %2063 = vmatpush.msra.mxu0 0.0
    %2064 = vmatpush.msra.mxu0 0.0
    %2065 = vmatpush.msra.mxu0 %v1643
    %2066 = vmatmul.f32.gmra.mxu0 %v2027
    %v2067 = vpop.f32.mrf.mxu0
    %v2068 = vadd.f32 0.0, %v2067
    %2069 = vmatmul.f32.gmra.mxu0 %v2030
    %v2070 = vpop.f32.mrf.mxu0
    %v2071 = vadd.f32 0.0, %v2070
    %2072 = vmatmul.f32.gmra.mxu0 %v2033
    %v2073 = vpop.f32.mrf.mxu0
    %v2074 = vadd.f32 0.0, %v2073
    %2075 = vmatmul.f32.gmra.mxu0 %v2036
    %v2076 = vpop.f32.mrf.mxu0
    %v2077 = vadd.f32 0.0, %v2076
    %2078 = vmatmul.f32.gmra.mxu0 %v2039
    %v2079 = vpop.f32.mrf.mxu0
    %v2080 = vadd.f32 0.0, %v2079
    %2081 = vmatmul.f32.gmra.mxu0 %v2042
    %v2082 = vpop.f32.mrf.mxu0
    %v2083 = vadd.f32 0.0, %v2082
    %2084 = vmatmul.f32.gmra.mxu0 %v2045
    %v2085 = vpop.f32.mrf.mxu0
    %v2086 = vadd.f32 0.0, %v2085
    %2087 = vmatmul.f32.gmra.mxu0 %v2048
    %v2088 = vpop.f32.mrf.mxu0
    %v2089 = vadd.f32 0.0, %v2088
    %2090 = vdwg.mxu0
    %2091 = vmatpush.msra.mxu0 0.0
    %2092 = vmatpush.msra.mxu0 0.0
    %2093 = vmatpush.msra.mxu0 0.0
    %2094 = vmatpush.msra.mxu0 0.0
    %2095 = vmatpush.msra.mxu0 0.0
    %2096 = vmatpush.msra.mxu0 0.0
    %2097 = vmatpush.msra.mxu0 0.0
    %2098 = vmatpush.msra.mxu0 0.0
    %2099 = vmatpush.msra.mxu0 0.0
    %2100 = vmatpush.msra.mxu0 0.0
    %2101 = vmatpush.msra.mxu0 0.0
    %2102 = vmatpush.msra.mxu0 0.0
    %2103 = vmatpush.msra.mxu0 0.0
    %2104 = vmatpush.msra.mxu0 0.0
    %2105 = vmatpush.msra.mxu0 0.0
    %2106 = vmatpush.msra.mxu0 %v1681
    %2107 = vmatmul.f32.gmra.mxu0 %v2027
    %v2108 = vpop.f32.mrf.mxu0
    %v2109 = vadd.f32 0.0, %v2108
    %2110 = vmatmul.f32.gmra.mxu0 %v2030
    %v2111 = vpop.f32.mrf.mxu0
    %v2112 = vadd.f32 0.0, %v2111
    %2113 = vmatmul.f32.gmra.mxu0 %v2033
    %v2114 = vpop.f32.mrf.mxu0
    %v2115 = vadd.f32 0.0, %v2114
    %2116 = vmatmul.f32.gmra.mxu0 %v2036
    %v2117 = vpop.f32.mrf.mxu0
    %v2118 = vadd.f32 0.0, %v2117
    %2119 = vmatmul.f32.gmra.mxu0 %v2039
    %v2120 = vpop.f32.mrf.mxu0
    %v2121 = vadd.f32 0.0, %v2120
    %2122 = vmatmul.f32.gmra.mxu0 %v2042
    %v2123 = vpop.f32.mrf.mxu0
    %v2124 = vadd.f32 0.0, %v2123
    %2125 = vmatmul.f32.gmra.mxu0 %v2045
    %v2126 = vpop.f32.mrf.mxu0
    %v2127 = vadd.f32 0.0, %v2126
    %2128 = vmatmul.f32.gmra.mxu0 %v2048
    %v2129 = vpop.f32.mrf.mxu0
    %v2130 = vadd.f32 0.0, %v2129
    %2131 = vdwg.mxu0
    %v2132 = vmax.f32 %v2068, %v2109
    %2133 = vmax.xlane.f32.xlu0 %v2132
    %v2134 = vpop.xlane.xlu0 %2133
    %v2135 = vmax.f32 %v2071, %v2112
    %2136 = vmax.xlane.f32.xlu0 %v2135
    %v2137 = vpop.xlane.xlu0 %2136
    %v2138 = vmax.f32 %v2074, %v2115
    %2139 = vmax.xlane.f32.xlu0 %v2138
    %v2140 = vpop.xlane.xlu0 %2139
    %v2141 = vmax.f32 %v2077, %v2118
    %2142 = vmax.xlane.f32.xlu0 %v2141
    %v2143 = vpop.xlane.xlu0 %2142
    %v2144 = vmax.f32 %v2080, %v2121
    %2145 = vmax.xlane.f32.xlu0 %v2144
    %v2146 = vpop.xlane.xlu0 %2145
    %v2147 = vmax.f32 %v2083, %v2124
    %2148 = vmax.xlane.f32.xlu0 %v2147
    %v2149 = vpop.xlane.xlu0 %2148
    %v2150 = vmax.f32 %v2086, %v2127
    %2151 = vmax.xlane.f32.xlu0 %v2150
    %v2152 = vpop.xlane.xlu0 %2151
    %v2153 = vmax.f32 %v2089, %v2130
    %2154 = vmax.xlane.f32.xlu0 %v2153
    %v2155 = vpop.xlane.xlu0 %2154
    %v2156 = vsub.f32 %v2068, %v2134
    %v2157 = vsub.f32 %v2109, %v2134
    %v2158 = vsub.f32 %v2071, %v2137
    %v2159 = vsub.f32 %v2112, %v2137
    %v2160 = vsub.f32 %v2074, %v2140
    %v2161 = vsub.f32 %v2115, %v2140
    %v2162 = vsub.f32 %v2077, %v2143
    %v2163 = vsub.f32 %v2118, %v2143
    %v2164 = vsub.f32 %v2080, %v2146
    %v2165 = vsub.f32 %v2121, %v2146
    %v2166 = vsub.f32 %v2083, %v2149
    %v2167 = vsub.f32 %v2124, %v2149
    %v2168 = vsub.f32 %v2086, %v2152
    %v2169 = vsub.f32 %v2127, %v2152
    %v2170 = vsub.f32 %v2089, %v2155
    %v2171 = vsub.f32 %v2130, %v2155
    %v2172 = vmul.f32 %v2156, 1.442695
    %v2173 = vpow.pop %v2172
    %v2174 = vmul.f32 %v2157, 1.442695
    %v2175 = vpow.pop %v2174
    %v2176 = vmul.f32 %v2158, 1.442695
    %v2177 = vpow.pop %v2176
    %v2178 = vmul.f32 %v2159, 1.442695
    %v2179 = vpow.pop %v2178
    %v2180 = vmul.f32 %v2160, 1.442695
    %v2181 = vpow.pop %v2180
    %v2182 = vmul.f32 %v2161, 1.442695
    %v2183 = vpow.pop %v2182
    %v2184 = vmul.f32 %v2162, 1.442695
    %v2185 = vpow.pop %v2184
    %v2186 = vmul.f32 %v2163, 1.442695
    %v2187 = vpow.pop %v2186
    %v2188 = vmul.f32 %v2164, 1.442695
    %v2189 = vpow.pop %v2188
    %v2190 = vmul.f32 %v2165, 1.442695
    %v2191 = vpow.pop %v2190
    %v2192 = vmul.f32 %v2166, 1.442695
    %v2193 = vpow.pop %v2192
    %v2194 = vmul.f32 %v2167, 1.442695
    %v2195 = vpow.pop %v2194
    %v2196 = vmul.f32 %v2168, 1.442695
    %v2197 = vpow.pop %v2196
    %v2198 = vmul.f32 %v2169, 1.442695
    %v2199 = vpow.pop %v2198
    %v2200 = vmul.f32 %v2170, 1.442695
    %v2201 = vpow.pop %v2200
    %v2202 = vmul.f32 %v2171, 1.442695
    %v2203 = vpow.pop %v2202
    %2204 = vmatpush.xpose.msra.mxu0 0.0
    %2205 = vmatpush.xpose.msra.mxu0 0.0
    %2206 = vmatpush.xpose.msra.mxu0 0.0
    %2207 = vmatpush.xpose.msra.mxu0 0.0
    %2208 = vmatpush.xpose.msra.mxu0 0.0
    %2209 = vmatpush.xpose.msra.mxu0 0.0
    %2210 = vmatpush.xpose.msra.mxu0 0.0
    %2211 = vmatpush.xpose.msra.mxu0 0.0
    %2212 = vmatpush.xpose.msra.mxu0 %v2201
    %2213 = vmatpush.xpose.msra.mxu0 %v2197
    %2214 = vmatpush.xpose.msra.mxu0 %v2193
    %2215 = vmatpush.xpose.msra.mxu0 %v2189
    %2216 = vmatpush.xpose.msra.mxu0 %v2185
    %2217 = vmatpush.xpose.msra.mxu0 %v2181
    %2218 = vmatpush.xpose.msra.mxu0 %v2177
    %2219 = vmatpush.xpose.msra.mxu0 %v2173
    %2220 = vmatmul.f32.gmra.mxu0 %v1646
    %v2221 = vpop.f32.mrf.mxu0
    %v2222 = vadd.f32 0.0, %v2221
    %2223 = vmatmul.f32.gmra.mxu0 %v1649
    %v2224 = vpop.f32.mrf.mxu0
    %v2225 = vadd.f32 0.0, %v2224
    %2226 = vmatmul.f32.gmra.mxu0 %v1652
    %v2227 = vpop.f32.mrf.mxu0
    %v2228 = vadd.f32 0.0, %v2227
    %2229 = vmatmul.f32.gmra.mxu0 %v1655
    %v2230 = vpop.f32.mrf.mxu0
    %v2231 = vadd.f32 0.0, %v2230
    %2232 = vmatmul.f32.gmra.mxu0 %v1658
    %v2233 = vpop.f32.mrf.mxu0
    %v2234 = vadd.f32 0.0, %v2233
    %2235 = vdwg.mxu0
    %2236 = vmatpush.xpose.msra.mxu0 0.0
    %2237 = vmatpush.xpose.msra.mxu0 0.0
    %2238 = vmatpush.xpose.msra.mxu0 0.0
    %2239 = vmatpush.xpose.msra.mxu0 0.0
    %2240 = vmatpush.xpose.msra.mxu0 0.0
    %2241 = vmatpush.xpose.msra.mxu0 0.0
    %2242 = vmatpush.xpose.msra.mxu0 0.0
    %2243 = vmatpush.xpose.msra.mxu0 0.0
    %2244 = vmatpush.xpose.msra.mxu0 %v2203
    %2245 = vmatpush.xpose.msra.mxu0 %v2199
    %2246 = vmatpush.xpose.msra.mxu0 %v2195
    %2247 = vmatpush.xpose.msra.mxu0 %v2191
    %2248 = vmatpush.xpose.msra.mxu0 %v2187
    %2249 = vmatpush.xpose.msra.mxu0 %v2183
    %2250 = vmatpush.xpose.msra.mxu0 %v2179
    %2251 = vmatpush.xpose.msra.mxu0 %v2175
    %2252 = vmatmul.f32.gmra.mxu0 %v1684
    %v2253 = vpop.f32.mrf.mxu0
    %v2254 = vadd.f32 %v2222, %v2253
    %2255 = vmatmul.f32.gmra.mxu0 %v1687
    %v2256 = vpop.f32.mrf.mxu0
    %v2257 = vadd.f32 %v2225, %v2256
    %2258 = vmatmul.f32.gmra.mxu0 %v1690
    %v2259 = vpop.f32.mrf.mxu0
    %v2260 = vadd.f32 %v2228, %v2259
    %2261 = vmatmul.f32.gmra.mxu0 %v1693
    %v2262 = vpop.f32.mrf.mxu0
    %v2263 = vadd.f32 %v2231, %v2262
    %2264 = vmatmul.f32.gmra.mxu0 %v1696
    %v2265 = vpop.f32.mrf.mxu0
    %v2266 = vadd.f32 %v2234, %v2265
    %2267 = vdwg.mxu0
    %v2268 = vrcp.pop %v2266
    %v2269 = vperm.slane %v2268, 0
    %v2270 = vmul.f32 %v2254, %v2269
    %v2271 = vmul.f32 %v2257, %v2269
    %v2272 = vmul.f32 %v2260, %v2269
    %v2273 = vmul.f32 %v2263, %v2269
    %v2274 = vld [vmem:[#allocation2] sm:$0xff]
    %v2275 = vld [vmem:[#allocation2 + $0x10] sm:$0xff]
    %v2276 = vld [vmem:[#allocation2 + $0x20] sm:$0xff]
    %v2277 = vld [vmem:[#allocation2 + $0x30] sm:$0xff]
    %2282 = vrot.lane.b32.xlu0 %v2274, 64
    %v2283 = vpop.permute.xlu0 %2282
    %2284 = vrot.lane.b32.xlu0 %v2275, 64
    %v2285 = vpop.permute.xlu0 %2284
    %2286 = vrot.lane.b32.xlu0 %v2276, 64
    %v2287 = vpop.permute.xlu0 %2286
    %2288 = vrot.lane.b32.xlu0 %v2277, 64
    %v2289 = vpop.permute.xlu0 %2288
    %v2294 = vadd.f32 %v2270, %v2283
    %v2295 = vadd.f32 %v2271, %v2285
    %v2296 = vadd.f32 %v2272, %v2287
    %v2297 = vadd.f32 %v2273, %v2289
    %2302 = vrot.lane.b32.xlu0 %v2294, 64
    %v2303 = vpop.permute.xlu0 %2302
    %2304 = vrot.lane.b32.xlu0 %v2295, 64
    %v2305 = vpop.permute.xlu0 %2304
    %2306 = vrot.lane.b32.xlu0 %v2296, 64
    %v2307 = vpop.permute.xlu0 %2306
    %2308 = vrot.lane.b32.xlu0 %v2297, 64
    %v2309 = vpop.permute.xlu0 %2308
    %2314 = vst.msk [vmem:[#allocation2] sm:$0xff] %vm917, %v2303
    %2315 = vst.msk [vmem:[#allocation2 + $0x10] sm:$0xff] %vm917, %v2305
    %2316 = vst.msk [vmem:[#allocation2 + $0x20] sm:$0xff] %vm917, %v2307
    %2317 = vst.msk [vmem:[#allocation2 + $0x30] sm:$0xff] %vm917, %v2309
    %2318 = vxpose.xlu0.b32.start [1/16] %v1678, 128
    %2319 = vxpose.xlu0.b32.cont [2/16] 0.0, 128
    %2320 = vxpose.xlu0.b32.cont [3/16] 0.0, 128
    %2321 = vxpose.xlu0.b32.cont [4/16] 0.0, 128
    %2322 = vxpose.xlu0.b32.cont [5/16] 0.0, 128
    %2323 = vxpose.xlu0.b32.cont [6/16] 0.0, 128
    %2324 = vxpose.xlu0.b32.cont [7/16] 0.0, 128
    %2325 = vxpose.xlu0.b32.cont [8/16] 0.0, 128
    %2326 = vxpose.xlu0.b32.cont [9/16] 0.0, 128
    %2327 = vxpose.xlu0.b32.cont [10/16] 0.0, 128
    %2328 = vxpose.xlu0.b32.cont [11/16] 0.0, 128
    %2329 = vxpose.xlu0.b32.cont [12/16] 0.0, 128
    %2330 = vxpose.xlu0.b32.cont [13/16] 0.0, 128
    %2331 = vxpose.xlu0.b32.cont [14/16] 0.0, 128
    %2332 = vxpose.xlu0.b32.cont [15/16] 0.0, 128
    %2333 = vxpose.xlu0.b32.end [16/16] 0.0, 128
    %v2334 = vpop.trf.xlu0
    %v2335 = vpop.trf.xlu0
    %v2336 = vpop.trf.xlu0
    %v2337 = vpop.trf.xlu0
    %v2338 = vpop.trf.xlu0
    %v2339 = vpop.trf.xlu0
    %v2340 = vpop.trf.xlu0
    %v2341 = vpop.trf.xlu0
    %v2342 = vpop.trf.xlu0
    %v2343 = vpop.trf.xlu0
    %v2344 = vpop.trf.xlu0
    %v2345 = vpop.trf.xlu0
    %v2346 = vpop.trf.xlu0
    %v2347 = vpop.trf.xlu0
    %v2348 = vpop.trf.xlu0
    %v2349 = vpop.trf.xlu0
    %v2351 = vsel %vm331, %v2334, 0
    %v2354 = vsel %vm331, %v2335, 0
    %v2357 = vsel %vm331, %v2336, 0
    %v2360 = vsel %vm331, %v2337, 0
    %v2363 = vsel %vm331, %v2338, 0
    %v2366 = vsel %vm331, %v2339, 0
    %v2369 = vsel %vm331, %v2340, 0
    %v2372 = vsel %vm331, %v2341, 0
    %2374 = vmatpush.msra.mxu0 0.0
    %2375 = vmatpush.msra.mxu0 0.0
    %2376 = vmatpush.msra.mxu0 0.0
    %2377 = vmatpush.msra.mxu0 0.0
    %2378 = vmatpush.msra.mxu0 0.0
    %2379 = vmatpush.msra.mxu0 0.0
    %2380 = vmatpush.msra.mxu0 0.0
    %2381 = vmatpush.msra.mxu0 0.0
    %2382 = vmatpush.msra.mxu0 0.0
    %2383 = vmatpush.msra.mxu0 0.0
    %2384 = vmatpush.msra.mxu0 0.0
    %2385 = vmatpush.msra.mxu0 0.0
    %2386 = vmatpush.msra.mxu0 0.0
    %2387 = vmatpush.msra.mxu0 0.0
    %2388 = vmatpush.msra.mxu0 0.0
    %2389 = vmatpush.msra.mxu0 %v1643
    %2390 = vmatmul.f32.gmra.mxu0 %v2351
    %v2391 = vpop.f32.mrf.mxu0
    %v2392 = vadd.f32 0.0, %v2391
    %2393 = vmatmul.f32.gmra.mxu0 %v2354
    %v2394 = vpop.f32.mrf.mxu0
    %v2395 = vadd.f32 0.0, %v2394
    %2396 = vmatmul.f32.gmra.mxu0 %v2357
    %v2397 = vpop.f32.mrf.mxu0
    %v2398 = vadd.f32 0.0, %v2397
    %2399 = vmatmul.f32.gmra.mxu0 %v2360
    %v2400 = vpop.f32.mrf.mxu0
    %v2401 = vadd.f32 0.0, %v2400
    %2402 = vmatmul.f32.gmra.mxu0 %v2363
    %v2403 = vpop.f32.mrf.mxu0
    %v2404 = vadd.f32 0.0, %v2403
    %2405 = vmatmul.f32.gmra.mxu0 %v2366
    %v2406 = vpop.f32.mrf.mxu0
    %v2407 = vadd.f32 0.0, %v2406
    %2408 = vmatmul.f32.gmra.mxu0 %v2369
    %v2409 = vpop.f32.mrf.mxu0
    %v2410 = vadd.f32 0.0, %v2409
    %2411 = vmatmul.f32.gmra.mxu0 %v2372
    %v2412 = vpop.f32.mrf.mxu0
    %v2413 = vadd.f32 0.0, %v2412
    %2414 = vdwg.mxu0
    %2415 = vmatpush.msra.mxu0 0.0
    %2416 = vmatpush.msra.mxu0 0.0
    %2417 = vmatpush.msra.mxu0 0.0
    %2418 = vmatpush.msra.mxu0 0.0
    %2419 = vmatpush.msra.mxu0 0.0
    %2420 = vmatpush.msra.mxu0 0.0
    %2421 = vmatpush.msra.mxu0 0.0
    %2422 = vmatpush.msra.mxu0 0.0
    %2423 = vmatpush.msra.mxu0 0.0
    %2424 = vmatpush.msra.mxu0 0.0
    %2425 = vmatpush.msra.mxu0 0.0
    %2426 = vmatpush.msra.mxu0 0.0
    %2427 = vmatpush.msra.mxu0 0.0
    %2428 = vmatpush.msra.mxu0 0.0
    %2429 = vmatpush.msra.mxu0 0.0
    %2430 = vmatpush.msra.mxu0 %v1681
    %2431 = vmatmul.f32.gmra.mxu0 %v2351
    %v2432 = vpop.f32.mrf.mxu0
    %v2433 = vadd.f32 0.0, %v2432
    %2434 = vmatmul.f32.gmra.mxu0 %v2354
    %v2435 = vpop.f32.mrf.mxu0
    %v2436 = vadd.f32 0.0, %v2435
    %2437 = vmatmul.f32.gmra.mxu0 %v2357
    %v2438 = vpop.f32.mrf.mxu0
    %v2439 = vadd.f32 0.0, %v2438
    %2440 = vmatmul.f32.gmra.mxu0 %v2360
    %v2441 = vpop.f32.mrf.mxu0
    %v2442 = vadd.f32 0.0, %v2441
    %2443 = vmatmul.f32.gmra.mxu0 %v2363
    %v2444 = vpop.f32.mrf.mxu0
    %v2445 = vadd.f32 0.0, %v2444
    %2446 = vmatmul.f32.gmra.mxu0 %v2366
    %v2447 = vpop.f32.mrf.mxu0
    %v2448 = vadd.f32 0.0, %v2447
    %2449 = vmatmul.f32.gmra.mxu0 %v2369
    %v2450 = vpop.f32.mrf.mxu0
    %v2451 = vadd.f32 0.0, %v2450
    %2452 = vmatmul.f32.gmra.mxu0 %v2372
    %v2453 = vpop.f32.mrf.mxu0
    %v2454 = vadd.f32 0.0, %v2453
    %2455 = vdwg.mxu0
    %v2456 = vmax.f32 %v2392, %v2433
    %2457 = vmax.xlane.f32.xlu0 %v2456
    %v2458 = vpop.xlane.xlu0 %2457
    %v2459 = vmax.f32 %v2395, %v2436
    %2460 = vmax.xlane.f32.xlu0 %v2459
    %v2461 = vpop.xlane.xlu0 %2460
    %v2462 = vmax.f32 %v2398, %v2439
    %2463 = vmax.xlane.f32.xlu0 %v2462
    %v2464 = vpop.xlane.xlu0 %2463
    %v2465 = vmax.f32 %v2401, %v2442
    %2466 = vmax.xlane.f32.xlu0 %v2465
    %v2467 = vpop.xlane.xlu0 %2466
    %v2468 = vmax.f32 %v2404, %v2445
    %2469 = vmax.xlane.f32.xlu0 %v2468
    %v2470 = vpop.xlane.xlu0 %2469
    %v2471 = vmax.f32 %v2407, %v2448
    %2472 = vmax.xlane.f32.xlu0 %v2471
    %v2473 = vpop.xlane.xlu0 %2472
    %v2474 = vmax.f32 %v2410, %v2451
    %2475 = vmax.xlane.f32.xlu0 %v2474
    %v2476 = vpop.xlane.xlu0 %2475
    %v2477 = vmax.f32 %v2413, %v2454
    %2478 = vmax.xlane.f32.xlu0 %v2477
    %v2479 = vpop.xlane.xlu0 %2478
    %v2480 = vsub.f32 %v2392, %v2458
    %v2481 = vsub.f32 %v2433, %v2458
    %v2482 = vsub.f32 %v2395, %v2461
    %v2483 = vsub.f32 %v2436, %v2461
    %v2484 = vsub.f32 %v2398, %v2464
    %v2485 = vsub.f32 %v2439, %v2464
    %v2486 = vsub.f32 %v2401, %v2467
    %v2487 = vsub.f32 %v2442, %v2467
    %v2488 = vsub.f32 %v2404, %v2470
    %v2489 = vsub.f32 %v2445, %v2470
    %v2490 = vsub.f32 %v2407, %v2473
    %v2491 = vsub.f32 %v2448, %v2473
    %v2492 = vsub.f32 %v2410, %v2476
    %v2493 = vsub.f32 %v2451, %v2476
    %v2494 = vsub.f32 %v2413, %v2479
    %v2495 = vsub.f32 %v2454, %v2479
    %v2496 = vmul.f32 %v2480, 1.442695
    %v2497 = vpow.pop %v2496
    %v2498 = vmul.f32 %v2481, 1.442695
    %v2499 = vpow.pop %v2498
    %v2500 = vmul.f32 %v2482, 1.442695
    %v2501 = vpow.pop %v2500
    %v2502 = vmul.f32 %v2483, 1.442695
    %v2503 = vpow.pop %v2502
    %v2504 = vmul.f32 %v2484, 1.442695
    %v2505 = vpow.pop %v2504
    %v2506 = vmul.f32 %v2485, 1.442695
    %v2507 = vpow.pop %v2506
    %v2508 = vmul.f32 %v2486, 1.442695
    %v2509 = vpow.pop %v2508
    %v2510 = vmul.f32 %v2487, 1.442695
    %v2511 = vpow.pop %v2510
    %v2512 = vmul.f32 %v2488, 1.442695
    %v2513 = vpow.pop %v2512
    %v2514 = vmul.f32 %v2489, 1.442695
    %v2515 = vpow.pop %v2514
    %v2516 = vmul.f32 %v2490, 1.442695
    %v2517 = vpow.pop %v2516
    %v2518 = vmul.f32 %v2491, 1.442695
    %v2519 = vpow.pop %v2518
    %v2520 = vmul.f32 %v2492, 1.442695
    %v2521 = vpow.pop %v2520
    %v2522 = vmul.f32 %v2493, 1.442695
    %v2523 = vpow.pop %v2522
    %v2524 = vmul.f32 %v2494, 1.442695
    %v2525 = vpow.pop %v2524
    %v2526 = vmul.f32 %v2495, 1.442695
    %v2527 = vpow.pop %v2526
    %2528 = vmatpush.xpose.msra.mxu0 0.0
    %2529 = vmatpush.xpose.msra.mxu0 0.0
    %2530 = vmatpush.xpose.msra.mxu0 0.0
    %2531 = vmatpush.xpose.msra.mxu0 0.0
    %2532 = vmatpush.xpose.msra.mxu0 0.0
    %2533 = vmatpush.xpose.msra.mxu0 0.0
    %2534 = vmatpush.xpose.msra.mxu0 0.0
    %2535 = vmatpush.xpose.msra.mxu0 0.0
    %2536 = vmatpush.xpose.msra.mxu0 %v2525
    %2537 = vmatpush.xpose.msra.mxu0 %v2521
    %2538 = vmatpush.xpose.msra.mxu0 %v2517
    %2539 = vmatpush.xpose.msra.mxu0 %v2513
    %2540 = vmatpush.xpose.msra.mxu0 %v2509
    %2541 = vmatpush.xpose.msra.mxu0 %v2505
    %2542 = vmatpush.xpose.msra.mxu0 %v2501
    %2543 = vmatpush.xpose.msra.mxu0 %v2497
    %2544 = vmatmul.f32.gmra.mxu0 %v1646
    %v2545 = vpop.f32.mrf.mxu0
    %v2546 = vadd.f32 0.0, %v2545
    %2547 = vmatmul.f32.gmra.mxu0 %v1649
    %v2548 = vpop.f32.mrf.mxu0
    %v2549 = vadd.f32 0.0, %v2548
    %2550 = vmatmul.f32.gmra.mxu0 %v1652
    %v2551 = vpop.f32.mrf.mxu0
    %v2552 = vadd.f32 0.0, %v2551
    %2553 = vmatmul.f32.gmra.mxu0 %v1655
    %v2554 = vpop.f32.mrf.mxu0
    %v2555 = vadd.f32 0.0, %v2554
    %2556 = vmatmul.f32.gmra.mxu0 %v1658
    %v2557 = vpop.f32.mrf.mxu0
    %v2558 = vadd.f32 0.0, %v2557
    %2559 = vdwg.mxu0
    %2560 = vmatpush.xpose.msra.mxu0 0.0
    %2561 = vmatpush.xpose.msra.mxu0 0.0
    %2562 = vmatpush.xpose.msra.mxu0 0.0
    %2563 = vmatpush.xpose.msra.mxu0 0.0
    %2564 = vmatpush.xpose.msra.mxu0 0.0
    %2565 = vmatpush.xpose.msra.mxu0 0.0
    %2566 = vmatpush.xpose.msra.mxu0 0.0
    %2567 = vmatpush.xpose.msra.mxu0 0.0
    %2568 = vmatpush.xpose.msra.mxu0 %v2527
    %2569 = vmatpush.xpose.msra.mxu0 %v2523
    %2570 = vmatpush.xpose.msra.mxu0 %v2519
    %2571 = vmatpush.xpose.msra.mxu0 %v2515
    %2572 = vmatpush.xpose.msra.mxu0 %v2511
    %2573 = vmatpush.xpose.msra.mxu0 %v2507
    %2574 = vmatpush.xpose.msra.mxu0 %v2503
    %2575 = vmatpush.xpose.msra.mxu0 %v2499
    %2576 = vmatmul.f32.gmra.mxu0 %v1684
    %v2577 = vpop.f32.mrf.mxu0
    %v2578 = vadd.f32 %v2546, %v2577
    %2579 = vmatmul.f32.gmra.mxu0 %v1687
    %v2580 = vpop.f32.mrf.mxu0
    %v2581 = vadd.f32 %v2549, %v2580
    %2582 = vmatmul.f32.gmra.mxu0 %v1690
    %v2583 = vpop.f32.mrf.mxu0
    %v2584 = vadd.f32 %v2552, %v2583
    %2585 = vmatmul.f32.gmra.mxu0 %v1693
    %v2586 = vpop.f32.mrf.mxu0
    %v2587 = vadd.f32 %v2555, %v2586
    %2588 = vmatmul.f32.gmra.mxu0 %v1696
    %v2589 = vpop.f32.mrf.mxu0
    %v2590 = vadd.f32 %v2558, %v2589
    %2591 = vdwg.mxu0
    %v2592 = vrcp.pop %v2590
    %v2593 = vperm.slane %v2592, 0
    %v2594 = vmul.f32 %v2578, %v2593
    %v2595 = vmul.f32 %v2581, %v2593
    %v2596 = vmul.f32 %v2584, %v2593
    %v2597 = vmul.f32 %v2587, %v2593
    %v2598 = vld [vmem:[#allocation2 + $0x8] sm:$0xff]
    %v2599 = vld [vmem:[#allocation2 + $0x18] sm:$0xff]
    %v2600 = vld [vmem:[#allocation2 + $0x28] sm:$0xff]
    %v2601 = vld [vmem:[#allocation2 + $0x38] sm:$0xff]
    %v2602 = vadd.f32 %v2594, %v2598
    %v2603 = vadd.f32 %v2595, %v2599
    %v2604 = vadd.f32 %v2596, %v2600
    %v2605 = vadd.f32 %v2597, %v2601
    %2606 = vst.msk [vmem:[#allocation2 + $0x8] sm:$0xff] %vm588, %v2602
    %2607 = vst.msk [vmem:[#allocation2 + $0x18] sm:$0xff] %vm588, %v2603
    %2608 = vst.msk [vmem:[#allocation2 + $0x28] sm:$0xff] %vm588, %v2604
    %2609 = vst.msk [vmem:[#allocation2 + $0x38] sm:$0xff] %vm588, %v2605
    %2611 = vrot.lane.b32.xlu0 %v1678, 64
    %v2612 = vpop.permute.xlu0 %2611
    %2614 = vxpose.xlu0.b32.start [1/16] %v2612, 128
    %2615 = vxpose.xlu0.b32.cont [2/16] 0.0, 128
    %2616 = vxpose.xlu0.b32.cont [3/16] 0.0, 128
    %2617 = vxpose.xlu0.b32.cont [4/16] 0.0, 128
    %2618 = vxpose.xlu0.b32.cont [5/16] 0.0, 128
    %2619 = vxpose.xlu0.b32.cont [6/16] 0.0, 128
    %2620 = vxpose.xlu0.b32.cont [7/16] 0.0, 128
    %2621 = vxpose.xlu0.b32.cont [8/16] 0.0, 128
    %2622 = vxpose.xlu0.b32.cont [9/16] 0.0, 128
    %2623 = vxpose.xlu0.b32.cont [10/16] 0.0, 128
    %2624 = vxpose.xlu0.b32.cont [11/16] 0.0, 128
    %2625 = vxpose.xlu0.b32.cont [12/16] 0.0, 128
    %2626 = vxpose.xlu0.b32.cont [13/16] 0.0, 128
    %2627 = vxpose.xlu0.b32.cont [14/16] 0.0, 128
    %2628 = vxpose.xlu0.b32.cont [15/16] 0.0, 128
    %2629 = vxpose.xlu0.b32.end [16/16] 0.0, 128
    %v2630 = vpop.trf.xlu0
    %v2631 = vpop.trf.xlu0
    %v2632 = vpop.trf.xlu0
    %v2633 = vpop.trf.xlu0
    %v2634 = vpop.trf.xlu0
    %v2635 = vpop.trf.xlu0
    %v2636 = vpop.trf.xlu0
    %v2637 = vpop.trf.xlu0
    %v2638 = vpop.trf.xlu0
    %v2639 = vpop.trf.xlu0
    %v2640 = vpop.trf.xlu0
    %v2641 = vpop.trf.xlu0
    %v2642 = vpop.trf.xlu0
    %v2643 = vpop.trf.xlu0
    %v2644 = vpop.trf.xlu0
    %v2645 = vpop.trf.xlu0
    %v2647 = vsel %vm331, %v2630, 0
    %v2650 = vsel %vm331, %v2631, 0
    %v2653 = vsel %vm331, %v2632, 0
    %v2656 = vsel %vm331, %v2633, 0
    %v2659 = vsel %vm331, %v2634, 0
    %v2662 = vsel %vm331, %v2635, 0
    %v2665 = vsel %vm331, %v2636, 0
    %v2668 = vsel %vm331, %v2637, 0
    %2670 = vmatpush.msra.mxu0 0.0
    %2671 = vmatpush.msra.mxu0 0.0
    %2672 = vmatpush.msra.mxu0 0.0
    %2673 = vmatpush.msra.mxu0 0.0
    %2674 = vmatpush.msra.mxu0 0.0
    %2675 = vmatpush.msra.mxu0 0.0
    %2676 = vmatpush.msra.mxu0 0.0
    %2677 = vmatpush.msra.mxu0 0.0
    %2678 = vmatpush.msra.mxu0 0.0
    %2679 = vmatpush.msra.mxu0 0.0
    %2680 = vmatpush.msra.mxu0 0.0
    %2681 = vmatpush.msra.mxu0 0.0
    %2682 = vmatpush.msra.mxu0 0.0
    %2683 = vmatpush.msra.mxu0 0.0
    %2684 = vmatpush.msra.mxu0 0.0
    %2685 = vmatpush.msra.mxu0 %v1643
    %2686 = vmatmul.f32.gmra.mxu0 %v2647
    %v2687 = vpop.f32.mrf.mxu0
    %v2688 = vadd.f32 0.0, %v2687
    %2689 = vmatmul.f32.gmra.mxu0 %v2650
    %v2690 = vpop.f32.mrf.mxu0
    %v2691 = vadd.f32 0.0, %v2690
    %2692 = vmatmul.f32.gmra.mxu0 %v2653
    %v2693 = vpop.f32.mrf.mxu0
    %v2694 = vadd.f32 0.0, %v2693
    %2695 = vmatmul.f32.gmra.mxu0 %v2656
    %v2696 = vpop.f32.mrf.mxu0
    %v2697 = vadd.f32 0.0, %v2696
    %2698 = vmatmul.f32.gmra.mxu0 %v2659
    %v2699 = vpop.f32.mrf.mxu0
    %v2700 = vadd.f32 0.0, %v2699
    %2701 = vmatmul.f32.gmra.mxu0 %v2662
    %v2702 = vpop.f32.mrf.mxu0
    %v2703 = vadd.f32 0.0, %v2702
    %2704 = vmatmul.f32.gmra.mxu0 %v2665
    %v2705 = vpop.f32.mrf.mxu0
    %v2706 = vadd.f32 0.0, %v2705
    %2707 = vmatmul.f32.gmra.mxu0 %v2668
    %v2708 = vpop.f32.mrf.mxu0
    %v2709 = vadd.f32 0.0, %v2708
    %2710 = vdwg.mxu0
    %2711 = vmatpush.msra.mxu0 0.0
    %2712 = vmatpush.msra.mxu0 0.0
    %2713 = vmatpush.msra.mxu0 0.0
    %2714 = vmatpush.msra.mxu0 0.0
    %2715 = vmatpush.msra.mxu0 0.0
    %2716 = vmatpush.msra.mxu0 0.0
    %2717 = vmatpush.msra.mxu0 0.0
    %2718 = vmatpush.msra.mxu0 0.0
    %2719 = vmatpush.msra.mxu0 0.0
    %2720 = vmatpush.msra.mxu0 0.0
    %2721 = vmatpush.msra.mxu0 0.0
    %2722 = vmatpush.msra.mxu0 0.0
    %2723 = vmatpush.msra.mxu0 0.0
    %2724 = vmatpush.msra.mxu0 0.0
    %2725 = vmatpush.msra.mxu0 0.0
    %2726 = vmatpush.msra.mxu0 %v1681
    %2727 = vmatmul.f32.gmra.mxu0 %v2647
    %v2728 = vpop.f32.mrf.mxu0
    %v2729 = vadd.f32 0.0, %v2728
    %2730 = vmatmul.f32.gmra.mxu0 %v2650
    %v2731 = vpop.f32.mrf.mxu0
    %v2732 = vadd.f32 0.0, %v2731
    %2733 = vmatmul.f32.gmra.mxu0 %v2653
    %v2734 = vpop.f32.mrf.mxu0
    %v2735 = vadd.f32 0.0, %v2734
    %2736 = vmatmul.f32.gmra.mxu0 %v2656
    %v2737 = vpop.f32.mrf.mxu0
    %v2738 = vadd.f32 0.0, %v2737
    %2739 = vmatmul.f32.gmra.mxu0 %v2659
    %v2740 = vpop.f32.mrf.mxu0
    %v2741 = vadd.f32 0.0, %v2740
    %2742 = vmatmul.f32.gmra.mxu0 %v2662
    %v2743 = vpop.f32.mrf.mxu0
    %v2744 = vadd.f32 0.0, %v2743
    %2745 = vmatmul.f32.gmra.mxu0 %v2665
    %v2746 = vpop.f32.mrf.mxu0
    %v2747 = vadd.f32 0.0, %v2746
    %2748 = vmatmul.f32.gmra.mxu0 %v2668
    %v2749 = vpop.f32.mrf.mxu0
    %v2750 = vadd.f32 0.0, %v2749
    %2751 = vdwg.mxu0
    %v2752 = vmax.f32 %v2688, %v2729
    %2753 = vmax.xlane.f32.xlu0 %v2752
    %v2754 = vpop.xlane.xlu0 %2753
    %v2755 = vmax.f32 %v2691, %v2732
    %2756 = vmax.xlane.f32.xlu0 %v2755
    %v2757 = vpop.xlane.xlu0 %2756
    %v2758 = vmax.f32 %v2694, %v2735
    %2759 = vmax.xlane.f32.xlu0 %v2758
    %v2760 = vpop.xlane.xlu0 %2759
    %v2761 = vmax.f32 %v2697, %v2738
    %2762 = vmax.xlane.f32.xlu0 %v2761
    %v2763 = vpop.xlane.xlu0 %2762
    %v2764 = vmax.f32 %v2700, %v2741
    %2765 = vmax.xlane.f32.xlu0 %v2764
    %v2766 = vpop.xlane.xlu0 %2765
    %v2767 = vmax.f32 %v2703, %v2744
    %2768 = vmax.xlane.f32.xlu0 %v2767
    %v2769 = vpop.xlane.xlu0 %2768
    %v2770 = vmax.f32 %v2706, %v2747
    %2771 = vmax.xlane.f32.xlu0 %v2770
    %v2772 = vpop.xlane.xlu0 %2771
    %v2773 = vmax.f32 %v2709, %v2750
    %2774 = vmax.xlane.f32.xlu0 %v2773
    %v2775 = vpop.xlane.xlu0 %2774
    %v2776 = vsub.f32 %v2688, %v2754
    %v2777 = vsub.f32 %v2729, %v2754
    %v2778 = vsub.f32 %v2691, %v2757
    %v2779 = vsub.f32 %v2732, %v2757
    %v2780 = vsub.f32 %v2694, %v2760
    %v2781 = vsub.f32 %v2735, %v2760
    %v2782 = vsub.f32 %v2697, %v2763
    %v2783 = vsub.f32 %v2738, %v2763
    %v2784 = vsub.f32 %v2700, %v2766
    %v2785 = vsub.f32 %v2741, %v2766
    %v2786 = vsub.f32 %v2703, %v2769
    %v2787 = vsub.f32 %v2744, %v2769
    %v2788 = vsub.f32 %v2706, %v2772
    %v2789 = vsub.f32 %v2747, %v2772
    %v2790 = vsub.f32 %v2709, %v2775
    %v2791 = vsub.f32 %v2750, %v2775
    %v2792 = vmul.f32 %v2776, 1.442695
    %v2793 = vpow.pop %v2792
    %v2794 = vmul.f32 %v2777, 1.442695
    %v2795 = vpow.pop %v2794
    %v2796 = vmul.f32 %v2778, 1.442695
    %v2797 = vpow.pop %v2796
    %v2798 = vmul.f32 %v2779, 1.442695
    %v2799 = vpow.pop %v2798
    %v2800 = vmul.f32 %v2780, 1.442695
    %v2801 = vpow.pop %v2800
    %v2802 = vmul.f32 %v2781, 1.442695
    %v2803 = vpow.pop %v2802
    %v2804 = vmul.f32 %v2782, 1.442695
    %v2805 = vpow.pop %v2804
    %v2806 = vmul.f32 %v2783, 1.442695
    %v2807 = vpow.pop %v2806
    %v2808 = vmul.f32 %v2784, 1.442695
    %v2809 = vpow.pop %v2808
    %v2810 = vmul.f32 %v2785, 1.442695
    %v2811 = vpow.pop %v2810
    %v2812 = vmul.f32 %v2786, 1.442695
    %v2813 = vpow.pop %v2812
    %v2814 = vmul.f32 %v2787, 1.442695
    %v2815 = vpow.pop %v2814
    %v2816 = vmul.f32 %v2788, 1.442695
    %v2817 = vpow.pop %v2816
    %v2818 = vmul.f32 %v2789, 1.442695
    %v2819 = vpow.pop %v2818
    %v2820 = vmul.f32 %v2790, 1.442695
    %v2821 = vpow.pop %v2820
    %v2822 = vmul.f32 %v2791, 1.442695
    %v2823 = vpow.pop %v2822
    %2824 = vmatpush.xpose.msra.mxu0 0.0
    %2825 = vmatpush.xpose.msra.mxu0 0.0
    %2826 = vmatpush.xpose.msra.mxu0 0.0
    %2827 = vmatpush.xpose.msra.mxu0 0.0
    %2828 = vmatpush.xpose.msra.mxu0 0.0
    %2829 = vmatpush.xpose.msra.mxu0 0.0
    %2830 = vmatpush.xpose.msra.mxu0 0.0
    %2831 = vmatpush.xpose.msra.mxu0 0.0
    %2832 = vmatpush.xpose.msra.mxu0 %v2821
    %2833 = vmatpush.xpose.msra.mxu0 %v2817
    %2834 = vmatpush.xpose.msra.mxu0 %v2813
    %2835 = vmatpush.xpose.msra.mxu0 %v2809
    %2836 = vmatpush.xpose.msra.mxu0 %v2805
    %2837 = vmatpush.xpose.msra.mxu0 %v2801
    %2838 = vmatpush.xpose.msra.mxu0 %v2797
    %2839 = vmatpush.xpose.msra.mxu0 %v2793
    %2840 = vmatmul.f32.gmra.mxu0 %v1646
    %v2841 = vpop.f32.mrf.mxu0
    %v2842 = vadd.f32 0.0, %v2841
    %2843 = vmatmul.f32.gmra.mxu0 %v1649
    %v2844 = vpop.f32.mrf.mxu0
    %v2845 = vadd.f32 0.0, %v2844
    %2846 = vmatmul.f32.gmra.mxu0 %v1652
    %v2847 = vpop.f32.mrf.mxu0
    %v2848 = vadd.f32 0.0, %v2847
    %2849 = vmatmul.f32.gmra.mxu0 %v1655
    %v2850 = vpop.f32.mrf.mxu0
    %v2851 = vadd.f32 0.0, %v2850
    %2852 = vmatmul.f32.gmra.mxu0 %v1658
    %v2853 = vpop.f32.mrf.mxu0
    %v2854 = vadd.f32 0.0, %v2853
    %2855 = vdwg.mxu0
    %2856 = vmatpush.xpose.msra.mxu0 0.0
    %2857 = vmatpush.xpose.msra.mxu0 0.0
    %2858 = vmatpush.xpose.msra.mxu0 0.0
    %2859 = vmatpush.xpose.msra.mxu0 0.0
    %2860 = vmatpush.xpose.msra.mxu0 0.0
    %2861 = vmatpush.xpose.msra.mxu0 0.0
    %2862 = vmatpush.xpose.msra.mxu0 0.0
    %2863 = vmatpush.xpose.msra.mxu0 0.0
    %2864 = vmatpush.xpose.msra.mxu0 %v2823
    %2865 = vmatpush.xpose.msra.mxu0 %v2819
    %2866 = vmatpush.xpose.msra.mxu0 %v2815
    %2867 = vmatpush.xpose.msra.mxu0 %v2811
    %2868 = vmatpush.xpose.msra.mxu0 %v2807
    %2869 = vmatpush.xpose.msra.mxu0 %v2803
    %2870 = vmatpush.xpose.msra.mxu0 %v2799
    %2871 = vmatpush.xpose.msra.mxu0 %v2795
    %2872 = vmatmul.f32.gmra.mxu0 %v1684
    %v2873 = vpop.f32.mrf.mxu0
    %v2874 = vadd.f32 %v2842, %v2873
    %2875 = vmatmul.f32.gmra.mxu0 %v1687
    %v2876 = vpop.f32.mrf.mxu0
    %v2877 = vadd.f32 %v2845, %v2876
    %2878 = vmatmul.f32.gmra.mxu0 %v1690
    %v2879 = vpop.f32.mrf.mxu0
    %v2880 = vadd.f32 %v2848, %v2879
    %2881 = vmatmul.f32.gmra.mxu0 %v1693
    %v2882 = vpop.f32.mrf.mxu0
    %v2883 = vadd.f32 %v2851, %v2882
    %2884 = vmatmul.f32.gmra.mxu0 %v1696
    %v2885 = vpop.f32.mrf.mxu0
    %v2886 = vadd.f32 %v2854, %v2885
    %2887 = vdwg.mxu0
    %v2888 = vrcp.pop %v2886
    %v2889 = vperm.slane %v2888, 0
    %v2890 = vmul.f32 %v2874, %v2889
    %v2891 = vmul.f32 %v2877, %v2889
    %v2892 = vmul.f32 %v2880, %v2889
    %v2893 = vmul.f32 %v2883, %v2889
    %v2894 = vld [vmem:[#allocation2 + $0x8] sm:$0xff]
    %v2895 = vld [vmem:[#allocation2 + $0x18] sm:$0xff]
    %v2896 = vld [vmem:[#allocation2 + $0x28] sm:$0xff]
    %v2897 = vld [vmem:[#allocation2 + $0x38] sm:$0xff]
    %2902 = vrot.lane.b32.xlu0 %v2894, 64
    %v2903 = vpop.permute.xlu0 %2902
    %2904 = vrot.lane.b32.xlu0 %v2895, 64
    %v2905 = vpop.permute.xlu0 %2904
    %2906 = vrot.lane.b32.xlu0 %v2896, 64
    %v2907 = vpop.permute.xlu0 %2906
    %2908 = vrot.lane.b32.xlu0 %v2897, 64
    %v2909 = vpop.permute.xlu0 %2908
    %v2914 = vadd.f32 %v2890, %v2903
    %v2915 = vadd.f32 %v2891, %v2905
    %v2916 = vadd.f32 %v2892, %v2907
    %v2917 = vadd.f32 %v2893, %v2909
    %2922 = vrot.lane.b32.xlu0 %v2914, 64
    %v2923 = vpop.permute.xlu0 %2922
    %2924 = vrot.lane.b32.xlu0 %v2915, 64
    %v2925 = vpop.permute.xlu0 %2924
    %2926 = vrot.lane.b32.xlu0 %v2916, 64
    %v2927 = vpop.permute.xlu0 %2926
    %2928 = vrot.lane.b32.xlu0 %v2917, 64
    %v2929 = vpop.permute.xlu0 %2928
    %2934 = vst.msk [vmem:[#allocation2 + $0x8] sm:$0xff] %vm917, %v2923
    %2935 = vst.msk [vmem:[#allocation2 + $0x18] sm:$0xff] %vm917, %v2925
    %2936 = vst.msk [vmem:[#allocation2 + $0x28] sm:$0xff] %vm917, %v2927
    %2937 = vst.msk [vmem:[#allocation2 + $0x38] sm:$0xff] %vm917, %v2929
    %v2938 = vld [vmem:[#allocation2] sm:$0xff]
    %v2939 = vld [vmem:[#allocation2 + $0x8] sm:$0xff]
    %v2940 = vld [vmem:[#allocation2 + $0x10] sm:$0xff]
    %v2941 = vld [vmem:[#allocation2 + $0x18] sm:$0xff]
    %v2942 = vld [vmem:[#allocation2 + $0x20] sm:$0xff]
    %v2943 = vld [vmem:[#allocation2 + $0x28] sm:$0xff]
    %v2944 = vld [vmem:[#allocation2 + $0x30] sm:$0xff]
    %v2945 = vld [vmem:[#allocation2 + $0x38] sm:$0xff]
    %v2946 = vadd.f32 %v2938, %v2939
    %2947 = vadd.xlane.f32.xlu0 %v2946
    %v2948 = vpop.xlane.xlu0 %2947
    %v2949 = vadd.f32 %v2940, %v2941
    %2950 = vadd.xlane.f32.xlu0 %v2949
    %v2951 = vpop.xlane.xlu0 %2950
    %v2952 = vadd.f32 %v2942, %v2943
    %2953 = vadd.xlane.f32.xlu0 %v2952
    %v2954 = vpop.xlane.xlu0 %2953
    %v2955 = vadd.f32 %v2944, %v2945
    %2956 = vadd.xlane.f32.xlu0 %v2955
    %v2957 = vpop.xlane.xlu0 %2956
    %v2958 = vrcp.pop 256.0
    %v2959 = vmul.f32 256.0, %v2958
    %v2960 = vsub.f32 1.0, %v2959
    %v2961 = vmul.f32 %v2958, %v2960
    %v2962 = vadd.f32 %v2958, %v2961
    %vm2963 = vweird.f32 %v2958
    %v2964 = vsel %vm2963, %v2958, %v2962
    %v2965 = vmul.f32 %v2948, %v2964
    %v2966 = vmul.f32 %v2951, %v2964
    %v2967 = vmul.f32 %v2954, %v2964
    %v2968 = vmul.f32 %v2957, %v2964
    %v2969 = vld [vmem:[%s5] sm:$0xff]
    %v2970 = vld [vmem:[%s5 + $0x8] sm:$0xff]
    %v2971 = vld [vmem:[%s5 + $0x10] sm:$0xff]
    %v2972 = vld [vmem:[%s5 + $0x18] sm:$0xff]
    %v2973 = vmul.f32 %v2965, %v2969
    %v2974 = vmul.f32 %v2966, %v2970
    %v2975 = vmul.f32 %v2967, %v2971
    %v2976 = vmul.f32 %v2968, %v2972
    %v2977 = vsel %vm60, %v2973, 0.0
    %v2978 = vsel %vm60, %v2974, 0.0
    %v2979 = vadd.f32 %v2977, %v2978
    %v2980 = vsel %vm60, %v2975, 0.0
    %v2981 = vadd.f32 %v2979, %v2980
    %v2982 = vsel %vm60, %v2976, 0.0
    %v2983 = vadd.f32 %v2981, %v2982
    %v2984 = vrot.slane %v2983, 4
    %v2985 = vadd.f32 %v2983, %v2984
    %v2986 = vrot.slane %v2985, 2
    %v2987 = vadd.f32 %v2985, %v2986
    %v2988 = vrot.slane %v2987, 1
    %v2989 = vadd.f32 %v2987, %v2988
    %v2990 = vld [vmem:[%s6] sm:$0x1]
    %v2991 = vadd.f32 %v2989, %v2990
    %vm2992 = vcmask 24576
    %2993 = vst.msk [vmem:[#allocation3] sm:$0x1] %vm2992, %v2991
    %s2994 = scalar_lea.vmem %s0, 8
    %v2995 = vld [vmem:[%s2994] sm:$0xff]
    %v2996 = vld [vmem:[%s1] sm:$0xff]
    %v2997 = vld [vmem:[%s1 + $0x8] sm:$0xff]
    %v2998 = vld [vmem:[%s1 + $0x10] sm:$0xff]
    %v2999 = vld [vmem:[%s1 + $0x18] sm:$0xff]
    %v3000 = vld [vmem:[%s2] sm:$0xff]
    %v3001 = vld [vmem:[%s2 + $0x8] sm:$0xff]
    %v3002 = vld [vmem:[%s2 + $0x10] sm:$0xff]
    %v3003 = vld [vmem:[%s2 + $0x18] sm:$0xff]
    %3005 = vset.pattern.permute.xlu0 0
    %3006 = vperm.xlu0 %3005, %v3000
    %v3007 = vpop.permute.xlu0 %3006
    %3010 = vset.pattern.permute.xlu0 0
    %3011 = vperm.xlu0 %3010, %v3001
    %v3012 = vpop.permute.xlu0 %3011
    %3015 = vset.pattern.permute.xlu0 0
    %3016 = vperm.xlu0 %3015, %v3002
    %v3017 = vpop.permute.xlu0 %3016
    %3020 = vset.pattern.permute.xlu0 0
    %3021 = vperm.xlu0 %3020, %v3003
    %v3022 = vpop.permute.xlu0 %3021
    %3025 = vst [vmem:[#allocation1] ss:$2 sm:$0xff] %v2995
    %v3026 = vld.sshfl [vmem:[#allocation1] sm:$0xff pattern:$0x75316420]
    %v3027 = vld.sshfl [vmem:[#allocation1 + $0x8] sm:$0xff pattern:$0x75316420]
    %v3029 = vsel %vm60, %v2996, 0
    %v3032 = vsel %vm60, %v2997, 0
    %v3035 = vsel %vm60, %v2998, 0
    %v3038 = vsel %vm60, %v2999, 0
    %v3040 = vsel %vm73, %v3026, 0
    %v3042 = vsel %vm73, %v3027, 0
    %3044 = vmatpush.msra.mxu0 0.0
    %3045 = vmatpush.msra.mxu0 0.0
    %3046 = vmatpush.msra.mxu0 0.0
    %3047 = vmatpush.msra.mxu0 0.0
    %3048 = vmatpush.msra.mxu0 0.0
    %3049 = vmatpush.msra.mxu0 0.0
    %3050 = vmatpush.msra.mxu0 0.0
    %3051 = vmatpush.msra.mxu0 0.0
    %3052 = vmatpush.msra.mxu0 0.0
    %3053 = vmatpush.msra.mxu0 0.0
    %3054 = vmatpush.msra.mxu0 0.0
    %3055 = vmatpush.msra.mxu0 0.0
    %3056 = vmatpush.msra.mxu0 0.0
    %3057 = vmatpush.msra.mxu0 0.0
    %3058 = vmatpush.msra.mxu0 0.0
    %3059 = vmatpush.msra.mxu0 %v3040
    %3060 = vmatmul.f32.gmra.mxu0 %v3029
    %v3061 = vpop.f32.mrf.mxu0
    %v3062 = vadd.f32 %v3007, %v3061
    %3063 = vmatmul.f32.gmra.mxu0 %v3032
    %v3064 = vpop.f32.mrf.mxu0
    %v3065 = vadd.f32 %v3012, %v3064
    %3066 = vmatmul.f32.gmra.mxu0 %v3035
    %v3067 = vpop.f32.mrf.mxu0
    %v3068 = vadd.f32 %v3017, %v3067
    %3069 = vmatmul.f32.gmra.mxu0 %v3038
    %v3070 = vpop.f32.mrf.mxu0
    %v3071 = vadd.f32 %v3022, %v3070
    %3072 = vdwg.mxu0
    %3073 = vmatpush.msra.mxu0 0.0
    %3074 = vmatpush.msra.mxu0 0.0
    %3075 = vmatpush.msra.mxu0 0.0
    %3076 = vmatpush.msra.mxu0 0.0
    %3077 = vmatpush.msra.mxu0 0.0
    %3078 = vmatpush.msra.mxu0 0.0
    %3079 = vmatpush.msra.mxu0 0.0
    %3080 = vmatpush.msra.mxu0 0.0
    %3081 = vmatpush.msra.mxu0 0.0
    %3082 = vmatpush.msra.mxu0 0.0
    %3083 = vmatpush.msra.mxu0 0.0
    %3084 = vmatpush.msra.mxu0 0.0
    %3085 = vmatpush.msra.mxu0 0.0
    %3086 = vmatpush.msra.mxu0 0.0
    %3087 = vmatpush.msra.mxu0 0.0
    %3088 = vmatpush.msra.mxu0 %v3042
    %3089 = vmatmul.f32.gmra.mxu0 %v3029
    %v3090 = vpop.f32.mrf.mxu0
    %v3091 = vadd.f32 %v3007, %v3090
    %3092 = vmatmul.f32.gmra.mxu0 %v3032
    %v3093 = vpop.f32.mrf.mxu0
    %v3094 = vadd.f32 %v3012, %v3093
    %3095 = vmatmul.f32.gmra.mxu0 %v3035
    %v3096 = vpop.f32.mrf.mxu0
    %v3097 = vadd.f32 %v3017, %v3096
    %3098 = vmatmul.f32.gmra.mxu0 %v3038
    %v3099 = vpop.f32.mrf.mxu0
    %v3100 = vadd.f32 %v3022, %v3099
    %3101 = vdwg.mxu0
    %3102 = vst [vmem:[#allocation2] sm:$0xff] %v3062
    %3103 = vst [vmem:[#allocation2 + $0x8] sm:$0xff] %v3091
    %3104 = vst [vmem:[#allocation2 + $0x10] sm:$0xff] %v3065
    %3105 = vst [vmem:[#allocation2 + $0x18] sm:$0xff] %v3094
    %3106 = vst [vmem:[#allocation2 + $0x20] sm:$0xff] %v3068
    %3107 = vst [vmem:[#allocation2 + $0x28] sm:$0xff] %v3097
    %3108 = vst [vmem:[#allocation2 + $0x30] sm:$0xff] %v3071
    %3109 = vst [vmem:[#allocation2 + $0x38] sm:$0xff] %v3100
    %v3110 = vld [vmem:[%s3] sm:$0xff]
    %v3111 = vld [vmem:[%s3 + $0x8] sm:$0xff]
    %v3112 = vld [vmem:[%s3 + $0x10] sm:$0xff]
    %v3113 = vld [vmem:[%s3 + $0x18] sm:$0xff]
    %v3114 = vld [vmem:[%s3 + $0x20] sm:$0xff]
    %v3115 = vld [vmem:[%s3 + $0x28] sm:$0xff]
    %v3116 = vld [vmem:[%s3 + $0x30] sm:$0x1]
    %v3117 = vld [vmem:[#allocation2] sm:$0xff]
    %v3118 = vld [vmem:[#allocation2 + $0x8] sm:$0xff]
    %v3119 = vld [vmem:[#allocation2 + $0x10] sm:$0xff]
    %v3120 = vld [vmem:[#allocation2 + $0x18] sm:$0xff]
    %v3121 = vld [vmem:[#allocation2 + $0x20] sm:$0xff]
    %v3122 = vld [vmem:[#allocation2 + $0x28] sm:$0xff]
    %v3123 = vld [vmem:[#allocation2 + $0x30] sm:$0xff]
    %v3124 = vld [vmem:[#allocation2 + $0x38] sm:$0xff]
    %v3125 = vld [vmem:[%s4] sm:$0xff]
    %v3126 = vld [vmem:[%s4 + $0x8] sm:$0xff]
    %v3127 = vld [vmem:[%s4 + $0x10] sm:$0xff]
    %v3128 = vld [vmem:[%s4 + $0x18] sm:$0xff]
    %v3129 = vld [vmem:[%s4 + $0x20] sm:$0xff]
    %v3130 = vld [vmem:[%s4 + $0x28] sm:$0xff]
    %v3131 = vld [vmem:[%s4 + $0x30] sm:$0x1]
    %3133 = vset.pattern.permute.xlu0 0
    %3134 = vperm.xlu0 %3133, %v3125
    %v3135 = vpop.permute.xlu0 %3134
    %3138 = vset.pattern.permute.xlu0 0
    %3139 = vperm.xlu0 %3138, %v3126
    %v3140 = vpop.permute.xlu0 %3139
    %3143 = vset.pattern.permute.xlu0 0
    %3144 = vperm.xlu0 %3143, %v3127
    %v3145 = vpop.permute.xlu0 %3144
    %3148 = vset.pattern.permute.xlu0 0
    %3149 = vperm.xlu0 %3148, %v3128
    %v3150 = vpop.permute.xlu0 %3149
    %3153 = vset.pattern.permute.xlu0 0
    %3154 = vperm.xlu0 %3153, %v3129
    %v3155 = vpop.permute.xlu0 %3154
    %3158 = vset.pattern.permute.xlu0 0
    %3159 = vperm.xlu0 %3158, %v3130
    %v3160 = vpop.permute.xlu0 %3159
    %3163 = vset.pattern.permute.xlu0 0
    %3164 = vperm.xlu0 %3163, %v3131
    %v3165 = vpop.permute.xlu0 %3164
    %v3168 = vsel %vm201, %v3110, 0
    %v3171 = vsel %vm201, %v3111, 0
    %v3174 = vsel %vm201, %v3112, 0
    %v3177 = vsel %vm201, %v3113, 0
    %v3180 = vsel %vm201, %v3114, 0
    %v3183 = vsel %vm201, %v3115, 0
    %v3186 = vsel %vm201, %v3116, 0
    %3188 = vmatpush.msra.mxu0 0.0
    %3189 = vmatpush.msra.mxu0 0.0
    %3190 = vmatpush.msra.mxu0 0.0
    %3191 = vmatpush.msra.mxu0 0.0
    %3192 = vmatpush.msra.mxu0 0.0
    %3193 = vmatpush.msra.mxu0 0.0
    %3194 = vmatpush.msra.mxu0 0.0
    %3195 = vmatpush.msra.mxu0 0.0
    %3196 = vmatpush.msra.mxu0 0.0
    %3197 = vmatpush.msra.mxu0 0.0
    %3198 = vmatpush.msra.mxu0 0.0
    %3199 = vmatpush.msra.mxu0 0.0
    %3200 = vmatpush.msra.mxu0 %v3123
    %3201 = vmatpush.msra.mxu0 %v3121
    %3202 = vmatpush.msra.mxu0 %v3119
    %3203 = vmatpush.msra.mxu0 %v3117
    %3204 = vmatmul.f32.gmra.mxu0 %v3168
    %v3205 = vpop.f32.mrf.mxu0
    %v3206 = vadd.f32 %v3135, %v3205
    %3207 = vmatmul.f32.gmra.mxu0 %v3171
    %v3208 = vpop.f32.mrf.mxu0
    %v3209 = vadd.f32 %v3140, %v3208
    %3210 = vmatmul.f32.gmra.mxu0 %v3174
    %v3211 = vpop.f32.mrf.mxu0
    %v3212 = vadd.f32 %v3145, %v3211
    %3213 = vmatmul.f32.gmra.mxu0 %v3177
    %v3214 = vpop.f32.mrf.mxu0
    %v3215 = vadd.f32 %v3150, %v3214
    %3216 = vmatmul.f32.gmra.mxu0 %v3180
    %v3217 = vpop.f32.mrf.mxu0
    %v3218 = vadd.f32 %v3155, %v3217
    %3219 = vmatmul.f32.gmra.mxu0 %v3183
    %v3220 = vpop.f32.mrf.mxu0
    %v3221 = vadd.f32 %v3160, %v3220
    %3222 = vmatmul.f32.gmra.mxu0 %v3186
    %v3223 = vpop.f32.mrf.mxu0
    %v3224 = vadd.f32 %v3165, %v3223
    %3225 = vdwg.mxu0
    %3226 = vmatpush.msra.mxu0 0.0
    %3227 = vmatpush.msra.mxu0 0.0
    %3228 = vmatpush.msra.mxu0 0.0
    %3229 = vmatpush.msra.mxu0 0.0
    %3230 = vmatpush.msra.mxu0 0.0
    %3231 = vmatpush.msra.mxu0 0.0
    %3232 = vmatpush.msra.mxu0 0.0
    %3233 = vmatpush.msra.mxu0 0.0
    %3234 = vmatpush.msra.mxu0 0.0
    %3235 = vmatpush.msra.mxu0 0.0
    %3236 = vmatpush.msra.mxu0 0.0
    %3237 = vmatpush.msra.mxu0 0.0
    %3238 = vmatpush.msra.mxu0 %v3124
    %3239 = vmatpush.msra.mxu0 %v3122
    %3240 = vmatpush.msra.mxu0 %v3120
    %3241 = vmatpush.msra.mxu0 %v3118
    %3242 = vmatmul.f32.gmra.mxu0 %v3168
    %v3243 = vpop.f32.mrf.mxu0
    %v3244 = vadd.f32 %v3135, %v3243
    %3245 = vmatmul.f32.gmra.mxu0 %v3171
    %v3246 = vpop.f32.mrf.mxu0
    %v3247 = vadd.f32 %v3140, %v3246
    %3248 = vmatmul.f32.gmra.mxu0 %v3174
    %v3249 = vpop.f32.mrf.mxu0
    %v3250 = vadd.f32 %v3145, %v3249
    %3251 = vmatmul.f32.gmra.mxu0 %v3177
    %v3252 = vpop.f32.mrf.mxu0
    %v3253 = vadd.f32 %v3150, %v3252
    %3254 = vmatmul.f32.gmra.mxu0 %v3180
    %v3255 = vpop.f32.mrf.mxu0
    %v3256 = vadd.f32 %v3155, %v3255
    %3257 = vmatmul.f32.gmra.mxu0 %v3183
    %v3258 = vpop.f32.mrf.mxu0
    %v3259 = vadd.f32 %v3160, %v3258
    %3260 = vmatmul.f32.gmra.mxu0 %v3186
    %v3261 = vpop.f32.mrf.mxu0
    %v3262 = vadd.f32 %v3165, %v3261
    %3263 = vdwg.mxu0
    %3264 = vxpose.xlu0.b32.start [1/16] %v3206, 128
    %3265 = vxpose.xlu0.b32.cont [2/16] 0.0, 128
    %3266 = vxpose.xlu0.b32.cont [3/16] 0.0, 128
    %3267 = vxpose.xlu0.b32.cont [4/16] 0.0, 128
    %3268 = vxpose.xlu0.b32.cont [5/16] 0.0, 128
    %3269 = vxpose.xlu0.b32.cont [6/16] 0.0, 128
    %3270 = vxpose.xlu0.b32.cont [7/16] 0.0, 128
    %3271 = vxpose.xlu0.b32.cont [8/16] 0.0, 128
    %3272 = vxpose.xlu0.b32.cont [9/16] 0.0, 128
    %3273 = vxpose.xlu0.b32.cont [10/16] 0.0, 128
    %3274 = vxpose.xlu0.b32.cont [11/16] 0.0, 128
    %3275 = vxpose.xlu0.b32.cont [12/16] 0.0, 128
    %3276 = vxpose.xlu0.b32.cont [13/16] 0.0, 128
    %3277 = vxpose.xlu0.b32.cont [14/16] 0.0, 128
    %3278 = vxpose.xlu0.b32.cont [15/16] 0.0, 128
    %3279 = vxpose.xlu0.b32.end [16/16] 0.0, 128
    %v3280 = vpop.trf.xlu0
    %v3281 = vpop.trf.xlu0
    %v3282 = vpop.trf.xlu0
    %v3283 = vpop.trf.xlu0
    %v3284 = vpop.trf.xlu0
    %v3285 = vpop.trf.xlu0
    %v3286 = vpop.trf.xlu0
    %v3287 = vpop.trf.xlu0
    %v3288 = vpop.trf.xlu0
    %v3289 = vpop.trf.xlu0
    %v3290 = vpop.trf.xlu0
    %v3291 = vpop.trf.xlu0
    %v3292 = vpop.trf.xlu0
    %v3293 = vpop.trf.xlu0
    %v3294 = vpop.trf.xlu0
    %v3295 = vpop.trf.xlu0
    %v3297 = vsel %vm331, %v3280, 0
    %v3300 = vsel %vm331, %v3281, 0
    %v3303 = vsel %vm331, %v3282, 0
    %v3306 = vsel %vm331, %v3283, 0
    %v3309 = vsel %vm331, %v3284, 0
    %v3312 = vsel %vm331, %v3285, 0
    %v3315 = vsel %vm331, %v3286, 0
    %v3318 = vsel %vm331, %v3287, 0
    %3320 = vmatpush.msra.mxu0 0.0
    %3321 = vmatpush.msra.mxu0 0.0
    %3322 = vmatpush.msra.mxu0 0.0
    %3323 = vmatpush.msra.mxu0 0.0
    %3324 = vmatpush.msra.mxu0 0.0
    %3325 = vmatpush.msra.mxu0 0.0
    %3326 = vmatpush.msra.mxu0 0.0
    %3327 = vmatpush.msra.mxu0 0.0
    %3328 = vmatpush.msra.mxu0 0.0
    %3329 = vmatpush.msra.mxu0 0.0
    %3330 = vmatpush.msra.mxu0 0.0
    %3331 = vmatpush.msra.mxu0 0.0
    %3332 = vmatpush.msra.mxu0 0.0
    %3333 = vmatpush.msra.mxu0 0.0
    %3334 = vmatpush.msra.mxu0 0.0
    %3335 = vmatpush.msra.mxu0 %v3209
    %3336 = vmatmul.f32.gmra.mxu0 %v3297
    %v3337 = vpop.f32.mrf.mxu0
    %v3338 = vadd.f32 0.0, %v3337
    %3339 = vmatmul.f32.gmra.mxu0 %v3300
    %v3340 = vpop.f32.mrf.mxu0
    %v3341 = vadd.f32 0.0, %v3340
    %3342 = vmatmul.f32.gmra.mxu0 %v3303
    %v3343 = vpop.f32.mrf.mxu0
    %v3344 = vadd.f32 0.0, %v3343
    %3345 = vmatmul.f32.gmra.mxu0 %v3306
    %v3346 = vpop.f32.mrf.mxu0
    %v3347 = vadd.f32 0.0, %v3346
    %3348 = vmatmul.f32.gmra.mxu0 %v3309
    %v3349 = vpop.f32.mrf.mxu0
    %v3350 = vadd.f32 0.0, %v3349
    %3351 = vmatmul.f32.gmra.mxu0 %v3312
    %v3352 = vpop.f32.mrf.mxu0
    %v3353 = vadd.f32 0.0, %v3352
    %3354 = vmatmul.f32.gmra.mxu0 %v3315
    %v3355 = vpop.f32.mrf.mxu0
    %v3356 = vadd.f32 0.0, %v3355
    %3357 = vmatmul.f32.gmra.mxu0 %v3318
    %v3358 = vpop.f32.mrf.mxu0
    %v3359 = vadd.f32 0.0, %v3358
    %3360 = vdwg.mxu0
    %3361 = vmatpush.msra.mxu0 0.0
    %3362 = vmatpush.msra.mxu0 0.0
    %3363 = vmatpush.msra.mxu0 0.0
    %3364 = vmatpush.msra.mxu0 0.0
    %3365 = vmatpush.msra.mxu0 0.0
    %3366 = vmatpush.msra.mxu0 0.0
    %3367 = vmatpush.msra.mxu0 0.0
    %3368 = vmatpush.msra.mxu0 0.0
    %3369 = vmatpush.msra.mxu0 0.0
    %3370 = vmatpush.msra.mxu0 0.0
    %3371 = vmatpush.msra.mxu0 0.0
    %3372 = vmatpush.msra.mxu0 0.0
    %3373 = vmatpush.msra.mxu0 0.0
    %3374 = vmatpush.msra.mxu0 0.0
    %3375 = vmatpush.msra.mxu0 0.0
    %3376 = vmatpush.msra.mxu0 %v3247
    %3377 = vmatmul.f32.gmra.mxu0 %v3297
    %v3378 = vpop.f32.mrf.mxu0
    %v3379 = vadd.f32 0.0, %v3378
    %3380 = vmatmul.f32.gmra.mxu0 %v3300
    %v3381 = vpop.f32.mrf.mxu0
    %v3382 = vadd.f32 0.0, %v3381
    %3383 = vmatmul.f32.gmra.mxu0 %v3303
    %v3384 = vpop.f32.mrf.mxu0
    %v3385 = vadd.f32 0.0, %v3384
    %3386 = vmatmul.f32.gmra.mxu0 %v3306
    %v3387 = vpop.f32.mrf.mxu0
    %v3388 = vadd.f32 0.0, %v3387
    %3389 = vmatmul.f32.gmra.mxu0 %v3309
    %v3390 = vpop.f32.mrf.mxu0
    %v3391 = vadd.f32 0.0, %v3390
    %3392 = vmatmul.f32.gmra.mxu0 %v3312
    %v3393 = vpop.f32.mrf.mxu0
    %v3394 = vadd.f32 0.0, %v3393
    %3395 = vmatmul.f32.gmra.mxu0 %v3315
    %v3396 = vpop.f32.mrf.mxu0
    %v3397 = vadd.f32 0.0, %v3396
    %3398 = vmatmul.f32.gmra.mxu0 %v3318
    %v3399 = vpop.f32.mrf.mxu0
    %v3400 = vadd.f32 0.0, %v3399
    %3401 = vdwg.mxu0
    %v3402 = vmax.f32 %v3338, %v3379
    %3403 = vmax.xlane.f32.xlu0 %v3402
    %v3404 = vpop.xlane.xlu0 %3403
    %v3405 = vmax.f32 %v3341, %v3382
    %3406 = vmax.xlane.f32.xlu0 %v3405
    %v3407 = vpop.xlane.xlu0 %3406
    %v3408 = vmax.f32 %v3344, %v3385
    %3409 = vmax.xlane.f32.xlu0 %v3408
    %v3410 = vpop.xlane.xlu0 %3409
    %v3411 = vmax.f32 %v3347, %v3388
    %3412 = vmax.xlane.f32.xlu0 %v3411
    %v3413 = vpop.xlane.xlu0 %3412
    %v3414 = vmax.f32 %v3350, %v3391
    %3415 = vmax.xlane.f32.xlu0 %v3414
    %v3416 = vpop.xlane.xlu0 %3415
    %v3417 = vmax.f32 %v3353, %v3394
    %3418 = vmax.xlane.f32.xlu0 %v3417
    %v3419 = vpop.xlane.xlu0 %3418
    %v3420 = vmax.f32 %v3356, %v3397
    %3421 = vmax.xlane.f32.xlu0 %v3420
    %v3422 = vpop.xlane.xlu0 %3421
    %v3423 = vmax.f32 %v3359, %v3400
    %3424 = vmax.xlane.f32.xlu0 %v3423
    %v3425 = vpop.xlane.xlu0 %3424
    %v3426 = vsub.f32 %v3338, %v3404
    %v3427 = vsub.f32 %v3379, %v3404
    %v3428 = vsub.f32 %v3341, %v3407
    %v3429 = vsub.f32 %v3382, %v3407
    %v3430 = vsub.f32 %v3344, %v3410
    %v3431 = vsub.f32 %v3385, %v3410
    %v3432 = vsub.f32 %v3347, %v3413
    %v3433 = vsub.f32 %v3388, %v3413
    %v3434 = vsub.f32 %v3350, %v3416
    %v3435 = vsub.f32 %v3391, %v3416
    %v3436 = vsub.f32 %v3353, %v3419
    %v3437 = vsub.f32 %v3394, %v3419
    %v3438 = vsub.f32 %v3356, %v3422
    %v3439 = vsub.f32 %v3397, %v3422
    %v3440 = vsub.f32 %v3359, %v3425
    %v3441 = vsub.f32 %v3400, %v3425
    %v3442 = vmul.f32 %v3426, 1.442695
    %v3443 = vpow.pop %v3442
    %v3444 = vmul.f32 %v3427, 1.442695
    %v3445 = vpow.pop %v3444
    %v3446 = vmul.f32 %v3428, 1.442695
    %v3447 = vpow.pop %v3446
    %v3448 = vmul.f32 %v3429, 1.442695
    %v3449 = vpow.pop %v3448
    %v3450 = vmul.f32 %v3430, 1.442695
    %v3451 = vpow.pop %v3450
    %v3452 = vmul.f32 %v3431, 1.442695
    %v3453 = vpow.pop %v3452
    %v3454 = vmul.f32 %v3432, 1.442695
    %v3455 = vpow.pop %v3454
    %v3456 = vmul.f32 %v3433, 1.442695
    %v3457 = vpow.pop %v3456
    %v3458 = vmul.f32 %v3434, 1.442695
    %v3459 = vpow.pop %v3458
    %v3460 = vmul.f32 %v3435, 1.442695
    %v3461 = vpow.pop %v3460
    %v3462 = vmul.f32 %v3436, 1.442695
    %v3463 = vpow.pop %v3462
    %v3464 = vmul.f32 %v3437, 1.442695
    %v3465 = vpow.pop %v3464
    %v3466 = vmul.f32 %v3438, 1.442695
    %v3467 = vpow.pop %v3466
    %v3468 = vmul.f32 %v3439, 1.442695
    %v3469 = vpow.pop %v3468
    %v3470 = vmul.f32 %v3440, 1.442695
    %v3471 = vpow.pop %v3470
    %v3472 = vmul.f32 %v3441, 1.442695
    %v3473 = vpow.pop %v3472
    %3474 = vmatpush.xpose.msra.mxu0 0.0
    %3475 = vmatpush.xpose.msra.mxu0 0.0
    %3476 = vmatpush.xpose.msra.mxu0 0.0
    %3477 = vmatpush.xpose.msra.mxu0 0.0
    %3478 = vmatpush.xpose.msra.mxu0 0.0
    %3479 = vmatpush.xpose.msra.mxu0 0.0
    %3480 = vmatpush.xpose.msra.mxu0 0.0
    %3481 = vmatpush.xpose.msra.mxu0 0.0
    %3482 = vmatpush.xpose.msra.mxu0 %v3471
    %3483 = vmatpush.xpose.msra.mxu0 %v3467
    %3484 = vmatpush.xpose.msra.mxu0 %v3463
    %3485 = vmatpush.xpose.msra.mxu0 %v3459
    %3486 = vmatpush.xpose.msra.mxu0 %v3455
    %3487 = vmatpush.xpose.msra.mxu0 %v3451
    %3488 = vmatpush.xpose.msra.mxu0 %v3447
    %3489 = vmatpush.xpose.msra.mxu0 %v3443
    %3490 = vmatmul.f32.gmra.mxu0 %v3212
    %v3491 = vpop.f32.mrf.mxu0
    %v3492 = vadd.f32 0.0, %v3491
    %3493 = vmatmul.f32.gmra.mxu0 %v3215
    %v3494 = vpop.f32.mrf.mxu0
    %v3495 = vadd.f32 0.0, %v3494
    %3496 = vmatmul.f32.gmra.mxu0 %v3218
    %v3497 = vpop.f32.mrf.mxu0
    %v3498 = vadd.f32 0.0, %v3497
    %3499 = vmatmul.f32.gmra.mxu0 %v3221
    %v3500 = vpop.f32.mrf.mxu0
    %v3501 = vadd.f32 0.0, %v3500
    %3502 = vmatmul.f32.gmra.mxu0 %v3224
    %v3503 = vpop.f32.mrf.mxu0
    %v3504 = vadd.f32 0.0, %v3503
    %3505 = vdwg.mxu0
    %3506 = vmatpush.xpose.msra.mxu0 0.0
    %3507 = vmatpush.xpose.msra.mxu0 0.0
    %3508 = vmatpush.xpose.msra.mxu0 0.0
    %3509 = vmatpush.xpose.msra.mxu0 0.0
    %3510 = vmatpush.xpose.msra.mxu0 0.0
    %3511 = vmatpush.xpose.msra.mxu0 0.0
    %3512 = vmatpush.xpose.msra.mxu0 0.0
    %3513 = vmatpush.xpose.msra.mxu0 0.0
    %3514 = vmatpush.xpose.msra.mxu0 %v3473
    %3515 = vmatpush.xpose.msra.mxu0 %v3469
    %3516 = vmatpush.xpose.msra.mxu0 %v3465
    %3517 = vmatpush.xpose.msra.mxu0 %v3461
    %3518 = vmatpush.xpose.msra.mxu0 %v3457
    %3519 = vmatpush.xpose.msra.mxu0 %v3453
    %3520 = vmatpush.xpose.msra.mxu0 %v3449
    %3521 = vmatpush.xpose.msra.mxu0 %v3445
    %3522 = vmatmul.f32.gmra.mxu0 %v3250
    %v3523 = vpop.f32.mrf.mxu0
    %v3524 = vadd.f32 %v3492, %v3523
    %3525 = vmatmul.f32.gmra.mxu0 %v3253
    %v3526 = vpop.f32.mrf.mxu0
    %v3527 = vadd.f32 %v3495, %v3526
    %3528 = vmatmul.f32.gmra.mxu0 %v3256
    %v3529 = vpop.f32.mrf.mxu0
    %v3530 = vadd.f32 %v3498, %v3529
    %3531 = vmatmul.f32.gmra.mxu0 %v3259
    %v3532 = vpop.f32.mrf.mxu0
    %v3533 = vadd.f32 %v3501, %v3532
    %3534 = vmatmul.f32.gmra.mxu0 %v3262
    %v3535 = vpop.f32.mrf.mxu0
    %v3536 = vadd.f32 %v3504, %v3535
    %3537 = vdwg.mxu0
    %v3538 = vrcp.pop %v3536
    %v3539 = vperm.slane %v3538, 0
    %v3540 = vmul.f32 %v3524, %v3539
    %v3541 = vmul.f32 %v3527, %v3539
    %v3542 = vmul.f32 %v3530, %v3539
    %v3543 = vmul.f32 %v3533, %v3539
    %v3544 = vld [vmem:[#allocation2] sm:$0xff]
    %v3545 = vld [vmem:[#allocation2 + $0x10] sm:$0xff]
    %v3546 = vld [vmem:[#allocation2 + $0x20] sm:$0xff]
    %v3547 = vld [vmem:[#allocation2 + $0x30] sm:$0xff]
    %v3548 = vadd.f32 %v3540, %v3544
    %v3549 = vadd.f32 %v3541, %v3545
    %v3550 = vadd.f32 %v3542, %v3546
    %v3551 = vadd.f32 %v3543, %v3547
    %3552 = vst.msk [vmem:[#allocation2] sm:$0xff] %vm588, %v3548
    %3553 = vst.msk [vmem:[#allocation2 + $0x10] sm:$0xff] %vm588, %v3549
    %3554 = vst.msk [vmem:[#allocation2 + $0x20] sm:$0xff] %vm588, %v3550
    %3555 = vst.msk [vmem:[#allocation2 + $0x30] sm:$0xff] %vm588, %v3551
    %3557 = vrot.lane.b32.xlu0 %v3206, 64
    %v3558 = vpop.permute.xlu0 %3557
    %3560 = vxpose.xlu0.b32.start [1/16] %v3558, 128
    %3561 = vxpose.xlu0.b32.cont [2/16] 0.0, 128
    %3562 = vxpose.xlu0.b32.cont [3/16] 0.0, 128
    %3563 = vxpose.xlu0.b32.cont [4/16] 0.0, 128
    %3564 = vxpose.xlu0.b32.cont [5/16] 0.0, 128
    %3565 = vxpose.xlu0.b32.cont [6/16] 0.0, 128
    %3566 = vxpose.xlu0.b32.cont [7/16] 0.0, 128
    %3567 = vxpose.xlu0.b32.cont [8/16] 0.0, 128
    %3568 = vxpose.xlu0.b32.cont [9/16] 0.0, 128
    %3569 = vxpose.xlu0.b32.cont [10/16] 0.0, 128
    %3570 = vxpose.xlu0.b32.cont [11/16] 0.0, 128
    %3571 = vxpose.xlu0.b32.cont [12/16] 0.0, 128
    %3572 = vxpose.xlu0.b32.cont [13/16] 0.0, 128
    %3573 = vxpose.xlu0.b32.cont [14/16] 0.0, 128
    %3574 = vxpose.xlu0.b32.cont [15/16] 0.0, 128
    %3575 = vxpose.xlu0.b32.end [16/16] 0.0, 128
    %v3576 = vpop.trf.xlu0
    %v3577 = vpop.trf.xlu0
    %v3578 = vpop.trf.xlu0
    %v3579 = vpop.trf.xlu0
    %v3580 = vpop.trf.xlu0
    %v3581 = vpop.trf.xlu0
    %v3582 = vpop.trf.xlu0
    %v3583 = vpop.trf.xlu0
    %v3584 = vpop.trf.xlu0
    %v3585 = vpop.trf.xlu0
    %v3586 = vpop.trf.xlu0
    %v3587 = vpop.trf.xlu0
    %v3588 = vpop.trf.xlu0
    %v3589 = vpop.trf.xlu0
    %v3590 = vpop.trf.xlu0
    %v3591 = vpop.trf.xlu0
    %v3593 = vsel %vm331, %v3576, 0
    %v3596 = vsel %vm331, %v3577, 0
    %v3599 = vsel %vm331, %v3578, 0
    %v3602 = vsel %vm331, %v3579, 0
    %v3605 = vsel %vm331, %v3580, 0
    %v3608 = vsel %vm331, %v3581, 0
    %v3611 = vsel %vm331, %v3582, 0
    %v3614 = vsel %vm331, %v3583, 0
    %3616 = vmatpush.msra.mxu0 0.0
    %3617 = vmatpush.msra.mxu0 0.0
    %3618 = vmatpush.msra.mxu0 0.0
    %3619 = vmatpush.msra.mxu0 0.0
    %3620 = vmatpush.msra.mxu0 0.0
    %3621 = vmatpush.msra.mxu0 0.0
    %3622 = vmatpush.msra.mxu0 0.0
    %3623 = vmatpush.msra.mxu0 0.0
    %3624 = vmatpush.msra.mxu0 0.0
    %3625 = vmatpush.msra.mxu0 0.0
    %3626 = vmatpush.msra.mxu0 0.0
    %3627 = vmatpush.msra.mxu0 0.0
    %3628 = vmatpush.msra.mxu0 0.0
    %3629 = vmatpush.msra.mxu0 0.0
    %3630 = vmatpush.msra.mxu0 0.0
    %3631 = vmatpush.msra.mxu0 %v3209
    %3632 = vmatmul.f32.gmra.mxu0 %v3593
    %v3633 = vpop.f32.mrf.mxu0
    %v3634 = vadd.f32 0.0, %v3633
    %3635 = vmatmul.f32.gmra.mxu0 %v3596
    %v3636 = vpop.f32.mrf.mxu0
    %v3637 = vadd.f32 0.0, %v3636
    %3638 = vmatmul.f32.gmra.mxu0 %v3599
    %v3639 = vpop.f32.mrf.mxu0
    %v3640 = vadd.f32 0.0, %v3639
    %3641 = vmatmul.f32.gmra.mxu0 %v3602
    %v3642 = vpop.f32.mrf.mxu0
    %v3643 = vadd.f32 0.0, %v3642
    %3644 = vmatmul.f32.gmra.mxu0 %v3605
    %v3645 = vpop.f32.mrf.mxu0
    %v3646 = vadd.f32 0.0, %v3645
    %3647 = vmatmul.f32.gmra.mxu0 %v3608
    %v3648 = vpop.f32.mrf.mxu0
    %v3649 = vadd.f32 0.0, %v3648
    %3650 = vmatmul.f32.gmra.mxu0 %v3611
    %v3651 = vpop.f32.mrf.mxu0
    %v3652 = vadd.f32 0.0, %v3651
    %3653 = vmatmul.f32.gmra.mxu0 %v3614
    %v3654 = vpop.f32.mrf.mxu0
    %v3655 = vadd.f32 0.0, %v3654
    %3656 = vdwg.mxu0
    %3657 = vmatpush.msra.mxu0 0.0
    %3658 = vmatpush.msra.mxu0 0.0
    %3659 = vmatpush.msra.mxu0 0.0
    %3660 = vmatpush.msra.mxu0 0.0
    %3661 = vmatpush.msra.mxu0 0.0
    %3662 = vmatpush.msra.mxu0 0.0
    %3663 = vmatpush.msra.mxu0 0.0
    %3664 = vmatpush.msra.mxu0 0.0
    %3665 = vmatpush.msra.mxu0 0.0
    %3666 = vmatpush.msra.mxu0 0.0
    %3667 = vmatpush.msra.mxu0 0.0
    %3668 = vmatpush.msra.mxu0 0.0
    %3669 = vmatpush.msra.mxu0 0.0
    %3670 = vmatpush.msra.mxu0 0.0
    %3671 = vmatpush.msra.mxu0 0.0
    %3672 = vmatpush.msra.mxu0 %v3247
    %3673 = vmatmul.f32.gmra.mxu0 %v3593
    %v3674 = vpop.f32.mrf.mxu0
    %v3675 = vadd.f32 0.0, %v3674
    %3676 = vmatmul.f32.gmra.mxu0 %v3596
    %v3677 = vpop.f32.mrf.mxu0
    %v3678 = vadd.f32 0.0, %v3677
    %3679 = vmatmul.f32.gmra.mxu0 %v3599
    %v3680 = vpop.f32.mrf.mxu0
    %v3681 = vadd.f32 0.0, %v3680
    %3682 = vmatmul.f32.gmra.mxu0 %v3602
    %v3683 = vpop.f32.mrf.mxu0
    %v3684 = vadd.f32 0.0, %v3683
    %3685 = vmatmul.f32.gmra.mxu0 %v3605
    %v3686 = vpop.f32.mrf.mxu0
    %v3687 = vadd.f32 0.0, %v3686
    %3688 = vmatmul.f32.gmra.mxu0 %v3608
    %v3689 = vpop.f32.mrf.mxu0
    %v3690 = vadd.f32 0.0, %v3689
    %3691 = vmatmul.f32.gmra.mxu0 %v3611
    %v3692 = vpop.f32.mrf.mxu0
    %v3693 = vadd.f32 0.0, %v3692
    %3694 = vmatmul.f32.gmra.mxu0 %v3614
    %v3695 = vpop.f32.mrf.mxu0
    %v3696 = vadd.f32 0.0, %v3695
    %3697 = vdwg.mxu0
    %v3698 = vmax.f32 %v3634, %v3675
    %3699 = vmax.xlane.f32.xlu0 %v3698
    %v3700 = vpop.xlane.xlu0 %3699
    %v3701 = vmax.f32 %v3637, %v3678
    %3702 = vmax.xlane.f32.xlu0 %v3701
    %v3703 = vpop.xlane.xlu0 %3702
    %v3704 = vmax.f32 %v3640, %v3681
    %3705 = vmax.xlane.f32.xlu0 %v3704
    %v3706 = vpop.xlane.xlu0 %3705
    %v3707 = vmax.f32 %v3643, %v3684
    %3708 = vmax.xlane.f32.xlu0 %v3707
    %v3709 = vpop.xlane.xlu0 %3708
    %v3710 = vmax.f32 %v3646, %v3687
    %3711 = vmax.xlane.f32.xlu0 %v3710
    %v3712 = vpop.xlane.xlu0 %3711
    %v3713 = vmax.f32 %v3649, %v3690
    %3714 = vmax.xlane.f32.xlu0 %v3713
    %v3715 = vpop.xlane.xlu0 %3714
    %v3716 = vmax.f32 %v3652, %v3693
    %3717 = vmax.xlane.f32.xlu0 %v3716
    %v3718 = vpop.xlane.xlu0 %3717
    %v3719 = vmax.f32 %v3655, %v3696
    %3720 = vmax.xlane.f32.xlu0 %v3719
    %v3721 = vpop.xlane.xlu0 %3720
    %v3722 = vsub.f32 %v3634, %v3700
    %v3723 = vsub.f32 %v3675, %v3700
    %v3724 = vsub.f32 %v3637, %v3703
    %v3725 = vsub.f32 %v3678, %v3703
    %v3726 = vsub.f32 %v3640, %v3706
    %v3727 = vsub.f32 %v3681, %v3706
    %v3728 = vsub.f32 %v3643, %v3709
    %v3729 = vsub.f32 %v3684, %v3709
    %v3730 = vsub.f32 %v3646, %v3712
    %v3731 = vsub.f32 %v3687, %v3712
    %v3732 = vsub.f32 %v3649, %v3715
    %v3733 = vsub.f32 %v3690, %v3715
    %v3734 = vsub.f32 %v3652, %v3718
    %v3735 = vsub.f32 %v3693, %v3718
    %v3736 = vsub.f32 %v3655, %v3721
    %v3737 = vsub.f32 %v3696, %v3721
    %v3738 = vmul.f32 %v3722, 1.442695
    %v3739 = vpow.pop %v3738
    %v3740 = vmul.f32 %v3723, 1.442695
    %v3741 = vpow.pop %v3740
    %v3742 = vmul.f32 %v3724, 1.442695
    %v3743 = vpow.pop %v3742
    %v3744 = vmul.f32 %v3725, 1.442695
    %v3745 = vpow.pop %v3744
    %v3746 = vmul.f32 %v3726, 1.442695
    %v3747 = vpow.pop %v3746
    %v3748 = vmul.f32 %v3727, 1.442695
    %v3749 = vpow.pop %v3748
    %v3750 = vmul.f32 %v3728, 1.442695
    %v3751 = vpow.pop %v3750
    %v3752 = vmul.f32 %v3729, 1.442695
    %v3753 = vpow.pop %v3752
    %v3754 = vmul.f32 %v3730, 1.442695
    %v3755 = vpow.pop %v3754
    %v3756 = vmul.f32 %v3731, 1.442695
    %v3757 = vpow.pop %v3756
    %v3758 = vmul.f32 %v3732, 1.442695
    %v3759 = vpow.pop %v3758
    %v3760 = vmul.f32 %v3733, 1.442695
    %v3761 = vpow.pop %v3760
    %v3762 = vmul.f32 %v3734, 1.442695
    %v3763 = vpow.pop %v3762
    %v3764 = vmul.f32 %v3735, 1.442695
    %v3765 = vpow.pop %v3764
    %v3766 = vmul.f32 %v3736, 1.442695
    %v3767 = vpow.pop %v3766
    %v3768 = vmul.f32 %v3737, 1.442695
    %v3769 = vpow.pop %v3768
    %3770 = vmatpush.xpose.msra.mxu0 0.0
    %3771 = vmatpush.xpose.msra.mxu0 0.0
    %3772 = vmatpush.xpose.msra.mxu0 0.0
    %3773 = vmatpush.xpose.msra.mxu0 0.0
    %3774 = vmatpush.xpose.msra.mxu0 0.0
    %3775 = vmatpush.xpose.msra.mxu0 0.0
    %3776 = vmatpush.xpose.msra.mxu0 0.0
    %3777 = vmatpush.xpose.msra.mxu0 0.0
    %3778 = vmatpush.xpose.msra.mxu0 %v3767
    %3779 = vmatpush.xpose.msra.mxu0 %v3763
    %3780 = vmatpush.xpose.msra.mxu0 %v3759
    %3781 = vmatpush.xpose.msra.mxu0 %v3755
    %3782 = vmatpush.xpose.msra.mxu0 %v3751
    %3783 = vmatpush.xpose.msra.mxu0 %v3747
    %3784 = vmatpush.xpose.msra.mxu0 %v3743
    %3785 = vmatpush.xpose.msra.mxu0 %v3739
    %3786 = vmatmul.f32.gmra.mxu0 %v3212
    %v3787 = vpop.f32.mrf.mxu0
    %v3788 = vadd.f32 0.0, %v3787
    %3789 = vmatmul.f32.gmra.mxu0 %v3215
    %v3790 = vpop.f32.mrf.mxu0
    %v3791 = vadd.f32 0.0, %v3790
    %3792 = vmatmul.f32.gmra.mxu0 %v3218
    %v3793 = vpop.f32.mrf.mxu0
    %v3794 = vadd.f32 0.0, %v3793
    %3795 = vmatmul.f32.gmra.mxu0 %v3221
    %v3796 = vpop.f32.mrf.mxu0
    %v3797 = vadd.f32 0.0, %v3796
    %3798 = vmatmul.f32.gmra.mxu0 %v3224
    %v3799 = vpop.f32.mrf.mxu0
    %v3800 = vadd.f32 0.0, %v3799
    %3801 = vdwg.mxu0
    %3802 = vmatpush.xpose.msra.mxu0 0.0
    %3803 = vmatpush.xpose.msra.mxu0 0.0
    %3804 = vmatpush.xpose.msra.mxu0 0.0
    %3805 = vmatpush.xpose.msra.mxu0 0.0
    %3806 = vmatpush.xpose.msra.mxu0 0.0
    %3807 = vmatpush.xpose.msra.mxu0 0.0
    %3808 = vmatpush.xpose.msra.mxu0 0.0
    %3809 = vmatpush.xpose.msra.mxu0 0.0
    %3810 = vmatpush.xpose.msra.mxu0 %v3769
    %3811 = vmatpush.xpose.msra.mxu0 %v3765
    %3812 = vmatpush.xpose.msra.mxu0 %v3761
    %3813 = vmatpush.xpose.msra.mxu0 %v3757
    %3814 = vmatpush.xpose.msra.mxu0 %v3753
    %3815 = vmatpush.xpose.msra.mxu0 %v3749
    %3816 = vmatpush.xpose.msra.mxu0 %v3745
    %3817 = vmatpush.xpose.msra.mxu0 %v3741
    %3818 = vmatmul.f32.gmra.mxu0 %v3250
    %v3819 = vpop.f32.mrf.mxu0
    %v3820 = vadd.f32 %v3788, %v3819
    %3821 = vmatmul.f32.gmra.mxu0 %v3253
    %v3822 = vpop.f32.mrf.mxu0
    %v3823 = vadd.f32 %v3791, %v3822
    %3824 = vmatmul.f32.gmra.mxu0 %v3256
    %v3825 = vpop.f32.mrf.mxu0
    %v3826 = vadd.f32 %v3794, %v3825
    %3827 = vmatmul.f32.gmra.mxu0 %v3259
    %v3828 = vpop.f32.mrf.mxu0
    %v3829 = vadd.f32 %v3797, %v3828
    %3830 = vmatmul.f32.gmra.mxu0 %v3262
    %v3831 = vpop.f32.mrf.mxu0
    %v3832 = vadd.f32 %v3800, %v3831
    %3833 = vdwg.mxu0
    %v3834 = vrcp.pop %v3832
    %v3835 = vperm.slane %v3834, 0
    %v3836 = vmul.f32 %v3820, %v3835
    %v3837 = vmul.f32 %v3823, %v3835
    %v3838 = vmul.f32 %v3826, %v3835
    %v3839 = vmul.f32 %v3829, %v3835
    %v3840 = vld [vmem:[#allocation2] sm:$0xff]
    %v3841 = vld [vmem:[#allocation2 + $0x10] sm:$0xff]
    %v3842 = vld [vmem:[#allocation2 + $0x20] sm:$0xff]
    %v3843 = vld [vmem:[#allocation2 + $0x30] sm:$0xff]
    %3848 = vrot.lane.b32.xlu0 %v3840, 64
    %v3849 = vpop.permute.xlu0 %3848
    %3850 = vrot.lane.b32.xlu0 %v3841, 64
    %v3851 = vpop.permute.xlu0 %3850
    %3852 = vrot.lane.b32.xlu0 %v3842, 64
    %v3853 = vpop.permute.xlu0 %3852
    %3854 = vrot.lane.b32.xlu0 %v3843, 64
    %v3855 = vpop.permute.xlu0 %3854
    %v3860 = vadd.f32 %v3836, %v3849
    %v3861 = vadd.f32 %v3837, %v3851
    %v3862 = vadd.f32 %v3838, %v3853
    %v3863 = vadd.f32 %v3839, %v3855
    %3868 = vrot.lane.b32.xlu0 %v3860, 64
    %v3869 = vpop.permute.xlu0 %3868
    %3870 = vrot.lane.b32.xlu0 %v3861, 64
    %v3871 = vpop.permute.xlu0 %3870
    %3872 = vrot.lane.b32.xlu0 %v3862, 64
    %v3873 = vpop.permute.xlu0 %3872
    %3874 = vrot.lane.b32.xlu0 %v3863, 64
    %v3875 = vpop.permute.xlu0 %3874
    %3880 = vst.msk [vmem:[#allocation2] sm:$0xff] %vm917, %v3869
    %3881 = vst.msk [vmem:[#allocation2 + $0x10] sm:$0xff] %vm917, %v3871
    %3882 = vst.msk [vmem:[#allocation2 + $0x20] sm:$0xff] %vm917, %v3873
    %3883 = vst.msk [vmem:[#allocation2 + $0x30] sm:$0xff] %vm917, %v3875
    %3884 = vxpose.xlu0.b32.start [1/16] %v3244, 128
    %3885 = vxpose.xlu0.b32.cont [2/16] 0.0, 128
    %3886 = vxpose.xlu0.b32.cont [3/16] 0.0, 128
    %3887 = vxpose.xlu0.b32.cont [4/16] 0.0, 128
    %3888 = vxpose.xlu0.b32.cont [5/16] 0.0, 128
    %3889 = vxpose.xlu0.b32.cont [6/16] 0.0, 128
    %3890 = vxpose.xlu0.b32.cont [7/16] 0.0, 128
    %3891 = vxpose.xlu0.b32.cont [8/16] 0.0, 128
    %3892 = vxpose.xlu0.b32.cont [9/16] 0.0, 128
    %3893 = vxpose.xlu0.b32.cont [10/16] 0.0, 128
    %3894 = vxpose.xlu0.b32.cont [11/16] 0.0, 128
    %3895 = vxpose.xlu0.b32.cont [12/16] 0.0, 128
    %3896 = vxpose.xlu0.b32.cont [13/16] 0.0, 128
    %3897 = vxpose.xlu0.b32.cont [14/16] 0.0, 128
    %3898 = vxpose.xlu0.b32.cont [15/16] 0.0, 128
    %3899 = vxpose.xlu0.b32.end [16/16] 0.0, 128
    %v3900 = vpop.trf.xlu0
    %v3901 = vpop.trf.xlu0
    %v3902 = vpop.trf.xlu0
    %v3903 = vpop.trf.xlu0
    %v3904 = vpop.trf.xlu0
    %v3905 = vpop.trf.xlu0
    %v3906 = vpop.trf.xlu0
    %v3907 = vpop.trf.xlu0
    %v3908 = vpop.trf.xlu0
    %v3909 = vpop.trf.xlu0
    %v3910 = vpop.trf.xlu0
    %v3911 = vpop.trf.xlu0
    %v3912 = vpop.trf.xlu0
    %v3913 = vpop.trf.xlu0
    %v3914 = vpop.trf.xlu0
    %v3915 = vpop.trf.xlu0
    %v3917 = vsel %vm331, %v3900, 0
    %v3920 = vsel %vm331, %v3901, 0
    %v3923 = vsel %vm331, %v3902, 0
    %v3926 = vsel %vm331, %v3903, 0
    %v3929 = vsel %vm331, %v3904, 0
    %v3932 = vsel %vm331, %v3905, 0
    %v3935 = vsel %vm331, %v3906, 0
    %v3938 = vsel %vm331, %v3907, 0
    %3940 = vmatpush.msra.mxu0 0.0
    %3941 = vmatpush.msra.mxu0 0.0
    %3942 = vmatpush.msra.mxu0 0.0
    %3943 = vmatpush.msra.mxu0 0.0
    %3944 = vmatpush.msra.mxu0 0.0
    %3945 = vmatpush.msra.mxu0 0.0
    %3946 = vmatpush.msra.mxu0 0.0
    %3947 = vmatpush.msra.mxu0 0.0
    %3948 = vmatpush.msra.mxu0 0.0
    %3949 = vmatpush.msra.mxu0 0.0
    %3950 = vmatpush.msra.mxu0 0.0
    %3951 = vmatpush.msra.mxu0 0.0
    %3952 = vmatpush.msra.mxu0 0.0
    %3953 = vmatpush.msra.mxu0 0.0
    %3954 = vmatpush.msra.mxu0 0.0
    %3955 = vmatpush.msra.mxu0 %v3209
    %3956 = vmatmul.f32.gmra.mxu0 %v3917
    %v3957 = vpop.f32.mrf.mxu0
    %v3958 = vadd.f32 0.0, %v3957
    %3959 = vmatmul.f32.gmra.mxu0 %v3920
    %v3960 = vpop.f32.mrf.mxu0
    %v3961 = vadd.f32 0.0, %v3960
    %3962 = vmatmul.f32.gmra.mxu0 %v3923
    %v3963 = vpop.f32.mrf.mxu0
    %v3964 = vadd.f32 0.0, %v3963
    %3965 = vmatmul.f32.gmra.mxu0 %v3926
    %v3966 = vpop.f32.mrf.mxu0
    %v3967 = vadd.f32 0.0, %v3966
    %3968 = vmatmul.f32.gmra.mxu0 %v3929
    %v3969 = vpop.f32.mrf.mxu0
    %v3970 = vadd.f32 0.0, %v3969
    %3971 = vmatmul.f32.gmra.mxu0 %v3932
    %v3972 = vpop.f32.mrf.mxu0
    %v3973 = vadd.f32 0.0, %v3972
    %3974 = vmatmul.f32.gmra.mxu0 %v3935
    %v3975 = vpop.f32.mrf.mxu0
    %v3976 = vadd.f32 0.0, %v3975
    %3977 = vmatmul.f32.gmra.mxu0 %v3938
    %v3978 = vpop.f32.mrf.mxu0
    %v3979 = vadd.f32 0.0, %v3978
    %3980 = vdwg.mxu0
    %3981 = vmatpush.msra.mxu0 0.0
    %3982 = vmatpush.msra.mxu0 0.0
    %3983 = vmatpush.msra.mxu0 0.0
    %3984 = vmatpush.msra.mxu0 0.0
    %3985 = vmatpush.msra.mxu0 0.0
    %3986 = vmatpush.msra.mxu0 0.0
    %3987 = vmatpush.msra.mxu0 0.0
    %3988 = vmatpush.msra.mxu0 0.0
    %3989 = vmatpush.msra.mxu0 0.0
    %3990 = vmatpush.msra.mxu0 0.0
    %3991 = vmatpush.msra.mxu0 0.0
    %3992 = vmatpush.msra.mxu0 0.0
    %3993 = vmatpush.msra.mxu0 0.0
    %3994 = vmatpush.msra.mxu0 0.0
    %3995 = vmatpush.msra.mxu0 0.0
    %3996 = vmatpush.msra.mxu0 %v3247
    %3997 = vmatmul.f32.gmra.mxu0 %v3917
    %v3998 = vpop.f32.mrf.mxu0
    %v3999 = vadd.f32 0.0, %v3998
    %4000 = vmatmul.f32.gmra.mxu0 %v3920
    %v4001 = vpop.f32.mrf.mxu0
    %v4002 = vadd.f32 0.0, %v4001
    %4003 = vmatmul.f32.gmra.mxu0 %v3923
    %v4004 = vpop.f32.mrf.mxu0
    %v4005 = vadd.f32 0.0, %v4004
    %4006 = vmatmul.f32.gmra.mxu0 %v3926
    %v4007 = vpop.f32.mrf.mxu0
    %v4008 = vadd.f32 0.0, %v4007
    %4009 = vmatmul.f32.gmra.mxu0 %v3929
    %v4010 = vpop.f32.mrf.mxu0
    %v4011 = vadd.f32 0.0, %v4010
    %4012 = vmatmul.f32.gmra.mxu0 %v3932
    %v4013 = vpop.f32.mrf.mxu0
    %v4014 = vadd.f32 0.0, %v4013
    %4015 = vmatmul.f32.gmra.mxu0 %v3935
    %v4016 = vpop.f32.mrf.mxu0
    %v4017 = vadd.f32 0.0, %v4016
    %4018 = vmatmul.f32.gmra.mxu0 %v3938
    %v4019 = vpop.f32.mrf.mxu0
    %v4020 = vadd.f32 0.0, %v4019
    %4021 = vdwg.mxu0
    %v4022 = vmax.f32 %v3958, %v3999
    %4023 = vmax.xlane.f32.xlu0 %v4022
    %v4024 = vpop.xlane.xlu0 %4023
    %v4025 = vmax.f32 %v3961, %v4002
    %4026 = vmax.xlane.f32.xlu0 %v4025
    %v4027 = vpop.xlane.xlu0 %4026
    %v4028 = vmax.f32 %v3964, %v4005
    %4029 = vmax.xlane.f32.xlu0 %v4028
    %v4030 = vpop.xlane.xlu0 %4029
    %v4031 = vmax.f32 %v3967, %v4008
    %4032 = vmax.xlane.f32.xlu0 %v4031
    %v4033 = vpop.xlane.xlu0 %4032
    %v4034 = vmax.f32 %v3970, %v4011
    %4035 = vmax.xlane.f32.xlu0 %v4034
    %v4036 = vpop.xlane.xlu0 %4035
    %v4037 = vmax.f32 %v3973, %v4014
    %4038 = vmax.xlane.f32.xlu0 %v4037
    %v4039 = vpop.xlane.xlu0 %4038
    %v4040 = vmax.f32 %v3976, %v4017
    %4041 = vmax.xlane.f32.xlu0 %v4040
    %v4042 = vpop.xlane.xlu0 %4041
    %v4043 = vmax.f32 %v3979, %v4020
    %4044 = vmax.xlane.f32.xlu0 %v4043
    %v4045 = vpop.xlane.xlu0 %4044
    %v4046 = vsub.f32 %v3958, %v4024
    %v4047 = vsub.f32 %v3999, %v4024
    %v4048 = vsub.f32 %v3961, %v4027
    %v4049 = vsub.f32 %v4002, %v4027
    %v4050 = vsub.f32 %v3964, %v4030
    %v4051 = vsub.f32 %v4005, %v4030
    %v4052 = vsub.f32 %v3967, %v4033
    %v4053 = vsub.f32 %v4008, %v4033
    %v4054 = vsub.f32 %v3970, %v4036
    %v4055 = vsub.f32 %v4011, %v4036
    %v4056 = vsub.f32 %v3973, %v4039
    %v4057 = vsub.f32 %v4014, %v4039
    %v4058 = vsub.f32 %v3976, %v4042
    %v4059 = vsub.f32 %v4017, %v4042
    %v4060 = vsub.f32 %v3979, %v4045
    %v4061 = vsub.f32 %v4020, %v4045
    %v4062 = vmul.f32 %v4046, 1.442695
    %v4063 = vpow.pop %v4062
    %v4064 = vmul.f32 %v4047, 1.442695
    %v4065 = vpow.pop %v4064
    %v4066 = vmul.f32 %v4048, 1.442695
    %v4067 = vpow.pop %v4066
    %v4068 = vmul.f32 %v4049, 1.442695
    %v4069 = vpow.pop %v4068
    %v4070 = vmul.f32 %v4050, 1.442695
    %v4071 = vpow.pop %v4070
    %v4072 = vmul.f32 %v4051, 1.442695
    %v4073 = vpow.pop %v4072
    %v4074 = vmul.f32 %v4052, 1.442695
    %v4075 = vpow.pop %v4074
    %v4076 = vmul.f32 %v4053, 1.442695
    %v4077 = vpow.pop %v4076
    %v4078 = vmul.f32 %v4054, 1.442695
    %v4079 = vpow.pop %v4078
    %v4080 = vmul.f32 %v4055, 1.442695
    %v4081 = vpow.pop %v4080
    %v4082 = vmul.f32 %v4056, 1.442695
    %v4083 = vpow.pop %v4082
    %v4084 = vmul.f32 %v4057, 1.442695
    %v4085 = vpow.pop %v4084
    %v4086 = vmul.f32 %v4058, 1.442695
    %v4087 = vpow.pop %v4086
    %v4088 = vmul.f32 %v4059, 1.442695
    %v4089 = vpow.pop %v4088
    %v4090 = vmul.f32 %v4060, 1.442695
    %v4091 = vpow.pop %v4090
    %v4092 = vmul.f32 %v4061, 1.442695
    %v4093 = vpow.pop %v4092
    %4094 = vmatpush.xpose.msra.mxu0 0.0
    %4095 = vmatpush.xpose.msra.mxu0 0.0
    %4096 = vmatpush.xpose.msra.mxu0 0.0
    %4097 = vmatpush.xpose.msra.mxu0 0.0
    %4098 = vmatpush.xpose.msra.mxu0 0.0
    %4099 = vmatpush.xpose.msra.mxu0 0.0
    %4100 = vmatpush.xpose.msra.mxu0 0.0
    %4101 = vmatpush.xpose.msra.mxu0 0.0
    %4102 = vmatpush.xpose.msra.mxu0 %v4091
    %4103 = vmatpush.xpose.msra.mxu0 %v4087
    %4104 = vmatpush.xpose.msra.mxu0 %v4083
    %4105 = vmatpush.xpose.msra.mxu0 %v4079
    %4106 = vmatpush.xpose.msra.mxu0 %v4075
    %4107 = vmatpush.xpose.msra.mxu0 %v4071
    %4108 = vmatpush.xpose.msra.mxu0 %v4067
    %4109 = vmatpush.xpose.msra.mxu0 %v4063
    %4110 = vmatmul.f32.gmra.mxu0 %v3212
    %v4111 = vpop.f32.mrf.mxu0
    %v4112 = vadd.f32 0.0, %v4111
    %4113 = vmatmul.f32.gmra.mxu0 %v3215
    %v4114 = vpop.f32.mrf.mxu0
    %v4115 = vadd.f32 0.0, %v4114
    %4116 = vmatmul.f32.gmra.mxu0 %v3218
    %v4117 = vpop.f32.mrf.mxu0
    %v4118 = vadd.f32 0.0, %v4117
    %4119 = vmatmul.f32.gmra.mxu0 %v3221
    %v4120 = vpop.f32.mrf.mxu0
    %v4121 = vadd.f32 0.0, %v4120
    %4122 = vmatmul.f32.gmra.mxu0 %v3224
    %v4123 = vpop.f32.mrf.mxu0
    %v4124 = vadd.f32 0.0, %v4123
    %4125 = vdwg.mxu0
    %4126 = vmatpush.xpose.msra.mxu0 0.0
    %4127 = vmatpush.xpose.msra.mxu0 0.0
    %4128 = vmatpush.xpose.msra.mxu0 0.0
    %4129 = vmatpush.xpose.msra.mxu0 0.0
    %4130 = vmatpush.xpose.msra.mxu0 0.0
    %4131 = vmatpush.xpose.msra.mxu0 0.0
    %4132 = vmatpush.xpose.msra.mxu0 0.0
    %4133 = vmatpush.xpose.msra.mxu0 0.0
    %4134 = vmatpush.xpose.msra.mxu0 %v4093
    %4135 = vmatpush.xpose.msra.mxu0 %v4089
    %4136 = vmatpush.xpose.msra.mxu0 %v4085
    %4137 = vmatpush.xpose.msra.mxu0 %v4081
    %4138 = vmatpush.xpose.msra.mxu0 %v4077
    %4139 = vmatpush.xpose.msra.mxu0 %v4073
    %4140 = vmatpush.xpose.msra.mxu0 %v4069
    %4141 = vmatpush.xpose.msra.mxu0 %v4065
    %4142 = vmatmul.f32.gmra.mxu0 %v3250
    %v4143 = vpop.f32.mrf.mxu0
    %v4144 = vadd.f32 %v4112, %v4143
    %4145 = vmatmul.f32.gmra.mxu0 %v3253
    %v4146 = vpop.f32.mrf.mxu0
    %v4147 = vadd.f32 %v4115, %v4146
    %4148 = vmatmul.f32.gmra.mxu0 %v3256
    %v4149 = vpop.f32.mrf.mxu0
    %v4150 = vadd.f32 %v4118, %v4149
    %4151 = vmatmul.f32.gmra.mxu0 %v3259
    %v4152 = vpop.f32.mrf.mxu0
    %v4153 = vadd.f32 %v4121, %v4152
    %4154 = vmatmul.f32.gmra.mxu0 %v3262
    %v4155 = vpop.f32.mrf.mxu0
    %v4156 = vadd.f32 %v4124, %v4155
    %4157 = vdwg.mxu0
    %v4158 = vrcp.pop %v4156
    %v4159 = vperm.slane %v4158, 0
    %v4160 = vmul.f32 %v4144, %v4159
    %v4161 = vmul.f32 %v4147, %v4159
    %v4162 = vmul.f32 %v4150, %v4159
    %v4163 = vmul.f32 %v4153, %v4159
    %v4164 = vld [vmem:[#allocation2 + $0x8] sm:$0xff]
    %v4165 = vld [vmem:[#allocation2 + $0x18] sm:$0xff]
    %v4166 = vld [vmem:[#allocation2 + $0x28] sm:$0xff]
    %v4167 = vld [vmem:[#allocation2 + $0x38] sm:$0xff]
    %v4168 = vadd.f32 %v4160, %v4164
    %v4169 = vadd.f32 %v4161, %v4165
    %v4170 = vadd.f32 %v4162, %v4166
    %v4171 = vadd.f32 %v4163, %v4167
    %4172 = vst.msk [vmem:[#allocation2 + $0x8] sm:$0xff] %vm588, %v4168
    %4173 = vst.msk [vmem:[#allocation2 + $0x18] sm:$0xff] %vm588, %v4169
    %4174 = vst.msk [vmem:[#allocation2 + $0x28] sm:$0xff] %vm588, %v4170
    %4175 = vst.msk [vmem:[#allocation2 + $0x38] sm:$0xff] %vm588, %v4171
    %4177 = vrot.lane.b32.xlu0 %v3244, 64
    %v4178 = vpop.permute.xlu0 %4177
    %4180 = vxpose.xlu0.b32.start [1/16] %v4178, 128
    %4181 = vxpose.xlu0.b32.cont [2/16] 0.0, 128
    %4182 = vxpose.xlu0.b32.cont [3/16] 0.0, 128
    %4183 = vxpose.xlu0.b32.cont [4/16] 0.0, 128
    %4184 = vxpose.xlu0.b32.cont [5/16] 0.0, 128
    %4185 = vxpose.xlu0.b32.cont [6/16] 0.0, 128
    %4186 = vxpose.xlu0.b32.cont [7/16] 0.0, 128
    %4187 = vxpose.xlu0.b32.cont [8/16] 0.0, 128
    %4188 = vxpose.xlu0.b32.cont [9/16] 0.0, 128
    %4189 = vxpose.xlu0.b32.cont [10/16] 0.0, 128
    %4190 = vxpose.xlu0.b32.cont [11/16] 0.0, 128
    %4191 = vxpose.xlu0.b32.cont [12/16] 0.0, 128
    %4192 = vxpose.xlu0.b32.cont [13/16] 0.0, 128
    %4193 = vxpose.xlu0.b32.cont [14/16] 0.0, 128
    %4194 = vxpose.xlu0.b32.cont [15/16] 0.0, 128
    %4195 = vxpose.xlu0.b32.end [16/16] 0.0, 128
    %v4196 = vpop.trf.xlu0
    %v4197 = vpop.trf.xlu0
    %v4198 = vpop.trf.xlu0
    %v4199 = vpop.trf.xlu0
    %v4200 = vpop.trf.xlu0
    %v4201 = vpop.trf.xlu0
    %v4202 = vpop.trf.xlu0
    %v4203 = vpop.trf.xlu0
    %v4204 = vpop.trf.xlu0
    %v4205 = vpop.trf.xlu0
    %v4206 = vpop.trf.xlu0
    %v4207 = vpop.trf.xlu0
    %v4208 = vpop.trf.xlu0
    %v4209 = vpop.trf.xlu0
    %v4210 = vpop.trf.xlu0
    %v4211 = vpop.trf.xlu0
    %v4213 = vsel %vm331, %v4196, 0
    %v4216 = vsel %vm331, %v4197, 0
    %v4219 = vsel %vm331, %v4198, 0
    %v4222 = vsel %vm331, %v4199, 0
    %v4225 = vsel %vm331, %v4200, 0
    %v4228 = vsel %vm331, %v4201, 0
    %v4231 = vsel %vm331, %v4202, 0
    %v4234 = vsel %vm331, %v4203, 0
    %4236 = vmatpush.msra.mxu0 0.0
    %4237 = vmatpush.msra.mxu0 0.0
    %4238 = vmatpush.msra.mxu0 0.0
    %4239 = vmatpush.msra.mxu0 0.0
    %4240 = vmatpush.msra.mxu0 0.0
    %4241 = vmatpush.msra.mxu0 0.0
    %4242 = vmatpush.msra.mxu0 0.0
    %4243 = vmatpush.msra.mxu0 0.0
    %4244 = vmatpush.msra.mxu0 0.0
    %4245 = vmatpush.msra.mxu0 0.0
    %4246 = vmatpush.msra.mxu0 0.0
    %4247 = vmatpush.msra.mxu0 0.0
    %4248 = vmatpush.msra.mxu0 0.0
    %4249 = vmatpush.msra.mxu0 0.0
    %4250 = vmatpush.msra.mxu0 0.0
    %4251 = vmatpush.msra.mxu0 %v3209
    %4252 = vmatmul.f32.gmra.mxu0 %v4213
    %v4253 = vpop.f32.mrf.mxu0
    %v4254 = vadd.f32 0.0, %v4253
    %4255 = vmatmul.f32.gmra.mxu0 %v4216
    %v4256 = vpop.f32.mrf.mxu0
    %v4257 = vadd.f32 0.0, %v4256
    %4258 = vmatmul.f32.gmra.mxu0 %v4219
    %v4259 = vpop.f32.mrf.mxu0
    %v4260 = vadd.f32 0.0, %v4259
    %4261 = vmatmul.f32.gmra.mxu0 %v4222
    %v4262 = vpop.f32.mrf.mxu0
    %v4263 = vadd.f32 0.0, %v4262
    %4264 = vmatmul.f32.gmra.mxu0 %v4225
    %v4265 = vpop.f32.mrf.mxu0
    %v4266 = vadd.f32 0.0, %v4265
    %4267 = vmatmul.f32.gmra.mxu0 %v4228
    %v4268 = vpop.f32.mrf.mxu0
    %v4269 = vadd.f32 0.0, %v4268
    %4270 = vmatmul.f32.gmra.mxu0 %v4231
    %v4271 = vpop.f32.mrf.mxu0
    %v4272 = vadd.f32 0.0, %v4271
    %4273 = vmatmul.f32.gmra.mxu0 %v4234
    %v4274 = vpop.f32.mrf.mxu0
    %v4275 = vadd.f32 0.0, %v4274
    %4276 = vdwg.mxu0
    %4277 = vmatpush.msra.mxu0 0.0
    %4278 = vmatpush.msra.mxu0 0.0
    %4279 = vmatpush.msra.mxu0 0.0
    %4280 = vmatpush.msra.mxu0 0.0
    %4281 = vmatpush.msra.mxu0 0.0
    %4282 = vmatpush.msra.mxu0 0.0
    %4283 = vmatpush.msra.mxu0 0.0
    %4284 = vmatpush.msra.mxu0 0.0
    %4285 = vmatpush.msra.mxu0 0.0
    %4286 = vmatpush.msra.mxu0 0.0
    %4287 = vmatpush.msra.mxu0 0.0
    %4288 = vmatpush.msra.mxu0 0.0
    %4289 = vmatpush.msra.mxu0 0.0
    %4290 = vmatpush.msra.mxu0 0.0
    %4291 = vmatpush.msra.mxu0 0.0
    %4292 = vmatpush.msra.mxu0 %v3247
    %4293 = vmatmul.f32.gmra.mxu0 %v4213
    %v4294 = vpop.f32.mrf.mxu0
    %v4295 = vadd.f32 0.0, %v4294
    %4296 = vmatmul.f32.gmra.mxu0 %v4216
    %v4297 = vpop.f32.mrf.mxu0
    %v4298 = vadd.f32 0.0, %v4297
    %4299 = vmatmul.f32.gmra.mxu0 %v4219
    %v4300 = vpop.f32.mrf.mxu0
    %v4301 = vadd.f32 0.0, %v4300
    %4302 = vmatmul.f32.gmra.mxu0 %v4222
    %v4303 = vpop.f32.mrf.mxu0
    %v4304 = vadd.f32 0.0, %v4303
    %4305 = vmatmul.f32.gmra.mxu0 %v4225
    %v4306 = vpop.f32.mrf.mxu0
    %v4307 = vadd.f32 0.0, %v4306
    %4308 = vmatmul.f32.gmra.mxu0 %v4228
    %v4309 = vpop.f32.mrf.mxu0
    %v4310 = vadd.f32 0.0, %v4309
    %4311 = vmatmul.f32.gmra.mxu0 %v4231
    %v4312 = vpop.f32.mrf.mxu0
    %v4313 = vadd.f32 0.0, %v4312
    %4314 = vmatmul.f32.gmra.mxu0 %v4234
    %v4315 = vpop.f32.mrf.mxu0
    %v4316 = vadd.f32 0.0, %v4315
    %4317 = vdwg.mxu0
    %v4318 = vmax.f32 %v4254, %v4295
    %4319 = vmax.xlane.f32.xlu0 %v4318
    %v4320 = vpop.xlane.xlu0 %4319
    %v4321 = vmax.f32 %v4257, %v4298
    %4322 = vmax.xlane.f32.xlu0 %v4321
    %v4323 = vpop.xlane.xlu0 %4322
    %v4324 = vmax.f32 %v4260, %v4301
    %4325 = vmax.xlane.f32.xlu0 %v4324
    %v4326 = vpop.xlane.xlu0 %4325
    %v4327 = vmax.f32 %v4263, %v4304
    %4328 = vmax.xlane.f32.xlu0 %v4327
    %v4329 = vpop.xlane.xlu0 %4328
    %v4330 = vmax.f32 %v4266, %v4307
    %4331 = vmax.xlane.f32.xlu0 %v4330
    %v4332 = vpop.xlane.xlu0 %4331
    %v4333 = vmax.f32 %v4269, %v4310
    %4334 = vmax.xlane.f32.xlu0 %v4333
    %v4335 = vpop.xlane.xlu0 %4334
    %v4336 = vmax.f32 %v4272, %v4313
    %4337 = vmax.xlane.f32.xlu0 %v4336
    %v4338 = vpop.xlane.xlu0 %4337
    %v4339 = vmax.f32 %v4275, %v4316
    %4340 = vmax.xlane.f32.xlu0 %v4339
    %v4341 = vpop.xlane.xlu0 %4340
    %v4342 = vsub.f32 %v4254, %v4320
    %v4343 = vsub.f32 %v4295, %v4320
    %v4344 = vsub.f32 %v4257, %v4323
    %v4345 = vsub.f32 %v4298, %v4323
    %v4346 = vsub.f32 %v4260, %v4326
    %v4347 = vsub.f32 %v4301, %v4326
    %v4348 = vsub.f32 %v4263, %v4329
    %v4349 = vsub.f32 %v4304, %v4329
    %v4350 = vsub.f32 %v4266, %v4332
    %v4351 = vsub.f32 %v4307, %v4332
    %v4352 = vsub.f32 %v4269, %v4335
    %v4353 = vsub.f32 %v4310, %v4335
    %v4354 = vsub.f32 %v4272, %v4338
    %v4355 = vsub.f32 %v4313, %v4338
    %v4356 = vsub.f32 %v4275, %v4341
    %v4357 = vsub.f32 %v4316, %v4341
    %v4358 = vmul.f32 %v4342, 1.442695
    %v4359 = vpow.pop %v4358
    %v4360 = vmul.f32 %v4343, 1.442695
    %v4361 = vpow.pop %v4360
    %v4362 = vmul.f32 %v4344, 1.442695
    %v4363 = vpow.pop %v4362
    %v4364 = vmul.f32 %v4345, 1.442695
    %v4365 = vpow.pop %v4364
    %v4366 = vmul.f32 %v4346, 1.442695
    %v4367 = vpow.pop %v4366
    %v4368 = vmul.f32 %v4347, 1.442695
    %v4369 = vpow.pop %v4368
    %v4370 = vmul.f32 %v4348, 1.442695
    %v4371 = vpow.pop %v4370
    %v4372 = vmul.f32 %v4349, 1.442695
    %v4373 = vpow.pop %v4372
    %v4374 = vmul.f32 %v4350, 1.442695
    %v4375 = vpow.pop %v4374
    %v4376 = vmul.f32 %v4351, 1.442695
    %v4377 = vpow.pop %v4376
    %v4378 = vmul.f32 %v4352, 1.442695
    %v4379 = vpow.pop %v4378
    %v4380 = vmul.f32 %v4353, 1.442695
    %v4381 = vpow.pop %v4380
    %v4382 = vmul.f32 %v4354, 1.442695
    %v4383 = vpow.pop %v4382
    %v4384 = vmul.f32 %v4355, 1.442695
    %v4385 = vpow.pop %v4384
    %v4386 = vmul.f32 %v4356, 1.442695
    %v4387 = vpow.pop %v4386
    %v4388 = vmul.f32 %v4357, 1.442695
    %v4389 = vpow.pop %v4388
    %4390 = vmatpush.xpose.msra.mxu0 0.0
    %4391 = vmatpush.xpose.msra.mxu0 0.0
    %4392 = vmatpush.xpose.msra.mxu0 0.0
    %4393 = vmatpush.xpose.msra.mxu0 0.0
    %4394 = vmatpush.xpose.msra.mxu0 0.0
    %4395 = vmatpush.xpose.msra.mxu0 0.0
    %4396 = vmatpush.xpose.msra.mxu0 0.0
    %4397 = vmatpush.xpose.msra.mxu0 0.0
    %4398 = vmatpush.xpose.msra.mxu0 %v4387
    %4399 = vmatpush.xpose.msra.mxu0 %v4383
    %4400 = vmatpush.xpose.msra.mxu0 %v4379
    %4401 = vmatpush.xpose.msra.mxu0 %v4375
    %4402 = vmatpush.xpose.msra.mxu0 %v4371
    %4403 = vmatpush.xpose.msra.mxu0 %v4367
    %4404 = vmatpush.xpose.msra.mxu0 %v4363
    %4405 = vmatpush.xpose.msra.mxu0 %v4359
    %4406 = vmatmul.f32.gmra.mxu0 %v3212
    %v4407 = vpop.f32.mrf.mxu0
    %v4408 = vadd.f32 0.0, %v4407
    %4409 = vmatmul.f32.gmra.mxu0 %v3215
    %v4410 = vpop.f32.mrf.mxu0
    %v4411 = vadd.f32 0.0, %v4410
    %4412 = vmatmul.f32.gmra.mxu0 %v3218
    %v4413 = vpop.f32.mrf.mxu0
    %v4414 = vadd.f32 0.0, %v4413
    %4415 = vmatmul.f32.gmra.mxu0 %v3221
    %v4416 = vpop.f32.mrf.mxu0
    %v4417 = vadd.f32 0.0, %v4416
    %4418 = vmatmul.f32.gmra.mxu0 %v3224
    %v4419 = vpop.f32.mrf.mxu0
    %v4420 = vadd.f32 0.0, %v4419
    %4421 = vdwg.mxu0
    %4422 = vmatpush.xpose.msra.mxu0 0.0
    %4423 = vmatpush.xpose.msra.mxu0 0.0
    %4424 = vmatpush.xpose.msra.mxu0 0.0
    %4425 = vmatpush.xpose.msra.mxu0 0.0
    %4426 = vmatpush.xpose.msra.mxu0 0.0
    %4427 = vmatpush.xpose.msra.mxu0 0.0
    %4428 = vmatpush.xpose.msra.mxu0 0.0
    %4429 = vmatpush.xpose.msra.mxu0 0.0
    %4430 = vmatpush.xpose.msra.mxu0 %v4389
    %4431 = vmatpush.xpose.msra.mxu0 %v4385
    %4432 = vmatpush.xpose.msra.mxu0 %v4381
    %4433 = vmatpush.xpose.msra.mxu0 %v4377
    %4434 = vmatpush.xpose.msra.mxu0 %v4373
    %4435 = vmatpush.xpose.msra.mxu0 %v4369
    %4436 = vmatpush.xpose.msra.mxu0 %v4365
    %4437 = vmatpush.xpose.msra.mxu0 %v4361
    %4438 = vmatmul.f32.gmra.mxu0 %v3250
    %v4439 = vpop.f32.mrf.mxu0
    %v4440 = vadd.f32 %v4408, %v4439
    %4441 = vmatmul.f32.gmra.mxu0 %v3253
    %v4442 = vpop.f32.mrf.mxu0
    %v4443 = vadd.f32 %v4411, %v4442
    %4444 = vmatmul.f32.gmra.mxu0 %v3256
    %v4445 = vpop.f32.mrf.mxu0
    %v4446 = vadd.f32 %v4414, %v4445
    %4447 = vmatmul.f32.gmra.mxu0 %v3259
    %v4448 = vpop.f32.mrf.mxu0
    %v4449 = vadd.f32 %v4417, %v4448
    %4450 = vmatmul.f32.gmra.mxu0 %v3262
    %v4451 = vpop.f32.mrf.mxu0
    %v4452 = vadd.f32 %v4420, %v4451
    %4453 = vdwg.mxu0
    %v4454 = vrcp.pop %v4452
    %v4455 = vperm.slane %v4454, 0
    %v4456 = vmul.f32 %v4440, %v4455
    %v4457 = vmul.f32 %v4443, %v4455
    %v4458 = vmul.f32 %v4446, %v4455
    %v4459 = vmul.f32 %v4449, %v4455
    %v4460 = vld [vmem:[#allocation2 + $0x8] sm:$0xff]
    %v4461 = vld [vmem:[#allocation2 + $0x18] sm:$0xff]
    %v4462 = vld [vmem:[#allocation2 + $0x28] sm:$0xff]
    %v4463 = vld [vmem:[#allocation2 + $0x38] sm:$0xff]
    %4468 = vrot.lane.b32.xlu0 %v4460, 64
    %v4469 = vpop.permute.xlu0 %4468
    %4470 = vrot.lane.b32.xlu0 %v4461, 64
    %v4471 = vpop.permute.xlu0 %4470
    %4472 = vrot.lane.b32.xlu0 %v4462, 64
    %v4473 = vpop.permute.xlu0 %4472
    %4474 = vrot.lane.b32.xlu0 %v4463, 64
    %v4475 = vpop.permute.xlu0 %4474
    %v4480 = vadd.f32 %v4456, %v4469
    %v4481 = vadd.f32 %v4457, %v4471
    %v4482 = vadd.f32 %v4458, %v4473
    %v4483 = vadd.f32 %v4459, %v4475
    %4488 = vrot.lane.b32.xlu0 %v4480, 64
    %v4489 = vpop.permute.xlu0 %4488
    %4490 = vrot.lane.b32.xlu0 %v4481, 64
    %v4491 = vpop.permute.xlu0 %4490
    %4492 = vrot.lane.b32.xlu0 %v4482, 64
    %v4493 = vpop.permute.xlu0 %4492
    %4494 = vrot.lane.b32.xlu0 %v4483, 64
    %v4495 = vpop.permute.xlu0 %4494
    %4500 = vst.msk [vmem:[#allocation2 + $0x8] sm:$0xff] %vm917, %v4489
    %4501 = vst.msk [vmem:[#allocation2 + $0x18] sm:$0xff] %vm917, %v4491
    %4502 = vst.msk [vmem:[#allocation2 + $0x28] sm:$0xff] %vm917, %v4493
    %4503 = vst.msk [vmem:[#allocation2 + $0x38] sm:$0xff] %vm917, %v4495
    %v4504 = vld [vmem:[%s1542] sm:$0xff]
    %v4505 = vld [vmem:[%s1542 + $0x8] sm:$0xff]
    %v4506 = vld [vmem:[%s1542 + $0x10] sm:$0xff]
    %v4507 = vld [vmem:[%s1542 + $0x18] sm:$0xff]
    %v4508 = vld [vmem:[%s1542 + $0x20] sm:$0xff]
    %v4509 = vld [vmem:[%s1542 + $0x28] sm:$0xff]
    %v4510 = vld [vmem:[%s1542 + $0x30] sm:$0x1]
    %v4511 = vld [vmem:[#allocation2] sm:$0xff]
    %v4512 = vld [vmem:[#allocation2 + $0x8] sm:$0xff]
    %v4513 = vld [vmem:[#allocation2 + $0x10] sm:$0xff]
    %v4514 = vld [vmem:[#allocation2 + $0x18] sm:$0xff]
    %v4515 = vld [vmem:[#allocation2 + $0x20] sm:$0xff]
    %v4516 = vld [vmem:[#allocation2 + $0x28] sm:$0xff]
    %v4517 = vld [vmem:[#allocation2 + $0x30] sm:$0xff]
    %v4518 = vld [vmem:[#allocation2 + $0x38] sm:$0xff]
    %v4519 = vld [vmem:[%s1558] sm:$0xff]
    %v4520 = vld [vmem:[%s1558 + $0x8] sm:$0xff]
    %v4521 = vld [vmem:[%s1558 + $0x10] sm:$0xff]
    %v4522 = vld [vmem:[%s1558 + $0x18] sm:$0xff]
    %v4523 = vld [vmem:[%s1558 + $0x20] sm:$0xff]
    %v4524 = vld [vmem:[%s1558 + $0x28] sm:$0xff]
    %v4525 = vld [vmem:[%s1558 + $0x30] sm:$0x1]
    %4527 = vset.pattern.permute.xlu0 0
    %4528 = vperm.xlu0 %4527, %v4519
    %v4529 = vpop.permute.xlu0 %4528
    %4532 = vset.pattern.permute.xlu0 0
    %4533 = vperm.xlu0 %4532, %v4520
    %v4534 = vpop.permute.xlu0 %4533
    %4537 = vset.pattern.permute.xlu0 0
    %4538 = vperm.xlu0 %4537, %v4521
    %v4539 = vpop.permute.xlu0 %4538
    %4542 = vset.pattern.permute.xlu0 0
    %4543 = vperm.xlu0 %4542, %v4522
    %v4544 = vpop.permute.xlu0 %4543
    %4547 = vset.pattern.permute.xlu0 0
    %4548 = vperm.xlu0 %4547, %v4523
    %v4549 = vpop.permute.xlu0 %4548
    %4552 = vset.pattern.permute.xlu0 0
    %4553 = vperm.xlu0 %4552, %v4524
    %v4554 = vpop.permute.xlu0 %4553
    %4557 = vset.pattern.permute.xlu0 0
    %4558 = vperm.xlu0 %4557, %v4525
    %v4559 = vpop.permute.xlu0 %4558
    %v4562 = vsel %vm201, %v4504, 0
    %v4565 = vsel %vm201, %v4505, 0
    %v4568 = vsel %vm201, %v4506, 0
    %v4571 = vsel %vm201, %v4507, 0
    %v4574 = vsel %vm201, %v4508, 0
    %v4577 = vsel %vm201, %v4509, 0
    %v4580 = vsel %vm201, %v4510, 0
    %4582 = vmatpush.msra.mxu0 0.0
    %4583 = vmatpush.msra.mxu0 0.0
    %4584 = vmatpush.msra.mxu0 0.0
    %4585 = vmatpush.msra.mxu0 0.0
    %4586 = vmatpush.msra.mxu0 0.0
    %4587 = vmatpush.msra.mxu0 0.0
    %4588 = vmatpush.msra.mxu0 0.0
    %4589 = vmatpush.msra.mxu0 0.0
    %4590 = vmatpush.msra.mxu0 0.0
    %4591 = vmatpush.msra.mxu0 0.0
    %4592 = vmatpush.msra.mxu0 0.0
    %4593 = vmatpush.msra.mxu0 0.0
    %4594 = vmatpush.msra.mxu0 %v4517
    %4595 = vmatpush.msra.mxu0 %v4515
    %4596 = vmatpush.msra.mxu0 %v4513
    %4597 = vmatpush.msra.mxu0 %v4511
    %4598 = vmatmul.f32.gmra.mxu0 %v4562
    %v4599 = vpop.f32.mrf.mxu0
    %v4600 = vadd.f32 %v4529, %v4599
    %4601 = vmatmul.f32.gmra.mxu0 %v4565
    %v4602 = vpop.f32.mrf.mxu0
    %v4603 = vadd.f32 %v4534, %v4602
    %4604 = vmatmul.f32.gmra.mxu0 %v4568
    %v4605 = vpop.f32.mrf.mxu0
    %v4606 = vadd.f32 %v4539, %v4605
    %4607 = vmatmul.f32.gmra.mxu0 %v4571
    %v4608 = vpop.f32.mrf.mxu0
    %v4609 = vadd.f32 %v4544, %v4608
    %4610 = vmatmul.f32.gmra.mxu0 %v4574
    %v4611 = vpop.f32.mrf.mxu0
    %v4612 = vadd.f32 %v4549, %v4611
    %4613 = vmatmul.f32.gmra.mxu0 %v4577
    %v4614 = vpop.f32.mrf.mxu0
    %v4615 = vadd.f32 %v4554, %v4614
    %4616 = vmatmul.f32.gmra.mxu0 %v4580
    %v4617 = vpop.f32.mrf.mxu0
    %v4618 = vadd.f32 %v4559, %v4617
    %4619 = vdwg.mxu0
    %4620 = vmatpush.msra.mxu0 0.0
    %4621 = vmatpush.msra.mxu0 0.0
    %4622 = vmatpush.msra.mxu0 0.0
    %4623 = vmatpush.msra.mxu0 0.0
    %4624 = vmatpush.msra.mxu0 0.0
    %4625 = vmatpush.msra.mxu0 0.0
    %4626 = vmatpush.msra.mxu0 0.0
    %4627 = vmatpush.msra.mxu0 0.0
    %4628 = vmatpush.msra.mxu0 0.0
    %4629 = vmatpush.msra.mxu0 0.0
    %4630 = vmatpush.msra.mxu0 0.0
    %4631 = vmatpush.msra.mxu0 0.0
    %4632 = vmatpush.msra.mxu0 %v4518
    %4633 = vmatpush.msra.mxu0 %v4516
    %4634 = vmatpush.msra.mxu0 %v4514
    %4635 = vmatpush.msra.mxu0 %v4512
    %4636 = vmatmul.f32.gmra.mxu0 %v4562
    %v4637 = vpop.f32.mrf.mxu0
    %v4638 = vadd.f32 %v4529, %v4637
    %4639 = vmatmul.f32.gmra.mxu0 %v4565
    %v4640 = vpop.f32.mrf.mxu0
    %v4641 = vadd.f32 %v4534, %v4640
    %4642 = vmatmul.f32.gmra.mxu0 %v4568
    %v4643 = vpop.f32.mrf.mxu0
    %v4644 = vadd.f32 %v4539, %v4643
    %4645 = vmatmul.f32.gmra.mxu0 %v4571
    %v4646 = vpop.f32.mrf.mxu0
    %v4647 = vadd.f32 %v4544, %v4646
    %4648 = vmatmul.f32.gmra.mxu0 %v4574
    %v4649 = vpop.f32.mrf.mxu0
    %v4650 = vadd.f32 %v4549, %v4649
    %4651 = vmatmul.f32.gmra.mxu0 %v4577
    %v4652 = vpop.f32.mrf.mxu0
    %v4653 = vadd.f32 %v4554, %v4652
    %4654 = vmatmul.f32.gmra.mxu0 %v4580
    %v4655 = vpop.f32.mrf.mxu0
    %v4656 = vadd.f32 %v4559, %v4655
    %4657 = vdwg.mxu0
    %4658 = vxpose.xlu0.b32.start [1/16] %v4600, 128
    %4659 = vxpose.xlu0.b32.cont [2/16] 0.0, 128
    %4660 = vxpose.xlu0.b32.cont [3/16] 0.0, 128
    %4661 = vxpose.xlu0.b32.cont [4/16] 0.0, 128
    %4662 = vxpose.xlu0.b32.cont [5/16] 0.0, 128
    %4663 = vxpose.xlu0.b32.cont [6/16] 0.0, 128
    %4664 = vxpose.xlu0.b32.cont [7/16] 0.0, 128
    %4665 = vxpose.xlu0.b32.cont [8/16] 0.0, 128
    %4666 = vxpose.xlu0.b32.cont [9/16] 0.0, 128
    %4667 = vxpose.xlu0.b32.cont [10/16] 0.0, 128
    %4668 = vxpose.xlu0.b32.cont [11/16] 0.0, 128
    %4669 = vxpose.xlu0.b32.cont [12/16] 0.0, 128
    %4670 = vxpose.xlu0.b32.cont [13/16] 0.0, 128
    %4671 = vxpose.xlu0.b32.cont [14/16] 0.0, 128
    %4672 = vxpose.xlu0.b32.cont [15/16] 0.0, 128
    %4673 = vxpose.xlu0.b32.end [16/16] 0.0, 128
    %v4674 = vpop.trf.xlu0
    %v4675 = vpop.trf.xlu0
    %v4676 = vpop.trf.xlu0
    %v4677 = vpop.trf.xlu0
    %v4678 = vpop.trf.xlu0
    %v4679 = vpop.trf.xlu0
    %v4680 = vpop.trf.xlu0
    %v4681 = vpop.trf.xlu0
    %v4682 = vpop.trf.xlu0
    %v4683 = vpop.trf.xlu0
    %v4684 = vpop.trf.xlu0
    %v4685 = vpop.trf.xlu0
    %v4686 = vpop.trf.xlu0
    %v4687 = vpop.trf.xlu0
    %v4688 = vpop.trf.xlu0
    %v4689 = vpop.trf.xlu0
    %v4691 = vsel %vm331, %v4674, 0
    %v4694 = vsel %vm331, %v4675, 0
    %v4697 = vsel %vm331, %v4676, 0
    %v4700 = vsel %vm331, %v4677, 0
    %v4703 = vsel %vm331, %v4678, 0
    %v4706 = vsel %vm331, %v4679, 0
    %v4709 = vsel %vm331, %v4680, 0
    %v4712 = vsel %vm331, %v4681, 0
    %4714 = vmatpush.msra.mxu0 0.0
    %4715 = vmatpush.msra.mxu0 0.0
    %4716 = vmatpush.msra.mxu0 0.0
    %4717 = vmatpush.msra.mxu0 0.0
    %4718 = vmatpush.msra.mxu0 0.0
    %4719 = vmatpush.msra.mxu0 0.0
    %4720 = vmatpush.msra.mxu0 0.0
    %4721 = vmatpush.msra.mxu0 0.0
    %4722 = vmatpush.msra.mxu0 0.0
    %4723 = vmatpush.msra.mxu0 0.0
    %4724 = vmatpush.msra.mxu0 0.0
    %4725 = vmatpush.msra.mxu0 0.0
    %4726 = vmatpush.msra.mxu0 0.0
    %4727 = vmatpush.msra.mxu0 0.0
    %4728 = vmatpush.msra.mxu0 0.0
    %4729 = vmatpush.msra.mxu0 %v4603
    %4730 = vmatmul.f32.gmra.mxu0 %v4691
    %v4731 = vpop.f32.mrf.mxu0
    %v4732 = vadd.f32 0.0, %v4731
    %4733 = vmatmul.f32.gmra.mxu0 %v4694
    %v4734 = vpop.f32.mrf.mxu0
    %v4735 = vadd.f32 0.0, %v4734
    %4736 = vmatmul.f32.gmra.mxu0 %v4697
    %v4737 = vpop.f32.mrf.mxu0
    %v4738 = vadd.f32 0.0, %v4737
    %4739 = vmatmul.f32.gmra.mxu0 %v4700
    %v4740 = vpop.f32.mrf.mxu0
    %v4741 = vadd.f32 0.0, %v4740
    %4742 = vmatmul.f32.gmra.mxu0 %v4703
    %v4743 = vpop.f32.mrf.mxu0
    %v4744 = vadd.f32 0.0, %v4743
    %4745 = vmatmul.f32.gmra.mxu0 %v4706
    %v4746 = vpop.f32.mrf.mxu0
    %v4747 = vadd.f32 0.0, %v4746
    %4748 = vmatmul.f32.gmra.mxu0 %v4709
    %v4749 = vpop.f32.mrf.mxu0
    %v4750 = vadd.f32 0.0, %v4749
    %4751 = vmatmul.f32.gmra.mxu0 %v4712
    %v4752 = vpop.f32.mrf.mxu0
    %v4753 = vadd.f32 0.0, %v4752
    %4754 = vdwg.mxu0
    %4755 = vmatpush.msra.mxu0 0.0
    %4756 = vmatpush.msra.mxu0 0.0
    %4757 = vmatpush.msra.mxu0 0.0
    %4758 = vmatpush.msra.mxu0 0.0
    %4759 = vmatpush.msra.mxu0 0.0
    %4760 = vmatpush.msra.mxu0 0.0
    %4761 = vmatpush.msra.mxu0 0.0
    %4762 = vmatpush.msra.mxu0 0.0
    %4763 = vmatpush.msra.mxu0 0.0
    %4764 = vmatpush.msra.mxu0 0.0
    %4765 = vmatpush.msra.mxu0 0.0
    %4766 = vmatpush.msra.mxu0 0.0
    %4767 = vmatpush.msra.mxu0 0.0
    %4768 = vmatpush.msra.mxu0 0.0
    %4769 = vmatpush.msra.mxu0 0.0
    %4770 = vmatpush.msra.mxu0 %v4641
    %4771 = vmatmul.f32.gmra.mxu0 %v4691
    %v4772 = vpop.f32.mrf.mxu0
    %v4773 = vadd.f32 0.0, %v4772
    %4774 = vmatmul.f32.gmra.mxu0 %v4694
    %v4775 = vpop.f32.mrf.mxu0
    %v4776 = vadd.f32 0.0, %v4775
    %4777 = vmatmul.f32.gmra.mxu0 %v4697
    %v4778 = vpop.f32.mrf.mxu0
    %v4779 = vadd.f32 0.0, %v4778
    %4780 = vmatmul.f32.gmra.mxu0 %v4700
    %v4781 = vpop.f32.mrf.mxu0
    %v4782 = vadd.f32 0.0, %v4781
    %4783 = vmatmul.f32.gmra.mxu0 %v4703
    %v4784 = vpop.f32.mrf.mxu0
    %v4785 = vadd.f32 0.0, %v4784
    %4786 = vmatmul.f32.gmra.mxu0 %v4706
    %v4787 = vpop.f32.mrf.mxu0
    %v4788 = vadd.f32 0.0, %v4787
    %4789 = vmatmul.f32.gmra.mxu0 %v4709
    %v4790 = vpop.f32.mrf.mxu0
    %v4791 = vadd.f32 0.0, %v4790
    %4792 = vmatmul.f32.gmra.mxu0 %v4712
    %v4793 = vpop.f32.mrf.mxu0
    %v4794 = vadd.f32 0.0, %v4793
    %4795 = vdwg.mxu0
    %v4796 = vmax.f32 %v4732, %v4773
    %4797 = vmax.xlane.f32.xlu0 %v4796
    %v4798 = vpop.xlane.xlu0 %4797
    %v4799 = vmax.f32 %v4735, %v4776
    %4800 = vmax.xlane.f32.xlu0 %v4799
    %v4801 = vpop.xlane.xlu0 %4800
    %v4802 = vmax.f32 %v4738, %v4779
    %4803 = vmax.xlane.f32.xlu0 %v4802
    %v4804 = vpop.xlane.xlu0 %4803
    %v4805 = vmax.f32 %v4741, %v4782
    %4806 = vmax.xlane.f32.xlu0 %v4805
    %v4807 = vpop.xlane.xlu0 %4806
    %v4808 = vmax.f32 %v4744, %v4785
    %4809 = vmax.xlane.f32.xlu0 %v4808
    %v4810 = vpop.xlane.xlu0 %4809
    %v4811 = vmax.f32 %v4747, %v4788
    %4812 = vmax.xlane.f32.xlu0 %v4811
    %v4813 = vpop.xlane.xlu0 %4812
    %v4814 = vmax.f32 %v4750, %v4791
    %4815 = vmax.xlane.f32.xlu0 %v4814
    %v4816 = vpop.xlane.xlu0 %4815
    %v4817 = vmax.f32 %v4753, %v4794
    %4818 = vmax.xlane.f32.xlu0 %v4817
    %v4819 = vpop.xlane.xlu0 %4818
    %v4820 = vsub.f32 %v4732, %v4798
    %v4821 = vsub.f32 %v4773, %v4798
    %v4822 = vsub.f32 %v4735, %v4801
    %v4823 = vsub.f32 %v4776, %v4801
    %v4824 = vsub.f32 %v4738, %v4804
    %v4825 = vsub.f32 %v4779, %v4804
    %v4826 = vsub.f32 %v4741, %v4807
    %v4827 = vsub.f32 %v4782, %v4807
    %v4828 = vsub.f32 %v4744, %v4810
    %v4829 = vsub.f32 %v4785, %v4810
    %v4830 = vsub.f32 %v4747, %v4813
    %v4831 = vsub.f32 %v4788, %v4813
    %v4832 = vsub.f32 %v4750, %v4816
    %v4833 = vsub.f32 %v4791, %v4816
    %v4834 = vsub.f32 %v4753, %v4819
    %v4835 = vsub.f32 %v4794, %v4819
    %v4836 = vmul.f32 %v4820, 1.442695
    %v4837 = vpow.pop %v4836
    %v4838 = vmul.f32 %v4821, 1.442695
    %v4839 = vpow.pop %v4838
    %v4840 = vmul.f32 %v4822, 1.442695
    %v4841 = vpow.pop %v4840
    %v4842 = vmul.f32 %v4823, 1.442695
    %v4843 = vpow.pop %v4842
    %v4844 = vmul.f32 %v4824, 1.442695
    %v4845 = vpow.pop %v4844
    %v4846 = vmul.f32 %v4825, 1.442695
    %v4847 = vpow.pop %v4846
    %v4848 = vmul.f32 %v4826, 1.442695
    %v4849 = vpow.pop %v4848
    %v4850 = vmul.f32 %v4827, 1.442695
    %v4851 = vpow.pop %v4850
    %v4852 = vmul.f32 %v4828, 1.442695
    %v4853 = vpow.pop %v4852
    %v4854 = vmul.f32 %v4829, 1.442695
    %v4855 = vpow.pop %v4854
    %v4856 = vmul.f32 %v4830, 1.442695
    %v4857 = vpow.pop %v4856
    %v4858 = vmul.f32 %v4831, 1.442695
    %v4859 = vpow.pop %v4858
    %v4860 = vmul.f32 %v4832, 1.442695
    %v4861 = vpow.pop %v4860
    %v4862 = vmul.f32 %v4833, 1.442695
    %v4863 = vpow.pop %v4862
    %v4864 = vmul.f32 %v4834, 1.442695
    %v4865 = vpow.pop %v4864
    %v4866 = vmul.f32 %v4835, 1.442695
    %v4867 = vpow.pop %v4866
    %4868 = vmatpush.xpose.msra.mxu0 0.0
    %4869 = vmatpush.xpose.msra.mxu0 0.0
    %4870 = vmatpush.xpose.msra.mxu0 0.0
    %4871 = vmatpush.xpose.msra.mxu0 0.0
    %4872 = vmatpush.xpose.msra.mxu0 0.0
    %4873 = vmatpush.xpose.msra.mxu0 0.0
    %4874 = vmatpush.xpose.msra.mxu0 0.0
    %4875 = vmatpush.xpose.msra.mxu0 0.0
    %4876 = vmatpush.xpose.msra.mxu0 %v4865
    %4877 = vmatpush.xpose.msra.mxu0 %v4861
    %4878 = vmatpush.xpose.msra.mxu0 %v4857
    %4879 = vmatpush.xpose.msra.mxu0 %v4853
    %4880 = vmatpush.xpose.msra.mxu0 %v4849
    %4881 = vmatpush.xpose.msra.mxu0 %v4845
    %4882 = vmatpush.xpose.msra.mxu0 %v4841
    %4883 = vmatpush.xpose.msra.mxu0 %v4837
    %4884 = vmatmul.f32.gmra.mxu0 %v4606
    %v4885 = vpop.f32.mrf.mxu0
    %v4886 = vadd.f32 0.0, %v4885
    %4887 = vmatmul.f32.gmra.mxu0 %v4609
    %v4888 = vpop.f32.mrf.mxu0
    %v4889 = vadd.f32 0.0, %v4888
    %4890 = vmatmul.f32.gmra.mxu0 %v4612
    %v4891 = vpop.f32.mrf.mxu0
    %v4892 = vadd.f32 0.0, %v4891
    %4893 = vmatmul.f32.gmra.mxu0 %v4615
    %v4894 = vpop.f32.mrf.mxu0
    %v4895 = vadd.f32 0.0, %v4894
    %4896 = vmatmul.f32.gmra.mxu0 %v4618
    %v4897 = vpop.f32.mrf.mxu0
    %v4898 = vadd.f32 0.0, %v4897
    %4899 = vdwg.mxu0
    %4900 = vmatpush.xpose.msra.mxu0 0.0
    %4901 = vmatpush.xpose.msra.mxu0 0.0
    %4902 = vmatpush.xpose.msra.mxu0 0.0
    %4903 = vmatpush.xpose.msra.mxu0 0.0
    %4904 = vmatpush.xpose.msra.mxu0 0.0
    %4905 = vmatpush.xpose.msra.mxu0 0.0
    %4906 = vmatpush.xpose.msra.mxu0 0.0
    %4907 = vmatpush.xpose.msra.mxu0 0.0
    %4908 = vmatpush.xpose.msra.mxu0 %v4867
    %4909 = vmatpush.xpose.msra.mxu0 %v4863
    %4910 = vmatpush.xpose.msra.mxu0 %v4859
    %4911 = vmatpush.xpose.msra.mxu0 %v4855
    %4912 = vmatpush.xpose.msra.mxu0 %v4851
    %4913 = vmatpush.xpose.msra.mxu0 %v4847
    %4914 = vmatpush.xpose.msra.mxu0 %v4843
    %4915 = vmatpush.xpose.msra.mxu0 %v4839
    %4916 = vmatmul.f32.gmra.mxu0 %v4644
    %v4917 = vpop.f32.mrf.mxu0
    %v4918 = vadd.f32 %v4886, %v4917
    %4919 = vmatmul.f32.gmra.mxu0 %v4647
    %v4920 = vpop.f32.mrf.mxu0
    %v4921 = vadd.f32 %v4889, %v4920
    %4922 = vmatmul.f32.gmra.mxu0 %v4650
    %v4923 = vpop.f32.mrf.mxu0
    %v4924 = vadd.f32 %v4892, %v4923
    %4925 = vmatmul.f32.gmra.mxu0 %v4653
    %v4926 = vpop.f32.mrf.mxu0
    %v4927 = vadd.f32 %v4895, %v4926
    %4928 = vmatmul.f32.gmra.mxu0 %v4656
    %v4929 = vpop.f32.mrf.mxu0
    %v4930 = vadd.f32 %v4898, %v4929
    %4931 = vdwg.mxu0
    %v4932 = vrcp.pop %v4930
    %v4933 = vperm.slane %v4932, 0
    %v4934 = vmul.f32 %v4918, %v4933
    %v4935 = vmul.f32 %v4921, %v4933
    %v4936 = vmul.f32 %v4924, %v4933
    %v4937 = vmul.f32 %v4927, %v4933
    %v4938 = vld [vmem:[#allocation2] sm:$0xff]
    %v4939 = vld [vmem:[#allocation2 + $0x10] sm:$0xff]
    %v4940 = vld [vmem:[#allocation2 + $0x20] sm:$0xff]
    %v4941 = vld [vmem:[#allocation2 + $0x30] sm:$0xff]
    %v4942 = vadd.f32 %v4934, %v4938
    %v4943 = vadd.f32 %v4935, %v4939
    %v4944 = vadd.f32 %v4936, %v4940
    %v4945 = vadd.f32 %v4937, %v4941
    %4946 = vst.msk [vmem:[#allocation2] sm:$0xff] %vm588, %v4942
    %4947 = vst.msk [vmem:[#allocation2 + $0x10] sm:$0xff] %vm588, %v4943
    %4948 = vst.msk [vmem:[#allocation2 + $0x20] sm:$0xff] %vm588, %v4944
    %4949 = vst.msk [vmem:[#allocation2 + $0x30] sm:$0xff] %vm588, %v4945
    %4951 = vrot.lane.b32.xlu0 %v4600, 64
    %v4952 = vpop.permute.xlu0 %4951
    %4954 = vxpose.xlu0.b32.start [1/16] %v4952, 128
    %4955 = vxpose.xlu0.b32.cont [2/16] 0.0, 128
    %4956 = vxpose.xlu0.b32.cont [3/16] 0.0, 128
    %4957 = vxpose.xlu0.b32.cont [4/16] 0.0, 128
    %4958 = vxpose.xlu0.b32.cont [5/16] 0.0, 128
    %4959 = vxpose.xlu0.b32.cont [6/16] 0.0, 128
    %4960 = vxpose.xlu0.b32.cont [7/16] 0.0, 128
    %4961 = vxpose.xlu0.b32.cont [8/16] 0.0, 128
    %4962 = vxpose.xlu0.b32.cont [9/16] 0.0, 128
    %4963 = vxpose.xlu0.b32.cont [10/16] 0.0, 128
    %4964 = vxpose.xlu0.b32.cont [11/16] 0.0, 128
    %4965 = vxpose.xlu0.b32.cont [12/16] 0.0, 128
    %4966 = vxpose.xlu0.b32.cont [13/16] 0.0, 128
    %4967 = vxpose.xlu0.b32.cont [14/16] 0.0, 128
    %4968 = vxpose.xlu0.b32.cont [15/16] 0.0, 128
    %4969 = vxpose.xlu0.b32.end [16/16] 0.0, 128
    %v4970 = vpop.trf.xlu0
    %v4971 = vpop.trf.xlu0
    %v4972 = vpop.trf.xlu0
    %v4973 = vpop.trf.xlu0
    %v4974 = vpop.trf.xlu0
    %v4975 = vpop.trf.xlu0
    %v4976 = vpop.trf.xlu0
    %v4977 = vpop.trf.xlu0
    %v4978 = vpop.trf.xlu0
    %v4979 = vpop.trf.xlu0
    %v4980 = vpop.trf.xlu0
    %v4981 = vpop.trf.xlu0
    %v4982 = vpop.trf.xlu0
    %v4983 = vpop.trf.xlu0
    %v4984 = vpop.trf.xlu0
    %v4985 = vpop.trf.xlu0
    %v4987 = vsel %vm331, %v4970, 0
    %v4990 = vsel %vm331, %v4971, 0
    %v4993 = vsel %vm331, %v4972, 0
    %v4996 = vsel %vm331, %v4973, 0
    %v4999 = vsel %vm331, %v4974, 0
    %v5002 = vsel %vm331, %v4975, 0
    %v5005 = vsel %vm331, %v4976, 0
    %v5008 = vsel %vm331, %v4977, 0
    %5010 = vmatpush.msra.mxu0 0.0
    %5011 = vmatpush.msra.mxu0 0.0
    %5012 = vmatpush.msra.mxu0 0.0
    %5013 = vmatpush.msra.mxu0 0.0
    %5014 = vmatpush.msra.mxu0 0.0
    %5015 = vmatpush.msra.mxu0 0.0
    %5016 = vmatpush.msra.mxu0 0.0
    %5017 = vmatpush.msra.mxu0 0.0
    %5018 = vmatpush.msra.mxu0 0.0
    %5019 = vmatpush.msra.mxu0 0.0
    %5020 = vmatpush.msra.mxu0 0.0
    %5021 = vmatpush.msra.mxu0 0.0
    %5022 = vmatpush.msra.mxu0 0.0
    %5023 = vmatpush.msra.mxu0 0.0
    %5024 = vmatpush.msra.mxu0 0.0
    %5025 = vmatpush.msra.mxu0 %v4603
    %5026 = vmatmul.f32.gmra.mxu0 %v4987
    %v5027 = vpop.f32.mrf.mxu0
    %v5028 = vadd.f32 0.0, %v5027
    %5029 = vmatmul.f32.gmra.mxu0 %v4990
    %v5030 = vpop.f32.mrf.mxu0
    %v5031 = vadd.f32 0.0, %v5030
    %5032 = vmatmul.f32.gmra.mxu0 %v4993
    %v5033 = vpop.f32.mrf.mxu0
    %v5034 = vadd.f32 0.0, %v5033
    %5035 = vmatmul.f32.gmra.mxu0 %v4996
    %v5036 = vpop.f32.mrf.mxu0
    %v5037 = vadd.f32 0.0, %v5036
    %5038 = vmatmul.f32.gmra.mxu0 %v4999
    %v5039 = vpop.f32.mrf.mxu0
    %v5040 = vadd.f32 0.0, %v5039
    %5041 = vmatmul.f32.gmra.mxu0 %v5002
    %v5042 = vpop.f32.mrf.mxu0
    %v5043 = vadd.f32 0.0, %v5042
    %5044 = vmatmul.f32.gmra.mxu0 %v5005
    %v5045 = vpop.f32.mrf.mxu0
    %v5046 = vadd.f32 0.0, %v5045
    %5047 = vmatmul.f32.gmra.mxu0 %v5008
    %v5048 = vpop.f32.mrf.mxu0
    %v5049 = vadd.f32 0.0, %v5048
    %5050 = vdwg.mxu0
    %5051 = vmatpush.msra.mxu0 0.0
    %5052 = vmatpush.msra.mxu0 0.0
    %5053 = vmatpush.msra.mxu0 0.0
    %5054 = vmatpush.msra.mxu0 0.0
    %5055 = vmatpush.msra.mxu0 0.0
    %5056 = vmatpush.msra.mxu0 0.0
    %5057 = vmatpush.msra.mxu0 0.0
    %5058 = vmatpush.msra.mxu0 0.0
    %5059 = vmatpush.msra.mxu0 0.0
    %5060 = vmatpush.msra.mxu0 0.0
    %5061 = vmatpush.msra.mxu0 0.0
    %5062 = vmatpush.msra.mxu0 0.0
    %5063 = vmatpush.msra.mxu0 0.0
    %5064 = vmatpush.msra.mxu0 0.0
    %5065 = vmatpush.msra.mxu0 0.0
    %5066 = vmatpush.msra.mxu0 %v4641
    %5067 = vmatmul.f32.gmra.mxu0 %v4987
    %v5068 = vpop.f32.mrf.mxu0
    %v5069 = vadd.f32 0.0, %v5068
    %5070 = vmatmul.f32.gmra.mxu0 %v4990
    %v5071 = vpop.f32.mrf.mxu0
    %v5072 = vadd.f32 0.0, %v5071
    %5073 = vmatmul.f32.gmra.mxu0 %v4993
    %v5074 = vpop.f32.mrf.mxu0
    %v5075 = vadd.f32 0.0, %v5074
    %5076 = vmatmul.f32.gmra.mxu0 %v4996
    %v5077 = vpop.f32.mrf.mxu0
    %v5078 = vadd.f32 0.0, %v5077
    %5079 = vmatmul.f32.gmra.mxu0 %v4999
    %v5080 = vpop.f32.mrf.mxu0
    %v5081 = vadd.f32 0.0, %v5080
    %5082 = vmatmul.f32.gmra.mxu0 %v5002
    %v5083 = vpop.f32.mrf.mxu0
    %v5084 = vadd.f32 0.0, %v5083
    %5085 = vmatmul.f32.gmra.mxu0 %v5005
    %v5086 = vpop.f32.mrf.mxu0
    %v5087 = vadd.f32 0.0, %v5086
    %5088 = vmatmul.f32.gmra.mxu0 %v5008
    %v5089 = vpop.f32.mrf.mxu0
    %v5090 = vadd.f32 0.0, %v5089
    %5091 = vdwg.mxu0
    %v5092 = vmax.f32 %v5028, %v5069
    %5093 = vmax.xlane.f32.xlu0 %v5092
    %v5094 = vpop.xlane.xlu0 %5093
    %v5095 = vmax.f32 %v5031, %v5072
    %5096 = vmax.xlane.f32.xlu0 %v5095
    %v5097 = vpop.xlane.xlu0 %5096
    %v5098 = vmax.f32 %v5034, %v5075
    %5099 = vmax.xlane.f32.xlu0 %v5098
    %v5100 = vpop.xlane.xlu0 %5099
    %v5101 = vmax.f32 %v5037, %v5078
    %5102 = vmax.xlane.f32.xlu0 %v5101
    %v5103 = vpop.xlane.xlu0 %5102
    %v5104 = vmax.f32 %v5040, %v5081
    %5105 = vmax.xlane.f32.xlu0 %v5104
    %v5106 = vpop.xlane.xlu0 %5105
    %v5107 = vmax.f32 %v5043, %v5084
    %5108 = vmax.xlane.f32.xlu0 %v5107
    %v5109 = vpop.xlane.xlu0 %5108
    %v5110 = vmax.f32 %v5046, %v5087
    %5111 = vmax.xlane.f32.xlu0 %v5110
    %v5112 = vpop.xlane.xlu0 %5111
    %v5113 = vmax.f32 %v5049, %v5090
    %5114 = vmax.xlane.f32.xlu0 %v5113
    %v5115 = vpop.xlane.xlu0 %5114
    %v5116 = vsub.f32 %v5028, %v5094
    %v5117 = vsub.f32 %v5069, %v5094
    %v5118 = vsub.f32 %v5031, %v5097
    %v5119 = vsub.f32 %v5072, %v5097
    %v5120 = vsub.f32 %v5034, %v5100
    %v5121 = vsub.f32 %v5075, %v5100
    %v5122 = vsub.f32 %v5037, %v5103
    %v5123 = vsub.f32 %v5078, %v5103
    %v5124 = vsub.f32 %v5040, %v5106
    %v5125 = vsub.f32 %v5081, %v5106
    %v5126 = vsub.f32 %v5043, %v5109
    %v5127 = vsub.f32 %v5084, %v5109
    %v5128 = vsub.f32 %v5046, %v5112
    %v5129 = vsub.f32 %v5087, %v5112
    %v5130 = vsub.f32 %v5049, %v5115
    %v5131 = vsub.f32 %v5090, %v5115
    %v5132 = vmul.f32 %v5116, 1.442695
    %v5133 = vpow.pop %v5132
    %v5134 = vmul.f32 %v5117, 1.442695
    %v5135 = vpow.pop %v5134
    %v5136 = vmul.f32 %v5118, 1.442695
    %v5137 = vpow.pop %v5136
    %v5138 = vmul.f32 %v5119, 1.442695
    %v5139 = vpow.pop %v5138
    %v5140 = vmul.f32 %v5120, 1.442695
    %v5141 = vpow.pop %v5140
    %v5142 = vmul.f32 %v5121, 1.442695
    %v5143 = vpow.pop %v5142
    %v5144 = vmul.f32 %v5122, 1.442695
    %v5145 = vpow.pop %v5144
    %v5146 = vmul.f32 %v5123, 1.442695
    %v5147 = vpow.pop %v5146
    %v5148 = vmul.f32 %v5124, 1.442695
    %v5149 = vpow.pop %v5148
    %v5150 = vmul.f32 %v5125, 1.442695
    %v5151 = vpow.pop %v5150
    %v5152 = vmul.f32 %v5126, 1.442695
    %v5153 = vpow.pop %v5152
    %v5154 = vmul.f32 %v5127, 1.442695
    %v5155 = vpow.pop %v5154
    %v5156 = vmul.f32 %v5128, 1.442695
    %v5157 = vpow.pop %v5156
    %v5158 = vmul.f32 %v5129, 1.442695
    %v5159 = vpow.pop %v5158
    %v5160 = vmul.f32 %v5130, 1.442695
    %v5161 = vpow.pop %v5160
    %v5162 = vmul.f32 %v5131, 1.442695
    %v5163 = vpow.pop %v5162
    %5164 = vmatpush.xpose.msra.mxu0 0.0
    %5165 = vmatpush.xpose.msra.mxu0 0.0
    %5166 = vmatpush.xpose.msra.mxu0 0.0
    %5167 = vmatpush.xpose.msra.mxu0 0.0
    %5168 = vmatpush.xpose.msra.mxu0 0.0
    %5169 = vmatpush.xpose.msra.mxu0 0.0
    %5170 = vmatpush.xpose.msra.mxu0 0.0
    %5171 = vmatpush.xpose.msra.mxu0 0.0
    %5172 = vmatpush.xpose.msra.mxu0 %v5161
    %5173 = vmatpush.xpose.msra.mxu0 %v5157
    %5174 = vmatpush.xpose.msra.mxu0 %v5153
    %5175 = vmatpush.xpose.msra.mxu0 %v5149
    %5176 = vmatpush.xpose.msra.mxu0 %v5145
    %5177 = vmatpush.xpose.msra.mxu0 %v5141
    %5178 = vmatpush.xpose.msra.mxu0 %v5137
    %5179 = vmatpush.xpose.msra.mxu0 %v5133
    %5180 = vmatmul.f32.gmra.mxu0 %v4606
    %v5181 = vpop.f32.mrf.mxu0
    %v5182 = vadd.f32 0.0, %v5181
    %5183 = vmatmul.f32.gmra.mxu0 %v4609
    %v5184 = vpop.f32.mrf.mxu0
    %v5185 = vadd.f32 0.0, %v5184
    %5186 = vmatmul.f32.gmra.mxu0 %v4612
    %v5187 = vpop.f32.mrf.mxu0
    %v5188 = vadd.f32 0.0, %v5187
    %5189 = vmatmul.f32.gmra.mxu0 %v4615
    %v5190 = vpop.f32.mrf.mxu0
    %v5191 = vadd.f32 0.0, %v5190
    %5192 = vmatmul.f32.gmra.mxu0 %v4618
    %v5193 = vpop.f32.mrf.mxu0
    %v5194 = vadd.f32 0.0, %v5193
    %5195 = vdwg.mxu0
    %5196 = vmatpush.xpose.msra.mxu0 0.0
    %5197 = vmatpush.xpose.msra.mxu0 0.0
    %5198 = vmatpush.xpose.msra.mxu0 0.0
    %5199 = vmatpush.xpose.msra.mxu0 0.0
    %5200 = vmatpush.xpose.msra.mxu0 0.0
    %5201 = vmatpush.xpose.msra.mxu0 0.0
    %5202 = vmatpush.xpose.msra.mxu0 0.0
    %5203 = vmatpush.xpose.msra.mxu0 0.0
    %5204 = vmatpush.xpose.msra.mxu0 %v5163
    %5205 = vmatpush.xpose.msra.mxu0 %v5159
    %5206 = vmatpush.xpose.msra.mxu0 %v5155
    %5207 = vmatpush.xpose.msra.mxu0 %v5151
    %5208 = vmatpush.xpose.msra.mxu0 %v5147
    %5209 = vmatpush.xpose.msra.mxu0 %v5143
    %5210 = vmatpush.xpose.msra.mxu0 %v5139
    %5211 = vmatpush.xpose.msra.mxu0 %v5135
    %5212 = vmatmul.f32.gmra.mxu0 %v4644
    %v5213 = vpop.f32.mrf.mxu0
    %v5214 = vadd.f32 %v5182, %v5213
    %5215 = vmatmul.f32.gmra.mxu0 %v4647
    %v5216 = vpop.f32.mrf.mxu0
    %v5217 = vadd.f32 %v5185, %v5216
    %5218 = vmatmul.f32.gmra.mxu0 %v4650
    %v5219 = vpop.f32.mrf.mxu0
    %v5220 = vadd.f32 %v5188, %v5219
    %5221 = vmatmul.f32.gmra.mxu0 %v4653
    %v5222 = vpop.f32.mrf.mxu0
    %v5223 = vadd.f32 %v5191, %v5222
    %5224 = vmatmul.f32.gmra.mxu0 %v4656
    %v5225 = vpop.f32.mrf.mxu0
    %v5226 = vadd.f32 %v5194, %v5225
    %5227 = vdwg.mxu0
    %v5228 = vrcp.pop %v5226
    %v5229 = vperm.slane %v5228, 0
    %v5230 = vmul.f32 %v5214, %v5229
    %v5231 = vmul.f32 %v5217, %v5229
    %v5232 = vmul.f32 %v5220, %v5229
    %v5233 = vmul.f32 %v5223, %v5229
    %v5234 = vld [vmem:[#allocation2] sm:$0xff]
    %v5235 = vld [vmem:[#allocation2 + $0x10] sm:$0xff]
    %v5236 = vld [vmem:[#allocation2 + $0x20] sm:$0xff]
    %v5237 = vld [vmem:[#allocation2 + $0x30] sm:$0xff]
    %5242 = vrot.lane.b32.xlu0 %v5234, 64
    %v5243 = vpop.permute.xlu0 %5242
    %5244 = vrot.lane.b32.xlu0 %v5235, 64
    %v5245 = vpop.permute.xlu0 %5244
    %5246 = vrot.lane.b32.xlu0 %v5236, 64
    %v5247 = vpop.permute.xlu0 %5246
    %5248 = vrot.lane.b32.xlu0 %v5237, 64
    %v5249 = vpop.permute.xlu0 %5248
    %v5254 = vadd.f32 %v5230, %v5243
    %v5255 = vadd.f32 %v5231, %v5245
    %v5256 = vadd.f32 %v5232, %v5247
    %v5257 = vadd.f32 %v5233, %v5249
    %5262 = vrot.lane.b32.xlu0 %v5254, 64
    %v5263 = vpop.permute.xlu0 %5262
    %5264 = vrot.lane.b32.xlu0 %v5255, 64
    %v5265 = vpop.permute.xlu0 %5264
    %5266 = vrot.lane.b32.xlu0 %v5256, 64
    %v5267 = vpop.permute.xlu0 %5266
    %5268 = vrot.lane.b32.xlu0 %v5257, 64
    %v5269 = vpop.permute.xlu0 %5268
    %5274 = vst.msk [vmem:[#allocation2] sm:$0xff] %vm917, %v5263
    %5275 = vst.msk [vmem:[#allocation2 + $0x10] sm:$0xff] %vm917, %v5265
    %5276 = vst.msk [vmem:[#allocation2 + $0x20] sm:$0xff] %vm917, %v5267
    %5277 = vst.msk [vmem:[#allocation2 + $0x30] sm:$0xff] %vm917, %v5269
    %5278 = vxpose.xlu0.b32.start [1/16] %v4638, 128
    %5279 = vxpose.xlu0.b32.cont [2/16] 0.0, 128
    %5280 = vxpose.xlu0.b32.cont [3/16] 0.0, 128
    %5281 = vxpose.xlu0.b32.cont [4/16] 0.0, 128
    %5282 = vxpose.xlu0.b32.cont [5/16] 0.0, 128
    %5283 = vxpose.xlu0.b32.cont [6/16] 0.0, 128
    %5284 = vxpose.xlu0.b32.cont [7/16] 0.0, 128
    %5285 = vxpose.xlu0.b32.cont [8/16] 0.0, 128
    %5286 = vxpose.xlu0.b32.cont [9/16] 0.0, 128
    %5287 = vxpose.xlu0.b32.cont [10/16] 0.0, 128
    %5288 = vxpose.xlu0.b32.cont [11/16] 0.0, 128
    %5289 = vxpose.xlu0.b32.cont [12/16] 0.0, 128
    %5290 = vxpose.xlu0.b32.cont [13/16] 0.0, 128
    %5291 = vxpose.xlu0.b32.cont [14/16] 0.0, 128
    %5292 = vxpose.xlu0.b32.cont [15/16] 0.0, 128
    %5293 = vxpose.xlu0.b32.end [16/16] 0.0, 128
    %v5294 = vpop.trf.xlu0
    %v5295 = vpop.trf.xlu0
    %v5296 = vpop.trf.xlu0
    %v5297 = vpop.trf.xlu0
    %v5298 = vpop.trf.xlu0
    %v5299 = vpop.trf.xlu0
    %v5300 = vpop.trf.xlu0
    %v5301 = vpop.trf.xlu0
    %v5302 = vpop.trf.xlu0
    %v5303 = vpop.trf.xlu0
    %v5304 = vpop.trf.xlu0
    %v5305 = vpop.trf.xlu0
    %v5306 = vpop.trf.xlu0
    %v5307 = vpop.trf.xlu0
    %v5308 = vpop.trf.xlu0
    %v5309 = vpop.trf.xlu0
    %v5311 = vsel %vm331, %v5294, 0
    %v5314 = vsel %vm331, %v5295, 0
    %v5317 = vsel %vm331, %v5296, 0
    %v5320 = vsel %vm331, %v5297, 0
    %v5323 = vsel %vm331, %v5298, 0
    %v5326 = vsel %vm331, %v5299, 0
    %v5329 = vsel %vm331, %v5300, 0
    %v5332 = vsel %vm331, %v5301, 0
    %5334 = vmatpush.msra.mxu0 0.0
    %5335 = vmatpush.msra.mxu0 0.0
    %5336 = vmatpush.msra.mxu0 0.0
    %5337 = vmatpush.msra.mxu0 0.0
    %5338 = vmatpush.msra.mxu0 0.0
    %5339 = vmatpush.msra.mxu0 0.0
    %5340 = vmatpush.msra.mxu0 0.0
    %5341 = vmatpush.msra.mxu0 0.0
    %5342 = vmatpush.msra.mxu0 0.0
    %5343 = vmatpush.msra.mxu0 0.0
    %5344 = vmatpush.msra.mxu0 0.0
    %5345 = vmatpush.msra.mxu0 0.0
    %5346 = vmatpush.msra.mxu0 0.0
    %5347 = vmatpush.msra.mxu0 0.0
    %5348 = vmatpush.msra.mxu0 0.0
    %5349 = vmatpush.msra.mxu0 %v4603
    %5350 = vmatmul.f32.gmra.mxu0 %v5311
    %v5351 = vpop.f32.mrf.mxu0
    %v5352 = vadd.f32 0.0, %v5351
    %5353 = vmatmul.f32.gmra.mxu0 %v5314
    %v5354 = vpop.f32.mrf.mxu0
    %v5355 = vadd.f32 0.0, %v5354
    %5356 = vmatmul.f32.gmra.mxu0 %v5317
    %v5357 = vpop.f32.mrf.mxu0
    %v5358 = vadd.f32 0.0, %v5357
    %5359 = vmatmul.f32.gmra.mxu0 %v5320
    %v5360 = vpop.f32.mrf.mxu0
    %v5361 = vadd.f32 0.0, %v5360
    %5362 = vmatmul.f32.gmra.mxu0 %v5323
    %v5363 = vpop.f32.mrf.mxu0
    %v5364 = vadd.f32 0.0, %v5363
    %5365 = vmatmul.f32.gmra.mxu0 %v5326
    %v5366 = vpop.f32.mrf.mxu0
    %v5367 = vadd.f32 0.0, %v5366
    %5368 = vmatmul.f32.gmra.mxu0 %v5329
    %v5369 = vpop.f32.mrf.mxu0
    %v5370 = vadd.f32 0.0, %v5369
    %5371 = vmatmul.f32.gmra.mxu0 %v5332
    %v5372 = vpop.f32.mrf.mxu0
    %v5373 = vadd.f32 0.0, %v5372
    %5374 = vdwg.mxu0
    %5375 = vmatpush.msra.mxu0 0.0
    %5376 = vmatpush.msra.mxu0 0.0
    %5377 = vmatpush.msra.mxu0 0.0
    %5378 = vmatpush.msra.mxu0 0.0
    %5379 = vmatpush.msra.mxu0 0.0
    %5380 = vmatpush.msra.mxu0 0.0
    %5381 = vmatpush.msra.mxu0 0.0
    %5382 = vmatpush.msra.mxu0 0.0
    %5383 = vmatpush.msra.mxu0 0.0
    %5384 = vmatpush.msra.mxu0 0.0
    %5385 = vmatpush.msra.mxu0 0.0
    %5386 = vmatpush.msra.mxu0 0.0
    %5387 = vmatpush.msra.mxu0 0.0
    %5388 = vmatpush.msra.mxu0 0.0
    %5389 = vmatpush.msra.mxu0 0.0
    %5390 = vmatpush.msra.mxu0 %v4641
    %5391 = vmatmul.f32.gmra.mxu0 %v5311
    %v5392 = vpop.f32.mrf.mxu0
    %v5393 = vadd.f32 0.0, %v5392
    %5394 = vmatmul.f32.gmra.mxu0 %v5314
    %v5395 = vpop.f32.mrf.mxu0
    %v5396 = vadd.f32 0.0, %v5395
    %5397 = vmatmul.f32.gmra.mxu0 %v5317
    %v5398 = vpop.f32.mrf.mxu0
    %v5399 = vadd.f32 0.0, %v5398
    %5400 = vmatmul.f32.gmra.mxu0 %v5320
    %v5401 = vpop.f32.mrf.mxu0
    %v5402 = vadd.f32 0.0, %v5401
    %5403 = vmatmul.f32.gmra.mxu0 %v5323
    %v5404 = vpop.f32.mrf.mxu0
    %v5405 = vadd.f32 0.0, %v5404
    %5406 = vmatmul.f32.gmra.mxu0 %v5326
    %v5407 = vpop.f32.mrf.mxu0
    %v5408 = vadd.f32 0.0, %v5407
    %5409 = vmatmul.f32.gmra.mxu0 %v5329
    %v5410 = vpop.f32.mrf.mxu0
    %v5411 = vadd.f32 0.0, %v5410
    %5412 = vmatmul.f32.gmra.mxu0 %v5332
    %v5413 = vpop.f32.mrf.mxu0
    %v5414 = vadd.f32 0.0, %v5413
    %5415 = vdwg.mxu0
    %v5416 = vmax.f32 %v5352, %v5393
    %5417 = vmax.xlane.f32.xlu0 %v5416
    %v5418 = vpop.xlane.xlu0 %5417
    %v5419 = vmax.f32 %v5355, %v5396
    %5420 = vmax.xlane.f32.xlu0 %v5419
    %v5421 = vpop.xlane.xlu0 %5420
    %v5422 = vmax.f32 %v5358, %v5399
    %5423 = vmax.xlane.f32.xlu0 %v5422
    %v5424 = vpop.xlane.xlu0 %5423
    %v5425 = vmax.f32 %v5361, %v5402
    %5426 = vmax.xlane.f32.xlu0 %v5425
    %v5427 = vpop.xlane.xlu0 %5426
    %v5428 = vmax.f32 %v5364, %v5405
    %5429 = vmax.xlane.f32.xlu0 %v5428
    %v5430 = vpop.xlane.xlu0 %5429
    %v5431 = vmax.f32 %v5367, %v5408
    %5432 = vmax.xlane.f32.xlu0 %v5431
    %v5433 = vpop.xlane.xlu0 %5432
    %v5434 = vmax.f32 %v5370, %v5411
    %5435 = vmax.xlane.f32.xlu0 %v5434
    %v5436 = vpop.xlane.xlu0 %5435
    %v5437 = vmax.f32 %v5373, %v5414
    %5438 = vmax.xlane.f32.xlu0 %v5437
    %v5439 = vpop.xlane.xlu0 %5438
    %v5440 = vsub.f32 %v5352, %v5418
    %v5441 = vsub.f32 %v5393, %v5418
    %v5442 = vsub.f32 %v5355, %v5421
    %v5443 = vsub.f32 %v5396, %v5421
    %v5444 = vsub.f32 %v5358, %v5424
    %v5445 = vsub.f32 %v5399, %v5424
    %v5446 = vsub.f32 %v5361, %v5427
    %v5447 = vsub.f32 %v5402, %v5427
    %v5448 = vsub.f32 %v5364, %v5430
    %v5449 = vsub.f32 %v5405, %v5430
    %v5450 = vsub.f32 %v5367, %v5433
    %v5451 = vsub.f32 %v5408, %v5433
    %v5452 = vsub.f32 %v5370, %v5436
    %v5453 = vsub.f32 %v5411, %v5436
    %v5454 = vsub.f32 %v5373, %v5439
    %v5455 = vsub.f32 %v5414, %v5439
    %v5456 = vmul.f32 %v5440, 1.442695
    %v5457 = vpow.pop %v5456
    %v5458 = vmul.f32 %v5441, 1.442695
    %v5459 = vpow.pop %v5458
    %v5460 = vmul.f32 %v5442, 1.442695
    %v5461 = vpow.pop %v5460
    %v5462 = vmul.f32 %v5443, 1.442695
    %v5463 = vpow.pop %v5462
    %v5464 = vmul.f32 %v5444, 1.442695
    %v5465 = vpow.pop %v5464
    %v5466 = vmul.f32 %v5445, 1.442695
    %v5467 = vpow.pop %v5466
    %v5468 = vmul.f32 %v5446, 1.442695
    %v5469 = vpow.pop %v5468
    %v5470 = vmul.f32 %v5447, 1.442695
    %v5471 = vpow.pop %v5470
    %v5472 = vmul.f32 %v5448, 1.442695
    %v5473 = vpow.pop %v5472
    %v5474 = vmul.f32 %v5449, 1.442695
    %v5475 = vpow.pop %v5474
    %v5476 = vmul.f32 %v5450, 1.442695
    %v5477 = vpow.pop %v5476
    %v5478 = vmul.f32 %v5451, 1.442695
    %v5479 = vpow.pop %v5478
    %v5480 = vmul.f32 %v5452, 1.442695
    %v5481 = vpow.pop %v5480
    %v5482 = vmul.f32 %v5453, 1.442695
    %v5483 = vpow.pop %v5482
    %v5484 = vmul.f32 %v5454, 1.442695
    %v5485 = vpow.pop %v5484
    %v5486 = vmul.f32 %v5455, 1.442695
    %v5487 = vpow.pop %v5486
    %5488 = vmatpush.xpose.msra.mxu0 0.0
    %5489 = vmatpush.xpose.msra.mxu0 0.0
    %5490 = vmatpush.xpose.msra.mxu0 0.0
    %5491 = vmatpush.xpose.msra.mxu0 0.0
    %5492 = vmatpush.xpose.msra.mxu0 0.0
    %5493 = vmatpush.xpose.msra.mxu0 0.0
    %5494 = vmatpush.xpose.msra.mxu0 0.0
    %5495 = vmatpush.xpose.msra.mxu0 0.0
    %5496 = vmatpush.xpose.msra.mxu0 %v5485
    %5497 = vmatpush.xpose.msra.mxu0 %v5481
    %5498 = vmatpush.xpose.msra.mxu0 %v5477
    %5499 = vmatpush.xpose.msra.mxu0 %v5473
    %5500 = vmatpush.xpose.msra.mxu0 %v5469
    %5501 = vmatpush.xpose.msra.mxu0 %v5465
    %5502 = vmatpush.xpose.msra.mxu0 %v5461
    %5503 = vmatpush.xpose.msra.mxu0 %v5457
    %5504 = vmatmul.f32.gmra.mxu0 %v4606
    %v5505 = vpop.f32.mrf.mxu0
    %v5506 = vadd.f32 0.0, %v5505
    %5507 = vmatmul.f32.gmra.mxu0 %v4609
    %v5508 = vpop.f32.mrf.mxu0
    %v5509 = vadd.f32 0.0, %v5508
    %5510 = vmatmul.f32.gmra.mxu0 %v4612
    %v5511 = vpop.f32.mrf.mxu0
    %v5512 = vadd.f32 0.0, %v5511
    %5513 = vmatmul.f32.gmra.mxu0 %v4615
    %v5514 = vpop.f32.mrf.mxu0
    %v5515 = vadd.f32 0.0, %v5514
    %5516 = vmatmul.f32.gmra.mxu0 %v4618
    %v5517 = vpop.f32.mrf.mxu0
    %v5518 = vadd.f32 0.0, %v5517
    %5519 = vdwg.mxu0
    %5520 = vmatpush.xpose.msra.mxu0 0.0
    %5521 = vmatpush.xpose.msra.mxu0 0.0
    %5522 = vmatpush.xpose.msra.mxu0 0.0
    %5523 = vmatpush.xpose.msra.mxu0 0.0
    %5524 = vmatpush.xpose.msra.mxu0 0.0
    %5525 = vmatpush.xpose.msra.mxu0 0.0
    %5526 = vmatpush.xpose.msra.mxu0 0.0
    %5527 = vmatpush.xpose.msra.mxu0 0.0
    %5528 = vmatpush.xpose.msra.mxu0 %v5487
    %5529 = vmatpush.xpose.msra.mxu0 %v5483
    %5530 = vmatpush.xpose.msra.mxu0 %v5479
    %5531 = vmatpush.xpose.msra.mxu0 %v5475
    %5532 = vmatpush.xpose.msra.mxu0 %v5471
    %5533 = vmatpush.xpose.msra.mxu0 %v5467
    %5534 = vmatpush.xpose.msra.mxu0 %v5463
    %5535 = vmatpush.xpose.msra.mxu0 %v5459
    %5536 = vmatmul.f32.gmra.mxu0 %v4644
    %v5537 = vpop.f32.mrf.mxu0
    %v5538 = vadd.f32 %v5506, %v5537
    %5539 = vmatmul.f32.gmra.mxu0 %v4647
    %v5540 = vpop.f32.mrf.mxu0
    %v5541 = vadd.f32 %v5509, %v5540
    %5542 = vmatmul.f32.gmra.mxu0 %v4650
    %v5543 = vpop.f32.mrf.mxu0
    %v5544 = vadd.f32 %v5512, %v5543
    %5545 = vmatmul.f32.gmra.mxu0 %v4653
    %v5546 = vpop.f32.mrf.mxu0
    %v5547 = vadd.f32 %v5515, %v5546
    %5548 = vmatmul.f32.gmra.mxu0 %v4656
    %v5549 = vpop.f32.mrf.mxu0
    %v5550 = vadd.f32 %v5518, %v5549
    %5551 = vdwg.mxu0
    %v5552 = vrcp.pop %v5550
    %v5553 = vperm.slane %v5552, 0
    %v5554 = vmul.f32 %v5538, %v5553
    %v5555 = vmul.f32 %v5541, %v5553
    %v5556 = vmul.f32 %v5544, %v5553
    %v5557 = vmul.f32 %v5547, %v5553
    %v5558 = vld [vmem:[#allocation2 + $0x8] sm:$0xff]
    %v5559 = vld [vmem:[#allocation2 + $0x18] sm:$0xff]
    %v5560 = vld [vmem:[#allocation2 + $0x28] sm:$0xff]
    %v5561 = vld [vmem:[#allocation2 + $0x38] sm:$0xff]
    %v5562 = vadd.f32 %v5554, %v5558
    %v5563 = vadd.f32 %v5555, %v5559
    %v5564 = vadd.f32 %v5556, %v5560
    %v5565 = vadd.f32 %v5557, %v5561
    %5566 = vst.msk [vmem:[#allocation2 + $0x8] sm:$0xff] %vm588, %v5562
    %5567 = vst.msk [vmem:[#allocation2 + $0x18] sm:$0xff] %vm588, %v5563
    %5568 = vst.msk [vmem:[#allocation2 + $0x28] sm:$0xff] %vm588, %v5564
    %5569 = vst.msk [vmem:[#allocation2 + $0x38] sm:$0xff] %vm588, %v5565
    %5571 = vrot.lane.b32.xlu0 %v4638, 64
    %v5572 = vpop.permute.xlu0 %5571
    %5574 = vxpose.xlu0.b32.start [1/16] %v5572, 128
    %5575 = vxpose.xlu0.b32.cont [2/16] 0.0, 128
    %5576 = vxpose.xlu0.b32.cont [3/16] 0.0, 128
    %5577 = vxpose.xlu0.b32.cont [4/16] 0.0, 128
    %5578 = vxpose.xlu0.b32.cont [5/16] 0.0, 128
    %5579 = vxpose.xlu0.b32.cont [6/16] 0.0, 128
    %5580 = vxpose.xlu0.b32.cont [7/16] 0.0, 128
    %5581 = vxpose.xlu0.b32.cont [8/16] 0.0, 128
    %5582 = vxpose.xlu0.b32.cont [9/16] 0.0, 128
    %5583 = vxpose.xlu0.b32.cont [10/16] 0.0, 128
    %5584 = vxpose.xlu0.b32.cont [11/16] 0.0, 128
    %5585 = vxpose.xlu0.b32.cont [12/16] 0.0, 128
    %5586 = vxpose.xlu0.b32.cont [13/16] 0.0, 128
    %5587 = vxpose.xlu0.b32.cont [14/16] 0.0, 128
    %5588 = vxpose.xlu0.b32.cont [15/16] 0.0, 128
    %5589 = vxpose.xlu0.b32.end [16/16] 0.0, 128
    %v5590 = vpop.trf.xlu0
    %v5591 = vpop.trf.xlu0
    %v5592 = vpop.trf.xlu0
    %v5593 = vpop.trf.xlu0
    %v5594 = vpop.trf.xlu0
    %v5595 = vpop.trf.xlu0
    %v5596 = vpop.trf.xlu0
    %v5597 = vpop.trf.xlu0
    %v5598 = vpop.trf.xlu0
    %v5599 = vpop.trf.xlu0
    %v5600 = vpop.trf.xlu0
    %v5601 = vpop.trf.xlu0
    %v5602 = vpop.trf.xlu0
    %v5603 = vpop.trf.xlu0
    %v5604 = vpop.trf.xlu0
    %v5605 = vpop.trf.xlu0
    %v5607 = vsel %vm331, %v5590, 0
    %v5610 = vsel %vm331, %v5591, 0
    %v5613 = vsel %vm331, %v5592, 0
    %v5616 = vsel %vm331, %v5593, 0
    %v5619 = vsel %vm331, %v5594, 0
    %v5622 = vsel %vm331, %v5595, 0
    %v5625 = vsel %vm331, %v5596, 0
    %v5628 = vsel %vm331, %v5597, 0
    %5630 = vmatpush.msra.mxu0 0.0
    %5631 = vmatpush.msra.mxu0 0.0
    %5632 = vmatpush.msra.mxu0 0.0
    %5633 = vmatpush.msra.mxu0 0.0
    %5634 = vmatpush.msra.mxu0 0.0
    %5635 = vmatpush.msra.mxu0 0.0
    %5636 = vmatpush.msra.mxu0 0.0
    %5637 = vmatpush.msra.mxu0 0.0
    %5638 = vmatpush.msra.mxu0 0.0
    %5639 = vmatpush.msra.mxu0 0.0
    %5640 = vmatpush.msra.mxu0 0.0
    %5641 = vmatpush.msra.mxu0 0.0
    %5642 = vmatpush.msra.mxu0 0.0
    %5643 = vmatpush.msra.mxu0 0.0
    %5644 = vmatpush.msra.mxu0 0.0
    %5645 = vmatpush.msra.mxu0 %v4603
    %5646 = vmatmul.f32.gmra.mxu0 %v5607
    %v5647 = vpop.f32.mrf.mxu0
    %v5648 = vadd.f32 0.0, %v5647
    %5649 = vmatmul.f32.gmra.mxu0 %v5610
    %v5650 = vpop.f32.mrf.mxu0
    %v5651 = vadd.f32 0.0, %v5650
    %5652 = vmatmul.f32.gmra.mxu0 %v5613
    %v5653 = vpop.f32.mrf.mxu0
    %v5654 = vadd.f32 0.0, %v5653
    %5655 = vmatmul.f32.gmra.mxu0 %v5616
    %v5656 = vpop.f32.mrf.mxu0
    %v5657 = vadd.f32 0.0, %v5656
    %5658 = vmatmul.f32.gmra.mxu0 %v5619
    %v5659 = vpop.f32.mrf.mxu0
    %v5660 = vadd.f32 0.0, %v5659
    %5661 = vmatmul.f32.gmra.mxu0 %v5622
    %v5662 = vpop.f32.mrf.mxu0
    %v5663 = vadd.f32 0.0, %v5662
    %5664 = vmatmul.f32.gmra.mxu0 %v5625
    %v5665 = vpop.f32.mrf.mxu0
    %v5666 = vadd.f32 0.0, %v5665
    %5667 = vmatmul.f32.gmra.mxu0 %v5628
    %v5668 = vpop.f32.mrf.mxu0
    %v5669 = vadd.f32 0.0, %v5668
    %5670 = vdwg.mxu0
    %5671 = vmatpush.msra.mxu0 0.0
    %5672 = vmatpush.msra.mxu0 0.0
    %5673 = vmatpush.msra.mxu0 0.0
    %5674 = vmatpush.msra.mxu0 0.0
    %5675 = vmatpush.msra.mxu0 0.0
    %5676 = vmatpush.msra.mxu0 0.0
    %5677 = vmatpush.msra.mxu0 0.0
    %5678 = vmatpush.msra.mxu0 0.0
    %5679 = vmatpush.msra.mxu0 0.0
    %5680 = vmatpush.msra.mxu0 0.0
    %5681 = vmatpush.msra.mxu0 0.0
    %5682 = vmatpush.msra.mxu0 0.0
    %5683 = vmatpush.msra.mxu0 0.0
    %5684 = vmatpush.msra.mxu0 0.0
    %5685 = vmatpush.msra.mxu0 0.0
    %5686 = vmatpush.msra.mxu0 %v4641
    %5687 = vmatmul.f32.gmra.mxu0 %v5607
    %v5688 = vpop.f32.mrf.mxu0
    %v5689 = vadd.f32 0.0, %v5688
    %5690 = vmatmul.f32.gmra.mxu0 %v5610
    %v5691 = vpop.f32.mrf.mxu0
    %v5692 = vadd.f32 0.0, %v5691
    %5693 = vmatmul.f32.gmra.mxu0 %v5613
    %v5694 = vpop.f32.mrf.mxu0
    %v5695 = vadd.f32 0.0, %v5694
    %5696 = vmatmul.f32.gmra.mxu0 %v5616
    %v5697 = vpop.f32.mrf.mxu0
    %v5698 = vadd.f32 0.0, %v5697
    %5699 = vmatmul.f32.gmra.mxu0 %v5619
    %v5700 = vpop.f32.mrf.mxu0
    %v5701 = vadd.f32 0.0, %v5700
    %5702 = vmatmul.f32.gmra.mxu0 %v5622
    %v5703 = vpop.f32.mrf.mxu0
    %v5704 = vadd.f32 0.0, %v5703
    %5705 = vmatmul.f32.gmra.mxu0 %v5625
    %v5706 = vpop.f32.mrf.mxu0
    %v5707 = vadd.f32 0.0, %v5706
    %5708 = vmatmul.f32.gmra.mxu0 %v5628
    %v5709 = vpop.f32.mrf.mxu0
    %v5710 = vadd.f32 0.0, %v5709
    %5711 = vdwg.mxu0
    %v5712 = vmax.f32 %v5648, %v5689
    %5713 = vmax.xlane.f32.xlu0 %v5712
    %v5714 = vpop.xlane.xlu0 %5713
    %v5715 = vmax.f32 %v5651, %v5692
    %5716 = vmax.xlane.f32.xlu0 %v5715
    %v5717 = vpop.xlane.xlu0 %5716
    %v5718 = vmax.f32 %v5654, %v5695
    %5719 = vmax.xlane.f32.xlu0 %v5718
    %v5720 = vpop.xlane.xlu0 %5719
    %v5721 = vmax.f32 %v5657, %v5698
    %5722 = vmax.xlane.f32.xlu0 %v5721
    %v5723 = vpop.xlane.xlu0 %5722
    %v5724 = vmax.f32 %v5660, %v5701
    %5725 = vmax.xlane.f32.xlu0 %v5724
    %v5726 = vpop.xlane.xlu0 %5725
    %v5727 = vmax.f32 %v5663, %v5704
    %5728 = vmax.xlane.f32.xlu0 %v5727
    %v5729 = vpop.xlane.xlu0 %5728
    %v5730 = vmax.f32 %v5666, %v5707
    %5731 = vmax.xlane.f32.xlu0 %v5730
    %v5732 = vpop.xlane.xlu0 %5731
    %v5733 = vmax.f32 %v5669, %v5710
    %5734 = vmax.xlane.f32.xlu0 %v5733
    %v5735 = vpop.xlane.xlu0 %5734
    %v5736 = vsub.f32 %v5648, %v5714
    %v5737 = vsub.f32 %v5689, %v5714
    %v5738 = vsub.f32 %v5651, %v5717
    %v5739 = vsub.f32 %v5692, %v5717
    %v5740 = vsub.f32 %v5654, %v5720
    %v5741 = vsub.f32 %v5695, %v5720
    %v5742 = vsub.f32 %v5657, %v5723
    %v5743 = vsub.f32 %v5698, %v5723
    %v5744 = vsub.f32 %v5660, %v5726
    %v5745 = vsub.f32 %v5701, %v5726
    %v5746 = vsub.f32 %v5663, %v5729
    %v5747 = vsub.f32 %v5704, %v5729
    %v5748 = vsub.f32 %v5666, %v5732
    %v5749 = vsub.f32 %v5707, %v5732
    %v5750 = vsub.f32 %v5669, %v5735
    %v5751 = vsub.f32 %v5710, %v5735
    %v5752 = vmul.f32 %v5736, 1.442695
    %v5753 = vpow.pop %v5752
    %v5754 = vmul.f32 %v5737, 1.442695
    %v5755 = vpow.pop %v5754
    %v5756 = vmul.f32 %v5738, 1.442695
    %v5757 = vpow.pop %v5756
    %v5758 = vmul.f32 %v5739, 1.442695
    %v5759 = vpow.pop %v5758
    %v5760 = vmul.f32 %v5740, 1.442695
    %v5761 = vpow.pop %v5760
    %v5762 = vmul.f32 %v5741, 1.442695
    %v5763 = vpow.pop %v5762
    %v5764 = vmul.f32 %v5742, 1.442695
    %v5765 = vpow.pop %v5764
    %v5766 = vmul.f32 %v5743, 1.442695
    %v5767 = vpow.pop %v5766
    %v5768 = vmul.f32 %v5744, 1.442695
    %v5769 = vpow.pop %v5768
    %v5770 = vmul.f32 %v5745, 1.442695
    %v5771 = vpow.pop %v5770
    %v5772 = vmul.f32 %v5746, 1.442695
    %v5773 = vpow.pop %v5772
    %v5774 = vmul.f32 %v5747, 1.442695
    %v5775 = vpow.pop %v5774
    %v5776 = vmul.f32 %v5748, 1.442695
    %v5777 = vpow.pop %v5776
    %v5778 = vmul.f32 %v5749, 1.442695
    %v5779 = vpow.pop %v5778
    %v5780 = vmul.f32 %v5750, 1.442695
    %v5781 = vpow.pop %v5780
    %v5782 = vmul.f32 %v5751, 1.442695
    %v5783 = vpow.pop %v5782
    %5784 = vmatpush.xpose.msra.mxu0 0.0
    %5785 = vmatpush.xpose.msra.mxu0 0.0
    %5786 = vmatpush.xpose.msra.mxu0 0.0
    %5787 = vmatpush.xpose.msra.mxu0 0.0
    %5788 = vmatpush.xpose.msra.mxu0 0.0
    %5789 = vmatpush.xpose.msra.mxu0 0.0
    %5790 = vmatpush.xpose.msra.mxu0 0.0
    %5791 = vmatpush.xpose.msra.mxu0 0.0
    %5792 = vmatpush.xpose.msra.mxu0 %v5781
    %5793 = vmatpush.xpose.msra.mxu0 %v5777
    %5794 = vmatpush.xpose.msra.mxu0 %v5773
    %5795 = vmatpush.xpose.msra.mxu0 %v5769
    %5796 = vmatpush.xpose.msra.mxu0 %v5765
    %5797 = vmatpush.xpose.msra.mxu0 %v5761
    %5798 = vmatpush.xpose.msra.mxu0 %v5757
    %5799 = vmatpush.xpose.msra.mxu0 %v5753
    %5800 = vmatmul.f32.gmra.mxu0 %v4606
    %v5801 = vpop.f32.mrf.mxu0
    %v5802 = vadd.f32 0.0, %v5801
    %5803 = vmatmul.f32.gmra.mxu0 %v4609
    %v5804 = vpop.f32.mrf.mxu0
    %v5805 = vadd.f32 0.0, %v5804
    %5806 = vmatmul.f32.gmra.mxu0 %v4612
    %v5807 = vpop.f32.mrf.mxu0
    %v5808 = vadd.f32 0.0, %v5807
    %5809 = vmatmul.f32.gmra.mxu0 %v4615
    %v5810 = vpop.f32.mrf.mxu0
    %v5811 = vadd.f32 0.0, %v5810
    %5812 = vmatmul.f32.gmra.mxu0 %v4618
    %v5813 = vpop.f32.mrf.mxu0
    %v5814 = vadd.f32 0.0, %v5813
    %5815 = vdwg.mxu0
    %5816 = vmatpush.xpose.msra.mxu0 0.0
    %5817 = vmatpush.xpose.msra.mxu0 0.0
    %5818 = vmatpush.xpose.msra.mxu0 0.0
    %5819 = vmatpush.xpose.msra.mxu0 0.0
    %5820 = vmatpush.xpose.msra.mxu0 0.0
    %5821 = vmatpush.xpose.msra.mxu0 0.0
    %5822 = vmatpush.xpose.msra.mxu0 0.0
    %5823 = vmatpush.xpose.msra.mxu0 0.0
    %5824 = vmatpush.xpose.msra.mxu0 %v5783
    %5825 = vmatpush.xpose.msra.mxu0 %v5779
    %5826 = vmatpush.xpose.msra.mxu0 %v5775
    %5827 = vmatpush.xpose.msra.mxu0 %v5771
    %5828 = vmatpush.xpose.msra.mxu0 %v5767
    %5829 = vmatpush.xpose.msra.mxu0 %v5763
    %5830 = vmatpush.xpose.msra.mxu0 %v5759
    %5831 = vmatpush.xpose.msra.mxu0 %v5755
    %5832 = vmatmul.f32.gmra.mxu0 %v4644
    %v5833 = vpop.f32.mrf.mxu0
    %v5834 = vadd.f32 %v5802, %v5833
    %5835 = vmatmul.f32.gmra.mxu0 %v4647
    %v5836 = vpop.f32.mrf.mxu0
    %v5837 = vadd.f32 %v5805, %v5836
    %5838 = vmatmul.f32.gmra.mxu0 %v4650
    %v5839 = vpop.f32.mrf.mxu0
    %v5840 = vadd.f32 %v5808, %v5839
    %5841 = vmatmul.f32.gmra.mxu0 %v4653
    %v5842 = vpop.f32.mrf.mxu0
    %v5843 = vadd.f32 %v5811, %v5842
    %5844 = vmatmul.f32.gmra.mxu0 %v4656
    %v5845 = vpop.f32.mrf.mxu0
    %v5846 = vadd.f32 %v5814, %v5845
    %5847 = vdwg.mxu0
    %v5848 = vrcp.pop %v5846
    %v5849 = vperm.slane %v5848, 0
    %v5850 = vmul.f32 %v5834, %v5849
    %v5851 = vmul.f32 %v5837, %v5849
    %v5852 = vmul.f32 %v5840, %v5849
    %v5853 = vmul.f32 %v5843, %v5849
    %v5854 = vld [vmem:[#allocation2 + $0x8] sm:$0xff]
    %v5855 = vld [vmem:[#allocation2 + $0x18] sm:$0xff]
    %v5856 = vld [vmem:[#allocation2 + $0x28] sm:$0xff]
    %v5857 = vld [vmem:[#allocation2 + $0x38] sm:$0xff]
    %5862 = vrot.lane.b32.xlu0 %v5854, 64
    %v5863 = vpop.permute.xlu0 %5862
    %5864 = vrot.lane.b32.xlu0 %v5855, 64
    %v5865 = vpop.permute.xlu0 %5864
    %5866 = vrot.lane.b32.xlu0 %v5856, 64
    %v5867 = vpop.permute.xlu0 %5866
    %5868 = vrot.lane.b32.xlu0 %v5857, 64
    %v5869 = vpop.permute.xlu0 %5868
    %v5874 = vadd.f32 %v5850, %v5863
    %v5875 = vadd.f32 %v5851, %v5865
    %v5876 = vadd.f32 %v5852, %v5867
    %v5877 = vadd.f32 %v5853, %v5869
    %5882 = vrot.lane.b32.xlu0 %v5874, 64
    %v5883 = vpop.permute.xlu0 %5882
    %5884 = vrot.lane.b32.xlu0 %v5875, 64
    %v5885 = vpop.permute.xlu0 %5884
    %5886 = vrot.lane.b32.xlu0 %v5876, 64
    %v5887 = vpop.permute.xlu0 %5886
    %5888 = vrot.lane.b32.xlu0 %v5877, 64
    %v5889 = vpop.permute.xlu0 %5888
    %5894 = vst.msk [vmem:[#allocation2 + $0x8] sm:$0xff] %vm917, %v5883
    %5895 = vst.msk [vmem:[#allocation2 + $0x18] sm:$0xff] %vm917, %v5885
    %5896 = vst.msk [vmem:[#allocation2 + $0x28] sm:$0xff] %vm917, %v5887
    %5897 = vst.msk [vmem:[#allocation2 + $0x38] sm:$0xff] %vm917, %v5889
    %v5898 = vld [vmem:[#allocation2] sm:$0xff]
    %v5899 = vld [vmem:[#allocation2 + $0x8] sm:$0xff]
    %v5900 = vld [vmem:[#allocation2 + $0x10] sm:$0xff]
    %v5901 = vld [vmem:[#allocation2 + $0x18] sm:$0xff]
    %v5902 = vld [vmem:[#allocation2 + $0x20] sm:$0xff]
    %v5903 = vld [vmem:[#allocation2 + $0x28] sm:$0xff]
    %v5904 = vld [vmem:[#allocation2 + $0x30] sm:$0xff]
    %v5905 = vld [vmem:[#allocation2 + $0x38] sm:$0xff]
    %v5906 = vadd.f32 %v5898, %v5899
    %5907 = vadd.xlane.f32.xlu0 %v5906
    %v5908 = vpop.xlane.xlu0 %5907
    %v5909 = vadd.f32 %v5900, %v5901
    %5910 = vadd.xlane.f32.xlu0 %v5909
    %v5911 = vpop.xlane.xlu0 %5910
    %v5912 = vadd.f32 %v5902, %v5903
    %5913 = vadd.xlane.f32.xlu0 %v5912
    %v5914 = vpop.xlane.xlu0 %5913
    %v5915 = vadd.f32 %v5904, %v5905
    %5916 = vadd.xlane.f32.xlu0 %v5915
    %v5917 = vpop.xlane.xlu0 %5916
    %v5918 = vmul.f32 %v5908, %v2964
    %v5919 = vmul.f32 %v5911, %v2964
    %v5920 = vmul.f32 %v5914, %v2964
    %v5921 = vmul.f32 %v5917, %v2964
    %v5922 = vld [vmem:[%s5] sm:$0xff]
    %v5923 = vld [vmem:[%s5 + $0x8] sm:$0xff]
    %v5924 = vld [vmem:[%s5 + $0x10] sm:$0xff]
    %v5925 = vld [vmem:[%s5 + $0x18] sm:$0xff]
    %v5926 = vmul.f32 %v5918, %v5922
    %v5927 = vmul.f32 %v5919, %v5923
    %v5928 = vmul.f32 %v5920, %v5924
    %v5929 = vmul.f32 %v5921, %v5925
    %v5930 = vsel %vm60, %v5926, 0.0
    %v5931 = vsel %vm60, %v5927, 0.0
    %v5932 = vadd.f32 %v5930, %v5931
    %v5933 = vsel %vm60, %v5928, 0.0
    %v5934 = vadd.f32 %v5932, %v5933
    %v5935 = vsel %vm60, %v5929, 0.0
    %v5936 = vadd.f32 %v5934, %v5935
    %v5937 = vrot.slane %v5936, 4
    %v5938 = vadd.f32 %v5936, %v5937
    %v5939 = vrot.slane %v5938, 2
    %v5940 = vadd.f32 %v5938, %v5939
    %v5941 = vrot.slane %v5940, 1
    %v5942 = vadd.f32 %v5940, %v5941
    %v5943 = vld [vmem:[%s6] sm:$0x1]
    %v5944 = vadd.f32 %v5942, %v5943
    %s5945 = scalar_lea.vmem [#allocation3], 1
    %5946 = vst.msk [vmem:[%s5945] sm:$0x1] %vm2992, %v5944
    // Predicated region
    $region30: #{forward.1} parent=1 // pred_check
      _
    $region31: #{forward.1} parent=1 // pred_check_branch
      %5948 = sbr.rel (0) target = $region33
    $region32: #{forward.1} parent=1 // pred_region
      %5950 = vsyncadd [#allocation4], 0
      %s5951 = sshll.u32 [#allocation3], 4
      %s5952 = int_to_ptr.vmem [resolvable:$true] %s5951
      %s5953 = sshll.u32 %s7, 4
      %s5954 = int_to_ptr.hbm [resolvable:$true] %s5953
      %5959 = dma.vmem_to_hbm [thread:$0]  %s5952, 32, %s5954, [#allocation4], 16, 16, 1
    $region33: #{forward.1} parent=1 // pred_fallthru
      _
    // Predicated region
    $region34: #{forward.1} parent=1 // pred_check
      _
    $region35: #{forward.1} parent=1 // pred_check_branch
      %5961 = sbr.rel (0) target = $region37
    $region36: #{forward.1} parent=1 // pred_region
      %5963 = dma.done [#allocation4], 32
    $region37: #{forward.1} parent=1 // pred_fallthru
      _
    %5964 = vsyncpa [#allocation4], 1

</llo_original>
